<compile_context>
chip_gen: v5e
topology: v5e:2x2
jax: 0.10.0
libtpu: 0.0.40
codegen_flags: <defaults>
</compile_context>

<pallas_src>
import jax
import jax.numpy as jnp
from jax.experimental import pallas as pl
from jax.experimental.pallas import tpu as pltpu

EPS = 1e-5


def _fused_kernel(x_ref, res_ref, g1_ref, b1_ref, w_ref, g2_ref, b2_ref,
                  out_ref):
    # Layouts (channel-major: C on sublanes, spatial on lanes):
    #   x_ref, res_ref : (tk, M)      f32   current Cin chunk
    #   g1_ref, b1_ref : (Cin, 1)     f32   BN1 params (resident, sliced here)
    #   w_ref          : (co_blk, tk) bf16  conv weight chunk
    #   g2_ref, b2_ref : (co_blk, 1)  f32   BN2 params for this Cout block
    #   out_ref        : (co_blk, M)  f32   resident accumulator + final output
    k = pl.program_id(1)
    nk = pl.num_programs(1)
    tk = x_ref.shape[0]
    inv_m = 1.0 / x_ref.shape[1]                 # static M = N*H*W

    # BN1 params for this Cin chunk, sliced from the resident (Cin,1) block.
    ck = pl.multiple_of(k * tk, tk)
    g1c = g1_ref[pl.ds(ck, tk), :]               # (tk, 1)
    b1c = b1_ref[pl.ds(ck, tk), :]               # (tk, 1)

    xc = x_ref[...]                              # (tk, M)

    # ---- BatchNorm2d #1: per-channel batch stats, mean-centred variance ----
    mean1 = jnp.sum(xc, axis=1, keepdims=True) * inv_m        # (tk, 1)
    xm = xc - mean1
    var1 = jnp.sum(xm * xm, axis=1, keepdims=True) * inv_m    # (tk, 1)
    scale1 = g1c * jax.lax.rsqrt(var1 + EPS)

    # ---- BN1 + residual add + ReLU (all f32 on the VPU) ----
    act = jnp.maximum(xm * scale1 + b1c + res_ref[...], 0.0)  # (tk, M)

    # ---- 1x1 conv chunk on the MXU (bf16 operands, f32 accumulation) ----
    partial = jnp.dot(w_ref[...], act.astype(jnp.bfloat16),
                      preferred_element_type=jnp.float32)     # (co_blk, M)

    @pl.when(k == 0)
    def _():
        out_ref[...] = partial

    @pl.when(k != 0)
    def _():
        out_ref[...] += partial

    # ---- last K chunk: BatchNorm2d #2 applied in place ----
    @pl.when(k == nk - 1)
    def _():
        z = out_ref[...]                                      # (co_blk, M)
        mean2 = jnp.sum(z, axis=1, keepdims=True) * inv_m
        zm = z - mean2
        var2 = jnp.sum(zm * zm, axis=1, keepdims=True) * inv_m
        scale2 = g2_ref[...] * jax.lax.rsqrt(var2 + EPS)
        out_ref[...] = zm * scale2 + b2_ref[...]


def _num_tensorcores():
    """TensorCores addressable by one Pallas launch (megacore / v7x -> 2)."""
    try:
        dev = jax.devices()[0]
        n = getattr(dev, "num_cores", None)
        if isinstance(n, int) and n > 1:
            return n
        kind = str(getattr(dev, "device_kind", "")).lower()
        if any(tag in kind for tag in ("v4", "v5p", "v7")):
            return 2
    except Exception:
        pass
    return 1


def _input_spec(shape, index_map, buffers):
    """BlockSpec with optional deeper pipelining; falls back cleanly."""
    if buffers > 2:
        try:
            return pl.BlockSpec(shape, index_map,
                                pipeline_mode=pl.Buffered(buffers))
        except TypeError:
            pass
    return pl.BlockSpec(shape, index_map)


def prepare_conv_weight(conv_w):
    """Hoist the (Cout, Cin) reshape + bf16 cast out of the per-call path."""
    cout = conv_w.shape[0]
    return jnp.asarray(conv_w).reshape(cout, -1).astype(jnp.bfloat16)


def fused_bn_add_relu_conv_bn(x357, x350, gamma1, beta1, conv_w, gamma2, beta2,
                              *, tk=512, cout_blocks=None):
    """x357, x350: NCHW f32.  conv_w: (Cout, Cin[,1,1]); pre-cast with
    prepare_conv_weight for best performance.  Returns NCHW f32."""
    N, Cin, H, W = x357.shape
    Cout = conv_w.shape[0]
    M = N * H * W

    # Channel-major (C, M) views.  For N == 1 this is a free reshape of NCHW
    # (no HBM copy); for N > 1 a single transpose is required.
    if N == 1:
        x_cm = x357.reshape(Cin, M)
        r_cm = x350.reshape(Cin, M)
    else:
        x_cm = jnp.transpose(x357, (1, 0, 2, 3)).reshape(Cin, M)
        r_cm = jnp.transpose(x350, (1, 0, 2, 3)).reshape(Cin, M)

    # No-ops when prepare_conv_weight was already applied outside jit.
    w_cm = jnp.asarray(conv_w).reshape(Cout, Cin).astype(jnp.bfloat16)
    g1 = gamma1.reshape(Cin, 1).astype(jnp.float32)
    b1 = beta1.reshape(Cin, 1).astype(jnp.float32)
    g2 = gamma2.reshape(Cout, 1).astype(jnp.float32)
    b2 = beta2.reshape(Cout, 1).astype(jnp.float32)

    # K (=Cin) tiling: BN1 stays exact because every input channel lives
    # entirely inside one K chunk.
    tk = min(tk, Cin)
    if Cin % tk != 0:
        tk = Cin
    nk = Cin // tk

    # Cout split (exact: BN2 is per output channel).  Only >1 on chips with
    # multiple TensorCores per device; on a single core it would re-read
    # x357/x350 once per Cout block.
    if cout_blocks is None:
        cout_blocks = _num_tensorcores()
    nco = max(1, int(cout_blocks))
    if Cout % nco != 0 or (Cout // nco) % 8 != 0:
        nco = 1
    co_blk = Cout // nco

    in_buffers = 3 if nk >= 3 else 2

    grid_spec = pltpu.PrefetchScalarGridSpec(
        num_scalar_prefetch=0,
        grid=(nco, nk),
        in_specs=[
            _input_spec((tk, M), lambda co, k: (k, 0), in_buffers),   # x357
            _input_spec((tk, M), lambda co, k: (k, 0), in_buffers),   # x350
            pl.BlockSpec((Cin, 1), lambda co, k: (0, 0)),             # gamma1
            pl.BlockSpec((Cin, 1), lambda co, k: (0, 0)),             # beta1
            pl.BlockSpec((co_blk, tk), lambda co, k: (co, k)),        # weight
            pl.BlockSpec((co_blk, 1), lambda co, k: (co, 0)),         # gamma2
            pl.BlockSpec((co_blk, 1), lambda co, k: (co, 0)),         # beta2
        ],
        out_specs=pl.BlockSpec((co_blk, M), lambda co, k: (co, 0)),
    )

    out_cm = pl.pallas_call(
        _fused_kernel,
        out_shape=jax.ShapeDtypeStruct((Cout, M), jnp.float32),
        grid_spec=grid_spec,
        compiler_params=pltpu.CompilerParams(
            dimension_semantics=("parallel", "arbitrary"),  # Cout ∥, K reduce
            vmem_limit_bytes=32 * 1024 * 1024),
    )(x_cm, r_cm, g1, b1, w_cm, g2, b2)

    if N == 1:
        return out_cm.reshape(1, Cout, H, W)                 # free reshape
    return jnp.transpose(out_cm.reshape(Cout, N, H, W), (1, 0, 2, 3))


def _reference(x357, x350, gamma1, beta1, conv_w, gamma2, beta2):
    # Pure-JAX f32 reference (training-mode batchnorm semantics).
    def bn(x, g, b):
        mean = jnp.mean(x, axis=(0, 2, 3), keepdims=True)
        var = jnp.var(x, axis=(0, 2, 3), keepdims=True)
        return (x - mean) * jax.lax.rsqrt(var + EPS) * g.reshape(1, -1, 1, 1) \
            + b.reshape(1, -1, 1, 1)

    y = jnp.maximum(bn(x357, gamma1, beta1) + x350, 0.0)
    z = jax.lax.conv_general_dilated(y, conv_w, (1, 1), "VALID",
                                     dimension_numbers=("NCHW", "OIHW", "NCHW"))
    return bn(z, gamma2, beta2)


if __name__ == "__main__":
    # Shapes implied by the module: Conv2d(1024 -> 256, 1x1), 14x14 spatial.
    N, Cin, Cout, H, W = 1, 1024, 256, 14, 14

    key = jax.random.PRNGKey(0)
    k1, k2, k3, k4, k5, k6, k7 = jax.random.split(key, 7)

    x357 = jax.random.normal(k1, (N, Cin, H, W), dtype=jnp.float32)
    x350 = jax.random.normal(k2, (N, Cin, H, W), dtype=jnp.float32)

    gamma1 = 1.0 + 0.1 * jax.random.normal(k3, (Cin,), dtype=jnp.float32)
    beta1 = 0.1 * jax.random.normal(k4, (Cin,), dtype=jnp.float32)
    conv_w = jax.random.normal(k5, (Cout, Cin, 1, 1), dtype=jnp.float32) * 0.02
    gamma2 = 1.0 + 0.1 * jax.random.normal(k6, (Cout,), dtype=jnp.float32)
    beta2 = 0.1 * jax.random.normal(k7, (Cout,), dtype=jnp.float32)

    # bf16 weight cast hoisted out of the per-call path (done once).
    w_cm = prepare_conv_weight(conv_w)

    fn = jax.jit(fused_bn_add_relu_conv_bn)
    out = jax.block_until_ready(
        fn(x357, x350, gamma1, beta1, w_cm, gamma2, beta2))

    ref = _reference(x357, x350, gamma1, beta1, conv_w, gamma2, beta2)
    assert out.shape == (N, Cout, H, W)
    # bf16 MXU matmul (f32 accumulation) => slightly wider tolerance than a
    # pure-f32 pipeline; real bugs produce O(1) errors.
    max_err = float(jnp.max(jnp.abs(out - ref)))
    assert jnp.allclose(out, ref, atol=2e-2, rtol=2e-2), max_err

    print("KERNEL_OK")
</pallas_src>

<mosaic_0001>
module attributes {stable_mosaic.version = 11 : i64} {
  func.func @_fused_kernel(%arg0: i32, %arg1: i32, %arg2: memref<512x196xf32, #tpu.memory_space<vmem>>, %arg3: memref<512x196xf32, #tpu.memory_space<vmem>>, %arg4: memref<1024x1xf32, #tpu.memory_space<vmem>>, %arg5: memref<1024x1xf32, #tpu.memory_space<vmem>>, %arg6: memref<256x512xbf16, #tpu.memory_space<vmem>>, %arg7: memref<256x1xf32, #tpu.memory_space<vmem>>, %arg8: memref<256x1xf32, #tpu.memory_space<vmem>>, %arg9: memref<256x196xf32, #tpu.memory_space<vmem>>) attributes {dimension_semantics = [#tpu.dimension_semantics<parallel>, #tpu.dimension_semantics<arbitrary>], iteration_bounds = array<i64: 1, 2>, scalar_prefetch = 0 : i64, scratch_operands = 0 : i64, tpu.core_type = #tpu.core_type<tc>, window_params = [{transform_indices = @transform_0, window_bounds = array<i64: 512, 196>}, {transform_indices = @transform_1, window_bounds = array<i64: 512, 196>}, {pipeline_mode = #tpu.pipeline_mode<synchronous>, transform_indices = @transform_2, window_bounds = array<i64: 1024, 1>}, {pipeline_mode = #tpu.pipeline_mode<synchronous>, transform_indices = @transform_3, window_bounds = array<i64: 1024, 1>}, {transform_indices = @transform_4, window_bounds = array<i64: 256, 512>}, {transform_indices = @transform_5, window_bounds = array<i64: 256, 1>}, {transform_indices = @transform_6, window_bounds = array<i64: 256, 1>}, {transform_indices = @transform_7, window_bounds = array<i64: 256, 196>}]} {
    %c512_i32 = arith.constant 512 : i32
    %0 = arith.muli %arg1, %c512_i32 : i32
    %1 = tpu.assume_multiple %0, 512 : i32
    %2 = arith.index_cast %1 : i32 to index
    %c0 = arith.constant 0 : index
    %3 = vector.load %arg4[%2, %c0] : memref<1024x1xf32, #tpu.memory_space<vmem>>, vector<512x1xf32>
    %4 = arith.index_cast %1 : i32 to index
    %c0_0 = arith.constant 0 : index
    %5 = vector.load %arg5[%4, %c0_0] : memref<1024x1xf32, #tpu.memory_space<vmem>>, vector<512x1xf32>
    %c0_1 = arith.constant 0 : index
    %c0_2 = arith.constant 0 : index
    %6 = vector.load %arg2[%c0_1, %c0_2] : memref<512x196xf32, #tpu.memory_space<vmem>>, vector<512x196xf32>
    %cst = arith.constant dense<0.000000e+00> : vector<512xf32>
    %7 = vector.multi_reduction <add>, %6, %cst [1] : vector<512x196xf32> to vector<512xf32>
    %8 = vector.shape_cast %7 : vector<512xf32> to vector<512x1xf32>
    %cst_3 = arith.constant 0.00510204071 : f32
    %9 = vector.broadcast %cst_3 : f32 to vector<512x1xf32>
    %10 = arith.mulf %8, %9 : vector<512x1xf32>
    %11 = vector.broadcast %10 : vector<512x1xf32> to vector<512x196xf32>
    %12 = arith.subf %6, %11 : vector<512x196xf32>
    %13 = arith.mulf %12, %12 : vector<512x196xf32>
    %cst_4 = arith.constant dense<0.000000e+00> : vector<512xf32>
    %14 = vector.multi_reduction <add>, %13, %cst_4 [1] : vector<512x196xf32> to vector<512xf32>
    %15 = vector.shape_cast %14 : vector<512xf32> to vector<512x1xf32>
    %cst_5 = arith.constant 0.00510204071 : f32
    %16 = vector.broadcast %cst_5 : f32 to vector<512x1xf32>
    %17 = arith.mulf %15, %16 : vector<512x1xf32>
    %cst_6 = arith.constant 9.99999974E-6 : f32
    %18 = vector.broadcast %cst_6 : f32 to vector<512x1xf32>
    %19 = arith.addf %17, %18 : vector<512x1xf32>
    %20 = math.rsqrt %19 : vector<512x1xf32>
    %21 = arith.mulf %3, %20 : vector<512x1xf32>
    %22 = vector.broadcast %21 : vector<512x1xf32> to vector<512x196xf32>
    %23 = arith.mulf %12, %22 : vector<512x196xf32>
    %24 = vector.broadcast %5 : vector<512x1xf32> to vector<512x196xf32>
    %25 = arith.addf %23, %24 : vector<512x196xf32>
    %c0_7 = arith.constant 0 : index
    %c0_8 = arith.constant 0 : index
    %26 = vector.load %arg3[%c0_7, %c0_8] : memref<512x196xf32, #tpu.memory_space<vmem>>, vector<512x196xf32>
    %27 = arith.addf %25, %26 : vector<512x196xf32>
    %cst_9 = arith.constant 0.000000e+00 : f32
    %28 = vector.broadcast %cst_9 : f32 to vector<512x196xf32>
    %29 = arith.maximumf %27, %28 : vector<512x196xf32>
    %c0_10 = arith.constant 0 : index
    %c0_11 = arith.constant 0 : index
    %30 = vector.load %arg6[%c0_10, %c0_11] : memref<256x512xbf16, #tpu.memory_space<vmem>>, vector<256x512xbf16>
    %31 = arith.truncf %29 : vector<512x196xf32> to vector<512x196xbf16>
    %cst_12 = arith.constant dense<0.000000e+00> : vector<256x196xf32>
    %32 = tpu.matmul %30, %31, %cst_12 {dimension_numbers = #tpu.dot_dimension_numbers<[1], [0], [0], [1], [0, 0, 1, 1], [], []>} : vector<256x512xbf16>, vector<512x196xbf16>, vector<256x196xf32> -> vector<256x196xf32>
    %c0_i32 = arith.constant 0 : i32
    %33 = arith.cmpi eq, %arg1, %c0_i32 : i32
    %34 = arith.extui %33 : i1 to i32
    %c0_i32_13 = arith.constant 0 : i32
    %35 = arith.cmpi ne, %34, %c0_i32_13 : i32
    scf.if %35 {
      %c0_17 = arith.constant 0 : index
      %c0_18 = arith.constant 0 : index
      %42 = vector.load %arg9[%c0_17, %c0_18] : memref<256x196xf32, #tpu.memory_space<vmem>>, vector<256x196xf32>
      tpu.vector_store %arg9[%c0_17, %c0_18], %32 {strides = array<i32>} : memref<256x196xf32, #tpu.memory_space<vmem>>, vector<256x196xf32>,
    } else {
    }
    %c0_i32_14 = arith.constant 0 : i32
    %36 = arith.cmpi ne, %arg1, %c0_i32_14 : i32
    %37 = arith.extui %36 : i1 to i32
    %c0_i32_15 = arith.constant 0 : i32
    %38 = arith.cmpi ne, %37, %c0_i32_15 : i32
    scf.if %38 {
      %c0_17 = arith.constant 0 : index
      %c0_18 = arith.constant 0 : index
      %42 = vector.load %arg9[%c0_17, %c0_18] : memref<256x196xf32, #tpu.memory_space<vmem>>, vector<256x196xf32>
      %43 = arith.addf %42, %32 : vector<256x196xf32>
      %c0_19 = arith.constant 0 : index
      %c0_20 = arith.constant 0 : index
      %44 = vector.load %arg9[%c0_19, %c0_20] : memref<256x196xf32, #tpu.memory_space<vmem>>, vector<256x196xf32>
      tpu.vector_store %arg9[%c0_19, %c0_20], %43 {strides = array<i32>} : memref<256x196xf32, #tpu.memory_space<vmem>>, vector<256x196xf32>,
    } else {
    }
    %c1_i32 = arith.constant 1 : i32
    %39 = arith.cmpi eq, %arg1, %c1_i32 : i32
    %40 = arith.extui %39 : i1 to i32
    %c0_i32_16 = arith.constant 0 : i32
    %41 = arith.cmpi ne, %40, %c0_i32_16 : i32
    scf.if %41 {
      %c0_17 = arith.constant 0 : index
      %c0_18 = arith.constant 0 : index
      %42 = vector.load %arg9[%c0_17, %c0_18] : memref<256x196xf32, #tpu.memory_space<vmem>>, vector<256x196xf32>
      %cst_19 = arith.constant dense<0.000000e+00> : vector<256xf32>
      %43 = vector.multi_reduction <add>, %42, %cst_19 [1] : vector<256x196xf32> to vector<256xf32>
      %44 = vector.shape_cast %43 : vector<256xf32> to vector<256x1xf32>
      %cst_20 = arith.constant 0.00510204071 : f32
      %45 = vector.broadcast %cst_20 : f32 to vector<256x1xf32>
      %46 = arith.mulf %44, %45 : vector<256x1xf32>
      %47 = vector.broadcast %46 : vector<256x1xf32> to vector<256x196xf32>
      %48 = arith.subf %42, %47 : vector<256x196xf32>
      %49 = arith.mulf %48, %48 : vector<256x196xf32>
      %cst_21 = arith.constant dense<0.000000e+00> : vector<256xf32>
      %50 = vector.multi_reduction <add>, %49, %cst_21 [1] : vector<256x196xf32> to vector<256xf32>
      %51 = vector.shape_cast %50 : vector<256xf32> to vector<256x1xf32>
      %cst_22 = arith.constant 0.00510204071 : f32
      %52 = vector.broadcast %cst_22 : f32 to vector<256x1xf32>
      %53 = arith.mulf %51, %52 : vector<256x1xf32>
      %c0_23 = arith.constant 0 : index
      %c0_24 = arith.constant 0 : index
      %54 = vector.load %arg7[%c0_23, %c0_24] : memref<256x1xf32, #tpu.memory_space<vmem>>, vector<256x1xf32>
      %cst_25 = arith.constant 9.99999974E-6 : f32
      %55 = vector.broadcast %cst_25 : f32 to vector<256x1xf32>
      %56 = arith.addf %53, %55 : vector<256x1xf32>
      %57 = math.rsqrt %56 : vector<256x1xf32>
      %58 = arith.mulf %54, %57 : vector<256x1xf32>
      %59 = vector.broadcast %58 : vector<256x1xf32> to vector<256x196xf32>
      %60 = arith.mulf %48, %59 : vector<256x196xf32>
      %c0_26 = arith.constant 0 : index
      %c0_27 = arith.constant 0 : index
      %61 = vector.load %arg8[%c0_26, %c0_27] : memref<256x1xf32, #tpu.memory_space<vmem>>, vector<256x1xf32>
      %62 = vector.broadcast %61 : vector<256x1xf32> to vector<256x196xf32>
      %63 = arith.addf %60, %62 : vector<256x196xf32>
      %c0_28 = arith.constant 0 : index
      %c0_29 = arith.constant 0 : index
      %64 = vector.load %arg9[%c0_28, %c0_29] : memref<256x196xf32, #tpu.memory_space<vmem>>, vector<256x196xf32>
      tpu.vector_store %arg9[%c0_28, %c0_29], %63 {strides = array<i32>} : memref<256x196xf32, #tpu.memory_space<vmem>>, vector<256x196xf32>,
    } else {
    }
    return
  }
  func.func @transform_0(%arg0: i32, %arg1: i32) -> (i32, i32) {
    %c0_i32 = arith.constant 0 : i32
    %c0_i32_0 = arith.constant 0 : i32
    return %arg1, %c0_i32 : i32, i32
  }
  func.func @transform_1(%arg0: i32, %arg1: i32) -> (i32, i32) {
    %c0_i32 = arith.constant 0 : i32
    %c0_i32_0 = arith.constant 0 : i32
    return %arg1, %c0_i32 : i32, i32
  }
  func.func @transform_2(%arg0: i32, %arg1: i32) -> (i32, i32) {
    %c0_i32 = arith.constant 0 : i32
    %c0_i32_0 = arith.constant 0 : i32
    %c0_i32_1 = arith.constant 0 : i32
    return %c0_i32, %c0_i32_0 : i32, i32
  }
  func.func @transform_3(%arg0: i32, %arg1: i32) -> (i32, i32) {
    %c0_i32 = arith.constant 0 : i32
    %c0_i32_0 = arith.constant 0 : i32
    %c0_i32_1 = arith.constant 0 : i32
    return %c0_i32, %c0_i32_0 : i32, i32
  }
  func.func @transform_4(%arg0: i32, %arg1: i32) -> (i32, i32) {
    %c0_i32 = arith.constant 0 : i32
    return %arg0, %arg1 : i32, i32
  }
  func.func @transform_5(%arg0: i32, %arg1: i32) -> (i32, i32) {
    %c0_i32 = arith.constant 0 : i32
    %c0_i32_0 = arith.constant 0 : i32
    return %arg0, %c0_i32 : i32, i32
  }
  func.func @transform_6(%arg0: i32, %arg1: i32) -> (i32, i32) {
    %c0_i32 = arith.constant 0 : i32
    %c0_i32_0 = arith.constant 0 : i32
    return %arg0, %c0_i32 : i32, i32
  }
  func.func @transform_7(%arg0: i32, %arg1: i32) -> (i32, i32) {
    %c0_i32 = arith.constant 0 : i32
    %c0_i32_0 = arith.constant 0 : i32
    return %arg0, %c0_i32 : i32, i32
  }
}

</mosaic_0001>

<llo_original>
// kernel: fused_bn_add_relu_conv_bn.1
$region0: #{fused_bn_add_relu_conv_bn.1}
  #allocation0 [shape = 'u32[]', space=smem, size = 0x4, offset = 0x4, fixed_abs, tag = 'smem constant byte address 0x4 - core index']
  #allocation1 [shape = 'u32[72,128]{1,0:T(1,128)}', space=vmem, size = 0x9000, scoped, tag = 'internal scratch']
  %s0 = inlined_call_operand.vmem [shape: f32[1024,196], index: 0, kind: input, shape index: {}]
  %s1 = inlined_call_operand.vmem [shape: f32[1024,196], index: 1, kind: input, shape index: {}]
  %s2 = inlined_call_operand.vmem [shape: f32[1024,1], index: 2, kind: input, shape index: {}]
  %s3 = inlined_call_operand.vmem [shape: f32[1024,1], index: 3, kind: input, shape index: {}]
  %s4 = inlined_call_operand.vmem [shape: bf16[256,1024], index: 4, kind: input, shape index: {}]
  %s5 = inlined_call_operand.vmem [shape: f32[256,1], index: 5, kind: input, shape index: {}]
  %s6 = inlined_call_operand.vmem [shape: f32[256,1], index: 6, kind: input, shape index: {}]
  %s7 = inlined_call_operand.vmem [shape: f32[256,196], index: 7, kind: output, shape index: {}]
  %s8 = sld [smem:[#allocation0]]
  $region96: #{fused_bn_add_relu_conv_bn.1} parent=0
    _
  %s10 = ssub.s32 1, %s8
  %s11 = scalar_select 0, %s10, %s8
  $region1: #{fused_bn_add_relu_conv_bn.1} parent=0
    #allocation2 [shape = 'u8[524288]{0}', space=vmem, size = 0x80000, scoped, tag = 'input window, operand 4']
    loop: start=0, step=1, limit=4
    $region2: #{fused_bn_add_relu_conv_bn.1} parent=1 // loop_pre_header
      _
    $region3: #{fused_bn_add_relu_conv_bn.1} parent=1 // loop_header
      %s13 = sphi 0, %s17
      %p14 = scmp.ge.s32.totalorder %s13, 4
      %s20 = sphi 0, %s32
      %s21 = sphi 0, %s28
      %s22 = sphi 0, %s20
      %s23 = sphi 0, %s21
      %s24 = sphi 0, %s22
      %s25 = sphi 0, %s23
      %s35 = sphi 0, %s37
      %s38 = sphi 0, %s35
      %s39 = sphi 0, %s38
      %s55 = sphi 0, %s39
      %s61 = sphi 0, %s63
      %s64 = sphi 0, %s61
      %s65 = sphi 0, %s64
      %s81 = sphi 0, %s65
      %s85 = sphi 0, %s85
      %s87 = sphi 0, %s85
      %s88 = sphi 0, %s87
      %s102 = sphi 0, %s88
      %s106 = sphi 0, %s106
      %s108 = sphi 0, %s106
      %s109 = sphi 0, %s108
      %s123 = sphi 0, %s109
      %s131 = sphi 0, %s133
      %s134 = sphi 0, %s131
      %s135 = sphi 0, %s134
      %s151 = sphi 0, %s135
      %s157 = sphi 0, %s159
      %s160 = sphi 0, %s157
      %s161 = sphi 0, %s160
      %s177 = sphi 0, %s161
      %s183 = sphi 0, %s185
      %s186 = sphi 0, %s183
      %s187 = sphi 0, %s186
      %s203 = sphi 0, %s187
      %s209 = sphi 0, %s211
      %s212 = sphi 0, %s209
      %s213 = sphi 0, %s212
      %s229 = sphi 0, %s213
    $region4: #{fused_bn_add_relu_conv_bn.1} parent=1 // loop_header_branch
      %16 = sbr.rel (%p14) target = $region8
    $region5: #{fused_bn_add_relu_conv_bn.1} parent=1 // loop_body
      %s18 = ssub.s32 %s13, 1
      %s19 = ssub.s32 %s13, 2
      %s26 = sadd.s32 1, %s21
      %p27 = scmp.ge.s32.totalorder %s26, 2
      %s28 = scalar_select %p27, 0, %s26
      %s29 = sadd.s32 1, %s20
      %s30 = scalar_select %p27, %s29, %s20
      %p31 = scmp.ge.s32.totalorder %s30, 1
      %s32 = scalar_select %p31, 0, %s30
      %s33 = ssub.s32 %s21, %s28
      %p34 = scmp.eq.s32.totalorder %s33, 0
      %s36 = sadd.s32 %s35, 1
      %s37 = scalar_select %p34, %s35, %s36
      %p40 = pneg %p34
      %p41 = scmp.eq.s32.totalorder %s13, 1
      %p42 = por %p40, %p41
      %p43 = scmp.ne.s32.totalorder %s35, %s38
      %p44 = scmp.eq.s32.totalorder %s13, 0
      %p45 = por %p43, %p44
      %p46 = scmp.ne.s32.totalorder %s35, %s38
      %p47 = scmp.eq.s32.totalorder %s18, 1
      %p48 = por %p46, %p47
      %p49 = scmp.ne.s32.totalorder %s38, %s39
      %p50 = scmp.eq.s32.totalorder %s18, 0
      %p51 = por %p49, %p50
      %p52 = scmp.ne.s32.totalorder %s38, %s39
      %p53 = scmp.eq.s32.totalorder %s19, 1
      %p54 = por %p52, %p53
      %p56 = scmp.ne.s32.totalorder %s39, %s55
      %p57 = scmp.eq.s32.totalorder %s19, 0
      %p58 = por %p56, %p57
      %s59 = ssub.s32 %s21, %s28
      %p60 = scmp.eq.s32.totalorder %s59, 0
      %s62 = sadd.s32 %s61, 1
      %s63 = scalar_select %p60, %s61, %s62
      %p66 = pneg %p60
      %p67 = scmp.eq.s32.totalorder %s13, 1
      %p68 = por %p66, %p67
      %p69 = scmp.ne.s32.totalorder %s61, %s64
      %p70 = scmp.eq.s32.totalorder %s13, 0
      %p71 = por %p69, %p70
      %p72 = scmp.ne.s32.totalorder %s61, %s64
      %p73 = scmp.eq.s32.totalorder %s18, 1
      %p74 = por %p72, %p73
      %p75 = scmp.ne.s32.totalorder %s64, %s65
      %p76 = scmp.eq.s32.totalorder %s18, 0
      %p77 = por %p75, %p76
      %p78 = scmp.ne.s32.totalorder %s64, %s65
      %p79 = scmp.eq.s32.totalorder %s19, 1
      %p80 = por %p78, %p79
      %p82 = scmp.ne.s32.totalorder %s65, %s81
      %p83 = scmp.eq.s32.totalorder %s19, 0
      %p84 = por %p82, %p83
      %s86 = sadd.s32 %s85, 1
      %p89 = scmp.eq.s32.totalorder %s13, 1
      %p90 = scmp.ne.s32.totalorder %s85, %s87
      %p91 = scmp.eq.s32.totalorder %s13, 0
      %p92 = por %p90, %p91
      %p93 = scmp.ne.s32.totalorder %s85, %s87
      %p94 = scmp.eq.s32.totalorder %s18, 1
      %p95 = por %p93, %p94
      %p96 = scmp.ne.s32.totalorder %s87, %s88
      %p97 = scmp.eq.s32.totalorder %s18, 0
      %p98 = por %p96, %p97
      %p99 = scmp.ne.s32.totalorder %s87, %s88
      %p100 = scmp.eq.s32.totalorder %s19, 1
      %p101 = por %p99, %p100
      %p103 = scmp.ne.s32.totalorder %s88, %s102
      %p104 = scmp.eq.s32.totalorder %s19, 0
      %p105 = por %p103, %p104
      %s107 = sadd.s32 %s106, 1
      %p110 = scmp.eq.s32.totalorder %s13, 1
      %p111 = scmp.ne.s32.totalorder %s106, %s108
      %p112 = scmp.eq.s32.totalorder %s13, 0
      %p113 = por %p111, %p112
      %p114 = scmp.ne.s32.totalorder %s106, %s108
      %p115 = scmp.eq.s32.totalorder %s18, 1
      %p116 = por %p114, %p115
      %p117 = scmp.ne.s32.totalorder %s108, %s109
      %p118 = scmp.eq.s32.totalorder %s18, 0
      %p119 = por %p117, %p118
      %p120 = scmp.ne.s32.totalorder %s108, %s109
      %p121 = scmp.eq.s32.totalorder %s19, 1
      %p122 = por %p120, %p121
      %p124 = scmp.ne.s32.totalorder %s109, %s123
      %p125 = scmp.eq.s32.totalorder %s19, 0
      %p126 = por %p124, %p125
      %s127 = ssub.s32 %s20, %s32
      %s128 = ssub.s32 %s21, %s28
      %s129 = sor.u32 %s127, %s128
      %p130 = scmp.eq.s32.totalorder %s129, 0
      %s132 = sadd.s32 %s131, 1
      %s133 = scalar_select %p130, %s131, %s132
      %p136 = pneg %p130
      %p137 = scmp.eq.s32.totalorder %s13, 1
      %p138 = por %p136, %p137
      %p139 = scmp.ne.s32.totalorder %s131, %s134
      %p140 = scmp.eq.s32.totalorder %s13, 0
      %p141 = por %p139, %p140
      %p142 = scmp.ne.s32.totalorder %s131, %s134
      %p143 = scmp.eq.s32.totalorder %s18, 1
      %p144 = por %p142, %p143
      %p145 = scmp.ne.s32.totalorder %s134, %s135
      %p146 = scmp.eq.s32.totalorder %s18, 0
      %p147 = por %p145, %p146
      %p148 = scmp.ne.s32.totalorder %s134, %s135
      %p149 = scmp.eq.s32.totalorder %s19, 1
      %p150 = por %p148, %p149
      %p152 = scmp.ne.s32.totalorder %s135, %s151
      %p153 = scmp.eq.s32.totalorder %s19, 0
      %p154 = por %p152, %p153
      %s155 = ssub.s32 %s20, %s32
      %p156 = scmp.eq.s32.totalorder %s155, 0
      %s158 = sadd.s32 %s157, 1
      %s159 = scalar_select %p156, %s157, %s158
      %p162 = pneg %p156
      %p163 = scmp.eq.s32.totalorder %s13, 1
      %p164 = por %p162, %p163
      %p165 = scmp.ne.s32.totalorder %s157, %s160
      %p166 = scmp.eq.s32.totalorder %s13, 0
      %p167 = por %p165, %p166
      %p168 = scmp.ne.s32.totalorder %s157, %s160
      %p169 = scmp.eq.s32.totalorder %s18, 1
      %p170 = por %p168, %p169
      %p171 = scmp.ne.s32.totalorder %s160, %s161
      %p172 = scmp.eq.s32.totalorder %s18, 0
      %p173 = por %p171, %p172
      %p174 = scmp.ne.s32.totalorder %s160, %s161
      %p175 = scmp.eq.s32.totalorder %s19, 1
      %p176 = por %p174, %p175
      %p178 = scmp.ne.s32.totalorder %s161, %s177
      %p179 = scmp.eq.s32.totalorder %s19, 0
      %p180 = por %p178, %p179
      %s181 = ssub.s32 %s20, %s32
      %p182 = scmp.eq.s32.totalorder %s181, 0
      %s184 = sadd.s32 %s183, 1
      %s185 = scalar_select %p182, %s183, %s184
      %p188 = pneg %p182
      %p189 = scmp.eq.s32.totalorder %s13, 1
      %p190 = por %p188, %p189
      %p191 = scmp.ne.s32.totalorder %s183, %s186
      %p192 = scmp.eq.s32.totalorder %s13, 0
      %p193 = por %p191, %p192
      %p194 = scmp.ne.s32.totalorder %s183, %s186
      %p195 = scmp.eq.s32.totalorder %s18, 1
      %p196 = por %p194, %p195
      %p197 = scmp.ne.s32.totalorder %s186, %s187
      %p198 = scmp.eq.s32.totalorder %s18, 0
      %p199 = por %p197, %p198
      %p200 = scmp.ne.s32.totalorder %s186, %s187
      %p201 = scmp.eq.s32.totalorder %s19, 1
      %p202 = por %p200, %p201
      %p204 = scmp.ne.s32.totalorder %s187, %s203
      %p205 = scmp.eq.s32.totalorder %s19, 0
      %p206 = por %p204, %p205
      %s207 = ssub.s32 %s20, %s32
      %p208 = scmp.eq.s32.totalorder %s207, 0
      %s210 = sadd.s32 %s209, 1
      %s211 = scalar_select %p208, %s209, %s210
      %p214 = pneg %p208
      %p215 = scmp.eq.s32.totalorder %s13, 1
      %p216 = por %p214, %p215
      %p217 = scmp.ne.s32.totalorder %s209, %s212
      %p218 = scmp.eq.s32.totalorder %s13, 0
      %p219 = por %p217, %p218
      %p220 = scmp.ne.s32.totalorder %s209, %s212
      %p221 = scmp.eq.s32.totalorder %s18, 1
      %p222 = por %p220, %p221
      %p223 = scmp.ne.s32.totalorder %s212, %s213
      %p224 = scmp.eq.s32.totalorder %s18, 0
      %p225 = por %p223, %p224
      %p226 = scmp.ne.s32.totalorder %s212, %s213
      %p227 = scmp.eq.s32.totalorder %s19, 1
      %p228 = por %p226, %p227
      %p230 = scmp.ne.s32.totalorder %s213, %s229
      %p231 = scmp.eq.s32.totalorder %s19, 0
      %p232 = por %p230, %p231
      %p233 = scmp.le.s32.totalorder 1, %s13
      %p234 = scmp.lt.s32.totalorder %s13, 3
      %p235 = pnand %p233, %p234
      %p236 = pneg %p235
      // Predicated region
      $region9: #{fused_bn_add_relu_conv_bn.1} parent=5 // pred_check
        _
      $region10: #{fused_bn_add_relu_conv_bn.1} parent=5 // pred_check_branch
        %238 = sbr.rel (%p235) target = $region12
      $region11: #{fused_bn_add_relu_conv_bn.1} parent=5 // pred_region
        %s239 = ssub.s32 %s13, 1
        // Predicated region
        $region13: #{fused_bn_add_relu_conv_bn.1} parent=11 // pred_check
          %p240 = pneg %p98
        $region14: #{fused_bn_add_relu_conv_bn.1} parent=11 // pred_check_branch
          %242 = sbr.rel (%p240) target = $region16
        $region15: #{fused_bn_add_relu_conv_bn.1} parent=11 // pred_region
          _
        $region16: #{fused_bn_add_relu_conv_bn.1} parent=11 // pred_fallthru
          _
        // Predicated region
        $region17: #{fused_bn_add_relu_conv_bn.1} parent=11 // pred_check
          %p243 = pneg %p119
        $region18: #{fused_bn_add_relu_conv_bn.1} parent=11 // pred_check_branch
          %245 = sbr.rel (%p243) target = $region20
        $region19: #{fused_bn_add_relu_conv_bn.1} parent=11 // pred_region
          _
        $region20: #{fused_bn_add_relu_conv_bn.1} parent=11 // pred_fallthru
          _
        // Predicated region
        $region21: #{fused_bn_add_relu_conv_bn.1} parent=11 // pred_check
          %p246 = pneg %p173
        $region22: #{fused_bn_add_relu_conv_bn.1} parent=11 // pred_check_branch
          %248 = sbr.rel (%p246) target = $region24
        $region23: #{fused_bn_add_relu_conv_bn.1} parent=11 // pred_region
          %s249 = smul.u32 32, %s22
          %p250 = scmp.lt.s32.totalorder %s249, 31
          %s251 = scalar_select %p250, %s249, 31
          %s252 = smul.addr %s251, 8
          %s253 = scalar_lea.vmem %s5, %s252
          %s254 = smul.u32 32, %s22
        $region24: #{fused_bn_add_relu_conv_bn.1} parent=11 // pred_fallthru
          _
        // Predicated region
        $region25: #{fused_bn_add_relu_conv_bn.1} parent=11 // pred_check
          %p255 = pneg %p199
        $region26: #{fused_bn_add_relu_conv_bn.1} parent=11 // pred_check_branch
          %257 = sbr.rel (%p255) target = $region28
        $region27: #{fused_bn_add_relu_conv_bn.1} parent=11 // pred_region
          %s258 = smul.u32 32, %s22
          %p259 = scmp.lt.s32.totalorder %s258, 31
          %s260 = scalar_select %p259, %s258, 31
          %s261 = smul.addr %s260, 8
          %s262 = scalar_lea.vmem %s6, %s261
          %s263 = smul.u32 32, %s22
        $region28: #{fused_bn_add_relu_conv_bn.1} parent=11 // pred_fallthru
          _
      $region12: #{fused_bn_add_relu_conv_bn.1} parent=5 // pred_fallthru
        _
      %p264 = scmp.lt.s32.totalorder %s13, 2
      // Predicated region
      $region29: #{fused_bn_add_relu_conv_bn.1} parent=5 // pred_check
        %p265 = pneg %p264
      $region30: #{fused_bn_add_relu_conv_bn.1} parent=5 // pred_check_branch
        %267 = sbr.rel (%p265) target = $region32
      $region31: #{fused_bn_add_relu_conv_bn.1} parent=5 // pred_region
        // Predicated region
        $region33: #{fused_bn_add_relu_conv_bn.1} parent=31 // pred_check
          %p268 = pneg %p45
        $region34: #{fused_bn_add_relu_conv_bn.1} parent=31 // pred_check_branch
          %270 = sbr.rel (%p268) target = $region36
        $region35: #{fused_bn_add_relu_conv_bn.1} parent=31 // pred_region
          %s271 = smul.u32 64, %s21
          %p272 = scmp.lt.s32.totalorder %s271, 127
          %s273 = scalar_select %p272, %s271, 127
          %s274 = smul.addr %s273, 2
          %s275 = smul.addr %s274, 8
          %s276 = scalar_lea.vmem %s0, %s275
          %s277 = smul.u32 64, %s21
        $region36: #{fused_bn_add_relu_conv_bn.1} parent=31 // pred_fallthru
          _
        // Predicated region
        $region37: #{fused_bn_add_relu_conv_bn.1} parent=31 // pred_check
          %p278 = pneg %p71
        $region38: #{fused_bn_add_relu_conv_bn.1} parent=31 // pred_check_branch
          %280 = sbr.rel (%p278) target = $region40
        $region39: #{fused_bn_add_relu_conv_bn.1} parent=31 // pred_region
          %s281 = smul.u32 64, %s21
          %p282 = scmp.lt.s32.totalorder %s281, 127
          %s283 = scalar_select %p282, %s281, 127
          %s284 = smul.addr %s283, 2
          %s285 = smul.addr %s284, 8
          %s286 = scalar_lea.vmem %s1, %s285
          %s287 = smul.u32 64, %s21
        $region40: #{fused_bn_add_relu_conv_bn.1} parent=31 // pred_fallthru
          _
        // Predicated region
        $region41: #{fused_bn_add_relu_conv_bn.1} parent=31 // pred_check
          %p288 = pneg %p141
        $region42: #{fused_bn_add_relu_conv_bn.1} parent=31 // pred_check_branch
          %290 = sbr.rel (%p288) target = $region44
        $region43: #{fused_bn_add_relu_conv_bn.1} parent=31 // pred_region
          %s291 = sand.u32 %s131, 1
          %s292 = sand.u32 %s131, 1
          %s293 = smul.addr %s292, 512
          %s294 = scalar_lea.vmem [#allocation2], %s293
          %s295 = smul.u32 32, %s20
          %s296 = smul.u32 4, %s21
          %s297 = smul.addr %s295, 8
          %s298 = sadd.s32 %s296, %s297
          %s299 = smul.addr %s298, 4
          %s300 = scalar_lea.vmem %s4, %s299
          // Predicated region
          $region45: #{fused_bn_add_relu_conv_bn.1} parent=43 // pred_check
            _
          $region46: #{fused_bn_add_relu_conv_bn.1} parent=43 // pred_check_branch
            %302 = sbr.rel (0) target = $region48
          $region47: #{fused_bn_add_relu_conv_bn.1} parent=43 // pred_region
            // Predicated region
            $region49: #{fused_bn_add_relu_conv_bn.1} parent=47 // pred_check
              _
            $region50: #{fused_bn_add_relu_conv_bn.1} parent=47 // pred_check_branch
              %304 = sbr.rel (0) target = $region52
            $region51: #{fused_bn_add_relu_conv_bn.1} parent=47 // pred_region
              loop: start=0, step=1, limit=1
              $region53: #{fused_bn_add_relu_conv_bn.1} parent=51 // loop_pre_header
                _
              $region54: #{fused_bn_add_relu_conv_bn.1} parent=51 // loop_header
                %s306 = sphi 0, %s310
                %p307 = scmp.ge.s32.totalorder %s306, 1
                %s311 = sphi %s300, %s300
                %s312 = sphi %s294, %s294
              $region55: #{fused_bn_add_relu_conv_bn.1} parent=51 // loop_header_branch
                %309 = sbr.rel (%p307) target = $region59
              $region56: #{fused_bn_add_relu_conv_bn.1} parent=51 // loop_body
                %v313 = vld [vmem:[%s311] sm:$0xff]
                %314 = vst [vmem:[%s312] sm:$0xff] %v313
                %v315 = vld [vmem:[%s311 + $0x8] sm:$0xff]
                %316 = vst [vmem:[%s312 + $0x8] sm:$0xff] %v315
                %v317 = vld [vmem:[%s311 + $0x20] sm:$0xff]
                %318 = vst [vmem:[%s312 + $0x10] sm:$0xff] %v317
                %v319 = vld [vmem:[%s311 + $0x28] sm:$0xff]
                %320 = vst [vmem:[%s312 + $0x18] sm:$0xff] %v319
                %v321 = vld [vmem:[%s311 + $0x40] sm:$0xff]
                %322 = vst [vmem:[%s312 + $0x20] sm:$0xff] %v321
                %v323 = vld [vmem:[%s311 + $0x48] sm:$0xff]
                %324 = vst [vmem:[%s312 + $0x28] sm:$0xff] %v323
                %v325 = vld [vmem:[%s311 + $0x60] sm:$0xff]
                %326 = vst [vmem:[%s312 + $0x30] sm:$0xff] %v325
                %v327 = vld [vmem:[%s311 + $0x68] sm:$0xff]
                %328 = vst [vmem:[%s312 + $0x38] sm:$0xff] %v327
                %v329 = vld [vmem:[%s311 + $0x80] sm:$0xff]
                %330 = vst [vmem:[%s312 + $0x40] sm:$0xff] %v329
                %v331 = vld [vmem:[%s311 + $0x88] sm:$0xff]
                %332 = vst [vmem:[%s312 + $0x48] sm:$0xff] %v331
                %v333 = vld [vmem:[%s311 + $0xa0] sm:$0xff]
                %334 = vst [vmem:[%s312 + $0x50] sm:$0xff] %v333
                %v335 = vld [vmem:[%s311 + $0xa8] sm:$0xff]
                %336 = vst [vmem:[%s312 + $0x58] sm:$0xff] %v335
                %v337 = vld [vmem:[%s311 + $0xc0] sm:$0xff]
                %338 = vst [vmem:[%s312 + $0x60] sm:$0xff] %v337
                %v339 = vld [vmem:[%s311 + $0xc8] sm:$0xff]
                %340 = vst [vmem:[%s312 + $0x68] sm:$0xff] %v339
                %v341 = vld [vmem:[%s311 + $0xe0] sm:$0xff]
                %342 = vst [vmem:[%s312 + $0x70] sm:$0xff] %v341
                %v343 = vld [vmem:[%s311 + $0xe8] sm:$0xff]
                %344 = vst [vmem:[%s312 + $0x78] sm:$0xff] %v343
                %v345 = vld [vmem:[%s311 + $0x100] sm:$0xff]
                %346 = vst [vmem:[%s312 + $0x80] sm:$0xff] %v345
                %v347 = vld [vmem:[%s311 + $0x108] sm:$0xff]
                %348 = vst [vmem:[%s312 + $0x88] sm:$0xff] %v347
                %v349 = vld [vmem:[%s311 + $0x120] sm:$0xff]
                %350 = vst [vmem:[%s312 + $0x90] sm:$0xff] %v349
                %v351 = vld [vmem:[%s311 + $0x128] sm:$0xff]
                %352 = vst [vmem:[%s312 + $0x98] sm:$0xff] %v351
                %v353 = vld [vmem:[%s311 + $0x140] sm:$0xff]
                %354 = vst [vmem:[%s312 + $0xa0] sm:$0xff] %v353
                %v355 = vld [vmem:[%s311 + $0x148] sm:$0xff]
                %356 = vst [vmem:[%s312 + $0xa8] sm:$0xff] %v355
                %v357 = vld [vmem:[%s311 + $0x160] sm:$0xff]
                %358 = vst [vmem:[%s312 + $0xb0] sm:$0xff] %v357
                %v359 = vld [vmem:[%s311 + $0x168] sm:$0xff]
                %360 = vst [vmem:[%s312 + $0xb8] sm:$0xff] %v359
                %v361 = vld [vmem:[%s311 + $0x180] sm:$0xff]
                %362 = vst [vmem:[%s312 + $0xc0] sm:$0xff] %v361
                %v363 = vld [vmem:[%s311 + $0x188] sm:$0xff]
                %364 = vst [vmem:[%s312 + $0xc8] sm:$0xff] %v363
                %v365 = vld [vmem:[%s311 + $0x1a0] sm:$0xff]
                %366 = vst [vmem:[%s312 + $0xd0] sm:$0xff] %v365
                %v367 = vld [vmem:[%s311 + $0x1a8] sm:$0xff]
                %368 = vst [vmem:[%s312 + $0xd8] sm:$0xff] %v367
                %v369 = vld [vmem:[%s311 + $0x1c0] sm:$0xff]
                %370 = vst [vmem:[%s312 + $0xe0] sm:$0xff] %v369
                %v371 = vld [vmem:[%s311 + $0x1c8] sm:$0xff]
                %372 = vst [vmem:[%s312 + $0xe8] sm:$0xff] %v371
                %v373 = vld [vmem:[%s311 + $0x1e0] sm:$0xff]
                %374 = vst [vmem:[%s312 + $0xf0] sm:$0xff] %v373
                %v375 = vld [vmem:[%s311 + $0x1e8] sm:$0xff]
                %376 = vst [vmem:[%s312 + $0xf8] sm:$0xff] %v375
                %v377 = vld [vmem:[%s311 + $0x200] sm:$0xff]
                %378 = vst [vmem:[%s312 + $0x100] sm:$0xff] %v377
                %v379 = vld [vmem:[%s311 + $0x208] sm:$0xff]
                %380 = vst [vmem:[%s312 + $0x108] sm:$0xff] %v379
                %v381 = vld [vmem:[%s311 + $0x220] sm:$0xff]
                %382 = vst [vmem:[%s312 + $0x110] sm:$0xff] %v381
                %v383 = vld [vmem:[%s311 + $0x228] sm:$0xff]
                %384 = vst [vmem:[%s312 + $0x118] sm:$0xff] %v383
                %v385 = vld [vmem:[%s311 + $0x240] sm:$0xff]
                %386 = vst [vmem:[%s312 + $0x120] sm:$0xff] %v385
                %v387 = vld [vmem:[%s311 + $0x248] sm:$0xff]
                %388 = vst [vmem:[%s312 + $0x128] sm:$0xff] %v387
                %v389 = vld [vmem:[%s311 + $0x260] sm:$0xff]
                %390 = vst [vmem:[%s312 + $0x130] sm:$0xff] %v389
                %v391 = vld [vmem:[%s311 + $0x268] sm:$0xff]
                %392 = vst [vmem:[%s312 + $0x138] sm:$0xff] %v391
                %v393 = vld [vmem:[%s311 + $0x280] sm:$0xff]
                %394 = vst [vmem:[%s312 + $0x140] sm:$0xff] %v393
                %v395 = vld [vmem:[%s311 + $0x288] sm:$0xff]
                %396 = vst [vmem:[%s312 + $0x148] sm:$0xff] %v395
                %v397 = vld [vmem:[%s311 + $0x2a0] sm:$0xff]
                %398 = vst [vmem:[%s312 + $0x150] sm:$0xff] %v397
                %v399 = vld [vmem:[%s311 + $0x2a8] sm:$0xff]
                %400 = vst [vmem:[%s312 + $0x158] sm:$0xff] %v399
                %v401 = vld [vmem:[%s311 + $0x2c0] sm:$0xff]
                %402 = vst [vmem:[%s312 + $0x160] sm:$0xff] %v401
                %v403 = vld [vmem:[%s311 + $0x2c8] sm:$0xff]
                %404 = vst [vmem:[%s312 + $0x168] sm:$0xff] %v403
                %v405 = vld [vmem:[%s311 + $0x2e0] sm:$0xff]
                %406 = vst [vmem:[%s312 + $0x170] sm:$0xff] %v405
                %v407 = vld [vmem:[%s311 + $0x2e8] sm:$0xff]
                %408 = vst [vmem:[%s312 + $0x178] sm:$0xff] %v407
                %v409 = vld [vmem:[%s311 + $0x300] sm:$0xff]
                %410 = vst [vmem:[%s312 + $0x180] sm:$0xff] %v409
                %v411 = vld [vmem:[%s311 + $0x308] sm:$0xff]
                %412 = vst [vmem:[%s312 + $0x188] sm:$0xff] %v411
                %v413 = vld [vmem:[%s311 + $0x320] sm:$0xff]
                %414 = vst [vmem:[%s312 + $0x190] sm:$0xff] %v413
                %v415 = vld [vmem:[%s311 + $0x328] sm:$0xff]
                %416 = vst [vmem:[%s312 + $0x198] sm:$0xff] %v415
                %v417 = vld [vmem:[%s311 + $0x340] sm:$0xff]
                %418 = vst [vmem:[%s312 + $0x1a0] sm:$0xff] %v417
                %v419 = vld [vmem:[%s311 + $0x348] sm:$0xff]
                %420 = vst [vmem:[%s312 + $0x1a8] sm:$0xff] %v419
                %v421 = vld [vmem:[%s311 + $0x360] sm:$0xff]
                %422 = vst [vmem:[%s312 + $0x1b0] sm:$0xff] %v421
                %v423 = vld [vmem:[%s311 + $0x368] sm:$0xff]
                %424 = vst [vmem:[%s312 + $0x1b8] sm:$0xff] %v423
                %v425 = vld [vmem:[%s311 + $0x380] sm:$0xff]
                %426 = vst [vmem:[%s312 + $0x1c0] sm:$0xff] %v425
                %v427 = vld [vmem:[%s311 + $0x388] sm:$0xff]
                %428 = vst [vmem:[%s312 + $0x1c8] sm:$0xff] %v427
                %v429 = vld [vmem:[%s311 + $0x3a0] sm:$0xff]
                %430 = vst [vmem:[%s312 + $0x1d0] sm:$0xff] %v429
                %v431 = vld [vmem:[%s311 + $0x3a8] sm:$0xff]
                %432 = vst [vmem:[%s312 + $0x1d8] sm:$0xff] %v431
                %v433 = vld [vmem:[%s311 + $0x3c0] sm:$0xff]
                %434 = vst [vmem:[%s312 + $0x1e0] sm:$0xff] %v433
                %v435 = vld [vmem:[%s311 + $0x3c8] sm:$0xff]
                %436 = vst [vmem:[%s312 + $0x1e8] sm:$0xff] %v435
                %v437 = vld [vmem:[%s311 + $0x3e0] sm:$0xff]
                %438 = vst [vmem:[%s312 + $0x1f0] sm:$0xff] %v437
                %v439 = vld [vmem:[%s311 + $0x3e8] sm:$0xff]
                %440 = vst [vmem:[%s312 + $0x1f8] sm:$0xff] %v439
              $region57: #{fused_bn_add_relu_conv_bn.1} parent=51 // loop_footer
                %s310 = sadd.s32 1, %s306
              $region58: #{fused_bn_add_relu_conv_bn.1} parent=51 // loop_footer_branch
                %305 = sbr.rel target = $region54
              $region59: #{fused_bn_add_relu_conv_bn.1} parent=51 // loop_exit
                _
            $region52: #{fused_bn_add_relu_conv_bn.1} parent=47 // pred_fallthru
              _
            // Predicated region
            $region60: #{fused_bn_add_relu_conv_bn.1} parent=47 // pred_check
              _
            $region61: #{fused_bn_add_relu_conv_bn.1} parent=47 // pred_check_branch
              %442 = sbr.rel target = $region63
            $region62: #{fused_bn_add_relu_conv_bn.1} parent=47 // pred_region
              _
            $region63: #{fused_bn_add_relu_conv_bn.1} parent=47 // pred_fallthru
              _
          $region48: #{fused_bn_add_relu_conv_bn.1} parent=43 // pred_fallthru
            _
          %443 = vnop
        $region44: #{fused_bn_add_relu_conv_bn.1} parent=31 // pred_fallthru
          _
      $region32: #{fused_bn_add_relu_conv_bn.1} parent=5 // pred_fallthru
        _
      %p444 = scmp.le.s32.totalorder 1, %s13
      %p445 = scmp.lt.s32.totalorder %s13, 3
      %p446 = pnand %p444, %p445
      %p447 = pneg %p446
      // Predicated region
      $region64: #{fused_bn_add_relu_conv_bn.1} parent=5 // pred_check
        _
      $region65: #{fused_bn_add_relu_conv_bn.1} parent=5 // pred_check_branch
        %449 = sbr.rel (%p446) target = $region67
      $region66: #{fused_bn_add_relu_conv_bn.1} parent=5 // pred_region
        %s450 = ssub.s32 %s13, 1
        %s451 = sand.u32 %s134, 1
        %s452 = sand.u32 %s134, 1
        %s453 = smul.addr %s452, 512
        %s454 = scalar_lea.vmem [#allocation2], %s453
        // Predicated region
        $region68: #{fused_bn_add_relu_conv_bn.1} parent=66 // pred_check
          %p455 = pneg %p147
        $region69: #{fused_bn_add_relu_conv_bn.1} parent=66 // pred_check_branch
          %457 = sbr.rel (%p455) target = $region71
        $region70: #{fused_bn_add_relu_conv_bn.1} parent=66 // pred_region
          _
        $region71: #{fused_bn_add_relu_conv_bn.1} parent=66 // pred_fallthru
          _
        %s458 = smul.u32 64, %s23
        %p459 = scmp.lt.s32.totalorder %s458, 127
        %s460 = scalar_select %p459, %s458, 127
        %s461 = smul.addr %s460, 2
        %s462 = smul.addr %s461, 8
        %s463 = scalar_lea.vmem %s0, %s462
        %p464 = pneg %p51
        %p465 = pneg %p48
        %s466 = smul.u32 64, %s23
        %p467 = scmp.lt.s32.totalorder %s466, 127
        %s468 = scalar_select %p467, %s466, 127
        %s469 = smul.addr %s468, 2
        %s470 = smul.addr %s469, 8
        %s471 = scalar_lea.vmem %s1, %s470
        %p472 = pneg %p77
        %p473 = pneg %p74
        %p474 = pneg %p98
        %p475 = pneg %p95
        %p476 = pneg %p119
        %p477 = pneg %p116
        %s478 = sand.u32 %s134, 1
        %s479 = sand.u32 %s134, 1
        %s480 = smul.addr %s479, 512
        %s481 = scalar_lea.vmem [#allocation2], %s480
        %p482 = pneg %p147
        %p483 = pneg %p144
        %s484 = smul.u32 32, %s22
        %p485 = scmp.lt.s32.totalorder %s484, 31
        %s486 = scalar_select %p485, %s484, 31
        %s487 = smul.addr %s486, 8
        %s488 = scalar_lea.vmem %s5, %s487
        %p489 = pneg %p173
        %p490 = pneg %p170
        %s491 = smul.u32 32, %s22
        %p492 = scmp.lt.s32.totalorder %s491, 31
        %s493 = scalar_select %p492, %s491, 31
        %s494 = smul.addr %s493, 8
        %s495 = scalar_lea.vmem %s6, %s494
        %p496 = pneg %p199
        %p497 = pneg %p196
        %p498 = pneg %p225
        %p499 = pneg %p222
        %s500 = smul.u32 32, %s22
        %p501 = scmp.lt.s32.totalorder %s500, 31
        %s502 = scalar_select %p501, %s500, 31
        %s503 = smul.addr %s502, 2
        %s504 = smul.addr %s503, 8
        %s505 = scalar_lea.vmem %s7, %s504
        %s506 = smul.u32 64, %s23
        %p507 = scmp.lt.s32.totalorder %s506, 127
        %s508 = scalar_select %p507, %s506, 127
        %s509 = smul.addr %s508, 2
        %s510 = smul.addr %s509, 8
        %s511 = scalar_lea.vmem %s0, %s510
        %s512 = smul.u32 64, %s23
        %s513 = smul.u32 64, %s23
        %p514 = scmp.lt.s32.totalorder %s513, 127
        %s515 = scalar_select %p514, %s513, 127
        %s516 = smul.addr %s515, 2
        %s517 = smul.addr %s516, 8
        %s518 = scalar_lea.vmem %s1, %s517
        %s519 = smul.u32 64, %s23
        %s520 = smul.u32 32, %s22
        %s521 = smul.u32 4, %s23
        %s522 = smul.u32 32, %s22
        %p523 = scmp.lt.s32.totalorder %s522, 31
        %s524 = scalar_select %p523, %s522, 31
        %s525 = smul.addr %s524, 8
        %s526 = scalar_lea.vmem %s5, %s525
        %s527 = smul.u32 32, %s22
        %s528 = smul.u32 32, %s22
        %p529 = scmp.lt.s32.totalorder %s528, 31
        %s530 = scalar_select %p529, %s528, 31
        %s531 = smul.addr %s530, 8
        %s532 = scalar_lea.vmem %s6, %s531
        %s533 = smul.u32 32, %s22
        %s534 = smul.u32 32, %s22
        %p535 = scmp.lt.s32.totalorder %s534, 31
        %s536 = scalar_select %p535, %s534, 31
        %s537 = smul.addr %s536, 2
        %s538 = smul.addr %s537, 8
        %s539 = scalar_lea.vmem %s7, %s538
        %s540 = smul.u32 32, %s22
        %s541 = smul.u32 %s23, 512
        %s542 = scalar_lea.vmem %s2, %s541
        %v543 = vld [vmem:[%s542] sm:$0xff]
        %v544 = vld [vmem:[%s542 + $0x8] sm:$0xff]
        %v545 = vld [vmem:[%s542 + $0x10] sm:$0xff]
        %v546 = vld [vmem:[%s542 + $0x18] sm:$0xff]
        %v547 = vld [vmem:[%s542 + $0x20] sm:$0xff]
        %v548 = vld [vmem:[%s542 + $0x28] sm:$0xff]
        %v549 = vld [vmem:[%s542 + $0x30] sm:$0xff]
        %v550 = vld [vmem:[%s542 + $0x38] sm:$0xff]
        %v551 = vld [vmem:[%s542 + $0x40] sm:$0xff]
        %v552 = vld [vmem:[%s542 + $0x48] sm:$0xff]
        %v553 = vld [vmem:[%s542 + $0x50] sm:$0xff]
        %v554 = vld [vmem:[%s542 + $0x58] sm:$0xff]
        %v555 = vld [vmem:[%s542 + $0x60] sm:$0xff]
        %v556 = vld [vmem:[%s542 + $0x68] sm:$0xff]
        %v557 = vld [vmem:[%s542 + $0x70] sm:$0xff]
        %v558 = vld [vmem:[%s542 + $0x78] sm:$0xff]
        %v559 = vld [vmem:[%s542 + $0x80] sm:$0xff]
        %v560 = vld [vmem:[%s542 + $0x88] sm:$0xff]
        %v561 = vld [vmem:[%s542 + $0x90] sm:$0xff]
        %v562 = vld [vmem:[%s542 + $0x98] sm:$0xff]
        %v563 = vld [vmem:[%s542 + $0xa0] sm:$0xff]
        %v564 = vld [vmem:[%s542 + $0xa8] sm:$0xff]
        %v565 = vld [vmem:[%s542 + $0xb0] sm:$0xff]
        %v566 = vld [vmem:[%s542 + $0xb8] sm:$0xff]
        %v567 = vld [vmem:[%s542 + $0xc0] sm:$0xff]
        %v568 = vld [vmem:[%s542 + $0xc8] sm:$0xff]
        %v569 = vld [vmem:[%s542 + $0xd0] sm:$0xff]
        %v570 = vld [vmem:[%s542 + $0xd8] sm:$0xff]
        %v571 = vld [vmem:[%s542 + $0xe0] sm:$0xff]
        %v572 = vld [vmem:[%s542 + $0xe8] sm:$0xff]
        %v573 = vld [vmem:[%s542 + $0xf0] sm:$0xff]
        %v574 = vld [vmem:[%s542 + $0xf8] sm:$0xff]
        %v575 = vld [vmem:[%s542 + $0x100] sm:$0xff]
        %v576 = vld [vmem:[%s542 + $0x108] sm:$0xff]
        %v577 = vld [vmem:[%s542 + $0x110] sm:$0xff]
        %v578 = vld [vmem:[%s542 + $0x118] sm:$0xff]
        %v579 = vld [vmem:[%s542 + $0x120] sm:$0xff]
        %v580 = vld [vmem:[%s542 + $0x128] sm:$0xff]
        %v581 = vld [vmem:[%s542 + $0x130] sm:$0xff]
        %v582 = vld [vmem:[%s542 + $0x138] sm:$0xff]
        %v583 = vld [vmem:[%s542 + $0x140] sm:$0xff]
        %v584 = vld [vmem:[%s542 + $0x148] sm:$0xff]
        %v585 = vld [vmem:[%s542 + $0x150] sm:$0xff]
        %v586 = vld [vmem:[%s542 + $0x158] sm:$0xff]
        %v587 = vld [vmem:[%s542 + $0x160] sm:$0xff]
        %v588 = vld [vmem:[%s542 + $0x168] sm:$0xff]
        %v589 = vld [vmem:[%s542 + $0x170] sm:$0xff]
        %v590 = vld [vmem:[%s542 + $0x178] sm:$0xff]
        %v591 = vld [vmem:[%s542 + $0x180] sm:$0xff]
        %v592 = vld [vmem:[%s542 + $0x188] sm:$0xff]
        %v593 = vld [vmem:[%s542 + $0x190] sm:$0xff]
        %v594 = vld [vmem:[%s542 + $0x198] sm:$0xff]
        %v595 = vld [vmem:[%s542 + $0x1a0] sm:$0xff]
        %v596 = vld [vmem:[%s542 + $0x1a8] sm:$0xff]
        %v597 = vld [vmem:[%s542 + $0x1b0] sm:$0xff]
        %v598 = vld [vmem:[%s542 + $0x1b8] sm:$0xff]
        %v599 = vld [vmem:[%s542 + $0x1c0] sm:$0xff]
        %v600 = vld [vmem:[%s542 + $0x1c8] sm:$0xff]
        %v601 = vld [vmem:[%s542 + $0x1d0] sm:$0xff]
        %v602 = vld [vmem:[%s542 + $0x1d8] sm:$0xff]
        %v603 = vld [vmem:[%s542 + $0x1e0] sm:$0xff]
        %v604 = vld [vmem:[%s542 + $0x1e8] sm:$0xff]
        %v605 = vld [vmem:[%s542 + $0x1f0] sm:$0xff]
        %v606 = vld [vmem:[%s542 + $0x1f8] sm:$0xff]
        %s607 = scalar_lea.vmem %s3, %s541
        %v608 = vld [vmem:[%s607] sm:$0xff]
        %v609 = vld [vmem:[%s607 + $0x8] sm:$0xff]
        %v610 = vld [vmem:[%s607 + $0x10] sm:$0xff]
        %v611 = vld [vmem:[%s607 + $0x18] sm:$0xff]
        %v612 = vld [vmem:[%s607 + $0x20] sm:$0xff]
        %v613 = vld [vmem:[%s607 + $0x28] sm:$0xff]
        %v614 = vld [vmem:[%s607 + $0x30] sm:$0xff]
        %v615 = vld [vmem:[%s607 + $0x38] sm:$0xff]
        %v616 = vld [vmem:[%s607 + $0x40] sm:$0xff]
        %v617 = vld [vmem:[%s607 + $0x48] sm:$0xff]
        %v618 = vld [vmem:[%s607 + $0x50] sm:$0xff]
        %v619 = vld [vmem:[%s607 + $0x58] sm:$0xff]
        %v620 = vld [vmem:[%s607 + $0x60] sm:$0xff]
        %v621 = vld [vmem:[%s607 + $0x68] sm:$0xff]
        %v622 = vld [vmem:[%s607 + $0x70] sm:$0xff]
        %v623 = vld [vmem:[%s607 + $0x78] sm:$0xff]
        %v624 = vld [vmem:[%s607 + $0x80] sm:$0xff]
        %v625 = vld [vmem:[%s607 + $0x88] sm:$0xff]
        %v626 = vld [vmem:[%s607 + $0x90] sm:$0xff]
        %v627 = vld [vmem:[%s607 + $0x98] sm:$0xff]
        %v628 = vld [vmem:[%s607 + $0xa0] sm:$0xff]
        %v629 = vld [vmem:[%s607 + $0xa8] sm:$0xff]
        %v630 = vld [vmem:[%s607 + $0xb0] sm:$0xff]
        %v631 = vld [vmem:[%s607 + $0xb8] sm:$0xff]
        %v632 = vld [vmem:[%s607 + $0xc0] sm:$0xff]
        %v633 = vld [vmem:[%s607 + $0xc8] sm:$0xff]
        %v634 = vld [vmem:[%s607 + $0xd0] sm:$0xff]
        %v635 = vld [vmem:[%s607 + $0xd8] sm:$0xff]
        %v636 = vld [vmem:[%s607 + $0xe0] sm:$0xff]
        %v637 = vld [vmem:[%s607 + $0xe8] sm:$0xff]
        %v638 = vld [vmem:[%s607 + $0xf0] sm:$0xff]
        %v639 = vld [vmem:[%s607 + $0xf8] sm:$0xff]
        %v640 = vld [vmem:[%s607 + $0x100] sm:$0xff]
        %v641 = vld [vmem:[%s607 + $0x108] sm:$0xff]
        %v642 = vld [vmem:[%s607 + $0x110] sm:$0xff]
        %v643 = vld [vmem:[%s607 + $0x118] sm:$0xff]
        %v644 = vld [vmem:[%s607 + $0x120] sm:$0xff]
        %v645 = vld [vmem:[%s607 + $0x128] sm:$0xff]
        %v646 = vld [vmem:[%s607 + $0x130] sm:$0xff]
        %v647 = vld [vmem:[%s607 + $0x138] sm:$0xff]
        %v648 = vld [vmem:[%s607 + $0x140] sm:$0xff]
        %v649 = vld [vmem:[%s607 + $0x148] sm:$0xff]
        %v650 = vld [vmem:[%s607 + $0x150] sm:$0xff]
        %v651 = vld [vmem:[%s607 + $0x158] sm:$0xff]
        %v652 = vld [vmem:[%s607 + $0x160] sm:$0xff]
        %v653 = vld [vmem:[%s607 + $0x168] sm:$0xff]
        %v654 = vld [vmem:[%s607 + $0x170] sm:$0xff]
        %v655 = vld [vmem:[%s607 + $0x178] sm:$0xff]
        %v656 = vld [vmem:[%s607 + $0x180] sm:$0xff]
        %v657 = vld [vmem:[%s607 + $0x188] sm:$0xff]
        %v658 = vld [vmem:[%s607 + $0x190] sm:$0xff]
        %v659 = vld [vmem:[%s607 + $0x198] sm:$0xff]
        %v660 = vld [vmem:[%s607 + $0x1a0] sm:$0xff]
        %v661 = vld [vmem:[%s607 + $0x1a8] sm:$0xff]
        %v662 = vld [vmem:[%s607 + $0x1b0] sm:$0xff]
        %v663 = vld [vmem:[%s607 + $0x1b8] sm:$0xff]
        %v664 = vld [vmem:[%s607 + $0x1c0] sm:$0xff]
        %v665 = vld [vmem:[%s607 + $0x1c8] sm:$0xff]
        %v666 = vld [vmem:[%s607 + $0x1d0] sm:$0xff]
        %v667 = vld [vmem:[%s607 + $0x1d8] sm:$0xff]
        %v668 = vld [vmem:[%s607 + $0x1e0] sm:$0xff]
        %v669 = vld [vmem:[%s607 + $0x1e8] sm:$0xff]
        %v670 = vld [vmem:[%s607 + $0x1f0] sm:$0xff]
        %v671 = vld [vmem:[%s607 + $0x1f8] sm:$0xff]
        %v672 = vld [vmem:[%s511] sm:$0xff]
        %v673 = vld [vmem:[%s511 + $0x8] sm:$0xff]
        %v674 = vld [vmem:[%s511 + $0x10] sm:$0xff]
        %v675 = vld [vmem:[%s511 + $0x18] sm:$0xff]
        %v676 = vld [vmem:[%s511 + $0x20] sm:$0xff]
        %v677 = vld [vmem:[%s511 + $0x28] sm:$0xff]
        %v678 = vld [vmem:[%s511 + $0x30] sm:$0xff]
        %v679 = vld [vmem:[%s511 + $0x38] sm:$0xff]
        %v680 = vld [vmem:[%s511 + $0x40] sm:$0xff]
        %v681 = vld [vmem:[%s511 + $0x48] sm:$0xff]
        %v682 = vld [vmem:[%s511 + $0x50] sm:$0xff]
        %v683 = vld [vmem:[%s511 + $0x58] sm:$0xff]
        %v684 = vld [vmem:[%s511 + $0x60] sm:$0xff]
        %v685 = vld [vmem:[%s511 + $0x68] sm:$0xff]
        %v686 = vld [vmem:[%s511 + $0x70] sm:$0xff]
        %v687 = vld [vmem:[%s511 + $0x78] sm:$0xff]
        %v688 = vld [vmem:[%s511 + $0x80] sm:$0xff]
        %v689 = vld [vmem:[%s511 + $0x88] sm:$0xff]
        %v690 = vld [vmem:[%s511 + $0x90] sm:$0xff]
        %v691 = vld [vmem:[%s511 + $0x98] sm:$0xff]
        %v692 = vld [vmem:[%s511 + $0xa0] sm:$0xff]
        %v693 = vld [vmem:[%s511 + $0xa8] sm:$0xff]
        %v694 = vld [vmem:[%s511 + $0xb0] sm:$0xff]
        %v695 = vld [vmem:[%s511 + $0xb8] sm:$0xff]
        %v696 = vld [vmem:[%s511 + $0xc0] sm:$0xff]
        %v697 = vld [vmem:[%s511 + $0xc8] sm:$0xff]
        %v698 = vld [vmem:[%s511 + $0xd0] sm:$0xff]
        %v699 = vld [vmem:[%s511 + $0xd8] sm:$0xff]
        %v700 = vld [vmem:[%s511 + $0xe0] sm:$0xff]
        %v701 = vld [vmem:[%s511 + $0xe8] sm:$0xff]
        %v702 = vld [vmem:[%s511 + $0xf0] sm:$0xff]
        %v703 = vld [vmem:[%s511 + $0xf8] sm:$0xff]
        %v704 = vld [vmem:[%s511 + $0x100] sm:$0xff]
        %v705 = vld [vmem:[%s511 + $0x108] sm:$0xff]
        %v706 = vld [vmem:[%s511 + $0x110] sm:$0xff]
        %v707 = vld [vmem:[%s511 + $0x118] sm:$0xff]
        %v708 = vld [vmem:[%s511 + $0x120] sm:$0xff]
        %v709 = vld [vmem:[%s511 + $0x128] sm:$0xff]
        %v710 = vld [vmem:[%s511 + $0x130] sm:$0xff]
        %v711 = vld [vmem:[%s511 + $0x138] sm:$0xff]
        %v712 = vld [vmem:[%s511 + $0x140] sm:$0xff]
        %v713 = vld [vmem:[%s511 + $0x148] sm:$0xff]
        %v714 = vld [vmem:[%s511 + $0x150] sm:$0xff]
        %v715 = vld [vmem:[%s511 + $0x158] sm:$0xff]
        %v716 = vld [vmem:[%s511 + $0x160] sm:$0xff]
        %v717 = vld [vmem:[%s511 + $0x168] sm:$0xff]
        %v718 = vld [vmem:[%s511 + $0x170] sm:$0xff]
        %v719 = vld [vmem:[%s511 + $0x178] sm:$0xff]
        %v720 = vld [vmem:[%s511 + $0x180] sm:$0xff]
        %v721 = vld [vmem:[%s511 + $0x188] sm:$0xff]
        %v722 = vld [vmem:[%s511 + $0x190] sm:$0xff]
        %v723 = vld [vmem:[%s511 + $0x198] sm:$0xff]
        %v724 = vld [vmem:[%s511 + $0x1a0] sm:$0xff]
        %v725 = vld [vmem:[%s511 + $0x1a8] sm:$0xff]
        %v726 = vld [vmem:[%s511 + $0x1b0] sm:$0xff]
        %v727 = vld [vmem:[%s511 + $0x1b8] sm:$0xff]
        %v728 = vld [vmem:[%s511 + $0x1c0] sm:$0xff]
        %v729 = vld [vmem:[%s511 + $0x1c8] sm:$0xff]
        %v730 = vld [vmem:[%s511 + $0x1d0] sm:$0xff]
        %v731 = vld [vmem:[%s511 + $0x1d8] sm:$0xff]
        %v732 = vld [vmem:[%s511 + $0x1e0] sm:$0xff]
        %v733 = vld [vmem:[%s511 + $0x1e8] sm:$0xff]
        %v734 = vld [vmem:[%s511 + $0x1f0] sm:$0xff]
        %v735 = vld [vmem:[%s511 + $0x1f8] sm:$0xff]
        %v736 = vld [vmem:[%s511 + $0x200] sm:$0xff]
        %v737 = vld [vmem:[%s511 + $0x208] sm:$0xff]
        %v738 = vld [vmem:[%s511 + $0x210] sm:$0xff]
        %v739 = vld [vmem:[%s511 + $0x218] sm:$0xff]
        %v740 = vld [vmem:[%s511 + $0x220] sm:$0xff]
        %v741 = vld [vmem:[%s511 + $0x228] sm:$0xff]
        %v742 = vld [vmem:[%s511 + $0x230] sm:$0xff]
        %v743 = vld [vmem:[%s511 + $0x238] sm:$0xff]
        %v744 = vld [vmem:[%s511 + $0x240] sm:$0xff]
        %v745 = vld [vmem:[%s511 + $0x248] sm:$0xff]
        %v746 = vld [vmem:[%s511 + $0x250] sm:$0xff]
        %v747 = vld [vmem:[%s511 + $0x258] sm:$0xff]
        %v748 = vld [vmem:[%s511 + $0x260] sm:$0xff]
        %v749 = vld [vmem:[%s511 + $0x268] sm:$0xff]
        %v750 = vld [vmem:[%s511 + $0x270] sm:$0xff]
        %v751 = vld [vmem:[%s511 + $0x278] sm:$0xff]
        %v752 = vld [vmem:[%s511 + $0x280] sm:$0xff]
        %v753 = vld [vmem:[%s511 + $0x288] sm:$0xff]
        %v754 = vld [vmem:[%s511 + $0x290] sm:$0xff]
        %v755 = vld [vmem:[%s511 + $0x298] sm:$0xff]
        %v756 = vld [vmem:[%s511 + $0x2a0] sm:$0xff]
        %v757 = vld [vmem:[%s511 + $0x2a8] sm:$0xff]
        %v758 = vld [vmem:[%s511 + $0x2b0] sm:$0xff]
        %v759 = vld [vmem:[%s511 + $0x2b8] sm:$0xff]
        %v760 = vld [vmem:[%s511 + $0x2c0] sm:$0xff]
        %v761 = vld [vmem:[%s511 + $0x2c8] sm:$0xff]
        %v762 = vld [vmem:[%s511 + $0x2d0] sm:$0xff]
        %v763 = vld [vmem:[%s511 + $0x2d8] sm:$0xff]
        %v764 = vld [vmem:[%s511 + $0x2e0] sm:$0xff]
        %v765 = vld [vmem:[%s511 + $0x2e8] sm:$0xff]
        %v766 = vld [vmem:[%s511 + $0x2f0] sm:$0xff]
        %v767 = vld [vmem:[%s511 + $0x2f8] sm:$0xff]
        %v768 = vld [vmem:[%s511 + $0x300] sm:$0xff]
        %v769 = vld [vmem:[%s511 + $0x308] sm:$0xff]
        %v770 = vld [vmem:[%s511 + $0x310] sm:$0xff]
        %v771 = vld [vmem:[%s511 + $0x318] sm:$0xff]
        %v772 = vld [vmem:[%s511 + $0x320] sm:$0xff]
        %v773 = vld [vmem:[%s511 + $0x328] sm:$0xff]
        %v774 = vld [vmem:[%s511 + $0x330] sm:$0xff]
        %v775 = vld [vmem:[%s511 + $0x338] sm:$0xff]
        %v776 = vld [vmem:[%s511 + $0x340] sm:$0xff]
        %v777 = vld [vmem:[%s511 + $0x348] sm:$0xff]
        %v778 = vld [vmem:[%s511 + $0x350] sm:$0xff]
        %v779 = vld [vmem:[%s511 + $0x358] sm:$0xff]
        %v780 = vld [vmem:[%s511 + $0x360] sm:$0xff]
        %v781 = vld [vmem:[%s511 + $0x368] sm:$0xff]
        %v782 = vld [vmem:[%s511 + $0x370] sm:$0xff]
        %v783 = vld [vmem:[%s511 + $0x378] sm:$0xff]
        %v784 = vld [vmem:[%s511 + $0x380] sm:$0xff]
        %v785 = vld [vmem:[%s511 + $0x388] sm:$0xff]
        %v786 = vld [vmem:[%s511 + $0x390] sm:$0xff]
        %v787 = vld [vmem:[%s511 + $0x398] sm:$0xff]
        %v788 = vld [vmem:[%s511 + $0x3a0] sm:$0xff]
        %v789 = vld [vmem:[%s511 + $0x3a8] sm:$0xff]
        %v790 = vld [vmem:[%s511 + $0x3b0] sm:$0xff]
        %v791 = vld [vmem:[%s511 + $0x3b8] sm:$0xff]
        %v792 = vld [vmem:[%s511 + $0x3c0] sm:$0xff]
        %v793 = vld [vmem:[%s511 + $0x3c8] sm:$0xff]
        %v794 = vld [vmem:[%s511 + $0x3d0] sm:$0xff]
        %v795 = vld [vmem:[%s511 + $0x3d8] sm:$0xff]
        %v796 = vld [vmem:[%s511 + $0x3e0] sm:$0xff]
        %v797 = vld [vmem:[%s511 + $0x3e8] sm:$0xff]
        %v798 = vld [vmem:[%s511 + $0x3f0] sm:$0xff]
        %v799 = vld [vmem:[%s511 + $0x3f8] sm:$0xff]
        %vm800 = vcmask 556032
        %v801 = vsel %vm800, %v673, 0.0
        %v802 = vadd.f32 %v672, %v801
        %803 = vadd.xlane.f32.xlu0 %v802
        %v804 = vpop.xlane.xlu0 %803
        %v805 = vsel %vm800, %v675, 0.0
        %v806 = vadd.f32 %v674, %v805
        %807 = vadd.xlane.f32.xlu0 %v806
        %v808 = vpop.xlane.xlu0 %807
        %v809 = vsel %vm800, %v677, 0.0
        %v810 = vadd.f32 %v676, %v809
        %811 = vadd.xlane.f32.xlu0 %v810
        %v812 = vpop.xlane.xlu0 %811
        %v813 = vsel %vm800, %v679, 0.0
        %v814 = vadd.f32 %v678, %v813
        %815 = vadd.xlane.f32.xlu0 %v814
        %v816 = vpop.xlane.xlu0 %815
        %v817 = vsel %vm800, %v681, 0.0
        %v818 = vadd.f32 %v680, %v817
        %819 = vadd.xlane.f32.xlu0 %v818
        %v820 = vpop.xlane.xlu0 %819
        %v821 = vsel %vm800, %v683, 0.0
        %v822 = vadd.f32 %v682, %v821
        %823 = vadd.xlane.f32.xlu0 %v822
        %v824 = vpop.xlane.xlu0 %823
        %v825 = vsel %vm800, %v685, 0.0
        %v826 = vadd.f32 %v684, %v825
        %827 = vadd.xlane.f32.xlu0 %v826
        %v828 = vpop.xlane.xlu0 %827
        %v829 = vsel %vm800, %v687, 0.0
        %v830 = vadd.f32 %v686, %v829
        %831 = vadd.xlane.f32.xlu0 %v830
        %v832 = vpop.xlane.xlu0 %831
        %v833 = vsel %vm800, %v689, 0.0
        %v834 = vadd.f32 %v688, %v833
        %835 = vadd.xlane.f32.xlu0 %v834
        %v836 = vpop.xlane.xlu0 %835
        %v837 = vsel %vm800, %v691, 0.0
        %v838 = vadd.f32 %v690, %v837
        %839 = vadd.xlane.f32.xlu0 %v838
        %v840 = vpop.xlane.xlu0 %839
        %v841 = vsel %vm800, %v693, 0.0
        %v842 = vadd.f32 %v692, %v841
        %843 = vadd.xlane.f32.xlu0 %v842
        %v844 = vpop.xlane.xlu0 %843
        %v845 = vsel %vm800, %v695, 0.0
        %v846 = vadd.f32 %v694, %v845
        %847 = vadd.xlane.f32.xlu0 %v846
        %v848 = vpop.xlane.xlu0 %847
        %v849 = vsel %vm800, %v697, 0.0
        %v850 = vadd.f32 %v696, %v849
        %851 = vadd.xlane.f32.xlu0 %v850
        %v852 = vpop.xlane.xlu0 %851
        %v853 = vsel %vm800, %v699, 0.0
        %v854 = vadd.f32 %v698, %v853
        %855 = vadd.xlane.f32.xlu0 %v854
        %v856 = vpop.xlane.xlu0 %855
        %v857 = vsel %vm800, %v701, 0.0
        %v858 = vadd.f32 %v700, %v857
        %859 = vadd.xlane.f32.xlu0 %v858
        %v860 = vpop.xlane.xlu0 %859
        %v861 = vsel %vm800, %v703, 0.0
        %v862 = vadd.f32 %v702, %v861
        %863 = vadd.xlane.f32.xlu0 %v862
        %v864 = vpop.xlane.xlu0 %863
        %v865 = vsel %vm800, %v705, 0.0
        %v866 = vadd.f32 %v704, %v865
        %867 = vadd.xlane.f32.xlu0 %v866
        %v868 = vpop.xlane.xlu0 %867
        %v869 = vsel %vm800, %v707, 0.0
        %v870 = vadd.f32 %v706, %v869
        %871 = vadd.xlane.f32.xlu0 %v870
        %v872 = vpop.xlane.xlu0 %871
        %v873 = vsel %vm800, %v709, 0.0
        %v874 = vadd.f32 %v708, %v873
        %875 = vadd.xlane.f32.xlu0 %v874
        %v876 = vpop.xlane.xlu0 %875
        %v877 = vsel %vm800, %v711, 0.0
        %v878 = vadd.f32 %v710, %v877
        %879 = vadd.xlane.f32.xlu0 %v878
        %v880 = vpop.xlane.xlu0 %879
        %v881 = vsel %vm800, %v713, 0.0
        %v882 = vadd.f32 %v712, %v881
        %883 = vadd.xlane.f32.xlu0 %v882
        %v884 = vpop.xlane.xlu0 %883
        %v885 = vsel %vm800, %v715, 0.0
        %v886 = vadd.f32 %v714, %v885
        %887 = vadd.xlane.f32.xlu0 %v886
        %v888 = vpop.xlane.xlu0 %887
        %v889 = vsel %vm800, %v717, 0.0
        %v890 = vadd.f32 %v716, %v889
        %891 = vadd.xlane.f32.xlu0 %v890
        %v892 = vpop.xlane.xlu0 %891
        %v893 = vsel %vm800, %v719, 0.0
        %v894 = vadd.f32 %v718, %v893
        %895 = vadd.xlane.f32.xlu0 %v894
        %v896 = vpop.xlane.xlu0 %895
        %v897 = vsel %vm800, %v721, 0.0
        %v898 = vadd.f32 %v720, %v897
        %899 = vadd.xlane.f32.xlu0 %v898
        %v900 = vpop.xlane.xlu0 %899
        %v901 = vsel %vm800, %v723, 0.0
        %v902 = vadd.f32 %v722, %v901
        %903 = vadd.xlane.f32.xlu0 %v902
        %v904 = vpop.xlane.xlu0 %903
        %v905 = vsel %vm800, %v725, 0.0
        %v906 = vadd.f32 %v724, %v905
        %907 = vadd.xlane.f32.xlu0 %v906
        %v908 = vpop.xlane.xlu0 %907
        %v909 = vsel %vm800, %v727, 0.0
        %v910 = vadd.f32 %v726, %v909
        %911 = vadd.xlane.f32.xlu0 %v910
        %v912 = vpop.xlane.xlu0 %911
        %v913 = vsel %vm800, %v729, 0.0
        %v914 = vadd.f32 %v728, %v913
        %915 = vadd.xlane.f32.xlu0 %v914
        %v916 = vpop.xlane.xlu0 %915
        %v917 = vsel %vm800, %v731, 0.0
        %v918 = vadd.f32 %v730, %v917
        %919 = vadd.xlane.f32.xlu0 %v918
        %v920 = vpop.xlane.xlu0 %919
        %v921 = vsel %vm800, %v733, 0.0
        %v922 = vadd.f32 %v732, %v921
        %923 = vadd.xlane.f32.xlu0 %v922
        %v924 = vpop.xlane.xlu0 %923
        %v925 = vsel %vm800, %v735, 0.0
        %v926 = vadd.f32 %v734, %v925
        %927 = vadd.xlane.f32.xlu0 %v926
        %v928 = vpop.xlane.xlu0 %927
        %v929 = vsel %vm800, %v737, 0.0
        %v930 = vadd.f32 %v736, %v929
        %931 = vadd.xlane.f32.xlu0 %v930
        %v932 = vpop.xlane.xlu0 %931
        %v933 = vsel %vm800, %v739, 0.0
        %v934 = vadd.f32 %v738, %v933
        %935 = vadd.xlane.f32.xlu0 %v934
        %v936 = vpop.xlane.xlu0 %935
        %v937 = vsel %vm800, %v741, 0.0
        %v938 = vadd.f32 %v740, %v937
        %939 = vadd.xlane.f32.xlu0 %v938
        %v940 = vpop.xlane.xlu0 %939
        %v941 = vsel %vm800, %v743, 0.0
        %v942 = vadd.f32 %v742, %v941
        %943 = vadd.xlane.f32.xlu0 %v942
        %v944 = vpop.xlane.xlu0 %943
        %v945 = vsel %vm800, %v745, 0.0
        %v946 = vadd.f32 %v744, %v945
        %947 = vadd.xlane.f32.xlu0 %v946
        %v948 = vpop.xlane.xlu0 %947
        %v949 = vsel %vm800, %v747, 0.0
        %v950 = vadd.f32 %v746, %v949
        %951 = vadd.xlane.f32.xlu0 %v950
        %v952 = vpop.xlane.xlu0 %951
        %v953 = vsel %vm800, %v749, 0.0
        %v954 = vadd.f32 %v748, %v953
        %955 = vadd.xlane.f32.xlu0 %v954
        %v956 = vpop.xlane.xlu0 %955
        %v957 = vsel %vm800, %v751, 0.0
        %v958 = vadd.f32 %v750, %v957
        %959 = vadd.xlane.f32.xlu0 %v958
        %v960 = vpop.xlane.xlu0 %959
        %v961 = vsel %vm800, %v753, 0.0
        %v962 = vadd.f32 %v752, %v961
        %963 = vadd.xlane.f32.xlu0 %v962
        %v964 = vpop.xlane.xlu0 %963
        %v965 = vsel %vm800, %v755, 0.0
        %v966 = vadd.f32 %v754, %v965
        %967 = vadd.xlane.f32.xlu0 %v966
        %v968 = vpop.xlane.xlu0 %967
        %v969 = vsel %vm800, %v757, 0.0
        %v970 = vadd.f32 %v756, %v969
        %971 = vadd.xlane.f32.xlu0 %v970
        %v972 = vpop.xlane.xlu0 %971
        %v973 = vsel %vm800, %v759, 0.0
        %v974 = vadd.f32 %v758, %v973
        %975 = vadd.xlane.f32.xlu0 %v974
        %v976 = vpop.xlane.xlu0 %975
        %v977 = vsel %vm800, %v761, 0.0
        %v978 = vadd.f32 %v760, %v977
        %979 = vadd.xlane.f32.xlu0 %v978
        %v980 = vpop.xlane.xlu0 %979
        %v981 = vsel %vm800, %v763, 0.0
        %v982 = vadd.f32 %v762, %v981
        %983 = vadd.xlane.f32.xlu0 %v982
        %v984 = vpop.xlane.xlu0 %983
        %v985 = vsel %vm800, %v765, 0.0
        %v986 = vadd.f32 %v764, %v985
        %987 = vadd.xlane.f32.xlu0 %v986
        %v988 = vpop.xlane.xlu0 %987
        %v989 = vsel %vm800, %v767, 0.0
        %v990 = vadd.f32 %v766, %v989
        %991 = vadd.xlane.f32.xlu0 %v990
        %v992 = vpop.xlane.xlu0 %991
        %v993 = vsel %vm800, %v769, 0.0
        %v994 = vadd.f32 %v768, %v993
        %995 = vadd.xlane.f32.xlu0 %v994
        %v996 = vpop.xlane.xlu0 %995
        %v997 = vsel %vm800, %v771, 0.0
        %v998 = vadd.f32 %v770, %v997
        %999 = vadd.xlane.f32.xlu0 %v998
        %v1000 = vpop.xlane.xlu0 %999
        %v1001 = vsel %vm800, %v773, 0.0
        %v1002 = vadd.f32 %v772, %v1001
        %1003 = vadd.xlane.f32.xlu0 %v1002
        %v1004 = vpop.xlane.xlu0 %1003
        %v1005 = vsel %vm800, %v775, 0.0
        %v1006 = vadd.f32 %v774, %v1005
        %1007 = vadd.xlane.f32.xlu0 %v1006
        %v1008 = vpop.xlane.xlu0 %1007
        %v1009 = vsel %vm800, %v777, 0.0
        %v1010 = vadd.f32 %v776, %v1009
        %1011 = vadd.xlane.f32.xlu0 %v1010
        %v1012 = vpop.xlane.xlu0 %1011
        %v1013 = vsel %vm800, %v779, 0.0
        %v1014 = vadd.f32 %v778, %v1013
        %1015 = vadd.xlane.f32.xlu0 %v1014
        %v1016 = vpop.xlane.xlu0 %1015
        %v1017 = vsel %vm800, %v781, 0.0
        %v1018 = vadd.f32 %v780, %v1017
        %1019 = vadd.xlane.f32.xlu0 %v1018
        %v1020 = vpop.xlane.xlu0 %1019
        %v1021 = vsel %vm800, %v783, 0.0
        %v1022 = vadd.f32 %v782, %v1021
        %1023 = vadd.xlane.f32.xlu0 %v1022
        %v1024 = vpop.xlane.xlu0 %1023
        %v1025 = vsel %vm800, %v785, 0.0
        %v1026 = vadd.f32 %v784, %v1025
        %1027 = vadd.xlane.f32.xlu0 %v1026
        %v1028 = vpop.xlane.xlu0 %1027
        %v1029 = vsel %vm800, %v787, 0.0
        %v1030 = vadd.f32 %v786, %v1029
        %1031 = vadd.xlane.f32.xlu0 %v1030
        %v1032 = vpop.xlane.xlu0 %1031
        %v1033 = vsel %vm800, %v789, 0.0
        %v1034 = vadd.f32 %v788, %v1033
        %1035 = vadd.xlane.f32.xlu0 %v1034
        %v1036 = vpop.xlane.xlu0 %1035
        %v1037 = vsel %vm800, %v791, 0.0
        %v1038 = vadd.f32 %v790, %v1037
        %1039 = vadd.xlane.f32.xlu0 %v1038
        %v1040 = vpop.xlane.xlu0 %1039
        %v1041 = vsel %vm800, %v793, 0.0
        %v1042 = vadd.f32 %v792, %v1041
        %1043 = vadd.xlane.f32.xlu0 %v1042
        %v1044 = vpop.xlane.xlu0 %1043
        %v1045 = vsel %vm800, %v795, 0.0
        %v1046 = vadd.f32 %v794, %v1045
        %1047 = vadd.xlane.f32.xlu0 %v1046
        %v1048 = vpop.xlane.xlu0 %1047
        %v1049 = vsel %vm800, %v797, 0.0
        %v1050 = vadd.f32 %v796, %v1049
        %1051 = vadd.xlane.f32.xlu0 %v1050
        %v1052 = vpop.xlane.xlu0 %1051
        %v1053 = vsel %vm800, %v799, 0.0
        %v1054 = vadd.f32 %v798, %v1053
        %1055 = vadd.xlane.f32.xlu0 %v1054
        %v1056 = vpop.xlane.xlu0 %1055
        %v1057 = vmul.f32 %v804, 0.0051020407
        %v1058 = vmul.f32 %v808, 0.0051020407
        %v1059 = vmul.f32 %v812, 0.0051020407
        %v1060 = vmul.f32 %v816, 0.0051020407
        %v1061 = vmul.f32 %v820, 0.0051020407
        %v1062 = vmul.f32 %v824, 0.0051020407
        %v1063 = vmul.f32 %v828, 0.0051020407
        %v1064 = vmul.f32 %v832, 0.0051020407
        %v1065 = vmul.f32 %v836, 0.0051020407
        %v1066 = vmul.f32 %v840, 0.0051020407
        %v1067 = vmul.f32 %v844, 0.0051020407
        %v1068 = vmul.f32 %v848, 0.0051020407
        %v1069 = vmul.f32 %v852, 0.0051020407
        %v1070 = vmul.f32 %v856, 0.0051020407
        %v1071 = vmul.f32 %v860, 0.0051020407
        %v1072 = vmul.f32 %v864, 0.0051020407
        %v1073 = vmul.f32 %v868, 0.0051020407
        %v1074 = vmul.f32 %v872, 0.0051020407
        %v1075 = vmul.f32 %v876, 0.0051020407
        %v1076 = vmul.f32 %v880, 0.0051020407
        %v1077 = vmul.f32 %v884, 0.0051020407
        %v1078 = vmul.f32 %v888, 0.0051020407
        %v1079 = vmul.f32 %v892, 0.0051020407
        %v1080 = vmul.f32 %v896, 0.0051020407
        %v1081 = vmul.f32 %v900, 0.0051020407
        %v1082 = vmul.f32 %v904, 0.0051020407
        %v1083 = vmul.f32 %v908, 0.0051020407
        %v1084 = vmul.f32 %v912, 0.0051020407
        %v1085 = vmul.f32 %v916, 0.0051020407
        %v1086 = vmul.f32 %v920, 0.0051020407
        %v1087 = vmul.f32 %v924, 0.0051020407
        %v1088 = vmul.f32 %v928, 0.0051020407
        %v1089 = vmul.f32 %v932, 0.0051020407
        %v1090 = vmul.f32 %v936, 0.0051020407
        %v1091 = vmul.f32 %v940, 0.0051020407
        %v1092 = vmul.f32 %v944, 0.0051020407
        %v1093 = vmul.f32 %v948, 0.0051020407
        %v1094 = vmul.f32 %v952, 0.0051020407
        %v1095 = vmul.f32 %v956, 0.0051020407
        %v1096 = vmul.f32 %v960, 0.0051020407
        %v1097 = vmul.f32 %v964, 0.0051020407
        %v1098 = vmul.f32 %v968, 0.0051020407
        %v1099 = vmul.f32 %v972, 0.0051020407
        %v1100 = vmul.f32 %v976, 0.0051020407
        %v1101 = vmul.f32 %v980, 0.0051020407
        %v1102 = vmul.f32 %v984, 0.0051020407
        %v1103 = vmul.f32 %v988, 0.0051020407
        %v1104 = vmul.f32 %v992, 0.0051020407
        %v1105 = vmul.f32 %v996, 0.0051020407
        %v1106 = vmul.f32 %v1000, 0.0051020407
        %v1107 = vmul.f32 %v1004, 0.0051020407
        %v1108 = vmul.f32 %v1008, 0.0051020407
        %v1109 = vmul.f32 %v1012, 0.0051020407
        %v1110 = vmul.f32 %v1016, 0.0051020407
        %v1111 = vmul.f32 %v1020, 0.0051020407
        %v1112 = vmul.f32 %v1024, 0.0051020407
        %v1113 = vmul.f32 %v1028, 0.0051020407
        %v1114 = vmul.f32 %v1032, 0.0051020407
        %v1115 = vmul.f32 %v1036, 0.0051020407
        %v1116 = vmul.f32 %v1040, 0.0051020407
        %v1117 = vmul.f32 %v1044, 0.0051020407
        %v1118 = vmul.f32 %v1048, 0.0051020407
        %v1119 = vmul.f32 %v1052, 0.0051020407
        %v1120 = vmul.f32 %v1056, 0.0051020407
        %v1121 = vsub.f32 %v672, %v1057
        %v1122 = vsub.f32 %v673, %v1057
        %v1123 = vsub.f32 %v674, %v1058
        %v1124 = vsub.f32 %v675, %v1058
        %v1125 = vsub.f32 %v676, %v1059
        %v1126 = vsub.f32 %v677, %v1059
        %v1127 = vsub.f32 %v678, %v1060
        %v1128 = vsub.f32 %v679, %v1060
        %v1129 = vsub.f32 %v680, %v1061
        %v1130 = vsub.f32 %v681, %v1061
        %v1131 = vsub.f32 %v682, %v1062
        %v1132 = vsub.f32 %v683, %v1062
        %v1133 = vsub.f32 %v684, %v1063
        %v1134 = vsub.f32 %v685, %v1063
        %v1135 = vsub.f32 %v686, %v1064
        %v1136 = vsub.f32 %v687, %v1064
        %v1137 = vsub.f32 %v688, %v1065
        %v1138 = vsub.f32 %v689, %v1065
        %v1139 = vsub.f32 %v690, %v1066
        %v1140 = vsub.f32 %v691, %v1066
        %v1141 = vsub.f32 %v692, %v1067
        %v1142 = vsub.f32 %v693, %v1067
        %v1143 = vsub.f32 %v694, %v1068
        %v1144 = vsub.f32 %v695, %v1068
        %v1145 = vsub.f32 %v696, %v1069
        %v1146 = vsub.f32 %v697, %v1069
        %v1147 = vsub.f32 %v698, %v1070
        %v1148 = vsub.f32 %v699, %v1070
        %v1149 = vsub.f32 %v700, %v1071
        %v1150 = vsub.f32 %v701, %v1071
        %v1151 = vsub.f32 %v702, %v1072
        %v1152 = vsub.f32 %v703, %v1072
        %v1153 = vsub.f32 %v704, %v1073
        %v1154 = vsub.f32 %v705, %v1073
        %v1155 = vsub.f32 %v706, %v1074
        %v1156 = vsub.f32 %v707, %v1074
        %v1157 = vsub.f32 %v708, %v1075
        %v1158 = vsub.f32 %v709, %v1075
        %v1159 = vsub.f32 %v710, %v1076
        %v1160 = vsub.f32 %v711, %v1076
        %v1161 = vsub.f32 %v712, %v1077
        %v1162 = vsub.f32 %v713, %v1077
        %v1163 = vsub.f32 %v714, %v1078
        %v1164 = vsub.f32 %v715, %v1078
        %v1165 = vsub.f32 %v716, %v1079
        %v1166 = vsub.f32 %v717, %v1079
        %v1167 = vsub.f32 %v718, %v1080
        %v1168 = vsub.f32 %v719, %v1080
        %v1169 = vsub.f32 %v720, %v1081
        %v1170 = vsub.f32 %v721, %v1081
        %v1171 = vsub.f32 %v722, %v1082
        %v1172 = vsub.f32 %v723, %v1082
        %v1173 = vsub.f32 %v724, %v1083
        %v1174 = vsub.f32 %v725, %v1083
        %v1175 = vsub.f32 %v726, %v1084
        %v1176 = vsub.f32 %v727, %v1084
        %v1177 = vsub.f32 %v728, %v1085
        %v1178 = vsub.f32 %v729, %v1085
        %v1179 = vsub.f32 %v730, %v1086
        %v1180 = vsub.f32 %v731, %v1086
        %v1181 = vsub.f32 %v732, %v1087
        %v1182 = vsub.f32 %v733, %v1087
        %v1183 = vsub.f32 %v734, %v1088
        %v1184 = vsub.f32 %v735, %v1088
        %v1185 = vsub.f32 %v736, %v1089
        %v1186 = vsub.f32 %v737, %v1089
        %v1187 = vsub.f32 %v738, %v1090
        %v1188 = vsub.f32 %v739, %v1090
        %v1189 = vsub.f32 %v740, %v1091
        %v1190 = vsub.f32 %v741, %v1091
        %v1191 = vsub.f32 %v742, %v1092
        %v1192 = vsub.f32 %v743, %v1092
        %v1193 = vsub.f32 %v744, %v1093
        %v1194 = vsub.f32 %v745, %v1093
        %v1195 = vsub.f32 %v746, %v1094
        %v1196 = vsub.f32 %v747, %v1094
        %v1197 = vsub.f32 %v748, %v1095
        %v1198 = vsub.f32 %v749, %v1095
        %v1199 = vsub.f32 %v750, %v1096
        %v1200 = vsub.f32 %v751, %v1096
        %v1201 = vsub.f32 %v752, %v1097
        %v1202 = vsub.f32 %v753, %v1097
        %v1203 = vsub.f32 %v754, %v1098
        %v1204 = vsub.f32 %v755, %v1098
        %v1205 = vsub.f32 %v756, %v1099
        %v1206 = vsub.f32 %v757, %v1099
        %v1207 = vsub.f32 %v758, %v1100
        %v1208 = vsub.f32 %v759, %v1100
        %v1209 = vsub.f32 %v760, %v1101
        %v1210 = vsub.f32 %v761, %v1101
        %v1211 = vsub.f32 %v762, %v1102
        %v1212 = vsub.f32 %v763, %v1102
        %v1213 = vsub.f32 %v764, %v1103
        %v1214 = vsub.f32 %v765, %v1103
        %v1215 = vsub.f32 %v766, %v1104
        %v1216 = vsub.f32 %v767, %v1104
        %v1217 = vsub.f32 %v768, %v1105
        %v1218 = vsub.f32 %v769, %v1105
        %v1219 = vsub.f32 %v770, %v1106
        %v1220 = vsub.f32 %v771, %v1106
        %v1221 = vsub.f32 %v772, %v1107
        %v1222 = vsub.f32 %v773, %v1107
        %v1223 = vsub.f32 %v774, %v1108
        %v1224 = vsub.f32 %v775, %v1108
        %v1225 = vsub.f32 %v776, %v1109
        %v1226 = vsub.f32 %v777, %v1109
        %v1227 = vsub.f32 %v778, %v1110
        %v1228 = vsub.f32 %v779, %v1110
        %v1229 = vsub.f32 %v780, %v1111
        %v1230 = vsub.f32 %v781, %v1111
        %v1231 = vsub.f32 %v782, %v1112
        %v1232 = vsub.f32 %v783, %v1112
        %v1233 = vsub.f32 %v784, %v1113
        %v1234 = vsub.f32 %v785, %v1113
        %v1235 = vsub.f32 %v786, %v1114
        %v1236 = vsub.f32 %v787, %v1114
        %v1237 = vsub.f32 %v788, %v1115
        %v1238 = vsub.f32 %v789, %v1115
        %v1239 = vsub.f32 %v790, %v1116
        %v1240 = vsub.f32 %v791, %v1116
        %v1241 = vsub.f32 %v792, %v1117
        %v1242 = vsub.f32 %v793, %v1117
        %v1243 = vsub.f32 %v794, %v1118
        %v1244 = vsub.f32 %v795, %v1118
        %v1245 = vsub.f32 %v796, %v1119
        %v1246 = vsub.f32 %v797, %v1119
        %v1247 = vsub.f32 %v798, %v1120
        %v1248 = vsub.f32 %v799, %v1120
        %v1249 = vmul.f32 %v1121, %v1121
        %v1250 = vmul.f32 %v1122, %v1122
        %v1251 = vmul.f32 %v1123, %v1123
        %v1252 = vmul.f32 %v1124, %v1124
        %v1253 = vmul.f32 %v1125, %v1125
        %v1254 = vmul.f32 %v1126, %v1126
        %v1255 = vmul.f32 %v1127, %v1127
        %v1256 = vmul.f32 %v1128, %v1128
        %v1257 = vmul.f32 %v1129, %v1129
        %v1258 = vmul.f32 %v1130, %v1130
        %v1259 = vmul.f32 %v1131, %v1131
        %v1260 = vmul.f32 %v1132, %v1132
        %v1261 = vmul.f32 %v1133, %v1133
        %v1262 = vmul.f32 %v1134, %v1134
        %v1263 = vmul.f32 %v1135, %v1135
        %v1264 = vmul.f32 %v1136, %v1136
        %v1265 = vmul.f32 %v1137, %v1137
        %v1266 = vmul.f32 %v1138, %v1138
        %v1267 = vmul.f32 %v1139, %v1139
        %v1268 = vmul.f32 %v1140, %v1140
        %v1269 = vmul.f32 %v1141, %v1141
        %v1270 = vmul.f32 %v1142, %v1142
        %v1271 = vmul.f32 %v1143, %v1143
        %v1272 = vmul.f32 %v1144, %v1144
        %v1273 = vmul.f32 %v1145, %v1145
        %v1274 = vmul.f32 %v1146, %v1146
        %v1275 = vmul.f32 %v1147, %v1147
        %v1276 = vmul.f32 %v1148, %v1148
        %v1277 = vmul.f32 %v1149, %v1149
        %v1278 = vmul.f32 %v1150, %v1150
        %v1279 = vmul.f32 %v1151, %v1151
        %v1280 = vmul.f32 %v1152, %v1152
        %v1281 = vmul.f32 %v1153, %v1153
        %v1282 = vmul.f32 %v1154, %v1154
        %v1283 = vmul.f32 %v1155, %v1155
        %v1284 = vmul.f32 %v1156, %v1156
        %v1285 = vmul.f32 %v1157, %v1157
        %v1286 = vmul.f32 %v1158, %v1158
        %v1287 = vmul.f32 %v1159, %v1159
        %v1288 = vmul.f32 %v1160, %v1160
        %v1289 = vmul.f32 %v1161, %v1161
        %v1290 = vmul.f32 %v1162, %v1162
        %v1291 = vmul.f32 %v1163, %v1163
        %v1292 = vmul.f32 %v1164, %v1164
        %v1293 = vmul.f32 %v1165, %v1165
        %v1294 = vmul.f32 %v1166, %v1166
        %v1295 = vmul.f32 %v1167, %v1167
        %v1296 = vmul.f32 %v1168, %v1168
        %v1297 = vmul.f32 %v1169, %v1169
        %v1298 = vmul.f32 %v1170, %v1170
        %v1299 = vmul.f32 %v1171, %v1171
        %v1300 = vmul.f32 %v1172, %v1172
        %v1301 = vmul.f32 %v1173, %v1173
        %v1302 = vmul.f32 %v1174, %v1174
        %v1303 = vmul.f32 %v1175, %v1175
        %v1304 = vmul.f32 %v1176, %v1176
        %v1305 = vmul.f32 %v1177, %v1177
        %v1306 = vmul.f32 %v1178, %v1178
        %v1307 = vmul.f32 %v1179, %v1179
        %v1308 = vmul.f32 %v1180, %v1180
        %v1309 = vmul.f32 %v1181, %v1181
        %v1310 = vmul.f32 %v1182, %v1182
        %v1311 = vmul.f32 %v1183, %v1183
        %v1312 = vmul.f32 %v1184, %v1184
        %v1313 = vmul.f32 %v1185, %v1185
        %v1314 = vmul.f32 %v1186, %v1186
        %v1315 = vmul.f32 %v1187, %v1187
        %v1316 = vmul.f32 %v1188, %v1188
        %v1317 = vmul.f32 %v1189, %v1189
        %v1318 = vmul.f32 %v1190, %v1190
        %v1319 = vmul.f32 %v1191, %v1191
        %v1320 = vmul.f32 %v1192, %v1192
        %v1321 = vmul.f32 %v1193, %v1193
        %v1322 = vmul.f32 %v1194, %v1194
        %v1323 = vmul.f32 %v1195, %v1195
        %v1324 = vmul.f32 %v1196, %v1196
        %v1325 = vmul.f32 %v1197, %v1197
        %v1326 = vmul.f32 %v1198, %v1198
        %v1327 = vmul.f32 %v1199, %v1199
        %v1328 = vmul.f32 %v1200, %v1200
        %v1329 = vmul.f32 %v1201, %v1201
        %v1330 = vmul.f32 %v1202, %v1202
        %v1331 = vmul.f32 %v1203, %v1203
        %v1332 = vmul.f32 %v1204, %v1204
        %v1333 = vmul.f32 %v1205, %v1205
        %v1334 = vmul.f32 %v1206, %v1206
        %v1335 = vmul.f32 %v1207, %v1207
        %v1336 = vmul.f32 %v1208, %v1208
        %v1337 = vmul.f32 %v1209, %v1209
        %v1338 = vmul.f32 %v1210, %v1210
        %v1339 = vmul.f32 %v1211, %v1211
        %v1340 = vmul.f32 %v1212, %v1212
        %v1341 = vmul.f32 %v1213, %v1213
        %v1342 = vmul.f32 %v1214, %v1214
        %v1343 = vmul.f32 %v1215, %v1215
        %v1344 = vmul.f32 %v1216, %v1216
        %v1345 = vmul.f32 %v1217, %v1217
        %v1346 = vmul.f32 %v1218, %v1218
        %v1347 = vmul.f32 %v1219, %v1219
        %v1348 = vmul.f32 %v1220, %v1220
        %v1349 = vmul.f32 %v1221, %v1221
        %v1350 = vmul.f32 %v1222, %v1222
        %v1351 = vmul.f32 %v1223, %v1223
        %v1352 = vmul.f32 %v1224, %v1224
        %v1353 = vmul.f32 %v1225, %v1225
        %v1354 = vmul.f32 %v1226, %v1226
        %v1355 = vmul.f32 %v1227, %v1227
        %v1356 = vmul.f32 %v1228, %v1228
        %v1357 = vmul.f32 %v1229, %v1229
        %v1358 = vmul.f32 %v1230, %v1230
        %v1359 = vmul.f32 %v1231, %v1231
        %v1360 = vmul.f32 %v1232, %v1232
        %v1361 = vmul.f32 %v1233, %v1233
        %v1362 = vmul.f32 %v1234, %v1234
        %v1363 = vmul.f32 %v1235, %v1235
        %v1364 = vmul.f32 %v1236, %v1236
        %v1365 = vmul.f32 %v1237, %v1237
        %v1366 = vmul.f32 %v1238, %v1238
        %v1367 = vmul.f32 %v1239, %v1239
        %v1368 = vmul.f32 %v1240, %v1240
        %v1369 = vmul.f32 %v1241, %v1241
        %v1370 = vmul.f32 %v1242, %v1242
        %v1371 = vmul.f32 %v1243, %v1243
        %v1372 = vmul.f32 %v1244, %v1244
        %v1373 = vmul.f32 %v1245, %v1245
        %v1374 = vmul.f32 %v1246, %v1246
        %v1375 = vmul.f32 %v1247, %v1247
        %v1376 = vmul.f32 %v1248, %v1248
        %v1377 = vsel %vm800, %v1250, 0.0
        %v1378 = vadd.f32 %v1249, %v1377
        %1379 = vadd.xlane.f32.xlu0 %v1378
        %v1380 = vpop.xlane.xlu0 %1379
        %v1381 = vsel %vm800, %v1252, 0.0
        %v1382 = vadd.f32 %v1251, %v1381
        %1383 = vadd.xlane.f32.xlu0 %v1382
        %v1384 = vpop.xlane.xlu0 %1383
        %v1385 = vsel %vm800, %v1254, 0.0
        %v1386 = vadd.f32 %v1253, %v1385
        %1387 = vadd.xlane.f32.xlu0 %v1386
        %v1388 = vpop.xlane.xlu0 %1387
        %v1389 = vsel %vm800, %v1256, 0.0
        %v1390 = vadd.f32 %v1255, %v1389
        %1391 = vadd.xlane.f32.xlu0 %v1390
        %v1392 = vpop.xlane.xlu0 %1391
        %v1393 = vsel %vm800, %v1258, 0.0
        %v1394 = vadd.f32 %v1257, %v1393
        %1395 = vadd.xlane.f32.xlu0 %v1394
        %v1396 = vpop.xlane.xlu0 %1395
        %v1397 = vsel %vm800, %v1260, 0.0
        %v1398 = vadd.f32 %v1259, %v1397
        %1399 = vadd.xlane.f32.xlu0 %v1398
        %v1400 = vpop.xlane.xlu0 %1399
        %v1401 = vsel %vm800, %v1262, 0.0
        %v1402 = vadd.f32 %v1261, %v1401
        %1403 = vadd.xlane.f32.xlu0 %v1402
        %v1404 = vpop.xlane.xlu0 %1403
        %v1405 = vsel %vm800, %v1264, 0.0
        %v1406 = vadd.f32 %v1263, %v1405
        %1407 = vadd.xlane.f32.xlu0 %v1406
        %v1408 = vpop.xlane.xlu0 %1407
        %v1409 = vsel %vm800, %v1266, 0.0
        %v1410 = vadd.f32 %v1265, %v1409
        %1411 = vadd.xlane.f32.xlu0 %v1410
        %v1412 = vpop.xlane.xlu0 %1411
        %v1413 = vsel %vm800, %v1268, 0.0
        %v1414 = vadd.f32 %v1267, %v1413
        %1415 = vadd.xlane.f32.xlu0 %v1414
        %v1416 = vpop.xlane.xlu0 %1415
        %v1417 = vsel %vm800, %v1270, 0.0
        %v1418 = vadd.f32 %v1269, %v1417
        %1419 = vadd.xlane.f32.xlu0 %v1418
        %v1420 = vpop.xlane.xlu0 %1419
        %v1421 = vsel %vm800, %v1272, 0.0
        %v1422 = vadd.f32 %v1271, %v1421
        %1423 = vadd.xlane.f32.xlu0 %v1422
        %v1424 = vpop.xlane.xlu0 %1423
        %v1425 = vsel %vm800, %v1274, 0.0
        %v1426 = vadd.f32 %v1273, %v1425
        %1427 = vadd.xlane.f32.xlu0 %v1426
        %v1428 = vpop.xlane.xlu0 %1427
        %v1429 = vsel %vm800, %v1276, 0.0
        %v1430 = vadd.f32 %v1275, %v1429
        %1431 = vadd.xlane.f32.xlu0 %v1430
        %v1432 = vpop.xlane.xlu0 %1431
        %v1433 = vsel %vm800, %v1278, 0.0
        %v1434 = vadd.f32 %v1277, %v1433
        %1435 = vadd.xlane.f32.xlu0 %v1434
        %v1436 = vpop.xlane.xlu0 %1435
        %v1437 = vsel %vm800, %v1280, 0.0
        %v1438 = vadd.f32 %v1279, %v1437
        %1439 = vadd.xlane.f32.xlu0 %v1438
        %v1440 = vpop.xlane.xlu0 %1439
        %v1441 = vsel %vm800, %v1282, 0.0
        %v1442 = vadd.f32 %v1281, %v1441
        %1443 = vadd.xlane.f32.xlu0 %v1442
        %v1444 = vpop.xlane.xlu0 %1443
        %v1445 = vsel %vm800, %v1284, 0.0
        %v1446 = vadd.f32 %v1283, %v1445
        %1447 = vadd.xlane.f32.xlu0 %v1446
        %v1448 = vpop.xlane.xlu0 %1447
        %v1449 = vsel %vm800, %v1286, 0.0
        %v1450 = vadd.f32 %v1285, %v1449
        %1451 = vadd.xlane.f32.xlu0 %v1450
        %v1452 = vpop.xlane.xlu0 %1451
        %v1453 = vsel %vm800, %v1288, 0.0
        %v1454 = vadd.f32 %v1287, %v1453
        %1455 = vadd.xlane.f32.xlu0 %v1454
        %v1456 = vpop.xlane.xlu0 %1455
        %v1457 = vsel %vm800, %v1290, 0.0
        %v1458 = vadd.f32 %v1289, %v1457
        %1459 = vadd.xlane.f32.xlu0 %v1458
        %v1460 = vpop.xlane.xlu0 %1459
        %v1461 = vsel %vm800, %v1292, 0.0
        %v1462 = vadd.f32 %v1291, %v1461
        %1463 = vadd.xlane.f32.xlu0 %v1462
        %v1464 = vpop.xlane.xlu0 %1463
        %v1465 = vsel %vm800, %v1294, 0.0
        %v1466 = vadd.f32 %v1293, %v1465
        %1467 = vadd.xlane.f32.xlu0 %v1466
        %v1468 = vpop.xlane.xlu0 %1467
        %v1469 = vsel %vm800, %v1296, 0.0
        %v1470 = vadd.f32 %v1295, %v1469
        %1471 = vadd.xlane.f32.xlu0 %v1470
        %v1472 = vpop.xlane.xlu0 %1471
        %v1473 = vsel %vm800, %v1298, 0.0
        %v1474 = vadd.f32 %v1297, %v1473
        %1475 = vadd.xlane.f32.xlu0 %v1474
        %v1476 = vpop.xlane.xlu0 %1475
        %v1477 = vsel %vm800, %v1300, 0.0
        %v1478 = vadd.f32 %v1299, %v1477
        %1479 = vadd.xlane.f32.xlu0 %v1478
        %v1480 = vpop.xlane.xlu0 %1479
        %v1481 = vsel %vm800, %v1302, 0.0
        %v1482 = vadd.f32 %v1301, %v1481
        %1483 = vadd.xlane.f32.xlu0 %v1482
        %v1484 = vpop.xlane.xlu0 %1483
        %v1485 = vsel %vm800, %v1304, 0.0
        %v1486 = vadd.f32 %v1303, %v1485
        %1487 = vadd.xlane.f32.xlu0 %v1486
        %v1488 = vpop.xlane.xlu0 %1487
        %v1489 = vsel %vm800, %v1306, 0.0
        %v1490 = vadd.f32 %v1305, %v1489
        %1491 = vadd.xlane.f32.xlu0 %v1490
        %v1492 = vpop.xlane.xlu0 %1491
        %v1493 = vsel %vm800, %v1308, 0.0
        %v1494 = vadd.f32 %v1307, %v1493
        %1495 = vadd.xlane.f32.xlu0 %v1494
        %v1496 = vpop.xlane.xlu0 %1495
        %v1497 = vsel %vm800, %v1310, 0.0
        %v1498 = vadd.f32 %v1309, %v1497
        %1499 = vadd.xlane.f32.xlu0 %v1498
        %v1500 = vpop.xlane.xlu0 %1499
        %v1501 = vsel %vm800, %v1312, 0.0
        %v1502 = vadd.f32 %v1311, %v1501
        %1503 = vadd.xlane.f32.xlu0 %v1502
        %v1504 = vpop.xlane.xlu0 %1503
        %v1505 = vsel %vm800, %v1314, 0.0
        %v1506 = vadd.f32 %v1313, %v1505
        %1507 = vadd.xlane.f32.xlu0 %v1506
        %v1508 = vpop.xlane.xlu0 %1507
        %v1509 = vsel %vm800, %v1316, 0.0
        %v1510 = vadd.f32 %v1315, %v1509
        %1511 = vadd.xlane.f32.xlu0 %v1510
        %v1512 = vpop.xlane.xlu0 %1511
        %v1513 = vsel %vm800, %v1318, 0.0
        %v1514 = vadd.f32 %v1317, %v1513
        %1515 = vadd.xlane.f32.xlu0 %v1514
        %v1516 = vpop.xlane.xlu0 %1515
        %v1517 = vsel %vm800, %v1320, 0.0
        %v1518 = vadd.f32 %v1319, %v1517
        %1519 = vadd.xlane.f32.xlu0 %v1518
        %v1520 = vpop.xlane.xlu0 %1519
        %v1521 = vsel %vm800, %v1322, 0.0
        %v1522 = vadd.f32 %v1321, %v1521
        %1523 = vadd.xlane.f32.xlu0 %v1522
        %v1524 = vpop.xlane.xlu0 %1523
        %v1525 = vsel %vm800, %v1324, 0.0
        %v1526 = vadd.f32 %v1323, %v1525
        %1527 = vadd.xlane.f32.xlu0 %v1526
        %v1528 = vpop.xlane.xlu0 %1527
        %v1529 = vsel %vm800, %v1326, 0.0
        %v1530 = vadd.f32 %v1325, %v1529
        %1531 = vadd.xlane.f32.xlu0 %v1530
        %v1532 = vpop.xlane.xlu0 %1531
        %v1533 = vsel %vm800, %v1328, 0.0
        %v1534 = vadd.f32 %v1327, %v1533
        %1535 = vadd.xlane.f32.xlu0 %v1534
        %v1536 = vpop.xlane.xlu0 %1535
        %v1537 = vsel %vm800, %v1330, 0.0
        %v1538 = vadd.f32 %v1329, %v1537
        %1539 = vadd.xlane.f32.xlu0 %v1538
        %v1540 = vpop.xlane.xlu0 %1539
        %v1541 = vsel %vm800, %v1332, 0.0
        %v1542 = vadd.f32 %v1331, %v1541
        %1543 = vadd.xlane.f32.xlu0 %v1542
        %v1544 = vpop.xlane.xlu0 %1543
        %v1545 = vsel %vm800, %v1334, 0.0
        %v1546 = vadd.f32 %v1333, %v1545
        %1547 = vadd.xlane.f32.xlu0 %v1546
        %v1548 = vpop.xlane.xlu0 %1547
        %v1549 = vsel %vm800, %v1336, 0.0
        %v1550 = vadd.f32 %v1335, %v1549
        %1551 = vadd.xlane.f32.xlu0 %v1550
        %v1552 = vpop.xlane.xlu0 %1551
        %v1553 = vsel %vm800, %v1338, 0.0
        %v1554 = vadd.f32 %v1337, %v1553
        %1555 = vadd.xlane.f32.xlu0 %v1554
        %v1556 = vpop.xlane.xlu0 %1555
        %v1557 = vsel %vm800, %v1340, 0.0
        %v1558 = vadd.f32 %v1339, %v1557
        %1559 = vadd.xlane.f32.xlu0 %v1558
        %v1560 = vpop.xlane.xlu0 %1559
        %v1561 = vsel %vm800, %v1342, 0.0
        %v1562 = vadd.f32 %v1341, %v1561
        %1563 = vadd.xlane.f32.xlu0 %v1562
        %v1564 = vpop.xlane.xlu0 %1563
        %v1565 = vsel %vm800, %v1344, 0.0
        %v1566 = vadd.f32 %v1343, %v1565
        %1567 = vadd.xlane.f32.xlu0 %v1566
        %v1568 = vpop.xlane.xlu0 %1567
        %v1569 = vsel %vm800, %v1346, 0.0
        %v1570 = vadd.f32 %v1345, %v1569
        %1571 = vadd.xlane.f32.xlu0 %v1570
        %v1572 = vpop.xlane.xlu0 %1571
        %v1573 = vsel %vm800, %v1348, 0.0
        %v1574 = vadd.f32 %v1347, %v1573
        %1575 = vadd.xlane.f32.xlu0 %v1574
        %v1576 = vpop.xlane.xlu0 %1575
        %v1577 = vsel %vm800, %v1350, 0.0
        %v1578 = vadd.f32 %v1349, %v1577
        %1579 = vadd.xlane.f32.xlu0 %v1578
        %v1580 = vpop.xlane.xlu0 %1579
        %v1581 = vsel %vm800, %v1352, 0.0
        %v1582 = vadd.f32 %v1351, %v1581
        %1583 = vadd.xlane.f32.xlu0 %v1582
        %v1584 = vpop.xlane.xlu0 %1583
        %v1585 = vsel %vm800, %v1354, 0.0
        %v1586 = vadd.f32 %v1353, %v1585
        %1587 = vadd.xlane.f32.xlu0 %v1586
        %v1588 = vpop.xlane.xlu0 %1587
        %v1589 = vsel %vm800, %v1356, 0.0
        %v1590 = vadd.f32 %v1355, %v1589
        %1591 = vadd.xlane.f32.xlu0 %v1590
        %v1592 = vpop.xlane.xlu0 %1591
        %v1593 = vsel %vm800, %v1358, 0.0
        %v1594 = vadd.f32 %v1357, %v1593
        %1595 = vadd.xlane.f32.xlu0 %v1594
        %v1596 = vpop.xlane.xlu0 %1595
        %v1597 = vsel %vm800, %v1360, 0.0
        %v1598 = vadd.f32 %v1359, %v1597
        %1599 = vadd.xlane.f32.xlu0 %v1598
        %v1600 = vpop.xlane.xlu0 %1599
        %v1601 = vsel %vm800, %v1362, 0.0
        %v1602 = vadd.f32 %v1361, %v1601
        %1603 = vadd.xlane.f32.xlu0 %v1602
        %v1604 = vpop.xlane.xlu0 %1603
        %v1605 = vsel %vm800, %v1364, 0.0
        %v1606 = vadd.f32 %v1363, %v1605
        %1607 = vadd.xlane.f32.xlu0 %v1606
        %v1608 = vpop.xlane.xlu0 %1607
        %v1609 = vsel %vm800, %v1366, 0.0
        %v1610 = vadd.f32 %v1365, %v1609
        %1611 = vadd.xlane.f32.xlu0 %v1610
        %v1612 = vpop.xlane.xlu0 %1611
        %v1613 = vsel %vm800, %v1368, 0.0
        %v1614 = vadd.f32 %v1367, %v1613
        %1615 = vadd.xlane.f32.xlu0 %v1614
        %v1616 = vpop.xlane.xlu0 %1615
        %v1617 = vsel %vm800, %v1370, 0.0
        %v1618 = vadd.f32 %v1369, %v1617
        %1619 = vadd.xlane.f32.xlu0 %v1618
        %v1620 = vpop.xlane.xlu0 %1619
        %v1621 = vsel %vm800, %v1372, 0.0
        %v1622 = vadd.f32 %v1371, %v1621
        %1623 = vadd.xlane.f32.xlu0 %v1622
        %v1624 = vpop.xlane.xlu0 %1623
        %v1625 = vsel %vm800, %v1374, 0.0
        %v1626 = vadd.f32 %v1373, %v1625
        %1627 = vadd.xlane.f32.xlu0 %v1626
        %v1628 = vpop.xlane.xlu0 %1627
        %v1629 = vsel %vm800, %v1376, 0.0
        %v1630 = vadd.f32 %v1375, %v1629
        %1631 = vadd.xlane.f32.xlu0 %v1630
        %v1632 = vpop.xlane.xlu0 %1631
        %v1633 = vmul.f32 %v1380, 0.0051020407
        %v1634 = vmul.f32 %v1384, 0.0051020407
        %v1635 = vmul.f32 %v1388, 0.0051020407
        %v1636 = vmul.f32 %v1392, 0.0051020407
        %v1637 = vmul.f32 %v1396, 0.0051020407
        %v1638 = vmul.f32 %v1400, 0.0051020407
        %v1639 = vmul.f32 %v1404, 0.0051020407
        %v1640 = vmul.f32 %v1408, 0.0051020407
        %v1641 = vmul.f32 %v1412, 0.0051020407
        %v1642 = vmul.f32 %v1416, 0.0051020407
        %v1643 = vmul.f32 %v1420, 0.0051020407
        %v1644 = vmul.f32 %v1424, 0.0051020407
        %v1645 = vmul.f32 %v1428, 0.0051020407
        %v1646 = vmul.f32 %v1432, 0.0051020407
        %v1647 = vmul.f32 %v1436, 0.0051020407
        %v1648 = vmul.f32 %v1440, 0.0051020407
        %v1649 = vmul.f32 %v1444, 0.0051020407
        %v1650 = vmul.f32 %v1448, 0.0051020407
        %v1651 = vmul.f32 %v1452, 0.0051020407
        %v1652 = vmul.f32 %v1456, 0.0051020407
        %v1653 = vmul.f32 %v1460, 0.0051020407
        %v1654 = vmul.f32 %v1464, 0.0051020407
        %v1655 = vmul.f32 %v1468, 0.0051020407
        %v1656 = vmul.f32 %v1472, 0.0051020407
        %v1657 = vmul.f32 %v1476, 0.0051020407
        %v1658 = vmul.f32 %v1480, 0.0051020407
        %v1659 = vmul.f32 %v1484, 0.0051020407
        %v1660 = vmul.f32 %v1488, 0.0051020407
        %v1661 = vmul.f32 %v1492, 0.0051020407
        %v1662 = vmul.f32 %v1496, 0.0051020407
        %v1663 = vmul.f32 %v1500, 0.0051020407
        %v1664 = vmul.f32 %v1504, 0.0051020407
        %v1665 = vmul.f32 %v1508, 0.0051020407
        %v1666 = vmul.f32 %v1512, 0.0051020407
        %v1667 = vmul.f32 %v1516, 0.0051020407
        %v1668 = vmul.f32 %v1520, 0.0051020407
        %v1669 = vmul.f32 %v1524, 0.0051020407
        %v1670 = vmul.f32 %v1528, 0.0051020407
        %v1671 = vmul.f32 %v1532, 0.0051020407
        %v1672 = vmul.f32 %v1536, 0.0051020407
        %v1673 = vmul.f32 %v1540, 0.0051020407
        %v1674 = vmul.f32 %v1544, 0.0051020407
        %v1675 = vmul.f32 %v1548, 0.0051020407
        %v1676 = vmul.f32 %v1552, 0.0051020407
        %v1677 = vmul.f32 %v1556, 0.0051020407
        %v1678 = vmul.f32 %v1560, 0.0051020407
        %v1679 = vmul.f32 %v1564, 0.0051020407
        %v1680 = vmul.f32 %v1568, 0.0051020407
        %v1681 = vmul.f32 %v1572, 0.0051020407
        %v1682 = vmul.f32 %v1576, 0.0051020407
        %v1683 = vmul.f32 %v1580, 0.0051020407
        %v1684 = vmul.f32 %v1584, 0.0051020407
        %v1685 = vmul.f32 %v1588, 0.0051020407
        %v1686 = vmul.f32 %v1592, 0.0051020407
        %v1687 = vmul.f32 %v1596, 0.0051020407
        %v1688 = vmul.f32 %v1600, 0.0051020407
        %v1689 = vmul.f32 %v1604, 0.0051020407
        %v1690 = vmul.f32 %v1608, 0.0051020407
        %v1691 = vmul.f32 %v1612, 0.0051020407
        %v1692 = vmul.f32 %v1616, 0.0051020407
        %v1693 = vmul.f32 %v1620, 0.0051020407
        %v1694 = vmul.f32 %v1624, 0.0051020407
        %v1695 = vmul.f32 %v1628, 0.0051020407
        %v1696 = vmul.f32 %v1632, 0.0051020407
        %v1697 = vadd.f32 %v1633, 1e-05
        %v1698 = vadd.f32 %v1634, 1e-05
        %v1699 = vadd.f32 %v1635, 1e-05
        %v1700 = vadd.f32 %v1636, 1e-05
        %v1701 = vadd.f32 %v1637, 1e-05
        %v1702 = vadd.f32 %v1638, 1e-05
        %v1703 = vadd.f32 %v1639, 1e-05
        %v1704 = vadd.f32 %v1640, 1e-05
        %v1705 = vadd.f32 %v1641, 1e-05
        %v1706 = vadd.f32 %v1642, 1e-05
        %v1707 = vadd.f32 %v1643, 1e-05
        %v1708 = vadd.f32 %v1644, 1e-05
        %v1709 = vadd.f32 %v1645, 1e-05
        %v1710 = vadd.f32 %v1646, 1e-05
        %v1711 = vadd.f32 %v1647, 1e-05
        %v1712 = vadd.f32 %v1648, 1e-05
        %v1713 = vadd.f32 %v1649, 1e-05
        %v1714 = vadd.f32 %v1650, 1e-05
        %v1715 = vadd.f32 %v1651, 1e-05
        %v1716 = vadd.f32 %v1652, 1e-05
        %v1717 = vadd.f32 %v1653, 1e-05
        %v1718 = vadd.f32 %v1654, 1e-05
        %v1719 = vadd.f32 %v1655, 1e-05
        %v1720 = vadd.f32 %v1656, 1e-05
        %v1721 = vadd.f32 %v1657, 1e-05
        %v1722 = vadd.f32 %v1658, 1e-05
        %v1723 = vadd.f32 %v1659, 1e-05
        %v1724 = vadd.f32 %v1660, 1e-05
        %v1725 = vadd.f32 %v1661, 1e-05
        %v1726 = vadd.f32 %v1662, 1e-05
        %v1727 = vadd.f32 %v1663, 1e-05
        %v1728 = vadd.f32 %v1664, 1e-05
        %v1729 = vadd.f32 %v1665, 1e-05
        %v1730 = vadd.f32 %v1666, 1e-05
        %v1731 = vadd.f32 %v1667, 1e-05
        %v1732 = vadd.f32 %v1668, 1e-05
        %v1733 = vadd.f32 %v1669, 1e-05
        %v1734 = vadd.f32 %v1670, 1e-05
        %v1735 = vadd.f32 %v1671, 1e-05
        %v1736 = vadd.f32 %v1672, 1e-05
        %v1737 = vadd.f32 %v1673, 1e-05
        %v1738 = vadd.f32 %v1674, 1e-05
        %v1739 = vadd.f32 %v1675, 1e-05
        %v1740 = vadd.f32 %v1676, 1e-05
        %v1741 = vadd.f32 %v1677, 1e-05
        %v1742 = vadd.f32 %v1678, 1e-05
        %v1743 = vadd.f32 %v1679, 1e-05
        %v1744 = vadd.f32 %v1680, 1e-05
        %v1745 = vadd.f32 %v1681, 1e-05
        %v1746 = vadd.f32 %v1682, 1e-05
        %v1747 = vadd.f32 %v1683, 1e-05
        %v1748 = vadd.f32 %v1684, 1e-05
        %v1749 = vadd.f32 %v1685, 1e-05
        %v1750 = vadd.f32 %v1686, 1e-05
        %v1751 = vadd.f32 %v1687, 1e-05
        %v1752 = vadd.f32 %v1688, 1e-05
        %v1753 = vadd.f32 %v1689, 1e-05
        %v1754 = vadd.f32 %v1690, 1e-05
        %v1755 = vadd.f32 %v1691, 1e-05
        %v1756 = vadd.f32 %v1692, 1e-05
        %v1757 = vadd.f32 %v1693, 1e-05
        %v1758 = vadd.f32 %v1694, 1e-05
        %v1759 = vadd.f32 %v1695, 1e-05
        %v1760 = vadd.f32 %v1696, 1e-05
        %v1761 = vrsqrt.pop %v1697
        %v1762 = vmul.f32 %v1761, %v1697
        %v1763 = vmul.f32 %v1762, %v1761
        %v1764 = vmul.f32 0.5, %v1763
        %v1765 = vsub.f32 1.5, %v1764
        %v1766 = vmul.f32 %v1761, %v1765
        %vm1767 = vweird.f32 %v1697
        %vm1768 = vweird.f32 %v1761
        %vm1769 = vmor %vm1767, %vm1768
        %v1770 = vsel %vm1769, %v1761, %v1766
        %v1771 = vrsqrt.pop %v1698
        %v1772 = vmul.f32 %v1771, %v1698
        %v1773 = vmul.f32 %v1772, %v1771
        %v1774 = vmul.f32 0.5, %v1773
        %v1775 = vsub.f32 1.5, %v1774
        %v1776 = vmul.f32 %v1771, %v1775
        %vm1777 = vweird.f32 %v1698
        %vm1778 = vweird.f32 %v1771
        %vm1779 = vmor %vm1777, %vm1778
        %v1780 = vsel %vm1779, %v1771, %v1776
        %v1781 = vrsqrt.pop %v1699
        %v1782 = vmul.f32 %v1781, %v1699
        %v1783 = vmul.f32 %v1782, %v1781
        %v1784 = vmul.f32 0.5, %v1783
        %v1785 = vsub.f32 1.5, %v1784
        %v1786 = vmul.f32 %v1781, %v1785
        %vm1787 = vweird.f32 %v1699
        %vm1788 = vweird.f32 %v1781
        %vm1789 = vmor %vm1787, %vm1788
        %v1790 = vsel %vm1789, %v1781, %v1786
        %v1791 = vrsqrt.pop %v1700
        %v1792 = vmul.f32 %v1791, %v1700
        %v1793 = vmul.f32 %v1792, %v1791
        %v1794 = vmul.f32 0.5, %v1793
        %v1795 = vsub.f32 1.5, %v1794
        %v1796 = vmul.f32 %v1791, %v1795
        %vm1797 = vweird.f32 %v1700
        %vm1798 = vweird.f32 %v1791
        %vm1799 = vmor %vm1797, %vm1798
        %v1800 = vsel %vm1799, %v1791, %v1796
        %v1801 = vrsqrt.pop %v1701
        %v1802 = vmul.f32 %v1801, %v1701
        %v1803 = vmul.f32 %v1802, %v1801
        %v1804 = vmul.f32 0.5, %v1803
        %v1805 = vsub.f32 1.5, %v1804
        %v1806 = vmul.f32 %v1801, %v1805
        %vm1807 = vweird.f32 %v1701
        %vm1808 = vweird.f32 %v1801
        %vm1809 = vmor %vm1807, %vm1808
        %v1810 = vsel %vm1809, %v1801, %v1806
        %v1811 = vrsqrt.pop %v1702
        %v1812 = vmul.f32 %v1811, %v1702
        %v1813 = vmul.f32 %v1812, %v1811
        %v1814 = vmul.f32 0.5, %v1813
        %v1815 = vsub.f32 1.5, %v1814
        %v1816 = vmul.f32 %v1811, %v1815
        %vm1817 = vweird.f32 %v1702
        %vm1818 = vweird.f32 %v1811
        %vm1819 = vmor %vm1817, %vm1818
        %v1820 = vsel %vm1819, %v1811, %v1816
        %v1821 = vrsqrt.pop %v1703
        %v1822 = vmul.f32 %v1821, %v1703
        %v1823 = vmul.f32 %v1822, %v1821
        %v1824 = vmul.f32 0.5, %v1823
        %v1825 = vsub.f32 1.5, %v1824
        %v1826 = vmul.f32 %v1821, %v1825
        %vm1827 = vweird.f32 %v1703
        %vm1828 = vweird.f32 %v1821
        %vm1829 = vmor %vm1827, %vm1828
        %v1830 = vsel %vm1829, %v1821, %v1826
        %v1831 = vrsqrt.pop %v1704
        %v1832 = vmul.f32 %v1831, %v1704
        %v1833 = vmul.f32 %v1832, %v1831
        %v1834 = vmul.f32 0.5, %v1833
        %v1835 = vsub.f32 1.5, %v1834
        %v1836 = vmul.f32 %v1831, %v1835
        %vm1837 = vweird.f32 %v1704
        %vm1838 = vweird.f32 %v1831
        %vm1839 = vmor %vm1837, %vm1838
        %v1840 = vsel %vm1839, %v1831, %v1836
        %v1841 = vrsqrt.pop %v1705
        %v1842 = vmul.f32 %v1841, %v1705
        %v1843 = vmul.f32 %v1842, %v1841
        %v1844 = vmul.f32 0.5, %v1843
        %v1845 = vsub.f32 1.5, %v1844
        %v1846 = vmul.f32 %v1841, %v1845
        %vm1847 = vweird.f32 %v1705
        %vm1848 = vweird.f32 %v1841
        %vm1849 = vmor %vm1847, %vm1848
        %v1850 = vsel %vm1849, %v1841, %v1846
        %v1851 = vrsqrt.pop %v1706
        %v1852 = vmul.f32 %v1851, %v1706
        %v1853 = vmul.f32 %v1852, %v1851
        %v1854 = vmul.f32 0.5, %v1853
        %v1855 = vsub.f32 1.5, %v1854
        %v1856 = vmul.f32 %v1851, %v1855
        %vm1857 = vweird.f32 %v1706
        %vm1858 = vweird.f32 %v1851
        %vm1859 = vmor %vm1857, %vm1858
        %v1860 = vsel %vm1859, %v1851, %v1856
        %v1861 = vrsqrt.pop %v1707
        %v1862 = vmul.f32 %v1861, %v1707
        %v1863 = vmul.f32 %v1862, %v1861
        %v1864 = vmul.f32 0.5, %v1863
        %v1865 = vsub.f32 1.5, %v1864
        %v1866 = vmul.f32 %v1861, %v1865
        %vm1867 = vweird.f32 %v1707
        %vm1868 = vweird.f32 %v1861
        %vm1869 = vmor %vm1867, %vm1868
        %v1870 = vsel %vm1869, %v1861, %v1866
        %v1871 = vrsqrt.pop %v1708
        %v1872 = vmul.f32 %v1871, %v1708
        %v1873 = vmul.f32 %v1872, %v1871
        %v1874 = vmul.f32 0.5, %v1873
        %v1875 = vsub.f32 1.5, %v1874
        %v1876 = vmul.f32 %v1871, %v1875
        %vm1877 = vweird.f32 %v1708
        %vm1878 = vweird.f32 %v1871
        %vm1879 = vmor %vm1877, %vm1878
        %v1880 = vsel %vm1879, %v1871, %v1876
        %v1881 = vrsqrt.pop %v1709
        %v1882 = vmul.f32 %v1881, %v1709
        %v1883 = vmul.f32 %v1882, %v1881
        %v1884 = vmul.f32 0.5, %v1883
        %v1885 = vsub.f32 1.5, %v1884
        %v1886 = vmul.f32 %v1881, %v1885
        %vm1887 = vweird.f32 %v1709
        %vm1888 = vweird.f32 %v1881
        %vm1889 = vmor %vm1887, %vm1888
        %v1890 = vsel %vm1889, %v1881, %v1886
        %v1891 = vrsqrt.pop %v1710
        %v1892 = vmul.f32 %v1891, %v1710
        %v1893 = vmul.f32 %v1892, %v1891
        %v1894 = vmul.f32 0.5, %v1893
        %v1895 = vsub.f32 1.5, %v1894
        %v1896 = vmul.f32 %v1891, %v1895
        %vm1897 = vweird.f32 %v1710
        %vm1898 = vweird.f32 %v1891
        %vm1899 = vmor %vm1897, %vm1898
        %v1900 = vsel %vm1899, %v1891, %v1896
        %v1901 = vrsqrt.pop %v1711
        %v1902 = vmul.f32 %v1901, %v1711
        %v1903 = vmul.f32 %v1902, %v1901
        %v1904 = vmul.f32 0.5, %v1903
        %v1905 = vsub.f32 1.5, %v1904
        %v1906 = vmul.f32 %v1901, %v1905
        %vm1907 = vweird.f32 %v1711
        %vm1908 = vweird.f32 %v1901
        %vm1909 = vmor %vm1907, %vm1908
        %v1910 = vsel %vm1909, %v1901, %v1906
        %v1911 = vrsqrt.pop %v1712
        %v1912 = vmul.f32 %v1911, %v1712
        %v1913 = vmul.f32 %v1912, %v1911
        %v1914 = vmul.f32 0.5, %v1913
        %v1915 = vsub.f32 1.5, %v1914
        %v1916 = vmul.f32 %v1911, %v1915
        %vm1917 = vweird.f32 %v1712
        %vm1918 = vweird.f32 %v1911
        %vm1919 = vmor %vm1917, %vm1918
        %v1920 = vsel %vm1919, %v1911, %v1916
        %v1921 = vrsqrt.pop %v1713
        %v1922 = vmul.f32 %v1921, %v1713
        %v1923 = vmul.f32 %v1922, %v1921
        %v1924 = vmul.f32 0.5, %v1923
        %v1925 = vsub.f32 1.5, %v1924
        %v1926 = vmul.f32 %v1921, %v1925
        %vm1927 = vweird.f32 %v1713
        %vm1928 = vweird.f32 %v1921
        %vm1929 = vmor %vm1927, %vm1928
        %v1930 = vsel %vm1929, %v1921, %v1926
        %v1931 = vrsqrt.pop %v1714
        %v1932 = vmul.f32 %v1931, %v1714
        %v1933 = vmul.f32 %v1932, %v1931
        %v1934 = vmul.f32 0.5, %v1933
        %v1935 = vsub.f32 1.5, %v1934
        %v1936 = vmul.f32 %v1931, %v1935
        %vm1937 = vweird.f32 %v1714
        %vm1938 = vweird.f32 %v1931
        %vm1939 = vmor %vm1937, %vm1938
        %v1940 = vsel %vm1939, %v1931, %v1936
        %v1941 = vrsqrt.pop %v1715
        %v1942 = vmul.f32 %v1941, %v1715
        %v1943 = vmul.f32 %v1942, %v1941
        %v1944 = vmul.f32 0.5, %v1943
        %v1945 = vsub.f32 1.5, %v1944
        %v1946 = vmul.f32 %v1941, %v1945
        %vm1947 = vweird.f32 %v1715
        %vm1948 = vweird.f32 %v1941
        %vm1949 = vmor %vm1947, %vm1948
        %v1950 = vsel %vm1949, %v1941, %v1946
        %v1951 = vrsqrt.pop %v1716
        %v1952 = vmul.f32 %v1951, %v1716
        %v1953 = vmul.f32 %v1952, %v1951
        %v1954 = vmul.f32 0.5, %v1953
        %v1955 = vsub.f32 1.5, %v1954
        %v1956 = vmul.f32 %v1951, %v1955
        %vm1957 = vweird.f32 %v1716
        %vm1958 = vweird.f32 %v1951
        %vm1959 = vmor %vm1957, %vm1958
        %v1960 = vsel %vm1959, %v1951, %v1956
        %v1961 = vrsqrt.pop %v1717
        %v1962 = vmul.f32 %v1961, %v1717
        %v1963 = vmul.f32 %v1962, %v1961
        %v1964 = vmul.f32 0.5, %v1963
        %v1965 = vsub.f32 1.5, %v1964
        %v1966 = vmul.f32 %v1961, %v1965
        %vm1967 = vweird.f32 %v1717
        %vm1968 = vweird.f32 %v1961
        %vm1969 = vmor %vm1967, %vm1968
        %v1970 = vsel %vm1969, %v1961, %v1966
        %v1971 = vrsqrt.pop %v1718
        %v1972 = vmul.f32 %v1971, %v1718
        %v1973 = vmul.f32 %v1972, %v1971
        %v1974 = vmul.f32 0.5, %v1973
        %v1975 = vsub.f32 1.5, %v1974
        %v1976 = vmul.f32 %v1971, %v1975
        %vm1977 = vweird.f32 %v1718
        %vm1978 = vweird.f32 %v1971
        %vm1979 = vmor %vm1977, %vm1978
        %v1980 = vsel %vm1979, %v1971, %v1976
        %v1981 = vrsqrt.pop %v1719
        %v1982 = vmul.f32 %v1981, %v1719
        %v1983 = vmul.f32 %v1982, %v1981
        %v1984 = vmul.f32 0.5, %v1983
        %v1985 = vsub.f32 1.5, %v1984
        %v1986 = vmul.f32 %v1981, %v1985
        %vm1987 = vweird.f32 %v1719
        %vm1988 = vweird.f32 %v1981
        %vm1989 = vmor %vm1987, %vm1988
        %v1990 = vsel %vm1989, %v1981, %v1986
        %v1991 = vrsqrt.pop %v1720
        %v1992 = vmul.f32 %v1991, %v1720
        %v1993 = vmul.f32 %v1992, %v1991
        %v1994 = vmul.f32 0.5, %v1993
        %v1995 = vsub.f32 1.5, %v1994
        %v1996 = vmul.f32 %v1991, %v1995
        %vm1997 = vweird.f32 %v1720
        %vm1998 = vweird.f32 %v1991
        %vm1999 = vmor %vm1997, %vm1998
        %v2000 = vsel %vm1999, %v1991, %v1996
        %v2001 = vrsqrt.pop %v1721
        %v2002 = vmul.f32 %v2001, %v1721
        %v2003 = vmul.f32 %v2002, %v2001
        %v2004 = vmul.f32 0.5, %v2003
        %v2005 = vsub.f32 1.5, %v2004
        %v2006 = vmul.f32 %v2001, %v2005
        %vm2007 = vweird.f32 %v1721
        %vm2008 = vweird.f32 %v2001
        %vm2009 = vmor %vm2007, %vm2008
        %v2010 = vsel %vm2009, %v2001, %v2006
        %v2011 = vrsqrt.pop %v1722
        %v2012 = vmul.f32 %v2011, %v1722
        %v2013 = vmul.f32 %v2012, %v2011
        %v2014 = vmul.f32 0.5, %v2013
        %v2015 = vsub.f32 1.5, %v2014
        %v2016 = vmul.f32 %v2011, %v2015
        %vm2017 = vweird.f32 %v1722
        %vm2018 = vweird.f32 %v2011
        %vm2019 = vmor %vm2017, %vm2018
        %v2020 = vsel %vm2019, %v2011, %v2016
        %v2021 = vrsqrt.pop %v1723
        %v2022 = vmul.f32 %v2021, %v1723
        %v2023 = vmul.f32 %v2022, %v2021
        %v2024 = vmul.f32 0.5, %v2023
        %v2025 = vsub.f32 1.5, %v2024
        %v2026 = vmul.f32 %v2021, %v2025
        %vm2027 = vweird.f32 %v1723
        %vm2028 = vweird.f32 %v2021
        %vm2029 = vmor %vm2027, %vm2028
        %v2030 = vsel %vm2029, %v2021, %v2026
        %v2031 = vrsqrt.pop %v1724
        %v2032 = vmul.f32 %v2031, %v1724
        %v2033 = vmul.f32 %v2032, %v2031
        %v2034 = vmul.f32 0.5, %v2033
        %v2035 = vsub.f32 1.5, %v2034
        %v2036 = vmul.f32 %v2031, %v2035
        %vm2037 = vweird.f32 %v1724
        %vm2038 = vweird.f32 %v2031
        %vm2039 = vmor %vm2037, %vm2038
        %v2040 = vsel %vm2039, %v2031, %v2036
        %v2041 = vrsqrt.pop %v1725
        %v2042 = vmul.f32 %v2041, %v1725
        %v2043 = vmul.f32 %v2042, %v2041
        %v2044 = vmul.f32 0.5, %v2043
        %v2045 = vsub.f32 1.5, %v2044
        %v2046 = vmul.f32 %v2041, %v2045
        %vm2047 = vweird.f32 %v1725
        %vm2048 = vweird.f32 %v2041
        %vm2049 = vmor %vm2047, %vm2048
        %v2050 = vsel %vm2049, %v2041, %v2046
        %v2051 = vrsqrt.pop %v1726
        %v2052 = vmul.f32 %v2051, %v1726
        %v2053 = vmul.f32 %v2052, %v2051
        %v2054 = vmul.f32 0.5, %v2053
        %v2055 = vsub.f32 1.5, %v2054
        %v2056 = vmul.f32 %v2051, %v2055
        %vm2057 = vweird.f32 %v1726
        %vm2058 = vweird.f32 %v2051
        %vm2059 = vmor %vm2057, %vm2058
        %v2060 = vsel %vm2059, %v2051, %v2056
        %v2061 = vrsqrt.pop %v1727
        %v2062 = vmul.f32 %v2061, %v1727
        %v2063 = vmul.f32 %v2062, %v2061
        %v2064 = vmul.f32 0.5, %v2063
        %v2065 = vsub.f32 1.5, %v2064
        %v2066 = vmul.f32 %v2061, %v2065
        %vm2067 = vweird.f32 %v1727
        %vm2068 = vweird.f32 %v2061
        %vm2069 = vmor %vm2067, %vm2068
        %v2070 = vsel %vm2069, %v2061, %v2066
        %v2071 = vrsqrt.pop %v1728
        %v2072 = vmul.f32 %v2071, %v1728
        %v2073 = vmul.f32 %v2072, %v2071
        %v2074 = vmul.f32 0.5, %v2073
        %v2075 = vsub.f32 1.5, %v2074
        %v2076 = vmul.f32 %v2071, %v2075
        %vm2077 = vweird.f32 %v1728
        %vm2078 = vweird.f32 %v2071
        %vm2079 = vmor %vm2077, %vm2078
        %v2080 = vsel %vm2079, %v2071, %v2076
        %v2081 = vrsqrt.pop %v1729
        %v2082 = vmul.f32 %v2081, %v1729
        %v2083 = vmul.f32 %v2082, %v2081
        %v2084 = vmul.f32 0.5, %v2083
        %v2085 = vsub.f32 1.5, %v2084
        %v2086 = vmul.f32 %v2081, %v2085
        %vm2087 = vweird.f32 %v1729
        %vm2088 = vweird.f32 %v2081
        %vm2089 = vmor %vm2087, %vm2088
        %v2090 = vsel %vm2089, %v2081, %v2086
        %v2091 = vrsqrt.pop %v1730
        %v2092 = vmul.f32 %v2091, %v1730
        %v2093 = vmul.f32 %v2092, %v2091
        %v2094 = vmul.f32 0.5, %v2093
        %v2095 = vsub.f32 1.5, %v2094
        %v2096 = vmul.f32 %v2091, %v2095
        %vm2097 = vweird.f32 %v1730
        %vm2098 = vweird.f32 %v2091
        %vm2099 = vmor %vm2097, %vm2098
        %v2100 = vsel %vm2099, %v2091, %v2096
        %v2101 = vrsqrt.pop %v1731
        %v2102 = vmul.f32 %v2101, %v1731
        %v2103 = vmul.f32 %v2102, %v2101
        %v2104 = vmul.f32 0.5, %v2103
        %v2105 = vsub.f32 1.5, %v2104
        %v2106 = vmul.f32 %v2101, %v2105
        %vm2107 = vweird.f32 %v1731
        %vm2108 = vweird.f32 %v2101
        %vm2109 = vmor %vm2107, %vm2108
        %v2110 = vsel %vm2109, %v2101, %v2106
        %v2111 = vrsqrt.pop %v1732
        %v2112 = vmul.f32 %v2111, %v1732
        %v2113 = vmul.f32 %v2112, %v2111
        %v2114 = vmul.f32 0.5, %v2113
        %v2115 = vsub.f32 1.5, %v2114
        %v2116 = vmul.f32 %v2111, %v2115
        %vm2117 = vweird.f32 %v1732
        %vm2118 = vweird.f32 %v2111
        %vm2119 = vmor %vm2117, %vm2118
        %v2120 = vsel %vm2119, %v2111, %v2116
        %v2121 = vrsqrt.pop %v1733
        %v2122 = vmul.f32 %v2121, %v1733
        %v2123 = vmul.f32 %v2122, %v2121
        %v2124 = vmul.f32 0.5, %v2123
        %v2125 = vsub.f32 1.5, %v2124
        %v2126 = vmul.f32 %v2121, %v2125
        %vm2127 = vweird.f32 %v1733
        %vm2128 = vweird.f32 %v2121
        %vm2129 = vmor %vm2127, %vm2128
        %v2130 = vsel %vm2129, %v2121, %v2126
        %v2131 = vrsqrt.pop %v1734
        %v2132 = vmul.f32 %v2131, %v1734
        %v2133 = vmul.f32 %v2132, %v2131
        %v2134 = vmul.f32 0.5, %v2133
        %v2135 = vsub.f32 1.5, %v2134
        %v2136 = vmul.f32 %v2131, %v2135
        %vm2137 = vweird.f32 %v1734
        %vm2138 = vweird.f32 %v2131
        %vm2139 = vmor %vm2137, %vm2138
        %v2140 = vsel %vm2139, %v2131, %v2136
        %v2141 = vrsqrt.pop %v1735
        %v2142 = vmul.f32 %v2141, %v1735
        %v2143 = vmul.f32 %v2142, %v2141
        %v2144 = vmul.f32 0.5, %v2143
        %v2145 = vsub.f32 1.5, %v2144
        %v2146 = vmul.f32 %v2141, %v2145
        %vm2147 = vweird.f32 %v1735
        %vm2148 = vweird.f32 %v2141
        %vm2149 = vmor %vm2147, %vm2148
        %v2150 = vsel %vm2149, %v2141, %v2146
        %v2151 = vrsqrt.pop %v1736
        %v2152 = vmul.f32 %v2151, %v1736
        %v2153 = vmul.f32 %v2152, %v2151
        %v2154 = vmul.f32 0.5, %v2153
        %v2155 = vsub.f32 1.5, %v2154
        %v2156 = vmul.f32 %v2151, %v2155
        %vm2157 = vweird.f32 %v1736
        %vm2158 = vweird.f32 %v2151
        %vm2159 = vmor %vm2157, %vm2158
        %v2160 = vsel %vm2159, %v2151, %v2156
        %v2161 = vrsqrt.pop %v1737
        %v2162 = vmul.f32 %v2161, %v1737
        %v2163 = vmul.f32 %v2162, %v2161
        %v2164 = vmul.f32 0.5, %v2163
        %v2165 = vsub.f32 1.5, %v2164
        %v2166 = vmul.f32 %v2161, %v2165
        %vm2167 = vweird.f32 %v1737
        %vm2168 = vweird.f32 %v2161
        %vm2169 = vmor %vm2167, %vm2168
        %v2170 = vsel %vm2169, %v2161, %v2166
        %v2171 = vrsqrt.pop %v1738
        %v2172 = vmul.f32 %v2171, %v1738
        %v2173 = vmul.f32 %v2172, %v2171
        %v2174 = vmul.f32 0.5, %v2173
        %v2175 = vsub.f32 1.5, %v2174
        %v2176 = vmul.f32 %v2171, %v2175
        %vm2177 = vweird.f32 %v1738
        %vm2178 = vweird.f32 %v2171
        %vm2179 = vmor %vm2177, %vm2178
        %v2180 = vsel %vm2179, %v2171, %v2176
        %v2181 = vrsqrt.pop %v1739
        %v2182 = vmul.f32 %v2181, %v1739
        %v2183 = vmul.f32 %v2182, %v2181
        %v2184 = vmul.f32 0.5, %v2183
        %v2185 = vsub.f32 1.5, %v2184
        %v2186 = vmul.f32 %v2181, %v2185
        %vm2187 = vweird.f32 %v1739
        %vm2188 = vweird.f32 %v2181
        %vm2189 = vmor %vm2187, %vm2188
        %v2190 = vsel %vm2189, %v2181, %v2186
        %v2191 = vrsqrt.pop %v1740
        %v2192 = vmul.f32 %v2191, %v1740
        %v2193 = vmul.f32 %v2192, %v2191
        %v2194 = vmul.f32 0.5, %v2193
        %v2195 = vsub.f32 1.5, %v2194
        %v2196 = vmul.f32 %v2191, %v2195
        %vm2197 = vweird.f32 %v1740
        %vm2198 = vweird.f32 %v2191
        %vm2199 = vmor %vm2197, %vm2198
        %v2200 = vsel %vm2199, %v2191, %v2196
        %v2201 = vrsqrt.pop %v1741
        %v2202 = vmul.f32 %v2201, %v1741
        %v2203 = vmul.f32 %v2202, %v2201
        %v2204 = vmul.f32 0.5, %v2203
        %v2205 = vsub.f32 1.5, %v2204
        %v2206 = vmul.f32 %v2201, %v2205
        %vm2207 = vweird.f32 %v1741
        %vm2208 = vweird.f32 %v2201
        %vm2209 = vmor %vm2207, %vm2208
        %v2210 = vsel %vm2209, %v2201, %v2206
        %v2211 = vrsqrt.pop %v1742
        %v2212 = vmul.f32 %v2211, %v1742
        %v2213 = vmul.f32 %v2212, %v2211
        %v2214 = vmul.f32 0.5, %v2213
        %v2215 = vsub.f32 1.5, %v2214
        %v2216 = vmul.f32 %v2211, %v2215
        %vm2217 = vweird.f32 %v1742
        %vm2218 = vweird.f32 %v2211
        %vm2219 = vmor %vm2217, %vm2218
        %v2220 = vsel %vm2219, %v2211, %v2216
        %v2221 = vrsqrt.pop %v1743
        %v2222 = vmul.f32 %v2221, %v1743
        %v2223 = vmul.f32 %v2222, %v2221
        %v2224 = vmul.f32 0.5, %v2223
        %v2225 = vsub.f32 1.5, %v2224
        %v2226 = vmul.f32 %v2221, %v2225
        %vm2227 = vweird.f32 %v1743
        %vm2228 = vweird.f32 %v2221
        %vm2229 = vmor %vm2227, %vm2228
        %v2230 = vsel %vm2229, %v2221, %v2226
        %v2231 = vrsqrt.pop %v1744
        %v2232 = vmul.f32 %v2231, %v1744
        %v2233 = vmul.f32 %v2232, %v2231
        %v2234 = vmul.f32 0.5, %v2233
        %v2235 = vsub.f32 1.5, %v2234
        %v2236 = vmul.f32 %v2231, %v2235
        %vm2237 = vweird.f32 %v1744
        %vm2238 = vweird.f32 %v2231
        %vm2239 = vmor %vm2237, %vm2238
        %v2240 = vsel %vm2239, %v2231, %v2236
        %v2241 = vrsqrt.pop %v1745
        %v2242 = vmul.f32 %v2241, %v1745
        %v2243 = vmul.f32 %v2242, %v2241
        %v2244 = vmul.f32 0.5, %v2243
        %v2245 = vsub.f32 1.5, %v2244
        %v2246 = vmul.f32 %v2241, %v2245
        %vm2247 = vweird.f32 %v1745
        %vm2248 = vweird.f32 %v2241
        %vm2249 = vmor %vm2247, %vm2248
        %v2250 = vsel %vm2249, %v2241, %v2246
        %v2251 = vrsqrt.pop %v1746
        %v2252 = vmul.f32 %v2251, %v1746
        %v2253 = vmul.f32 %v2252, %v2251
        %v2254 = vmul.f32 0.5, %v2253
        %v2255 = vsub.f32 1.5, %v2254
        %v2256 = vmul.f32 %v2251, %v2255
        %vm2257 = vweird.f32 %v1746
        %vm2258 = vweird.f32 %v2251
        %vm2259 = vmor %vm2257, %vm2258
        %v2260 = vsel %vm2259, %v2251, %v2256
        %v2261 = vrsqrt.pop %v1747
        %v2262 = vmul.f32 %v2261, %v1747
        %v2263 = vmul.f32 %v2262, %v2261
        %v2264 = vmul.f32 0.5, %v2263
        %v2265 = vsub.f32 1.5, %v2264
        %v2266 = vmul.f32 %v2261, %v2265
        %vm2267 = vweird.f32 %v1747
        %vm2268 = vweird.f32 %v2261
        %vm2269 = vmor %vm2267, %vm2268
        %v2270 = vsel %vm2269, %v2261, %v2266
        %v2271 = vrsqrt.pop %v1748
        %v2272 = vmul.f32 %v2271, %v1748
        %v2273 = vmul.f32 %v2272, %v2271
        %v2274 = vmul.f32 0.5, %v2273
        %v2275 = vsub.f32 1.5, %v2274
        %v2276 = vmul.f32 %v2271, %v2275
        %vm2277 = vweird.f32 %v1748
        %vm2278 = vweird.f32 %v2271
        %vm2279 = vmor %vm2277, %vm2278
        %v2280 = vsel %vm2279, %v2271, %v2276
        %v2281 = vrsqrt.pop %v1749
        %v2282 = vmul.f32 %v2281, %v1749
        %v2283 = vmul.f32 %v2282, %v2281
        %v2284 = vmul.f32 0.5, %v2283
        %v2285 = vsub.f32 1.5, %v2284
        %v2286 = vmul.f32 %v2281, %v2285
        %vm2287 = vweird.f32 %v1749
        %vm2288 = vweird.f32 %v2281
        %vm2289 = vmor %vm2287, %vm2288
        %v2290 = vsel %vm2289, %v2281, %v2286
        %v2291 = vrsqrt.pop %v1750
        %v2292 = vmul.f32 %v2291, %v1750
        %v2293 = vmul.f32 %v2292, %v2291
        %v2294 = vmul.f32 0.5, %v2293
        %v2295 = vsub.f32 1.5, %v2294
        %v2296 = vmul.f32 %v2291, %v2295
        %vm2297 = vweird.f32 %v1750
        %vm2298 = vweird.f32 %v2291
        %vm2299 = vmor %vm2297, %vm2298
        %v2300 = vsel %vm2299, %v2291, %v2296
        %v2301 = vrsqrt.pop %v1751
        %v2302 = vmul.f32 %v2301, %v1751
        %v2303 = vmul.f32 %v2302, %v2301
        %v2304 = vmul.f32 0.5, %v2303
        %v2305 = vsub.f32 1.5, %v2304
        %v2306 = vmul.f32 %v2301, %v2305
        %vm2307 = vweird.f32 %v1751
        %vm2308 = vweird.f32 %v2301
        %vm2309 = vmor %vm2307, %vm2308
        %v2310 = vsel %vm2309, %v2301, %v2306
        %v2311 = vrsqrt.pop %v1752
        %v2312 = vmul.f32 %v2311, %v1752
        %v2313 = vmul.f32 %v2312, %v2311
        %v2314 = vmul.f32 0.5, %v2313
        %v2315 = vsub.f32 1.5, %v2314
        %v2316 = vmul.f32 %v2311, %v2315
        %vm2317 = vweird.f32 %v1752
        %vm2318 = vweird.f32 %v2311
        %vm2319 = vmor %vm2317, %vm2318
        %v2320 = vsel %vm2319, %v2311, %v2316
        %v2321 = vrsqrt.pop %v1753
        %v2322 = vmul.f32 %v2321, %v1753
        %v2323 = vmul.f32 %v2322, %v2321
        %v2324 = vmul.f32 0.5, %v2323
        %v2325 = vsub.f32 1.5, %v2324
        %v2326 = vmul.f32 %v2321, %v2325
        %vm2327 = vweird.f32 %v1753
        %vm2328 = vweird.f32 %v2321
        %vm2329 = vmor %vm2327, %vm2328
        %v2330 = vsel %vm2329, %v2321, %v2326
        %v2331 = vrsqrt.pop %v1754
        %v2332 = vmul.f32 %v2331, %v1754
        %v2333 = vmul.f32 %v2332, %v2331
        %v2334 = vmul.f32 0.5, %v2333
        %v2335 = vsub.f32 1.5, %v2334
        %v2336 = vmul.f32 %v2331, %v2335
        %vm2337 = vweird.f32 %v1754
        %vm2338 = vweird.f32 %v2331
        %vm2339 = vmor %vm2337, %vm2338
        %v2340 = vsel %vm2339, %v2331, %v2336
        %v2341 = vrsqrt.pop %v1755
        %v2342 = vmul.f32 %v2341, %v1755
        %v2343 = vmul.f32 %v2342, %v2341
        %v2344 = vmul.f32 0.5, %v2343
        %v2345 = vsub.f32 1.5, %v2344
        %v2346 = vmul.f32 %v2341, %v2345
        %vm2347 = vweird.f32 %v1755
        %vm2348 = vweird.f32 %v2341
        %vm2349 = vmor %vm2347, %vm2348
        %v2350 = vsel %vm2349, %v2341, %v2346
        %v2351 = vrsqrt.pop %v1756
        %v2352 = vmul.f32 %v2351, %v1756
        %v2353 = vmul.f32 %v2352, %v2351
        %v2354 = vmul.f32 0.5, %v2353
        %v2355 = vsub.f32 1.5, %v2354
        %v2356 = vmul.f32 %v2351, %v2355
        %vm2357 = vweird.f32 %v1756
        %vm2358 = vweird.f32 %v2351
        %vm2359 = vmor %vm2357, %vm2358
        %v2360 = vsel %vm2359, %v2351, %v2356
        %v2361 = vrsqrt.pop %v1757
        %v2362 = vmul.f32 %v2361, %v1757
        %v2363 = vmul.f32 %v2362, %v2361
        %v2364 = vmul.f32 0.5, %v2363
        %v2365 = vsub.f32 1.5, %v2364
        %v2366 = vmul.f32 %v2361, %v2365
        %vm2367 = vweird.f32 %v1757
        %vm2368 = vweird.f32 %v2361
        %vm2369 = vmor %vm2367, %vm2368
        %v2370 = vsel %vm2369, %v2361, %v2366
        %v2371 = vrsqrt.pop %v1758
        %v2372 = vmul.f32 %v2371, %v1758
        %v2373 = vmul.f32 %v2372, %v2371
        %v2374 = vmul.f32 0.5, %v2373
        %v2375 = vsub.f32 1.5, %v2374
        %v2376 = vmul.f32 %v2371, %v2375
        %vm2377 = vweird.f32 %v1758
        %vm2378 = vweird.f32 %v2371
        %vm2379 = vmor %vm2377, %vm2378
        %v2380 = vsel %vm2379, %v2371, %v2376
        %v2381 = vrsqrt.pop %v1759
        %v2382 = vmul.f32 %v2381, %v1759
        %v2383 = vmul.f32 %v2382, %v2381
        %v2384 = vmul.f32 0.5, %v2383
        %v2385 = vsub.f32 1.5, %v2384
        %v2386 = vmul.f32 %v2381, %v2385
        %vm2387 = vweird.f32 %v1759
        %vm2388 = vweird.f32 %v2381
        %vm2389 = vmor %vm2387, %vm2388
        %v2390 = vsel %vm2389, %v2381, %v2386
        %v2391 = vrsqrt.pop %v1760
        %v2392 = vmul.f32 %v2391, %v1760
        %v2393 = vmul.f32 %v2392, %v2391
        %v2394 = vmul.f32 0.5, %v2393
        %v2395 = vsub.f32 1.5, %v2394
        %v2396 = vmul.f32 %v2391, %v2395
        %vm2397 = vweird.f32 %v1760
        %vm2398 = vweird.f32 %v2391
        %vm2399 = vmor %vm2397, %vm2398
        %v2400 = vsel %vm2399, %v2391, %v2396
        %v2401 = vmul.f32 %v543, %v1770
        %v2402 = vmul.f32 %v544, %v1780
        %v2403 = vmul.f32 %v545, %v1790
        %v2404 = vmul.f32 %v546, %v1800
        %v2405 = vmul.f32 %v547, %v1810
        %v2406 = vmul.f32 %v548, %v1820
        %v2407 = vmul.f32 %v549, %v1830
        %v2408 = vmul.f32 %v550, %v1840
        %v2409 = vmul.f32 %v551, %v1850
        %v2410 = vmul.f32 %v552, %v1860
        %v2411 = vmul.f32 %v553, %v1870
        %v2412 = vmul.f32 %v554, %v1880
        %v2413 = vmul.f32 %v555, %v1890
        %v2414 = vmul.f32 %v556, %v1900
        %v2415 = vmul.f32 %v557, %v1910
        %v2416 = vmul.f32 %v558, %v1920
        %v2417 = vmul.f32 %v559, %v1930
        %v2418 = vmul.f32 %v560, %v1940
        %v2419 = vmul.f32 %v561, %v1950
        %v2420 = vmul.f32 %v562, %v1960
        %v2421 = vmul.f32 %v563, %v1970
        %v2422 = vmul.f32 %v564, %v1980
        %v2423 = vmul.f32 %v565, %v1990
        %v2424 = vmul.f32 %v566, %v2000
        %v2425 = vmul.f32 %v567, %v2010
        %v2426 = vmul.f32 %v568, %v2020
        %v2427 = vmul.f32 %v569, %v2030
        %v2428 = vmul.f32 %v570, %v2040
        %v2429 = vmul.f32 %v571, %v2050
        %v2430 = vmul.f32 %v572, %v2060
        %v2431 = vmul.f32 %v573, %v2070
        %v2432 = vmul.f32 %v574, %v2080
        %v2433 = vmul.f32 %v575, %v2090
        %v2434 = vmul.f32 %v576, %v2100
        %v2435 = vmul.f32 %v577, %v2110
        %v2436 = vmul.f32 %v578, %v2120
        %v2437 = vmul.f32 %v579, %v2130
        %v2438 = vmul.f32 %v580, %v2140
        %v2439 = vmul.f32 %v581, %v2150
        %v2440 = vmul.f32 %v582, %v2160
        %v2441 = vmul.f32 %v583, %v2170
        %v2442 = vmul.f32 %v584, %v2180
        %v2443 = vmul.f32 %v585, %v2190
        %v2444 = vmul.f32 %v586, %v2200
        %v2445 = vmul.f32 %v587, %v2210
        %v2446 = vmul.f32 %v588, %v2220
        %v2447 = vmul.f32 %v589, %v2230
        %v2448 = vmul.f32 %v590, %v2240
        %v2449 = vmul.f32 %v591, %v2250
        %v2450 = vmul.f32 %v592, %v2260
        %v2451 = vmul.f32 %v593, %v2270
        %v2452 = vmul.f32 %v594, %v2280
        %v2453 = vmul.f32 %v595, %v2290
        %v2454 = vmul.f32 %v596, %v2300
        %v2455 = vmul.f32 %v597, %v2310
        %v2456 = vmul.f32 %v598, %v2320
        %v2457 = vmul.f32 %v599, %v2330
        %v2458 = vmul.f32 %v600, %v2340
        %v2459 = vmul.f32 %v601, %v2350
        %v2460 = vmul.f32 %v602, %v2360
        %v2461 = vmul.f32 %v603, %v2370
        %v2462 = vmul.f32 %v604, %v2380
        %v2463 = vmul.f32 %v605, %v2390
        %v2464 = vmul.f32 %v606, %v2400
        %2466 = vset.pattern.permute.xlu0 0
        %2467 = vperm.xlu0 %2466, %v2401
        %v2468 = vpop.permute.xlu0 %2467
        %2471 = vset.pattern.permute.xlu0 0
        %2472 = vperm.xlu0 %2471, %v2402
        %v2473 = vpop.permute.xlu0 %2472
        %2476 = vset.pattern.permute.xlu0 0
        %2477 = vperm.xlu0 %2476, %v2403
        %v2478 = vpop.permute.xlu0 %2477
        %2481 = vset.pattern.permute.xlu0 0
        %2482 = vperm.xlu0 %2481, %v2404
        %v2483 = vpop.permute.xlu0 %2482
        %2486 = vset.pattern.permute.xlu0 0
        %2487 = vperm.xlu0 %2486, %v2405
        %v2488 = vpop.permute.xlu0 %2487
        %2491 = vset.pattern.permute.xlu0 0
        %2492 = vperm.xlu0 %2491, %v2406
        %v2493 = vpop.permute.xlu0 %2492
        %2496 = vset.pattern.permute.xlu0 0
        %2497 = vperm.xlu0 %2496, %v2407
        %v2498 = vpop.permute.xlu0 %2497
        %2501 = vset.pattern.permute.xlu0 0
        %2502 = vperm.xlu0 %2501, %v2408
        %v2503 = vpop.permute.xlu0 %2502
        %2506 = vset.pattern.permute.xlu0 0
        %2507 = vperm.xlu0 %2506, %v2409
        %v2508 = vpop.permute.xlu0 %2507
        %2511 = vset.pattern.permute.xlu0 0
        %2512 = vperm.xlu0 %2511, %v2410
        %v2513 = vpop.permute.xlu0 %2512
        %2516 = vset.pattern.permute.xlu0 0
        %2517 = vperm.xlu0 %2516, %v2411
        %v2518 = vpop.permute.xlu0 %2517
        %2521 = vset.pattern.permute.xlu0 0
        %2522 = vperm.xlu0 %2521, %v2412
        %v2523 = vpop.permute.xlu0 %2522
        %2526 = vset.pattern.permute.xlu0 0
        %2527 = vperm.xlu0 %2526, %v2413
        %v2528 = vpop.permute.xlu0 %2527
        %2531 = vset.pattern.permute.xlu0 0
        %2532 = vperm.xlu0 %2531, %v2414
        %v2533 = vpop.permute.xlu0 %2532
        %2536 = vset.pattern.permute.xlu0 0
        %2537 = vperm.xlu0 %2536, %v2415
        %v2538 = vpop.permute.xlu0 %2537
        %2541 = vset.pattern.permute.xlu0 0
        %2542 = vperm.xlu0 %2541, %v2416
        %v2543 = vpop.permute.xlu0 %2542
        %2546 = vset.pattern.permute.xlu0 0
        %2547 = vperm.xlu0 %2546, %v2417
        %v2548 = vpop.permute.xlu0 %2547
        %2551 = vset.pattern.permute.xlu0 0
        %2552 = vperm.xlu0 %2551, %v2418
        %v2553 = vpop.permute.xlu0 %2552
        %2556 = vset.pattern.permute.xlu0 0
        %2557 = vperm.xlu0 %2556, %v2419
        %v2558 = vpop.permute.xlu0 %2557
        %2561 = vset.pattern.permute.xlu0 0
        %2562 = vperm.xlu0 %2561, %v2420
        %v2563 = vpop.permute.xlu0 %2562
        %2566 = vset.pattern.permute.xlu0 0
        %2567 = vperm.xlu0 %2566, %v2421
        %v2568 = vpop.permute.xlu0 %2567
        %2571 = vset.pattern.permute.xlu0 0
        %2572 = vperm.xlu0 %2571, %v2422
        %v2573 = vpop.permute.xlu0 %2572
        %2576 = vset.pattern.permute.xlu0 0
        %2577 = vperm.xlu0 %2576, %v2423
        %v2578 = vpop.permute.xlu0 %2577
        %2581 = vset.pattern.permute.xlu0 0
        %2582 = vperm.xlu0 %2581, %v2424
        %v2583 = vpop.permute.xlu0 %2582
        %2586 = vset.pattern.permute.xlu0 0
        %2587 = vperm.xlu0 %2586, %v2425
        %v2588 = vpop.permute.xlu0 %2587
        %2591 = vset.pattern.permute.xlu0 0
        %2592 = vperm.xlu0 %2591, %v2426
        %v2593 = vpop.permute.xlu0 %2592
        %2596 = vset.pattern.permute.xlu0 0
        %2597 = vperm.xlu0 %2596, %v2427
        %v2598 = vpop.permute.xlu0 %2597
        %2601 = vset.pattern.permute.xlu0 0
        %2602 = vperm.xlu0 %2601, %v2428
        %v2603 = vpop.permute.xlu0 %2602
        %2606 = vset.pattern.permute.xlu0 0
        %2607 = vperm.xlu0 %2606, %v2429
        %v2608 = vpop.permute.xlu0 %2607
        %2611 = vset.pattern.permute.xlu0 0
        %2612 = vperm.xlu0 %2611, %v2430
        %v2613 = vpop.permute.xlu0 %2612
        %2616 = vset.pattern.permute.xlu0 0
        %2617 = vperm.xlu0 %2616, %v2431
        %v2618 = vpop.permute.xlu0 %2617
        %2621 = vset.pattern.permute.xlu0 0
        %2622 = vperm.xlu0 %2621, %v2432
        %v2623 = vpop.permute.xlu0 %2622
        %2626 = vset.pattern.permute.xlu0 0
        %2627 = vperm.xlu0 %2626, %v2433
        %v2628 = vpop.permute.xlu0 %2627
        %2631 = vset.pattern.permute.xlu0 0
        %2632 = vperm.xlu0 %2631, %v2434
        %v2633 = vpop.permute.xlu0 %2632
        %2636 = vset.pattern.permute.xlu0 0
        %2637 = vperm.xlu0 %2636, %v2435
        %v2638 = vpop.permute.xlu0 %2637
        %2641 = vset.pattern.permute.xlu0 0
        %2642 = vperm.xlu0 %2641, %v2436
        %v2643 = vpop.permute.xlu0 %2642
        %2646 = vset.pattern.permute.xlu0 0
        %2647 = vperm.xlu0 %2646, %v2437
        %v2648 = vpop.permute.xlu0 %2647
        %2651 = vset.pattern.permute.xlu0 0
        %2652 = vperm.xlu0 %2651, %v2438
        %v2653 = vpop.permute.xlu0 %2652
        %2656 = vset.pattern.permute.xlu0 0
        %2657 = vperm.xlu0 %2656, %v2439
        %v2658 = vpop.permute.xlu0 %2657
        %2661 = vset.pattern.permute.xlu0 0
        %2662 = vperm.xlu0 %2661, %v2440
        %v2663 = vpop.permute.xlu0 %2662
        %2666 = vset.pattern.permute.xlu0 0
        %2667 = vperm.xlu0 %2666, %v2441
        %v2668 = vpop.permute.xlu0 %2667
        %2671 = vset.pattern.permute.xlu0 0
        %2672 = vperm.xlu0 %2671, %v2442
        %v2673 = vpop.permute.xlu0 %2672
        %2676 = vset.pattern.permute.xlu0 0
        %2677 = vperm.xlu0 %2676, %v2443
        %v2678 = vpop.permute.xlu0 %2677
        %2681 = vset.pattern.permute.xlu0 0
        %2682 = vperm.xlu0 %2681, %v2444
        %v2683 = vpop.permute.xlu0 %2682
        %2686 = vset.pattern.permute.xlu0 0
        %2687 = vperm.xlu0 %2686, %v2445
        %v2688 = vpop.permute.xlu0 %2687
        %2691 = vset.pattern.permute.xlu0 0
        %2692 = vperm.xlu0 %2691, %v2446
        %v2693 = vpop.permute.xlu0 %2692
        %2696 = vset.pattern.permute.xlu0 0
        %2697 = vperm.xlu0 %2696, %v2447
        %v2698 = vpop.permute.xlu0 %2697
        %2701 = vset.pattern.permute.xlu0 0
        %2702 = vperm.xlu0 %2701, %v2448
        %v2703 = vpop.permute.xlu0 %2702
        %2706 = vset.pattern.permute.xlu0 0
        %2707 = vperm.xlu0 %2706, %v2449
        %v2708 = vpop.permute.xlu0 %2707
        %2711 = vset.pattern.permute.xlu0 0
        %2712 = vperm.xlu0 %2711, %v2450
        %v2713 = vpop.permute.xlu0 %2712
        %2716 = vset.pattern.permute.xlu0 0
        %2717 = vperm.xlu0 %2716, %v2451
        %v2718 = vpop.permute.xlu0 %2717
        %2721 = vset.pattern.permute.xlu0 0
        %2722 = vperm.xlu0 %2721, %v2452
        %v2723 = vpop.permute.xlu0 %2722
        %2726 = vset.pattern.permute.xlu0 0
        %2727 = vperm.xlu0 %2726, %v2453
        %v2728 = vpop.permute.xlu0 %2727
        %2731 = vset.pattern.permute.xlu0 0
        %2732 = vperm.xlu0 %2731, %v2454
        %v2733 = vpop.permute.xlu0 %2732
        %2736 = vset.pattern.permute.xlu0 0
        %2737 = vperm.xlu0 %2736, %v2455
        %v2738 = vpop.permute.xlu0 %2737
        %2741 = vset.pattern.permute.xlu0 0
        %2742 = vperm.xlu0 %2741, %v2456
        %v2743 = vpop.permute.xlu0 %2742
        %2746 = vset.pattern.permute.xlu0 0
        %2747 = vperm.xlu0 %2746, %v2457
        %v2748 = vpop.permute.xlu0 %2747
        %2751 = vset.pattern.permute.xlu0 0
        %2752 = vperm.xlu0 %2751, %v2458
        %v2753 = vpop.permute.xlu0 %2752
        %2756 = vset.pattern.permute.xlu0 0
        %2757 = vperm.xlu0 %2756, %v2459
        %v2758 = vpop.permute.xlu0 %2757
        %2761 = vset.pattern.permute.xlu0 0
        %2762 = vperm.xlu0 %2761, %v2460
        %v2763 = vpop.permute.xlu0 %2762
        %2766 = vset.pattern.permute.xlu0 0
        %2767 = vperm.xlu0 %2766, %v2461
        %v2768 = vpop.permute.xlu0 %2767
        %2771 = vset.pattern.permute.xlu0 0
        %2772 = vperm.xlu0 %2771, %v2462
        %v2773 = vpop.permute.xlu0 %2772
        %2776 = vset.pattern.permute.xlu0 0
        %2777 = vperm.xlu0 %2776, %v2463
        %v2778 = vpop.permute.xlu0 %2777
        %2781 = vset.pattern.permute.xlu0 0
        %2782 = vperm.xlu0 %2781, %v2464
        %v2783 = vpop.permute.xlu0 %2782
        %v2785 = vmul.f32 %v1121, %v2468
        %v2786 = vmul.f32 %v1122, %v2468
        %v2787 = vmul.f32 %v1123, %v2473
        %v2788 = vmul.f32 %v1124, %v2473
        %v2789 = vmul.f32 %v1125, %v2478
        %v2790 = vmul.f32 %v1126, %v2478
        %v2791 = vmul.f32 %v1127, %v2483
        %v2792 = vmul.f32 %v1128, %v2483
        %v2793 = vmul.f32 %v1129, %v2488
        %v2794 = vmul.f32 %v1130, %v2488
        %v2795 = vmul.f32 %v1131, %v2493
        %v2796 = vmul.f32 %v1132, %v2493
        %v2797 = vmul.f32 %v1133, %v2498
        %v2798 = vmul.f32 %v1134, %v2498
        %v2799 = vmul.f32 %v1135, %v2503
        %v2800 = vmul.f32 %v1136, %v2503
        %v2801 = vmul.f32 %v1137, %v2508
        %v2802 = vmul.f32 %v1138, %v2508
        %v2803 = vmul.f32 %v1139, %v2513
        %v2804 = vmul.f32 %v1140, %v2513
        %v2805 = vmul.f32 %v1141, %v2518
        %v2806 = vmul.f32 %v1142, %v2518
        %v2807 = vmul.f32 %v1143, %v2523
        %v2808 = vmul.f32 %v1144, %v2523
        %v2809 = vmul.f32 %v1145, %v2528
        %v2810 = vmul.f32 %v1146, %v2528
        %v2811 = vmul.f32 %v1147, %v2533
        %v2812 = vmul.f32 %v1148, %v2533
        %v2813 = vmul.f32 %v1149, %v2538
        %v2814 = vmul.f32 %v1150, %v2538
        %v2815 = vmul.f32 %v1151, %v2543
        %v2816 = vmul.f32 %v1152, %v2543
        %v2817 = vmul.f32 %v1153, %v2548
        %v2818 = vmul.f32 %v1154, %v2548
        %v2819 = vmul.f32 %v1155, %v2553
        %v2820 = vmul.f32 %v1156, %v2553
        %v2821 = vmul.f32 %v1157, %v2558
        %v2822 = vmul.f32 %v1158, %v2558
        %v2823 = vmul.f32 %v1159, %v2563
        %v2824 = vmul.f32 %v1160, %v2563
        %v2825 = vmul.f32 %v1161, %v2568
        %v2826 = vmul.f32 %v1162, %v2568
        %v2827 = vmul.f32 %v1163, %v2573
        %v2828 = vmul.f32 %v1164, %v2573
        %v2829 = vmul.f32 %v1165, %v2578
        %v2830 = vmul.f32 %v1166, %v2578
        %v2831 = vmul.f32 %v1167, %v2583
        %v2832 = vmul.f32 %v1168, %v2583
        %v2833 = vmul.f32 %v1169, %v2588
        %v2834 = vmul.f32 %v1170, %v2588
        %v2835 = vmul.f32 %v1171, %v2593
        %v2836 = vmul.f32 %v1172, %v2593
        %v2837 = vmul.f32 %v1173, %v2598
        %v2838 = vmul.f32 %v1174, %v2598
        %v2839 = vmul.f32 %v1175, %v2603
        %v2840 = vmul.f32 %v1176, %v2603
        %v2841 = vmul.f32 %v1177, %v2608
        %v2842 = vmul.f32 %v1178, %v2608
        %v2843 = vmul.f32 %v1179, %v2613
        %v2844 = vmul.f32 %v1180, %v2613
        %v2845 = vmul.f32 %v1181, %v2618
        %v2846 = vmul.f32 %v1182, %v2618
        %v2847 = vmul.f32 %v1183, %v2623
        %v2848 = vmul.f32 %v1184, %v2623
        %v2849 = vmul.f32 %v1185, %v2628
        %v2850 = vmul.f32 %v1186, %v2628
        %v2851 = vmul.f32 %v1187, %v2633
        %v2852 = vmul.f32 %v1188, %v2633
        %v2853 = vmul.f32 %v1189, %v2638
        %v2854 = vmul.f32 %v1190, %v2638
        %v2855 = vmul.f32 %v1191, %v2643
        %v2856 = vmul.f32 %v1192, %v2643
        %v2857 = vmul.f32 %v1193, %v2648
        %v2858 = vmul.f32 %v1194, %v2648
        %v2859 = vmul.f32 %v1195, %v2653
        %v2860 = vmul.f32 %v1196, %v2653
        %v2861 = vmul.f32 %v1197, %v2658
        %v2862 = vmul.f32 %v1198, %v2658
        %v2863 = vmul.f32 %v1199, %v2663
        %v2864 = vmul.f32 %v1200, %v2663
        %v2865 = vmul.f32 %v1201, %v2668
        %v2866 = vmul.f32 %v1202, %v2668
        %v2867 = vmul.f32 %v1203, %v2673
        %v2868 = vmul.f32 %v1204, %v2673
        %v2869 = vmul.f32 %v1205, %v2678
        %v2870 = vmul.f32 %v1206, %v2678
        %v2871 = vmul.f32 %v1207, %v2683
        %v2872 = vmul.f32 %v1208, %v2683
        %v2873 = vmul.f32 %v1209, %v2688
        %v2874 = vmul.f32 %v1210, %v2688
        %v2875 = vmul.f32 %v1211, %v2693
        %v2876 = vmul.f32 %v1212, %v2693
        %v2877 = vmul.f32 %v1213, %v2698
        %v2878 = vmul.f32 %v1214, %v2698
        %v2879 = vmul.f32 %v1215, %v2703
        %v2880 = vmul.f32 %v1216, %v2703
        %v2881 = vmul.f32 %v1217, %v2708
        %v2882 = vmul.f32 %v1218, %v2708
        %v2883 = vmul.f32 %v1219, %v2713
        %v2884 = vmul.f32 %v1220, %v2713
        %v2885 = vmul.f32 %v1221, %v2718
        %v2886 = vmul.f32 %v1222, %v2718
        %v2887 = vmul.f32 %v1223, %v2723
        %v2888 = vmul.f32 %v1224, %v2723
        %v2889 = vmul.f32 %v1225, %v2728
        %v2890 = vmul.f32 %v1226, %v2728
        %v2891 = vmul.f32 %v1227, %v2733
        %v2892 = vmul.f32 %v1228, %v2733
        %v2893 = vmul.f32 %v1229, %v2738
        %v2894 = vmul.f32 %v1230, %v2738
        %v2895 = vmul.f32 %v1231, %v2743
        %v2896 = vmul.f32 %v1232, %v2743
        %v2897 = vmul.f32 %v1233, %v2748
        %v2898 = vmul.f32 %v1234, %v2748
        %v2899 = vmul.f32 %v1235, %v2753
        %v2900 = vmul.f32 %v1236, %v2753
        %v2901 = vmul.f32 %v1237, %v2758
        %v2902 = vmul.f32 %v1238, %v2758
        %v2903 = vmul.f32 %v1239, %v2763
        %v2904 = vmul.f32 %v1240, %v2763
        %v2905 = vmul.f32 %v1241, %v2768
        %v2906 = vmul.f32 %v1242, %v2768
        %v2907 = vmul.f32 %v1243, %v2773
        %v2908 = vmul.f32 %v1244, %v2773
        %v2909 = vmul.f32 %v1245, %v2778
        %v2910 = vmul.f32 %v1246, %v2778
        %v2911 = vmul.f32 %v1247, %v2783
        %v2912 = vmul.f32 %v1248, %v2783
        %2914 = vset.pattern.permute.xlu0 0
        %2915 = vperm.xlu0 %2914, %v608
        %v2916 = vpop.permute.xlu0 %2915
        %2919 = vset.pattern.permute.xlu0 0
        %2920 = vperm.xlu0 %2919, %v609
        %v2921 = vpop.permute.xlu0 %2920
        %2924 = vset.pattern.permute.xlu0 0
        %2925 = vperm.xlu0 %2924, %v610
        %v2926 = vpop.permute.xlu0 %2925
        %2929 = vset.pattern.permute.xlu0 0
        %2930 = vperm.xlu0 %2929, %v611
        %v2931 = vpop.permute.xlu0 %2930
        %2934 = vset.pattern.permute.xlu0 0
        %2935 = vperm.xlu0 %2934, %v612
        %v2936 = vpop.permute.xlu0 %2935
        %2939 = vset.pattern.permute.xlu0 0
        %2940 = vperm.xlu0 %2939, %v613
        %v2941 = vpop.permute.xlu0 %2940
        %2944 = vset.pattern.permute.xlu0 0
        %2945 = vperm.xlu0 %2944, %v614
        %v2946 = vpop.permute.xlu0 %2945
        %2949 = vset.pattern.permute.xlu0 0
        %2950 = vperm.xlu0 %2949, %v615
        %v2951 = vpop.permute.xlu0 %2950
        %2954 = vset.pattern.permute.xlu0 0
        %2955 = vperm.xlu0 %2954, %v616
        %v2956 = vpop.permute.xlu0 %2955
        %2959 = vset.pattern.permute.xlu0 0
        %2960 = vperm.xlu0 %2959, %v617
        %v2961 = vpop.permute.xlu0 %2960
        %2964 = vset.pattern.permute.xlu0 0
        %2965 = vperm.xlu0 %2964, %v618
        %v2966 = vpop.permute.xlu0 %2965
        %2969 = vset.pattern.permute.xlu0 0
        %2970 = vperm.xlu0 %2969, %v619
        %v2971 = vpop.permute.xlu0 %2970
        %2974 = vset.pattern.permute.xlu0 0
        %2975 = vperm.xlu0 %2974, %v620
        %v2976 = vpop.permute.xlu0 %2975
        %2979 = vset.pattern.permute.xlu0 0
        %2980 = vperm.xlu0 %2979, %v621
        %v2981 = vpop.permute.xlu0 %2980
        %2984 = vset.pattern.permute.xlu0 0
        %2985 = vperm.xlu0 %2984, %v622
        %v2986 = vpop.permute.xlu0 %2985
        %2989 = vset.pattern.permute.xlu0 0
        %2990 = vperm.xlu0 %2989, %v623
        %v2991 = vpop.permute.xlu0 %2990
        %2994 = vset.pattern.permute.xlu0 0
        %2995 = vperm.xlu0 %2994, %v624
        %v2996 = vpop.permute.xlu0 %2995
        %2999 = vset.pattern.permute.xlu0 0
        %3000 = vperm.xlu0 %2999, %v625
        %v3001 = vpop.permute.xlu0 %3000
        %3004 = vset.pattern.permute.xlu0 0
        %3005 = vperm.xlu0 %3004, %v626
        %v3006 = vpop.permute.xlu0 %3005
        %3009 = vset.pattern.permute.xlu0 0
        %3010 = vperm.xlu0 %3009, %v627
        %v3011 = vpop.permute.xlu0 %3010
        %3014 = vset.pattern.permute.xlu0 0
        %3015 = vperm.xlu0 %3014, %v628
        %v3016 = vpop.permute.xlu0 %3015
        %3019 = vset.pattern.permute.xlu0 0
        %3020 = vperm.xlu0 %3019, %v629
        %v3021 = vpop.permute.xlu0 %3020
        %3024 = vset.pattern.permute.xlu0 0
        %3025 = vperm.xlu0 %3024, %v630
        %v3026 = vpop.permute.xlu0 %3025
        %3029 = vset.pattern.permute.xlu0 0
        %3030 = vperm.xlu0 %3029, %v631
        %v3031 = vpop.permute.xlu0 %3030
        %3034 = vset.pattern.permute.xlu0 0
        %3035 = vperm.xlu0 %3034, %v632
        %v3036 = vpop.permute.xlu0 %3035
        %3039 = vset.pattern.permute.xlu0 0
        %3040 = vperm.xlu0 %3039, %v633
        %v3041 = vpop.permute.xlu0 %3040
        %3044 = vset.pattern.permute.xlu0 0
        %3045 = vperm.xlu0 %3044, %v634
        %v3046 = vpop.permute.xlu0 %3045
        %3049 = vset.pattern.permute.xlu0 0
        %3050 = vperm.xlu0 %3049, %v635
        %v3051 = vpop.permute.xlu0 %3050
        %3054 = vset.pattern.permute.xlu0 0
        %3055 = vperm.xlu0 %3054, %v636
        %v3056 = vpop.permute.xlu0 %3055
        %3059 = vset.pattern.permute.xlu0 0
        %3060 = vperm.xlu0 %3059, %v637
        %v3061 = vpop.permute.xlu0 %3060
        %3064 = vset.pattern.permute.xlu0 0
        %3065 = vperm.xlu0 %3064, %v638
        %v3066 = vpop.permute.xlu0 %3065
        %3069 = vset.pattern.permute.xlu0 0
        %3070 = vperm.xlu0 %3069, %v639
        %v3071 = vpop.permute.xlu0 %3070
        %3074 = vset.pattern.permute.xlu0 0
        %3075 = vperm.xlu0 %3074, %v640
        %v3076 = vpop.permute.xlu0 %3075
        %3079 = vset.pattern.permute.xlu0 0
        %3080 = vperm.xlu0 %3079, %v641
        %v3081 = vpop.permute.xlu0 %3080
        %3084 = vset.pattern.permute.xlu0 0
        %3085 = vperm.xlu0 %3084, %v642
        %v3086 = vpop.permute.xlu0 %3085
        %3089 = vset.pattern.permute.xlu0 0
        %3090 = vperm.xlu0 %3089, %v643
        %v3091 = vpop.permute.xlu0 %3090
        %3094 = vset.pattern.permute.xlu0 0
        %3095 = vperm.xlu0 %3094, %v644
        %v3096 = vpop.permute.xlu0 %3095
        %3099 = vset.pattern.permute.xlu0 0
        %3100 = vperm.xlu0 %3099, %v645
        %v3101 = vpop.permute.xlu0 %3100
        %3104 = vset.pattern.permute.xlu0 0
        %3105 = vperm.xlu0 %3104, %v646
        %v3106 = vpop.permute.xlu0 %3105
        %3109 = vset.pattern.permute.xlu0 0
        %3110 = vperm.xlu0 %3109, %v647
        %v3111 = vpop.permute.xlu0 %3110
        %3114 = vset.pattern.permute.xlu0 0
        %3115 = vperm.xlu0 %3114, %v648
        %v3116 = vpop.permute.xlu0 %3115
        %3119 = vset.pattern.permute.xlu0 0
        %3120 = vperm.xlu0 %3119, %v649
        %v3121 = vpop.permute.xlu0 %3120
        %3124 = vset.pattern.permute.xlu0 0
        %3125 = vperm.xlu0 %3124, %v650
        %v3126 = vpop.permute.xlu0 %3125
        %3129 = vset.pattern.permute.xlu0 0
        %3130 = vperm.xlu0 %3129, %v651
        %v3131 = vpop.permute.xlu0 %3130
        %3134 = vset.pattern.permute.xlu0 0
        %3135 = vperm.xlu0 %3134, %v652
        %v3136 = vpop.permute.xlu0 %3135
        %3139 = vset.pattern.permute.xlu0 0
        %3140 = vperm.xlu0 %3139, %v653
        %v3141 = vpop.permute.xlu0 %3140
        %3144 = vset.pattern.permute.xlu0 0
        %3145 = vperm.xlu0 %3144, %v654
        %v3146 = vpop.permute.xlu0 %3145
        %3149 = vset.pattern.permute.xlu0 0
        %3150 = vperm.xlu0 %3149, %v655
        %v3151 = vpop.permute.xlu0 %3150
        %3154 = vset.pattern.permute.xlu0 0
        %3155 = vperm.xlu0 %3154, %v656
        %v3156 = vpop.permute.xlu0 %3155
        %3159 = vset.pattern.permute.xlu0 0
        %3160 = vperm.xlu0 %3159, %v657
        %v3161 = vpop.permute.xlu0 %3160
        %3164 = vset.pattern.permute.xlu0 0
        %3165 = vperm.xlu0 %3164, %v658
        %v3166 = vpop.permute.xlu0 %3165
        %3169 = vset.pattern.permute.xlu0 0
        %3170 = vperm.xlu0 %3169, %v659
        %v3171 = vpop.permute.xlu0 %3170
        %3174 = vset.pattern.permute.xlu0 0
        %3175 = vperm.xlu0 %3174, %v660
        %v3176 = vpop.permute.xlu0 %3175
        %3179 = vset.pattern.permute.xlu0 0
        %3180 = vperm.xlu0 %3179, %v661
        %v3181 = vpop.permute.xlu0 %3180
        %3184 = vset.pattern.permute.xlu0 0
        %3185 = vperm.xlu0 %3184, %v662
        %v3186 = vpop.permute.xlu0 %3185
        %3189 = vset.pattern.permute.xlu0 0
        %3190 = vperm.xlu0 %3189, %v663
        %v3191 = vpop.permute.xlu0 %3190
        %3194 = vset.pattern.permute.xlu0 0
        %3195 = vperm.xlu0 %3194, %v664
        %v3196 = vpop.permute.xlu0 %3195
        %3199 = vset.pattern.permute.xlu0 0
        %3200 = vperm.xlu0 %3199, %v665
        %v3201 = vpop.permute.xlu0 %3200
        %3204 = vset.pattern.permute.xlu0 0
        %3205 = vperm.xlu0 %3204, %v666
        %v3206 = vpop.permute.xlu0 %3205
        %3209 = vset.pattern.permute.xlu0 0
        %3210 = vperm.xlu0 %3209, %v667
        %v3211 = vpop.permute.xlu0 %3210
        %3214 = vset.pattern.permute.xlu0 0
        %3215 = vperm.xlu0 %3214, %v668
        %v3216 = vpop.permute.xlu0 %3215
        %3219 = vset.pattern.permute.xlu0 0
        %3220 = vperm.xlu0 %3219, %v669
        %v3221 = vpop.permute.xlu0 %3220
        %3224 = vset.pattern.permute.xlu0 0
        %3225 = vperm.xlu0 %3224, %v670
        %v3226 = vpop.permute.xlu0 %3225
        %3229 = vset.pattern.permute.xlu0 0
        %3230 = vperm.xlu0 %3229, %v671
        %v3231 = vpop.permute.xlu0 %3230
        %v3233 = vadd.f32 %v2785, %v2916
        %v3234 = vadd.f32 %v2786, %v2916
        %v3235 = vadd.f32 %v2787, %v2921
        %v3236 = vadd.f32 %v2788, %v2921
        %v3237 = vadd.f32 %v2789, %v2926
        %v3238 = vadd.f32 %v2790, %v2926
        %v3239 = vadd.f32 %v2791, %v2931
        %v3240 = vadd.f32 %v2792, %v2931
        %v3241 = vadd.f32 %v2793, %v2936
        %v3242 = vadd.f32 %v2794, %v2936
        %v3243 = vadd.f32 %v2795, %v2941
        %v3244 = vadd.f32 %v2796, %v2941
        %v3245 = vadd.f32 %v2797, %v2946
        %v3246 = vadd.f32 %v2798, %v2946
        %v3247 = vadd.f32 %v2799, %v2951
        %v3248 = vadd.f32 %v2800, %v2951
        %v3249 = vadd.f32 %v2801, %v2956
        %v3250 = vadd.f32 %v2802, %v2956
        %v3251 = vadd.f32 %v2803, %v2961
        %v3252 = vadd.f32 %v2804, %v2961
        %v3253 = vadd.f32 %v2805, %v2966
        %v3254 = vadd.f32 %v2806, %v2966
        %v3255 = vadd.f32 %v2807, %v2971
        %v3256 = vadd.f32 %v2808, %v2971
        %v3257 = vadd.f32 %v2809, %v2976
        %v3258 = vadd.f32 %v2810, %v2976
        %v3259 = vadd.f32 %v2811, %v2981
        %v3260 = vadd.f32 %v2812, %v2981
        %v3261 = vadd.f32 %v2813, %v2986
        %v3262 = vadd.f32 %v2814, %v2986
        %v3263 = vadd.f32 %v2815, %v2991
        %v3264 = vadd.f32 %v2816, %v2991
        %v3265 = vadd.f32 %v2817, %v2996
        %v3266 = vadd.f32 %v2818, %v2996
        %v3267 = vadd.f32 %v2819, %v3001
        %v3268 = vadd.f32 %v2820, %v3001
        %v3269 = vadd.f32 %v2821, %v3006
        %v3270 = vadd.f32 %v2822, %v3006
        %v3271 = vadd.f32 %v2823, %v3011
        %v3272 = vadd.f32 %v2824, %v3011
        %v3273 = vadd.f32 %v2825, %v3016
        %v3274 = vadd.f32 %v2826, %v3016
        %v3275 = vadd.f32 %v2827, %v3021
        %v3276 = vadd.f32 %v2828, %v3021
        %v3277 = vadd.f32 %v2829, %v3026
        %v3278 = vadd.f32 %v2830, %v3026
        %v3279 = vadd.f32 %v2831, %v3031
        %v3280 = vadd.f32 %v2832, %v3031
        %v3281 = vadd.f32 %v2833, %v3036
        %v3282 = vadd.f32 %v2834, %v3036
        %v3283 = vadd.f32 %v2835, %v3041
        %v3284 = vadd.f32 %v2836, %v3041
        %v3285 = vadd.f32 %v2837, %v3046
        %v3286 = vadd.f32 %v2838, %v3046
        %v3287 = vadd.f32 %v2839, %v3051
        %v3288 = vadd.f32 %v2840, %v3051
        %v3289 = vadd.f32 %v2841, %v3056
        %v3290 = vadd.f32 %v2842, %v3056
        %v3291 = vadd.f32 %v2843, %v3061
        %v3292 = vadd.f32 %v2844, %v3061
        %v3293 = vadd.f32 %v2845, %v3066
        %v3294 = vadd.f32 %v2846, %v3066
        %v3295 = vadd.f32 %v2847, %v3071
        %v3296 = vadd.f32 %v2848, %v3071
        %v3297 = vadd.f32 %v2849, %v3076
        %v3298 = vadd.f32 %v2850, %v3076
        %v3299 = vadd.f32 %v2851, %v3081
        %v3300 = vadd.f32 %v2852, %v3081
        %v3301 = vadd.f32 %v2853, %v3086
        %v3302 = vadd.f32 %v2854, %v3086
        %v3303 = vadd.f32 %v2855, %v3091
        %v3304 = vadd.f32 %v2856, %v3091
        %v3305 = vadd.f32 %v2857, %v3096
        %v3306 = vadd.f32 %v2858, %v3096
        %v3307 = vadd.f32 %v2859, %v3101
        %v3308 = vadd.f32 %v2860, %v3101
        %v3309 = vadd.f32 %v2861, %v3106
        %v3310 = vadd.f32 %v2862, %v3106
        %v3311 = vadd.f32 %v2863, %v3111
        %v3312 = vadd.f32 %v2864, %v3111
        %v3313 = vadd.f32 %v2865, %v3116
        %v3314 = vadd.f32 %v2866, %v3116
        %v3315 = vadd.f32 %v2867, %v3121
        %v3316 = vadd.f32 %v2868, %v3121
        %v3317 = vadd.f32 %v2869, %v3126
        %v3318 = vadd.f32 %v2870, %v3126
        %v3319 = vadd.f32 %v2871, %v3131
        %v3320 = vadd.f32 %v2872, %v3131
        %v3321 = vadd.f32 %v2873, %v3136
        %v3322 = vadd.f32 %v2874, %v3136
        %v3323 = vadd.f32 %v2875, %v3141
        %v3324 = vadd.f32 %v2876, %v3141
        %v3325 = vadd.f32 %v2877, %v3146
        %v3326 = vadd.f32 %v2878, %v3146
        %v3327 = vadd.f32 %v2879, %v3151
        %v3328 = vadd.f32 %v2880, %v3151
        %v3329 = vadd.f32 %v2881, %v3156
        %v3330 = vadd.f32 %v2882, %v3156
        %v3331 = vadd.f32 %v2883, %v3161
        %v3332 = vadd.f32 %v2884, %v3161
        %v3333 = vadd.f32 %v2885, %v3166
        %v3334 = vadd.f32 %v2886, %v3166
        %v3335 = vadd.f32 %v2887, %v3171
        %v3336 = vadd.f32 %v2888, %v3171
        %v3337 = vadd.f32 %v2889, %v3176
        %v3338 = vadd.f32 %v2890, %v3176
        %v3339 = vadd.f32 %v2891, %v3181
        %v3340 = vadd.f32 %v2892, %v3181
        %v3341 = vadd.f32 %v2893, %v3186
        %v3342 = vadd.f32 %v2894, %v3186
        %v3343 = vadd.f32 %v2895, %v3191
        %v3344 = vadd.f32 %v2896, %v3191
        %v3345 = vadd.f32 %v2897, %v3196
        %v3346 = vadd.f32 %v2898, %v3196
        %v3347 = vadd.f32 %v2899, %v3201
        %v3348 = vadd.f32 %v2900, %v3201
        %v3349 = vadd.f32 %v2901, %v3206
        %v3350 = vadd.f32 %v2902, %v3206
        %v3351 = vadd.f32 %v2903, %v3211
        %v3352 = vadd.f32 %v2904, %v3211
        %v3353 = vadd.f32 %v2905, %v3216
        %v3354 = vadd.f32 %v2906, %v3216
        %v3355 = vadd.f32 %v2907, %v3221
        %v3356 = vadd.f32 %v2908, %v3221
        %v3357 = vadd.f32 %v2909, %v3226
        %v3358 = vadd.f32 %v2910, %v3226
        %v3359 = vadd.f32 %v2911, %v3231
        %v3360 = vadd.f32 %v2912, %v3231
        %v3361 = vld [vmem:[%s518] sm:$0xff]
        %v3362 = vld [vmem:[%s518 + $0x8] sm:$0xff]
        %v3363 = vld [vmem:[%s518 + $0x10] sm:$0xff]
        %v3364 = vld [vmem:[%s518 + $0x18] sm:$0xff]
        %v3365 = vld [vmem:[%s518 + $0x20] sm:$0xff]
        %v3366 = vld [vmem:[%s518 + $0x28] sm:$0xff]
        %v3367 = vld [vmem:[%s518 + $0x30] sm:$0xff]
        %v3368 = vld [vmem:[%s518 + $0x38] sm:$0xff]
        %v3369 = vld [vmem:[%s518 + $0x40] sm:$0xff]
        %v3370 = vld [vmem:[%s518 + $0x48] sm:$0xff]
        %v3371 = vld [vmem:[%s518 + $0x50] sm:$0xff]
        %v3372 = vld [vmem:[%s518 + $0x58] sm:$0xff]
        %v3373 = vld [vmem:[%s518 + $0x60] sm:$0xff]
        %v3374 = vld [vmem:[%s518 + $0x68] sm:$0xff]
        %v3375 = vld [vmem:[%s518 + $0x70] sm:$0xff]
        %v3376 = vld [vmem:[%s518 + $0x78] sm:$0xff]
        %v3377 = vld [vmem:[%s518 + $0x80] sm:$0xff]
        %v3378 = vld [vmem:[%s518 + $0x88] sm:$0xff]
        %v3379 = vld [vmem:[%s518 + $0x90] sm:$0xff]
        %v3380 = vld [vmem:[%s518 + $0x98] sm:$0xff]
        %v3381 = vld [vmem:[%s518 + $0xa0] sm:$0xff]
        %v3382 = vld [vmem:[%s518 + $0xa8] sm:$0xff]
        %v3383 = vld [vmem:[%s518 + $0xb0] sm:$0xff]
        %v3384 = vld [vmem:[%s518 + $0xb8] sm:$0xff]
        %v3385 = vld [vmem:[%s518 + $0xc0] sm:$0xff]
        %v3386 = vld [vmem:[%s518 + $0xc8] sm:$0xff]
        %v3387 = vld [vmem:[%s518 + $0xd0] sm:$0xff]
        %v3388 = vld [vmem:[%s518 + $0xd8] sm:$0xff]
        %v3389 = vld [vmem:[%s518 + $0xe0] sm:$0xff]
        %v3390 = vld [vmem:[%s518 + $0xe8] sm:$0xff]
        %v3391 = vld [vmem:[%s518 + $0xf0] sm:$0xff]
        %v3392 = vld [vmem:[%s518 + $0xf8] sm:$0xff]
        %v3393 = vld [vmem:[%s518 + $0x100] sm:$0xff]
        %v3394 = vld [vmem:[%s518 + $0x108] sm:$0xff]
        %v3395 = vld [vmem:[%s518 + $0x110] sm:$0xff]
        %v3396 = vld [vmem:[%s518 + $0x118] sm:$0xff]
        %v3397 = vld [vmem:[%s518 + $0x120] sm:$0xff]
        %v3398 = vld [vmem:[%s518 + $0x128] sm:$0xff]
        %v3399 = vld [vmem:[%s518 + $0x130] sm:$0xff]
        %v3400 = vld [vmem:[%s518 + $0x138] sm:$0xff]
        %v3401 = vld [vmem:[%s518 + $0x140] sm:$0xff]
        %v3402 = vld [vmem:[%s518 + $0x148] sm:$0xff]
        %v3403 = vld [vmem:[%s518 + $0x150] sm:$0xff]
        %v3404 = vld [vmem:[%s518 + $0x158] sm:$0xff]
        %v3405 = vld [vmem:[%s518 + $0x160] sm:$0xff]
        %v3406 = vld [vmem:[%s518 + $0x168] sm:$0xff]
        %v3407 = vld [vmem:[%s518 + $0x170] sm:$0xff]
        %v3408 = vld [vmem:[%s518 + $0x178] sm:$0xff]
        %v3409 = vld [vmem:[%s518 + $0x180] sm:$0xff]
        %v3410 = vld [vmem:[%s518 + $0x188] sm:$0xff]
        %v3411 = vld [vmem:[%s518 + $0x190] sm:$0xff]
        %v3412 = vld [vmem:[%s518 + $0x198] sm:$0xff]
        %v3413 = vld [vmem:[%s518 + $0x1a0] sm:$0xff]
        %v3414 = vld [vmem:[%s518 + $0x1a8] sm:$0xff]
        %v3415 = vld [vmem:[%s518 + $0x1b0] sm:$0xff]
        %v3416 = vld [vmem:[%s518 + $0x1b8] sm:$0xff]
        %v3417 = vld [vmem:[%s518 + $0x1c0] sm:$0xff]
        %v3418 = vld [vmem:[%s518 + $0x1c8] sm:$0xff]
        %v3419 = vld [vmem:[%s518 + $0x1d0] sm:$0xff]
        %v3420 = vld [vmem:[%s518 + $0x1d8] sm:$0xff]
        %v3421 = vld [vmem:[%s518 + $0x1e0] sm:$0xff]
        %v3422 = vld [vmem:[%s518 + $0x1e8] sm:$0xff]
        %v3423 = vld [vmem:[%s518 + $0x1f0] sm:$0xff]
        %v3424 = vld [vmem:[%s518 + $0x1f8] sm:$0xff]
        %v3425 = vld [vmem:[%s518 + $0x200] sm:$0xff]
        %v3426 = vld [vmem:[%s518 + $0x208] sm:$0xff]
        %v3427 = vld [vmem:[%s518 + $0x210] sm:$0xff]
        %v3428 = vld [vmem:[%s518 + $0x218] sm:$0xff]
        %v3429 = vld [vmem:[%s518 + $0x220] sm:$0xff]
        %v3430 = vld [vmem:[%s518 + $0x228] sm:$0xff]
        %v3431 = vld [vmem:[%s518 + $0x230] sm:$0xff]
        %v3432 = vld [vmem:[%s518 + $0x238] sm:$0xff]
        %v3433 = vld [vmem:[%s518 + $0x240] sm:$0xff]
        %v3434 = vld [vmem:[%s518 + $0x248] sm:$0xff]
        %v3435 = vld [vmem:[%s518 + $0x250] sm:$0xff]
        %v3436 = vld [vmem:[%s518 + $0x258] sm:$0xff]
        %v3437 = vld [vmem:[%s518 + $0x260] sm:$0xff]
        %v3438 = vld [vmem:[%s518 + $0x268] sm:$0xff]
        %v3439 = vld [vmem:[%s518 + $0x270] sm:$0xff]
        %v3440 = vld [vmem:[%s518 + $0x278] sm:$0xff]
        %v3441 = vld [vmem:[%s518 + $0x280] sm:$0xff]
        %v3442 = vld [vmem:[%s518 + $0x288] sm:$0xff]
        %v3443 = vld [vmem:[%s518 + $0x290] sm:$0xff]
        %v3444 = vld [vmem:[%s518 + $0x298] sm:$0xff]
        %v3445 = vld [vmem:[%s518 + $0x2a0] sm:$0xff]
        %v3446 = vld [vmem:[%s518 + $0x2a8] sm:$0xff]
        %v3447 = vld [vmem:[%s518 + $0x2b0] sm:$0xff]
        %v3448 = vld [vmem:[%s518 + $0x2b8] sm:$0xff]
        %v3449 = vld [vmem:[%s518 + $0x2c0] sm:$0xff]
        %v3450 = vld [vmem:[%s518 + $0x2c8] sm:$0xff]
        %v3451 = vld [vmem:[%s518 + $0x2d0] sm:$0xff]
        %v3452 = vld [vmem:[%s518 + $0x2d8] sm:$0xff]
        %v3453 = vld [vmem:[%s518 + $0x2e0] sm:$0xff]
        %v3454 = vld [vmem:[%s518 + $0x2e8] sm:$0xff]
        %v3455 = vld [vmem:[%s518 + $0x2f0] sm:$0xff]
        %v3456 = vld [vmem:[%s518 + $0x2f8] sm:$0xff]
        %v3457 = vld [vmem:[%s518 + $0x300] sm:$0xff]
        %v3458 = vld [vmem:[%s518 + $0x308] sm:$0xff]
        %v3459 = vld [vmem:[%s518 + $0x310] sm:$0xff]
        %v3460 = vld [vmem:[%s518 + $0x318] sm:$0xff]
        %v3461 = vld [vmem:[%s518 + $0x320] sm:$0xff]
        %v3462 = vld [vmem:[%s518 + $0x328] sm:$0xff]
        %v3463 = vld [vmem:[%s518 + $0x330] sm:$0xff]
        %v3464 = vld [vmem:[%s518 + $0x338] sm:$0xff]
        %v3465 = vld [vmem:[%s518 + $0x340] sm:$0xff]
        %v3466 = vld [vmem:[%s518 + $0x348] sm:$0xff]
        %v3467 = vld [vmem:[%s518 + $0x350] sm:$0xff]
        %v3468 = vld [vmem:[%s518 + $0x358] sm:$0xff]
        %v3469 = vld [vmem:[%s518 + $0x360] sm:$0xff]
        %v3470 = vld [vmem:[%s518 + $0x368] sm:$0xff]
        %v3471 = vld [vmem:[%s518 + $0x370] sm:$0xff]
        %v3472 = vld [vmem:[%s518 + $0x378] sm:$0xff]
        %v3473 = vld [vmem:[%s518 + $0x380] sm:$0xff]
        %v3474 = vld [vmem:[%s518 + $0x388] sm:$0xff]
        %v3475 = vld [vmem:[%s518 + $0x390] sm:$0xff]
        %v3476 = vld [vmem:[%s518 + $0x398] sm:$0xff]
        %v3477 = vld [vmem:[%s518 + $0x3a0] sm:$0xff]
        %v3478 = vld [vmem:[%s518 + $0x3a8] sm:$0xff]
        %v3479 = vld [vmem:[%s518 + $0x3b0] sm:$0xff]
        %v3480 = vld [vmem:[%s518 + $0x3b8] sm:$0xff]
        %v3481 = vld [vmem:[%s518 + $0x3c0] sm:$0xff]
        %v3482 = vld [vmem:[%s518 + $0x3c8] sm:$0xff]
        %v3483 = vld [vmem:[%s518 + $0x3d0] sm:$0xff]
        %v3484 = vld [vmem:[%s518 + $0x3d8] sm:$0xff]
        %v3485 = vld [vmem:[%s518 + $0x3e0] sm:$0xff]
        %v3486 = vld [vmem:[%s518 + $0x3e8] sm:$0xff]
        %v3487 = vld [vmem:[%s518 + $0x3f0] sm:$0xff]
        %v3488 = vld [vmem:[%s518 + $0x3f8] sm:$0xff]
        %v3489 = vadd.f32 %v3233, %v3361
        %v3490 = vadd.f32 %v3234, %v3362
        %v3491 = vadd.f32 %v3235, %v3363
        %v3492 = vadd.f32 %v3236, %v3364
        %v3493 = vadd.f32 %v3237, %v3365
        %v3494 = vadd.f32 %v3238, %v3366
        %v3495 = vadd.f32 %v3239, %v3367
        %v3496 = vadd.f32 %v3240, %v3368
        %v3497 = vadd.f32 %v3241, %v3369
        %v3498 = vadd.f32 %v3242, %v3370
        %v3499 = vadd.f32 %v3243, %v3371
        %v3500 = vadd.f32 %v3244, %v3372
        %v3501 = vadd.f32 %v3245, %v3373
        %v3502 = vadd.f32 %v3246, %v3374
        %v3503 = vadd.f32 %v3247, %v3375
        %v3504 = vadd.f32 %v3248, %v3376
        %v3505 = vadd.f32 %v3249, %v3377
        %v3506 = vadd.f32 %v3250, %v3378
        %v3507 = vadd.f32 %v3251, %v3379
        %v3508 = vadd.f32 %v3252, %v3380
        %v3509 = vadd.f32 %v3253, %v3381
        %v3510 = vadd.f32 %v3254, %v3382
        %v3511 = vadd.f32 %v3255, %v3383
        %v3512 = vadd.f32 %v3256, %v3384
        %v3513 = vadd.f32 %v3257, %v3385
        %v3514 = vadd.f32 %v3258, %v3386
        %v3515 = vadd.f32 %v3259, %v3387
        %v3516 = vadd.f32 %v3260, %v3388
        %v3517 = vadd.f32 %v3261, %v3389
        %v3518 = vadd.f32 %v3262, %v3390
        %v3519 = vadd.f32 %v3263, %v3391
        %v3520 = vadd.f32 %v3264, %v3392
        %v3521 = vadd.f32 %v3265, %v3393
        %v3522 = vadd.f32 %v3266, %v3394
        %v3523 = vadd.f32 %v3267, %v3395
        %v3524 = vadd.f32 %v3268, %v3396
        %v3525 = vadd.f32 %v3269, %v3397
        %v3526 = vadd.f32 %v3270, %v3398
        %v3527 = vadd.f32 %v3271, %v3399
        %v3528 = vadd.f32 %v3272, %v3400
        %v3529 = vadd.f32 %v3273, %v3401
        %v3530 = vadd.f32 %v3274, %v3402
        %v3531 = vadd.f32 %v3275, %v3403
        %v3532 = vadd.f32 %v3276, %v3404
        %v3533 = vadd.f32 %v3277, %v3405
        %v3534 = vadd.f32 %v3278, %v3406
        %v3535 = vadd.f32 %v3279, %v3407
        %v3536 = vadd.f32 %v3280, %v3408
        %v3537 = vadd.f32 %v3281, %v3409
        %v3538 = vadd.f32 %v3282, %v3410
        %v3539 = vadd.f32 %v3283, %v3411
        %v3540 = vadd.f32 %v3284, %v3412
        %v3541 = vadd.f32 %v3285, %v3413
        %v3542 = vadd.f32 %v3286, %v3414
        %v3543 = vadd.f32 %v3287, %v3415
        %v3544 = vadd.f32 %v3288, %v3416
        %v3545 = vadd.f32 %v3289, %v3417
        %v3546 = vadd.f32 %v3290, %v3418
        %v3547 = vadd.f32 %v3291, %v3419
        %v3548 = vadd.f32 %v3292, %v3420
        %v3549 = vadd.f32 %v3293, %v3421
        %v3550 = vadd.f32 %v3294, %v3422
        %v3551 = vadd.f32 %v3295, %v3423
        %v3552 = vadd.f32 %v3296, %v3424
        %v3553 = vadd.f32 %v3297, %v3425
        %v3554 = vadd.f32 %v3298, %v3426
        %v3555 = vadd.f32 %v3299, %v3427
        %v3556 = vadd.f32 %v3300, %v3428
        %v3557 = vadd.f32 %v3301, %v3429
        %v3558 = vadd.f32 %v3302, %v3430
        %v3559 = vadd.f32 %v3303, %v3431
        %v3560 = vadd.f32 %v3304, %v3432
        %v3561 = vadd.f32 %v3305, %v3433
        %v3562 = vadd.f32 %v3306, %v3434
        %v3563 = vadd.f32 %v3307, %v3435
        %v3564 = vadd.f32 %v3308, %v3436
        %v3565 = vadd.f32 %v3309, %v3437
        %v3566 = vadd.f32 %v3310, %v3438
        %v3567 = vadd.f32 %v3311, %v3439
        %v3568 = vadd.f32 %v3312, %v3440
        %v3569 = vadd.f32 %v3313, %v3441
        %v3570 = vadd.f32 %v3314, %v3442
        %v3571 = vadd.f32 %v3315, %v3443
        %v3572 = vadd.f32 %v3316, %v3444
        %v3573 = vadd.f32 %v3317, %v3445
        %v3574 = vadd.f32 %v3318, %v3446
        %v3575 = vadd.f32 %v3319, %v3447
        %v3576 = vadd.f32 %v3320, %v3448
        %v3577 = vadd.f32 %v3321, %v3449
        %v3578 = vadd.f32 %v3322, %v3450
        %v3579 = vadd.f32 %v3323, %v3451
        %v3580 = vadd.f32 %v3324, %v3452
        %v3581 = vadd.f32 %v3325, %v3453
        %v3582 = vadd.f32 %v3326, %v3454
        %v3583 = vadd.f32 %v3327, %v3455
        %v3584 = vadd.f32 %v3328, %v3456
        %v3585 = vadd.f32 %v3329, %v3457
        %v3586 = vadd.f32 %v3330, %v3458
        %v3587 = vadd.f32 %v3331, %v3459
        %v3588 = vadd.f32 %v3332, %v3460
        %v3589 = vadd.f32 %v3333, %v3461
        %v3590 = vadd.f32 %v3334, %v3462
        %v3591 = vadd.f32 %v3335, %v3463
        %v3592 = vadd.f32 %v3336, %v3464
        %v3593 = vadd.f32 %v3337, %v3465
        %v3594 = vadd.f32 %v3338, %v3466
        %v3595 = vadd.f32 %v3339, %v3467
        %v3596 = vadd.f32 %v3340, %v3468
        %v3597 = vadd.f32 %v3341, %v3469
        %v3598 = vadd.f32 %v3342, %v3470
        %v3599 = vadd.f32 %v3343, %v3471
        %v3600 = vadd.f32 %v3344, %v3472
        %v3601 = vadd.f32 %v3345, %v3473
        %v3602 = vadd.f32 %v3346, %v3474
        %v3603 = vadd.f32 %v3347, %v3475
        %v3604 = vadd.f32 %v3348, %v3476
        %v3605 = vadd.f32 %v3349, %v3477
        %v3606 = vadd.f32 %v3350, %v3478
        %v3607 = vadd.f32 %v3351, %v3479
        %v3608 = vadd.f32 %v3352, %v3480
        %v3609 = vadd.f32 %v3353, %v3481
        %v3610 = vadd.f32 %v3354, %v3482
        %v3611 = vadd.f32 %v3355, %v3483
        %v3612 = vadd.f32 %v3356, %v3484
        %v3613 = vadd.f32 %v3357, %v3485
        %v3614 = vadd.f32 %v3358, %v3486
        %v3615 = vadd.f32 %v3359, %v3487
        %v3616 = vadd.f32 %v3360, %v3488
        %v3617 = vmax.f32 %v3489, 0.0
        %v3618 = vmax.f32 %v3490, 0.0
        %v3619 = vmax.f32 %v3491, 0.0
        %v3620 = vmax.f32 %v3492, 0.0
        %v3621 = vmax.f32 %v3493, 0.0
        %v3622 = vmax.f32 %v3494, 0.0
        %v3623 = vmax.f32 %v3495, 0.0
        %v3624 = vmax.f32 %v3496, 0.0
        %v3625 = vmax.f32 %v3497, 0.0
        %v3626 = vmax.f32 %v3498, 0.0
        %v3627 = vmax.f32 %v3499, 0.0
        %v3628 = vmax.f32 %v3500, 0.0
        %v3629 = vmax.f32 %v3501, 0.0
        %v3630 = vmax.f32 %v3502, 0.0
        %v3631 = vmax.f32 %v3503, 0.0
        %v3632 = vmax.f32 %v3504, 0.0
        %v3633 = vmax.f32 %v3505, 0.0
        %v3634 = vmax.f32 %v3506, 0.0
        %v3635 = vmax.f32 %v3507, 0.0
        %v3636 = vmax.f32 %v3508, 0.0
        %v3637 = vmax.f32 %v3509, 0.0
        %v3638 = vmax.f32 %v3510, 0.0
        %v3639 = vmax.f32 %v3511, 0.0
        %v3640 = vmax.f32 %v3512, 0.0
        %v3641 = vmax.f32 %v3513, 0.0
        %v3642 = vmax.f32 %v3514, 0.0
        %v3643 = vmax.f32 %v3515, 0.0
        %v3644 = vmax.f32 %v3516, 0.0
        %v3645 = vmax.f32 %v3517, 0.0
        %v3646 = vmax.f32 %v3518, 0.0
        %v3647 = vmax.f32 %v3519, 0.0
        %v3648 = vmax.f32 %v3520, 0.0
        %v3649 = vmax.f32 %v3521, 0.0
        %v3650 = vmax.f32 %v3522, 0.0
        %v3651 = vmax.f32 %v3523, 0.0
        %v3652 = vmax.f32 %v3524, 0.0
        %v3653 = vmax.f32 %v3525, 0.0
        %v3654 = vmax.f32 %v3526, 0.0
        %v3655 = vmax.f32 %v3527, 0.0
        %v3656 = vmax.f32 %v3528, 0.0
        %v3657 = vmax.f32 %v3529, 0.0
        %v3658 = vmax.f32 %v3530, 0.0
        %v3659 = vmax.f32 %v3531, 0.0
        %v3660 = vmax.f32 %v3532, 0.0
        %v3661 = vmax.f32 %v3533, 0.0
        %v3662 = vmax.f32 %v3534, 0.0
        %v3663 = vmax.f32 %v3535, 0.0
        %v3664 = vmax.f32 %v3536, 0.0
        %v3665 = vmax.f32 %v3537, 0.0
        %v3666 = vmax.f32 %v3538, 0.0
        %v3667 = vmax.f32 %v3539, 0.0
        %v3668 = vmax.f32 %v3540, 0.0
        %v3669 = vmax.f32 %v3541, 0.0
        %v3670 = vmax.f32 %v3542, 0.0
        %v3671 = vmax.f32 %v3543, 0.0
        %v3672 = vmax.f32 %v3544, 0.0
        %v3673 = vmax.f32 %v3545, 0.0
        %v3674 = vmax.f32 %v3546, 0.0
        %v3675 = vmax.f32 %v3547, 0.0
        %v3676 = vmax.f32 %v3548, 0.0
        %v3677 = vmax.f32 %v3549, 0.0
        %v3678 = vmax.f32 %v3550, 0.0
        %v3679 = vmax.f32 %v3551, 0.0
        %v3680 = vmax.f32 %v3552, 0.0
        %v3681 = vmax.f32 %v3553, 0.0
        %v3682 = vmax.f32 %v3554, 0.0
        %v3683 = vmax.f32 %v3555, 0.0
        %v3684 = vmax.f32 %v3556, 0.0
        %v3685 = vmax.f32 %v3557, 0.0
        %v3686 = vmax.f32 %v3558, 0.0
        %v3687 = vmax.f32 %v3559, 0.0
        %v3688 = vmax.f32 %v3560, 0.0
        %v3689 = vmax.f32 %v3561, 0.0
        %v3690 = vmax.f32 %v3562, 0.0
        %v3691 = vmax.f32 %v3563, 0.0
        %v3692 = vmax.f32 %v3564, 0.0
        %v3693 = vmax.f32 %v3565, 0.0
        %v3694 = vmax.f32 %v3566, 0.0
        %v3695 = vmax.f32 %v3567, 0.0
        %v3696 = vmax.f32 %v3568, 0.0
        %v3697 = vmax.f32 %v3569, 0.0
        %v3698 = vmax.f32 %v3570, 0.0
        %v3699 = vmax.f32 %v3571, 0.0
        %v3700 = vmax.f32 %v3572, 0.0
        %v3701 = vmax.f32 %v3573, 0.0
        %v3702 = vmax.f32 %v3574, 0.0
        %v3703 = vmax.f32 %v3575, 0.0
        %v3704 = vmax.f32 %v3576, 0.0
        %v3705 = vmax.f32 %v3577, 0.0
        %v3706 = vmax.f32 %v3578, 0.0
        %v3707 = vmax.f32 %v3579, 0.0
        %v3708 = vmax.f32 %v3580, 0.0
        %v3709 = vmax.f32 %v3581, 0.0
        %v3710 = vmax.f32 %v3582, 0.0
        %v3711 = vmax.f32 %v3583, 0.0
        %v3712 = vmax.f32 %v3584, 0.0
        %v3713 = vmax.f32 %v3585, 0.0
        %v3714 = vmax.f32 %v3586, 0.0
        %v3715 = vmax.f32 %v3587, 0.0
        %v3716 = vmax.f32 %v3588, 0.0
        %v3717 = vmax.f32 %v3589, 0.0
        %v3718 = vmax.f32 %v3590, 0.0
        %v3719 = vmax.f32 %v3591, 0.0
        %v3720 = vmax.f32 %v3592, 0.0
        %v3721 = vmax.f32 %v3593, 0.0
        %v3722 = vmax.f32 %v3594, 0.0
        %v3723 = vmax.f32 %v3595, 0.0
        %v3724 = vmax.f32 %v3596, 0.0
        %v3725 = vmax.f32 %v3597, 0.0
        %v3726 = vmax.f32 %v3598, 0.0
        %v3727 = vmax.f32 %v3599, 0.0
        %v3728 = vmax.f32 %v3600, 0.0
        %v3729 = vmax.f32 %v3601, 0.0
        %v3730 = vmax.f32 %v3602, 0.0
        %v3731 = vmax.f32 %v3603, 0.0
        %v3732 = vmax.f32 %v3604, 0.0
        %v3733 = vmax.f32 %v3605, 0.0
        %v3734 = vmax.f32 %v3606, 0.0
        %v3735 = vmax.f32 %v3607, 0.0
        %v3736 = vmax.f32 %v3608, 0.0
        %v3737 = vmax.f32 %v3609, 0.0
        %v3738 = vmax.f32 %v3610, 0.0
        %v3739 = vmax.f32 %v3611, 0.0
        %v3740 = vmax.f32 %v3612, 0.0
        %v3741 = vmax.f32 %v3613, 0.0
        %v3742 = vmax.f32 %v3614, 0.0
        %v3743 = vmax.f32 %v3615, 0.0
        %v3744 = vmax.f32 %v3616, 0.0
        %v3745 = vld [vmem:[%s454] sm:$0xff]
        %v3746 = vld [vmem:[%s454 + $0x8] sm:$0xff]
        %v3747 = vld [vmem:[%s454 + $0x10] sm:$0xff]
        %v3748 = vld [vmem:[%s454 + $0x18] sm:$0xff]
        %v3749 = vld [vmem:[%s454 + $0x20] sm:$0xff]
        %v3750 = vld [vmem:[%s454 + $0x28] sm:$0xff]
        %v3751 = vld [vmem:[%s454 + $0x30] sm:$0xff]
        %v3752 = vld [vmem:[%s454 + $0x38] sm:$0xff]
        %v3753 = vld [vmem:[%s454 + $0x40] sm:$0xff]
        %v3754 = vld [vmem:[%s454 + $0x48] sm:$0xff]
        %v3755 = vld [vmem:[%s454 + $0x50] sm:$0xff]
        %v3756 = vld [vmem:[%s454 + $0x58] sm:$0xff]
        %v3757 = vld [vmem:[%s454 + $0x60] sm:$0xff]
        %v3758 = vld [vmem:[%s454 + $0x68] sm:$0xff]
        %v3759 = vld [vmem:[%s454 + $0x70] sm:$0xff]
        %v3760 = vld [vmem:[%s454 + $0x78] sm:$0xff]
        %v3761 = vld [vmem:[%s454 + $0x80] sm:$0xff]
        %v3762 = vld [vmem:[%s454 + $0x88] sm:$0xff]
        %v3763 = vld [vmem:[%s454 + $0x90] sm:$0xff]
        %v3764 = vld [vmem:[%s454 + $0x98] sm:$0xff]
        %v3765 = vld [vmem:[%s454 + $0xa0] sm:$0xff]
        %v3766 = vld [vmem:[%s454 + $0xa8] sm:$0xff]
        %v3767 = vld [vmem:[%s454 + $0xb0] sm:$0xff]
        %v3768 = vld [vmem:[%s454 + $0xb8] sm:$0xff]
        %v3769 = vld [vmem:[%s454 + $0xc0] sm:$0xff]
        %v3770 = vld [vmem:[%s454 + $0xc8] sm:$0xff]
        %v3771 = vld [vmem:[%s454 + $0xd0] sm:$0xff]
        %v3772 = vld [vmem:[%s454 + $0xd8] sm:$0xff]
        %v3773 = vld [vmem:[%s454 + $0xe0] sm:$0xff]
        %v3774 = vld [vmem:[%s454 + $0xe8] sm:$0xff]
        %v3775 = vld [vmem:[%s454 + $0xf0] sm:$0xff]
        %v3776 = vld [vmem:[%s454 + $0xf8] sm:$0xff]
        %v3777 = vld [vmem:[%s454 + $0x100] sm:$0xff]
        %v3778 = vld [vmem:[%s454 + $0x108] sm:$0xff]
        %v3779 = vld [vmem:[%s454 + $0x110] sm:$0xff]
        %v3780 = vld [vmem:[%s454 + $0x118] sm:$0xff]
        %v3781 = vld [vmem:[%s454 + $0x120] sm:$0xff]
        %v3782 = vld [vmem:[%s454 + $0x128] sm:$0xff]
        %v3783 = vld [vmem:[%s454 + $0x130] sm:$0xff]
        %v3784 = vld [vmem:[%s454 + $0x138] sm:$0xff]
        %v3785 = vld [vmem:[%s454 + $0x140] sm:$0xff]
        %v3786 = vld [vmem:[%s454 + $0x148] sm:$0xff]
        %v3787 = vld [vmem:[%s454 + $0x150] sm:$0xff]
        %v3788 = vld [vmem:[%s454 + $0x158] sm:$0xff]
        %v3789 = vld [vmem:[%s454 + $0x160] sm:$0xff]
        %v3790 = vld [vmem:[%s454 + $0x168] sm:$0xff]
        %v3791 = vld [vmem:[%s454 + $0x170] sm:$0xff]
        %v3792 = vld [vmem:[%s454 + $0x178] sm:$0xff]
        %v3793 = vld [vmem:[%s454 + $0x180] sm:$0xff]
        %v3794 = vld [vmem:[%s454 + $0x188] sm:$0xff]
        %v3795 = vld [vmem:[%s454 + $0x190] sm:$0xff]
        %v3796 = vld [vmem:[%s454 + $0x198] sm:$0xff]
        %v3797 = vld [vmem:[%s454 + $0x1a0] sm:$0xff]
        %v3798 = vld [vmem:[%s454 + $0x1a8] sm:$0xff]
        %v3799 = vld [vmem:[%s454 + $0x1b0] sm:$0xff]
        %v3800 = vld [vmem:[%s454 + $0x1b8] sm:$0xff]
        %v3801 = vld [vmem:[%s454 + $0x1c0] sm:$0xff]
        %v3802 = vld [vmem:[%s454 + $0x1c8] sm:$0xff]
        %v3803 = vld [vmem:[%s454 + $0x1d0] sm:$0xff]
        %v3804 = vld [vmem:[%s454 + $0x1d8] sm:$0xff]
        %v3805 = vld [vmem:[%s454 + $0x1e0] sm:$0xff]
        %v3806 = vld [vmem:[%s454 + $0x1e8] sm:$0xff]
        %v3807 = vld [vmem:[%s454 + $0x1f0] sm:$0xff]
        %v3808 = vld [vmem:[%s454 + $0x1f8] sm:$0xff]
        %v3809 = vpack.c.bf16 %v3619, %v3617
        %v3810 = vpack.c.bf16 %v3620, %v3618
        %v3811 = vpack.c.bf16 %v3623, %v3621
        %v3812 = vpack.c.bf16 %v3624, %v3622
        %v3813 = vpack.c.bf16 %v3627, %v3625
        %v3814 = vpack.c.bf16 %v3628, %v3626
        %v3815 = vpack.c.bf16 %v3631, %v3629
        %v3816 = vpack.c.bf16 %v3632, %v3630
        %v3817 = vpack.c.bf16 %v3635, %v3633
        %v3818 = vpack.c.bf16 %v3636, %v3634
        %v3819 = vpack.c.bf16 %v3639, %v3637
        %v3820 = vpack.c.bf16 %v3640, %v3638
        %v3821 = vpack.c.bf16 %v3643, %v3641
        %v3822 = vpack.c.bf16 %v3644, %v3642
        %v3823 = vpack.c.bf16 %v3647, %v3645
        %v3824 = vpack.c.bf16 %v3648, %v3646
        %v3825 = vpack.c.bf16 %v3651, %v3649
        %v3826 = vpack.c.bf16 %v3652, %v3650
        %v3827 = vpack.c.bf16 %v3655, %v3653
        %v3828 = vpack.c.bf16 %v3656, %v3654
        %v3829 = vpack.c.bf16 %v3659, %v3657
        %v3830 = vpack.c.bf16 %v3660, %v3658
        %v3831 = vpack.c.bf16 %v3663, %v3661
        %v3832 = vpack.c.bf16 %v3664, %v3662
        %v3833 = vpack.c.bf16 %v3667, %v3665
        %v3834 = vpack.c.bf16 %v3668, %v3666
        %v3835 = vpack.c.bf16 %v3671, %v3669
        %v3836 = vpack.c.bf16 %v3672, %v3670
        %v3837 = vpack.c.bf16 %v3675, %v3673
        %v3838 = vpack.c.bf16 %v3676, %v3674
        %v3839 = vpack.c.bf16 %v3679, %v3677
        %v3840 = vpack.c.bf16 %v3680, %v3678
        %v3841 = vpack.c.bf16 %v3683, %v3681
        %v3842 = vpack.c.bf16 %v3684, %v3682
        %v3843 = vpack.c.bf16 %v3687, %v3685
        %v3844 = vpack.c.bf16 %v3688, %v3686
        %v3845 = vpack.c.bf16 %v3691, %v3689
        %v3846 = vpack.c.bf16 %v3692, %v3690
        %v3847 = vpack.c.bf16 %v3695, %v3693
        %v3848 = vpack.c.bf16 %v3696, %v3694
        %v3849 = vpack.c.bf16 %v3699, %v3697
        %v3850 = vpack.c.bf16 %v3700, %v3698
        %v3851 = vpack.c.bf16 %v3703, %v3701
        %v3852 = vpack.c.bf16 %v3704, %v3702
        %v3853 = vpack.c.bf16 %v3707, %v3705
        %v3854 = vpack.c.bf16 %v3708, %v3706
        %v3855 = vpack.c.bf16 %v3711, %v3709
        %v3856 = vpack.c.bf16 %v3712, %v3710
        %v3857 = vpack.c.bf16 %v3715, %v3713
        %v3858 = vpack.c.bf16 %v3716, %v3714
        %v3859 = vpack.c.bf16 %v3719, %v3717
        %v3860 = vpack.c.bf16 %v3720, %v3718
        %v3861 = vpack.c.bf16 %v3723, %v3721
        %v3862 = vpack.c.bf16 %v3724, %v3722
        %v3863 = vpack.c.bf16 %v3727, %v3725
        %v3864 = vpack.c.bf16 %v3728, %v3726
        %v3865 = vpack.c.bf16 %v3731, %v3729
        %v3866 = vpack.c.bf16 %v3732, %v3730
        %v3867 = vpack.c.bf16 %v3735, %v3733
        %v3868 = vpack.c.bf16 %v3736, %v3734
        %v3869 = vpack.c.bf16 %v3739, %v3737
        %v3870 = vpack.c.bf16 %v3740, %v3738
        %v3871 = vpack.c.bf16 %v3743, %v3741
        %v3872 = vpack.c.bf16 %v3744, %v3742
        %v3937 = vunpack.c.l.b16 %v3745
        %v3938 = vunpack.c.h.b16 %v3745
        %v3939 = vunpack.c.l.b16 %v3746
        %v3940 = vunpack.c.h.b16 %v3746
        %v3941 = vunpack.c.l.b16 %v3747
        %v3942 = vunpack.c.h.b16 %v3747
        %v3943 = vunpack.c.l.b16 %v3748
        %v3944 = vunpack.c.h.b16 %v3748
        %v3945 = vunpack.c.l.b16 %v3749
        %v3946 = vunpack.c.h.b16 %v3749
        %v3947 = vunpack.c.l.b16 %v3750
        %v3948 = vunpack.c.h.b16 %v3750
        %v3949 = vunpack.c.l.b16 %v3751
        %v3950 = vunpack.c.h.b16 %v3751
        %v3951 = vunpack.c.l.b16 %v3752
        %v3952 = vunpack.c.h.b16 %v3752
        %v3953 = vunpack.c.l.b16 %v3753
        %v3954 = vunpack.c.h.b16 %v3753
        %v3955 = vunpack.c.l.b16 %v3754
        %v3956 = vunpack.c.h.b16 %v3754
        %v3957 = vunpack.c.l.b16 %v3755
        %v3958 = vunpack.c.h.b16 %v3755
        %v3959 = vunpack.c.l.b16 %v3756
        %v3960 = vunpack.c.h.b16 %v3756
        %v3961 = vunpack.c.l.b16 %v3757
        %v3962 = vunpack.c.h.b16 %v3757
        %v3963 = vunpack.c.l.b16 %v3758
        %v3964 = vunpack.c.h.b16 %v3758
        %v3965 = vunpack.c.l.b16 %v3759
        %v3966 = vunpack.c.h.b16 %v3759
        %v3967 = vunpack.c.l.b16 %v3760
        %v3968 = vunpack.c.h.b16 %v3760
        %v3969 = vunpack.c.l.b16 %v3761
        %v3970 = vunpack.c.h.b16 %v3761
        %v3971 = vunpack.c.l.b16 %v3762
        %v3972 = vunpack.c.h.b16 %v3762
        %v3973 = vunpack.c.l.b16 %v3763
        %v3974 = vunpack.c.h.b16 %v3763
        %v3975 = vunpack.c.l.b16 %v3764
        %v3976 = vunpack.c.h.b16 %v3764
        %v3977 = vunpack.c.l.b16 %v3765
        %v3978 = vunpack.c.h.b16 %v3765
        %v3979 = vunpack.c.l.b16 %v3766
        %v3980 = vunpack.c.h.b16 %v3766
        %v3981 = vunpack.c.l.b16 %v3767
        %v3982 = vunpack.c.h.b16 %v3767
        %v3983 = vunpack.c.l.b16 %v3768
        %v3984 = vunpack.c.h.b16 %v3768
        %v3985 = vunpack.c.l.b16 %v3769
        %v3986 = vunpack.c.h.b16 %v3769
        %v3987 = vunpack.c.l.b16 %v3770
        %v3988 = vunpack.c.h.b16 %v3770
        %v3989 = vunpack.c.l.b16 %v3771
        %v3990 = vunpack.c.h.b16 %v3771
        %v3991 = vunpack.c.l.b16 %v3772
        %v3992 = vunpack.c.h.b16 %v3772
        %v3993 = vunpack.c.l.b16 %v3773
        %v3994 = vunpack.c.h.b16 %v3773
        %v3995 = vunpack.c.l.b16 %v3774
        %v3996 = vunpack.c.h.b16 %v3774
        %v3997 = vunpack.c.l.b16 %v3775
        %v3998 = vunpack.c.h.b16 %v3775
        %v3999 = vunpack.c.l.b16 %v3776
        %v4000 = vunpack.c.h.b16 %v3776
        %v4001 = vunpack.c.l.b16 %v3777
        %v4002 = vunpack.c.h.b16 %v3777
        %v4003 = vunpack.c.l.b16 %v3778
        %v4004 = vunpack.c.h.b16 %v3778
        %v4005 = vunpack.c.l.b16 %v3779
        %v4006 = vunpack.c.h.b16 %v3779
        %v4007 = vunpack.c.l.b16 %v3780
        %v4008 = vunpack.c.h.b16 %v3780
        %v4009 = vunpack.c.l.b16 %v3781
        %v4010 = vunpack.c.h.b16 %v3781
        %v4011 = vunpack.c.l.b16 %v3782
        %v4012 = vunpack.c.h.b16 %v3782
        %v4013 = vunpack.c.l.b16 %v3783
        %v4014 = vunpack.c.h.b16 %v3783
        %v4015 = vunpack.c.l.b16 %v3784
        %v4016 = vunpack.c.h.b16 %v3784
        %v4017 = vunpack.c.l.b16 %v3785
        %v4018 = vunpack.c.h.b16 %v3785
        %v4019 = vunpack.c.l.b16 %v3786
        %v4020 = vunpack.c.h.b16 %v3786
        %v4021 = vunpack.c.l.b16 %v3787
        %v4022 = vunpack.c.h.b16 %v3787
        %v4023 = vunpack.c.l.b16 %v3788
        %v4024 = vunpack.c.h.b16 %v3788
        %v4025 = vunpack.c.l.b16 %v3789
        %v4026 = vunpack.c.h.b16 %v3789
        %v4027 = vunpack.c.l.b16 %v3790
        %v4028 = vunpack.c.h.b16 %v3790
        %v4029 = vunpack.c.l.b16 %v3791
        %v4030 = vunpack.c.h.b16 %v3791
        %v4031 = vunpack.c.l.b16 %v3792
        %v4032 = vunpack.c.h.b16 %v3792
        %v4033 = vunpack.c.l.b16 %v3793
        %v4034 = vunpack.c.h.b16 %v3793
        %v4035 = vunpack.c.l.b16 %v3794
        %v4036 = vunpack.c.h.b16 %v3794
        %v4037 = vunpack.c.l.b16 %v3795
        %v4038 = vunpack.c.h.b16 %v3795
        %v4039 = vunpack.c.l.b16 %v3796
        %v4040 = vunpack.c.h.b16 %v3796
        %v4041 = vunpack.c.l.b16 %v3797
        %v4042 = vunpack.c.h.b16 %v3797
        %v4043 = vunpack.c.l.b16 %v3798
        %v4044 = vunpack.c.h.b16 %v3798
        %v4045 = vunpack.c.l.b16 %v3799
        %v4046 = vunpack.c.h.b16 %v3799
        %v4047 = vunpack.c.l.b16 %v3800
        %v4048 = vunpack.c.h.b16 %v3800
        %v4049 = vunpack.c.l.b16 %v3801
        %v4050 = vunpack.c.h.b16 %v3801
        %v4051 = vunpack.c.l.b16 %v3802
        %v4052 = vunpack.c.h.b16 %v3802
        %v4053 = vunpack.c.l.b16 %v3803
        %v4054 = vunpack.c.h.b16 %v3803
        %v4055 = vunpack.c.l.b16 %v3804
        %v4056 = vunpack.c.h.b16 %v3804
        %v4057 = vunpack.c.l.b16 %v3805
        %v4058 = vunpack.c.h.b16 %v3805
        %v4059 = vunpack.c.l.b16 %v3806
        %v4060 = vunpack.c.h.b16 %v3806
        %v4061 = vunpack.c.l.b16 %v3807
        %v4062 = vunpack.c.h.b16 %v3807
        %v4063 = vunpack.c.l.b16 %v3808
        %v4064 = vunpack.c.h.b16 %v3808
        %v4065 = vpack.c.b16 %v3941, %v3937
        %v4066 = vpack.c.b16 %v3942, %v3938
        %v4067 = vpack.c.b16 %v3943, %v3939
        %v4068 = vpack.c.b16 %v3944, %v3940
        %v4069 = vpack.c.b16 %v3949, %v3945
        %v4070 = vpack.c.b16 %v3950, %v3946
        %v4071 = vpack.c.b16 %v3951, %v3947
        %v4072 = vpack.c.b16 %v3952, %v3948
        %v4073 = vpack.c.b16 %v3957, %v3953
        %v4074 = vpack.c.b16 %v3958, %v3954
        %v4075 = vpack.c.b16 %v3959, %v3955
        %v4076 = vpack.c.b16 %v3960, %v3956
        %v4077 = vpack.c.b16 %v3965, %v3961
        %v4078 = vpack.c.b16 %v3966, %v3962
        %v4079 = vpack.c.b16 %v3967, %v3963
        %v4080 = vpack.c.b16 %v3968, %v3964
        %v4081 = vpack.c.b16 %v3973, %v3969
        %v4082 = vpack.c.b16 %v3974, %v3970
        %v4083 = vpack.c.b16 %v3975, %v3971
        %v4084 = vpack.c.b16 %v3976, %v3972
        %v4085 = vpack.c.b16 %v3981, %v3977
        %v4086 = vpack.c.b16 %v3982, %v3978
        %v4087 = vpack.c.b16 %v3983, %v3979
        %v4088 = vpack.c.b16 %v3984, %v3980
        %v4089 = vpack.c.b16 %v3989, %v3985
        %v4090 = vpack.c.b16 %v3990, %v3986
        %v4091 = vpack.c.b16 %v3991, %v3987
        %v4092 = vpack.c.b16 %v3992, %v3988
        %v4093 = vpack.c.b16 %v3997, %v3993
        %v4094 = vpack.c.b16 %v3998, %v3994
        %v4095 = vpack.c.b16 %v3999, %v3995
        %v4096 = vpack.c.b16 %v4000, %v3996
        %v4097 = vpack.c.b16 %v4005, %v4001
        %v4098 = vpack.c.b16 %v4006, %v4002
        %v4099 = vpack.c.b16 %v4007, %v4003
        %v4100 = vpack.c.b16 %v4008, %v4004
        %v4101 = vpack.c.b16 %v4013, %v4009
        %v4102 = vpack.c.b16 %v4014, %v4010
        %v4103 = vpack.c.b16 %v4015, %v4011
        %v4104 = vpack.c.b16 %v4016, %v4012
        %v4105 = vpack.c.b16 %v4021, %v4017
        %v4106 = vpack.c.b16 %v4022, %v4018
        %v4107 = vpack.c.b16 %v4023, %v4019
        %v4108 = vpack.c.b16 %v4024, %v4020
        %v4109 = vpack.c.b16 %v4029, %v4025
        %v4110 = vpack.c.b16 %v4030, %v4026
        %v4111 = vpack.c.b16 %v4031, %v4027
        %v4112 = vpack.c.b16 %v4032, %v4028
        %v4113 = vpack.c.b16 %v4037, %v4033
        %v4114 = vpack.c.b16 %v4038, %v4034
        %v4115 = vpack.c.b16 %v4039, %v4035
        %v4116 = vpack.c.b16 %v4040, %v4036
        %v4117 = vpack.c.b16 %v4045, %v4041
        %v4118 = vpack.c.b16 %v4046, %v4042
        %v4119 = vpack.c.b16 %v4047, %v4043
        %v4120 = vpack.c.b16 %v4048, %v4044
        %v4121 = vpack.c.b16 %v4053, %v4049
        %v4122 = vpack.c.b16 %v4054, %v4050
        %v4123 = vpack.c.b16 %v4055, %v4051
        %v4124 = vpack.c.b16 %v4056, %v4052
        %v4125 = vpack.c.b16 %v4061, %v4057
        %v4126 = vpack.c.b16 %v4062, %v4058
        %v4127 = vpack.c.b16 %v4063, %v4059
        %v4128 = vpack.c.b16 %v4064, %v4060
        %4193 = vmatpush.bf16.msra.mxu0 %v3823
        %4194 = vmatpush.bf16.msra.mxu0 %v3821
        %4195 = vmatpush.bf16.msra.mxu0 %v3819
        %4196 = vmatpush.bf16.msra.mxu0 %v3817
        %4197 = vmatpush.bf16.msra.mxu0 %v3815
        %4198 = vmatpush.bf16.msra.mxu0 %v3813
        %4199 = vmatpush.bf16.msra.mxu0 %v3811
        %4200 = vmatpush.bf16.msra.mxu0 %v3809
        %4201 = vmatmul.bf16.gmra.mxu0 %v4065
        %v4202 = vpop.f32.mrf.mxu0
        %v4203 = vadd.f32 0.0, %v4202
        %v4204 = vpop.f32.mrf.mxu0
        %v4205 = vadd.f32 0.0, %v4204
        %4206 = vmatmul.bf16.gmra.mxu0 %v4069
        %v4207 = vpop.f32.mrf.mxu0
        %v4208 = vadd.f32 0.0, %v4207
        %v4209 = vpop.f32.mrf.mxu0
        %v4210 = vadd.f32 0.0, %v4209
        %4211 = vmatmul.bf16.gmra.mxu0 %v4073
        %v4212 = vpop.f32.mrf.mxu0
        %v4213 = vadd.f32 0.0, %v4212
        %v4214 = vpop.f32.mrf.mxu0
        %v4215 = vadd.f32 0.0, %v4214
        %4216 = vmatmul.bf16.gmra.mxu0 %v4077
        %v4217 = vpop.f32.mrf.mxu0
        %v4218 = vadd.f32 0.0, %v4217
        %v4219 = vpop.f32.mrf.mxu0
        %v4220 = vadd.f32 0.0, %v4219
        %4221 = vmatmul.bf16.gmra.mxu0 %v4081
        %v4222 = vpop.f32.mrf.mxu0
        %v4223 = vadd.f32 0.0, %v4222
        %v4224 = vpop.f32.mrf.mxu0
        %v4225 = vadd.f32 0.0, %v4224
        %4226 = vmatmul.bf16.gmra.mxu0 %v4085
        %v4227 = vpop.f32.mrf.mxu0
        %v4228 = vadd.f32 0.0, %v4227
        %v4229 = vpop.f32.mrf.mxu0
        %v4230 = vadd.f32 0.0, %v4229
        %4231 = vmatmul.bf16.gmra.mxu0 %v4089
        %v4232 = vpop.f32.mrf.mxu0
        %v4233 = vadd.f32 0.0, %v4232
        %v4234 = vpop.f32.mrf.mxu0
        %v4235 = vadd.f32 0.0, %v4234
        %4236 = vmatmul.bf16.gmra.mxu0 %v4093
        %v4237 = vpop.f32.mrf.mxu0
        %v4238 = vadd.f32 0.0, %v4237
        %v4239 = vpop.f32.mrf.mxu0
        %v4240 = vadd.f32 0.0, %v4239
        %4241 = vmatmul.bf16.gmra.mxu0 %v4097
        %v4242 = vpop.f32.mrf.mxu0
        %v4243 = vadd.f32 0.0, %v4242
        %v4244 = vpop.f32.mrf.mxu0
        %v4245 = vadd.f32 0.0, %v4244
        %4246 = vmatmul.bf16.gmra.mxu0 %v4101
        %v4247 = vpop.f32.mrf.mxu0
        %v4248 = vadd.f32 0.0, %v4247
        %v4249 = vpop.f32.mrf.mxu0
        %v4250 = vadd.f32 0.0, %v4249
        %4251 = vmatmul.bf16.gmra.mxu0 %v4105
        %v4252 = vpop.f32.mrf.mxu0
        %v4253 = vadd.f32 0.0, %v4252
        %v4254 = vpop.f32.mrf.mxu0
        %v4255 = vadd.f32 0.0, %v4254
        %4256 = vmatmul.bf16.gmra.mxu0 %v4109
        %v4257 = vpop.f32.mrf.mxu0
        %v4258 = vadd.f32 0.0, %v4257
        %v4259 = vpop.f32.mrf.mxu0
        %v4260 = vadd.f32 0.0, %v4259
        %4261 = vmatmul.bf16.gmra.mxu0 %v4113
        %v4262 = vpop.f32.mrf.mxu0
        %v4263 = vadd.f32 0.0, %v4262
        %v4264 = vpop.f32.mrf.mxu0
        %v4265 = vadd.f32 0.0, %v4264
        %4266 = vmatmul.bf16.gmra.mxu0 %v4117
        %v4267 = vpop.f32.mrf.mxu0
        %v4268 = vadd.f32 0.0, %v4267
        %v4269 = vpop.f32.mrf.mxu0
        %v4270 = vadd.f32 0.0, %v4269
        %4271 = vmatmul.bf16.gmra.mxu0 %v4121
        %v4272 = vpop.f32.mrf.mxu0
        %v4273 = vadd.f32 0.0, %v4272
        %v4274 = vpop.f32.mrf.mxu0
        %v4275 = vadd.f32 0.0, %v4274
        %4276 = vmatmul.bf16.gmra.mxu0 %v4125
        %v4277 = vpop.f32.mrf.mxu0
        %v4278 = vadd.f32 0.0, %v4277
        %v4279 = vpop.f32.mrf.mxu0
        %v4280 = vadd.f32 0.0, %v4279
        %4281 = vdwg.mxu0
        %4282 = vmatpush.bf16.msra.mxu0 %v3839
        %4283 = vmatpush.bf16.msra.mxu0 %v3837
        %4284 = vmatpush.bf16.msra.mxu0 %v3835
        %4285 = vmatpush.bf16.msra.mxu0 %v3833
        %4286 = vmatpush.bf16.msra.mxu0 %v3831
        %4287 = vmatpush.bf16.msra.mxu0 %v3829
        %4288 = vmatpush.bf16.msra.mxu0 %v3827
        %4289 = vmatpush.bf16.msra.mxu0 %v3825
        %4290 = vmatmul.bf16.gmra.mxu0 %v4066
        %v4291 = vpop.f32.mrf.mxu0
        %v4292 = vadd.f32 %v4203, %v4291
        %v4293 = vpop.f32.mrf.mxu0
        %v4294 = vadd.f32 %v4205, %v4293
        %4295 = vmatmul.bf16.gmra.mxu0 %v4070
        %v4296 = vpop.f32.mrf.mxu0
        %v4297 = vadd.f32 %v4208, %v4296
        %v4298 = vpop.f32.mrf.mxu0
        %v4299 = vadd.f32 %v4210, %v4298
        %4300 = vmatmul.bf16.gmra.mxu0 %v4074
        %v4301 = vpop.f32.mrf.mxu0
        %v4302 = vadd.f32 %v4213, %v4301
        %v4303 = vpop.f32.mrf.mxu0
        %v4304 = vadd.f32 %v4215, %v4303
        %4305 = vmatmul.bf16.gmra.mxu0 %v4078
        %v4306 = vpop.f32.mrf.mxu0
        %v4307 = vadd.f32 %v4218, %v4306
        %v4308 = vpop.f32.mrf.mxu0
        %v4309 = vadd.f32 %v4220, %v4308
        %4310 = vmatmul.bf16.gmra.mxu0 %v4082
        %v4311 = vpop.f32.mrf.mxu0
        %v4312 = vadd.f32 %v4223, %v4311
        %v4313 = vpop.f32.mrf.mxu0
        %v4314 = vadd.f32 %v4225, %v4313
        %4315 = vmatmul.bf16.gmra.mxu0 %v4086
        %v4316 = vpop.f32.mrf.mxu0
        %v4317 = vadd.f32 %v4228, %v4316
        %v4318 = vpop.f32.mrf.mxu0
        %v4319 = vadd.f32 %v4230, %v4318
        %4320 = vmatmul.bf16.gmra.mxu0 %v4090
        %v4321 = vpop.f32.mrf.mxu0
        %v4322 = vadd.f32 %v4233, %v4321
        %v4323 = vpop.f32.mrf.mxu0
        %v4324 = vadd.f32 %v4235, %v4323
        %4325 = vmatmul.bf16.gmra.mxu0 %v4094
        %v4326 = vpop.f32.mrf.mxu0
        %v4327 = vadd.f32 %v4238, %v4326
        %v4328 = vpop.f32.mrf.mxu0
        %v4329 = vadd.f32 %v4240, %v4328
        %4330 = vmatmul.bf16.gmra.mxu0 %v4098
        %v4331 = vpop.f32.mrf.mxu0
        %v4332 = vadd.f32 %v4243, %v4331
        %v4333 = vpop.f32.mrf.mxu0
        %v4334 = vadd.f32 %v4245, %v4333
        %4335 = vmatmul.bf16.gmra.mxu0 %v4102
        %v4336 = vpop.f32.mrf.mxu0
        %v4337 = vadd.f32 %v4248, %v4336
        %v4338 = vpop.f32.mrf.mxu0
        %v4339 = vadd.f32 %v4250, %v4338
        %4340 = vmatmul.bf16.gmra.mxu0 %v4106
        %v4341 = vpop.f32.mrf.mxu0
        %v4342 = vadd.f32 %v4253, %v4341
        %v4343 = vpop.f32.mrf.mxu0
        %v4344 = vadd.f32 %v4255, %v4343
        %4345 = vmatmul.bf16.gmra.mxu0 %v4110
        %v4346 = vpop.f32.mrf.mxu0
        %v4347 = vadd.f32 %v4258, %v4346
        %v4348 = vpop.f32.mrf.mxu0
        %v4349 = vadd.f32 %v4260, %v4348
        %4350 = vmatmul.bf16.gmra.mxu0 %v4114
        %v4351 = vpop.f32.mrf.mxu0
        %v4352 = vadd.f32 %v4263, %v4351
        %v4353 = vpop.f32.mrf.mxu0
        %v4354 = vadd.f32 %v4265, %v4353
        %4355 = vmatmul.bf16.gmra.mxu0 %v4118
        %v4356 = vpop.f32.mrf.mxu0
        %v4357 = vadd.f32 %v4268, %v4356
        %v4358 = vpop.f32.mrf.mxu0
        %v4359 = vadd.f32 %v4270, %v4358
        %4360 = vmatmul.bf16.gmra.mxu0 %v4122
        %v4361 = vpop.f32.mrf.mxu0
        %v4362 = vadd.f32 %v4273, %v4361
        %v4363 = vpop.f32.mrf.mxu0
        %v4364 = vadd.f32 %v4275, %v4363
        %4365 = vmatmul.bf16.gmra.mxu0 %v4126
        %v4366 = vpop.f32.mrf.mxu0
        %v4367 = vadd.f32 %v4278, %v4366
        %v4368 = vpop.f32.mrf.mxu0
        %v4369 = vadd.f32 %v4280, %v4368
        %4370 = vdwg.mxu0
        %4371 = vmatpush.bf16.msra.mxu0 %v3855
        %4372 = vmatpush.bf16.msra.mxu0 %v3853
        %4373 = vmatpush.bf16.msra.mxu0 %v3851
        %4374 = vmatpush.bf16.msra.mxu0 %v3849
        %4375 = vmatpush.bf16.msra.mxu0 %v3847
        %4376 = vmatpush.bf16.msra.mxu0 %v3845
        %4377 = vmatpush.bf16.msra.mxu0 %v3843
        %4378 = vmatpush.bf16.msra.mxu0 %v3841
        %4379 = vmatmul.bf16.gmra.mxu0 %v4067
        %v4380 = vpop.f32.mrf.mxu0
        %v4381 = vadd.f32 %v4292, %v4380
        %v4382 = vpop.f32.mrf.mxu0
        %v4383 = vadd.f32 %v4294, %v4382
        %4384 = vmatmul.bf16.gmra.mxu0 %v4071
        %v4385 = vpop.f32.mrf.mxu0
        %v4386 = vadd.f32 %v4297, %v4385
        %v4387 = vpop.f32.mrf.mxu0
        %v4388 = vadd.f32 %v4299, %v4387
        %4389 = vmatmul.bf16.gmra.mxu0 %v4075
        %v4390 = vpop.f32.mrf.mxu0
        %v4391 = vadd.f32 %v4302, %v4390
        %v4392 = vpop.f32.mrf.mxu0
        %v4393 = vadd.f32 %v4304, %v4392
        %4394 = vmatmul.bf16.gmra.mxu0 %v4079
        %v4395 = vpop.f32.mrf.mxu0
        %v4396 = vadd.f32 %v4307, %v4395
        %v4397 = vpop.f32.mrf.mxu0
        %v4398 = vadd.f32 %v4309, %v4397
        %4399 = vmatmul.bf16.gmra.mxu0 %v4083
        %v4400 = vpop.f32.mrf.mxu0
        %v4401 = vadd.f32 %v4312, %v4400
        %v4402 = vpop.f32.mrf.mxu0
        %v4403 = vadd.f32 %v4314, %v4402
        %4404 = vmatmul.bf16.gmra.mxu0 %v4087
        %v4405 = vpop.f32.mrf.mxu0
        %v4406 = vadd.f32 %v4317, %v4405
        %v4407 = vpop.f32.mrf.mxu0
        %v4408 = vadd.f32 %v4319, %v4407
        %4409 = vmatmul.bf16.gmra.mxu0 %v4091
        %v4410 = vpop.f32.mrf.mxu0
        %v4411 = vadd.f32 %v4322, %v4410
        %v4412 = vpop.f32.mrf.mxu0
        %v4413 = vadd.f32 %v4324, %v4412
        %4414 = vmatmul.bf16.gmra.mxu0 %v4095
        %v4415 = vpop.f32.mrf.mxu0
        %v4416 = vadd.f32 %v4327, %v4415
        %v4417 = vpop.f32.mrf.mxu0
        %v4418 = vadd.f32 %v4329, %v4417
        %4419 = vmatmul.bf16.gmra.mxu0 %v4099
        %v4420 = vpop.f32.mrf.mxu0
        %v4421 = vadd.f32 %v4332, %v4420
        %v4422 = vpop.f32.mrf.mxu0
        %v4423 = vadd.f32 %v4334, %v4422
        %4424 = vmatmul.bf16.gmra.mxu0 %v4103
        %v4425 = vpop.f32.mrf.mxu0
        %v4426 = vadd.f32 %v4337, %v4425
        %v4427 = vpop.f32.mrf.mxu0
        %v4428 = vadd.f32 %v4339, %v4427
        %4429 = vmatmul.bf16.gmra.mxu0 %v4107
        %v4430 = vpop.f32.mrf.mxu0
        %v4431 = vadd.f32 %v4342, %v4430
        %v4432 = vpop.f32.mrf.mxu0
        %v4433 = vadd.f32 %v4344, %v4432
        %4434 = vmatmul.bf16.gmra.mxu0 %v4111
        %v4435 = vpop.f32.mrf.mxu0
        %v4436 = vadd.f32 %v4347, %v4435
        %v4437 = vpop.f32.mrf.mxu0
        %v4438 = vadd.f32 %v4349, %v4437
        %4439 = vmatmul.bf16.gmra.mxu0 %v4115
        %v4440 = vpop.f32.mrf.mxu0
        %v4441 = vadd.f32 %v4352, %v4440
        %v4442 = vpop.f32.mrf.mxu0
        %v4443 = vadd.f32 %v4354, %v4442
        %4444 = vmatmul.bf16.gmra.mxu0 %v4119
        %v4445 = vpop.f32.mrf.mxu0
        %v4446 = vadd.f32 %v4357, %v4445
        %v4447 = vpop.f32.mrf.mxu0
        %v4448 = vadd.f32 %v4359, %v4447
        %4449 = vmatmul.bf16.gmra.mxu0 %v4123
        %v4450 = vpop.f32.mrf.mxu0
        %v4451 = vadd.f32 %v4362, %v4450
        %v4452 = vpop.f32.mrf.mxu0
        %v4453 = vadd.f32 %v4364, %v4452
        %4454 = vmatmul.bf16.gmra.mxu0 %v4127
        %v4455 = vpop.f32.mrf.mxu0
        %v4456 = vadd.f32 %v4367, %v4455
        %v4457 = vpop.f32.mrf.mxu0
        %v4458 = vadd.f32 %v4369, %v4457
        %4459 = vdwg.mxu0
        %4460 = vmatpush.bf16.msra.mxu0 %v3871
        %4461 = vmatpush.bf16.msra.mxu0 %v3869
        %4462 = vmatpush.bf16.msra.mxu0 %v3867
        %4463 = vmatpush.bf16.msra.mxu0 %v3865
        %4464 = vmatpush.bf16.msra.mxu0 %v3863
        %4465 = vmatpush.bf16.msra.mxu0 %v3861
        %4466 = vmatpush.bf16.msra.mxu0 %v3859
        %4467 = vmatpush.bf16.msra.mxu0 %v3857
        %4468 = vmatmul.bf16.gmra.mxu0 %v4068
        %v4469 = vpop.f32.mrf.mxu0
        %v4470 = vadd.f32 %v4381, %v4469
        %v4471 = vpop.f32.mrf.mxu0
        %v4472 = vadd.f32 %v4383, %v4471
        %4473 = vmatmul.bf16.gmra.mxu0 %v4072
        %v4474 = vpop.f32.mrf.mxu0
        %v4475 = vadd.f32 %v4386, %v4474
        %v4476 = vpop.f32.mrf.mxu0
        %v4477 = vadd.f32 %v4388, %v4476
        %4478 = vmatmul.bf16.gmra.mxu0 %v4076
        %v4479 = vpop.f32.mrf.mxu0
        %v4480 = vadd.f32 %v4391, %v4479
        %v4481 = vpop.f32.mrf.mxu0
        %v4482 = vadd.f32 %v4393, %v4481
        %4483 = vmatmul.bf16.gmra.mxu0 %v4080
        %v4484 = vpop.f32.mrf.mxu0
        %v4485 = vadd.f32 %v4396, %v4484
        %v4486 = vpop.f32.mrf.mxu0
        %v4487 = vadd.f32 %v4398, %v4486
        %4488 = vmatmul.bf16.gmra.mxu0 %v4084
        %v4489 = vpop.f32.mrf.mxu0
        %v4490 = vadd.f32 %v4401, %v4489
        %v4491 = vpop.f32.mrf.mxu0
        %v4492 = vadd.f32 %v4403, %v4491
        %4493 = vmatmul.bf16.gmra.mxu0 %v4088
        %v4494 = vpop.f32.mrf.mxu0
        %v4495 = vadd.f32 %v4406, %v4494
        %v4496 = vpop.f32.mrf.mxu0
        %v4497 = vadd.f32 %v4408, %v4496
        %4498 = vmatmul.bf16.gmra.mxu0 %v4092
        %v4499 = vpop.f32.mrf.mxu0
        %v4500 = vadd.f32 %v4411, %v4499
        %v4501 = vpop.f32.mrf.mxu0
        %v4502 = vadd.f32 %v4413, %v4501
        %4503 = vmatmul.bf16.gmra.mxu0 %v4096
        %v4504 = vpop.f32.mrf.mxu0
        %v4505 = vadd.f32 %v4416, %v4504
        %v4506 = vpop.f32.mrf.mxu0
        %v4507 = vadd.f32 %v4418, %v4506
        %4508 = vmatmul.bf16.gmra.mxu0 %v4100
        %v4509 = vpop.f32.mrf.mxu0
        %v4510 = vadd.f32 %v4421, %v4509
        %v4511 = vpop.f32.mrf.mxu0
        %v4512 = vadd.f32 %v4423, %v4511
        %4513 = vmatmul.bf16.gmra.mxu0 %v4104
        %v4514 = vpop.f32.mrf.mxu0
        %v4515 = vadd.f32 %v4426, %v4514
        %v4516 = vpop.f32.mrf.mxu0
        %v4517 = vadd.f32 %v4428, %v4516
        %4518 = vmatmul.bf16.gmra.mxu0 %v4108
        %v4519 = vpop.f32.mrf.mxu0
        %v4520 = vadd.f32 %v4431, %v4519
        %v4521 = vpop.f32.mrf.mxu0
        %v4522 = vadd.f32 %v4433, %v4521
        %4523 = vmatmul.bf16.gmra.mxu0 %v4112
        %v4524 = vpop.f32.mrf.mxu0
        %v4525 = vadd.f32 %v4436, %v4524
        %v4526 = vpop.f32.mrf.mxu0
        %v4527 = vadd.f32 %v4438, %v4526
        %4528 = vmatmul.bf16.gmra.mxu0 %v4116
        %v4529 = vpop.f32.mrf.mxu0
        %v4530 = vadd.f32 %v4441, %v4529
        %v4531 = vpop.f32.mrf.mxu0
        %v4532 = vadd.f32 %v4443, %v4531
        %4533 = vmatmul.bf16.gmra.mxu0 %v4120
        %v4534 = vpop.f32.mrf.mxu0
        %v4535 = vadd.f32 %v4446, %v4534
        %v4536 = vpop.f32.mrf.mxu0
        %v4537 = vadd.f32 %v4448, %v4536
        %4538 = vmatmul.bf16.gmra.mxu0 %v4124
        %v4539 = vpop.f32.mrf.mxu0
        %v4540 = vadd.f32 %v4451, %v4539
        %v4541 = vpop.f32.mrf.mxu0
        %v4542 = vadd.f32 %v4453, %v4541
        %4543 = vmatmul.bf16.gmra.mxu0 %v4128
        %v4544 = vpop.f32.mrf.mxu0
        %v4545 = vadd.f32 %v4456, %v4544
        %v4546 = vpop.f32.mrf.mxu0
        %v4547 = vadd.f32 %v4458, %v4546
        %4548 = vdwg.mxu0
        %4549 = vmatpush.bf16.msra.mxu0 %v3824
        %4550 = vmatpush.bf16.msra.mxu0 %v3822
        %4551 = vmatpush.bf16.msra.mxu0 %v3820
        %4552 = vmatpush.bf16.msra.mxu0 %v3818
        %4553 = vmatpush.bf16.msra.mxu0 %v3816
        %4554 = vmatpush.bf16.msra.mxu0 %v3814
        %4555 = vmatpush.bf16.msra.mxu0 %v3812
        %4556 = vmatpush.bf16.msra.mxu0 %v3810
        %4557 = vmatmul.bf16.gmra.mxu0 %v4065
        %v4558 = vpop.f32.mrf.mxu0
        %v4559 = vadd.f32 0.0, %v4558
        %v4560 = vpop.f32.mrf.mxu0
        %v4561 = vadd.f32 0.0, %v4560
        %4562 = vmatmul.bf16.gmra.mxu0 %v4069
        %v4563 = vpop.f32.mrf.mxu0
        %v4564 = vadd.f32 0.0, %v4563
        %v4565 = vpop.f32.mrf.mxu0
        %v4566 = vadd.f32 0.0, %v4565
        %4567 = vmatmul.bf16.gmra.mxu0 %v4073
        %v4568 = vpop.f32.mrf.mxu0
        %v4569 = vadd.f32 0.0, %v4568
        %v4570 = vpop.f32.mrf.mxu0
        %v4571 = vadd.f32 0.0, %v4570
        %4572 = vmatmul.bf16.gmra.mxu0 %v4077
        %v4573 = vpop.f32.mrf.mxu0
        %v4574 = vadd.f32 0.0, %v4573
        %v4575 = vpop.f32.mrf.mxu0
        %v4576 = vadd.f32 0.0, %v4575
        %4577 = vmatmul.bf16.gmra.mxu0 %v4081
        %v4578 = vpop.f32.mrf.mxu0
        %v4579 = vadd.f32 0.0, %v4578
        %v4580 = vpop.f32.mrf.mxu0
        %v4581 = vadd.f32 0.0, %v4580
        %4582 = vmatmul.bf16.gmra.mxu0 %v4085
        %v4583 = vpop.f32.mrf.mxu0
        %v4584 = vadd.f32 0.0, %v4583
        %v4585 = vpop.f32.mrf.mxu0
        %v4586 = vadd.f32 0.0, %v4585
        %4587 = vmatmul.bf16.gmra.mxu0 %v4089
        %v4588 = vpop.f32.mrf.mxu0
        %v4589 = vadd.f32 0.0, %v4588
        %v4590 = vpop.f32.mrf.mxu0
        %v4591 = vadd.f32 0.0, %v4590
        %4592 = vmatmul.bf16.gmra.mxu0 %v4093
        %v4593 = vpop.f32.mrf.mxu0
        %v4594 = vadd.f32 0.0, %v4593
        %v4595 = vpop.f32.mrf.mxu0
        %v4596 = vadd.f32 0.0, %v4595
        %4597 = vmatmul.bf16.gmra.mxu0 %v4097
        %v4598 = vpop.f32.mrf.mxu0
        %v4599 = vadd.f32 0.0, %v4598
        %v4600 = vpop.f32.mrf.mxu0
        %v4601 = vadd.f32 0.0, %v4600
        %4602 = vmatmul.bf16.gmra.mxu0 %v4101
        %v4603 = vpop.f32.mrf.mxu0
        %v4604 = vadd.f32 0.0, %v4603
        %v4605 = vpop.f32.mrf.mxu0
        %v4606 = vadd.f32 0.0, %v4605
        %4607 = vmatmul.bf16.gmra.mxu0 %v4105
        %v4608 = vpop.f32.mrf.mxu0
        %v4609 = vadd.f32 0.0, %v4608
        %v4610 = vpop.f32.mrf.mxu0
        %v4611 = vadd.f32 0.0, %v4610
        %4612 = vmatmul.bf16.gmra.mxu0 %v4109
        %v4613 = vpop.f32.mrf.mxu0
        %v4614 = vadd.f32 0.0, %v4613
        %v4615 = vpop.f32.mrf.mxu0
        %v4616 = vadd.f32 0.0, %v4615
        %4617 = vmatmul.bf16.gmra.mxu0 %v4113
        %v4618 = vpop.f32.mrf.mxu0
        %v4619 = vadd.f32 0.0, %v4618
        %v4620 = vpop.f32.mrf.mxu0
        %v4621 = vadd.f32 0.0, %v4620
        %4622 = vmatmul.bf16.gmra.mxu0 %v4117
        %v4623 = vpop.f32.mrf.mxu0
        %v4624 = vadd.f32 0.0, %v4623
        %v4625 = vpop.f32.mrf.mxu0
        %v4626 = vadd.f32 0.0, %v4625
        %4627 = vmatmul.bf16.gmra.mxu0 %v4121
        %v4628 = vpop.f32.mrf.mxu0
        %v4629 = vadd.f32 0.0, %v4628
        %v4630 = vpop.f32.mrf.mxu0
        %v4631 = vadd.f32 0.0, %v4630
        %4632 = vmatmul.bf16.gmra.mxu0 %v4125
        %v4633 = vpop.f32.mrf.mxu0
        %v4634 = vadd.f32 0.0, %v4633
        %v4635 = vpop.f32.mrf.mxu0
        %v4636 = vadd.f32 0.0, %v4635
        %4637 = vdwg.mxu0
        %4638 = vmatpush.bf16.msra.mxu0 %v3840
        %4639 = vmatpush.bf16.msra.mxu0 %v3838
        %4640 = vmatpush.bf16.msra.mxu0 %v3836
        %4641 = vmatpush.bf16.msra.mxu0 %v3834
        %4642 = vmatpush.bf16.msra.mxu0 %v3832
        %4643 = vmatpush.bf16.msra.mxu0 %v3830
        %4644 = vmatpush.bf16.msra.mxu0 %v3828
        %4645 = vmatpush.bf16.msra.mxu0 %v3826
        %4646 = vmatmul.bf16.gmra.mxu0 %v4066
        %v4647 = vpop.f32.mrf.mxu0
        %v4648 = vadd.f32 %v4559, %v4647
        %v4649 = vpop.f32.mrf.mxu0
        %v4650 = vadd.f32 %v4561, %v4649
        %4651 = vmatmul.bf16.gmra.mxu0 %v4070
        %v4652 = vpop.f32.mrf.mxu0
        %v4653 = vadd.f32 %v4564, %v4652
        %v4654 = vpop.f32.mrf.mxu0
        %v4655 = vadd.f32 %v4566, %v4654
        %4656 = vmatmul.bf16.gmra.mxu0 %v4074
        %v4657 = vpop.f32.mrf.mxu0
        %v4658 = vadd.f32 %v4569, %v4657
        %v4659 = vpop.f32.mrf.mxu0
        %v4660 = vadd.f32 %v4571, %v4659
        %4661 = vmatmul.bf16.gmra.mxu0 %v4078
        %v4662 = vpop.f32.mrf.mxu0
        %v4663 = vadd.f32 %v4574, %v4662
        %v4664 = vpop.f32.mrf.mxu0
        %v4665 = vadd.f32 %v4576, %v4664
        %4666 = vmatmul.bf16.gmra.mxu0 %v4082
        %v4667 = vpop.f32.mrf.mxu0
        %v4668 = vadd.f32 %v4579, %v4667
        %v4669 = vpop.f32.mrf.mxu0
        %v4670 = vadd.f32 %v4581, %v4669
        %4671 = vmatmul.bf16.gmra.mxu0 %v4086
        %v4672 = vpop.f32.mrf.mxu0
        %v4673 = vadd.f32 %v4584, %v4672
        %v4674 = vpop.f32.mrf.mxu0
        %v4675 = vadd.f32 %v4586, %v4674
        %4676 = vmatmul.bf16.gmra.mxu0 %v4090
        %v4677 = vpop.f32.mrf.mxu0
        %v4678 = vadd.f32 %v4589, %v4677
        %v4679 = vpop.f32.mrf.mxu0
        %v4680 = vadd.f32 %v4591, %v4679
        %4681 = vmatmul.bf16.gmra.mxu0 %v4094
        %v4682 = vpop.f32.mrf.mxu0
        %v4683 = vadd.f32 %v4594, %v4682
        %v4684 = vpop.f32.mrf.mxu0
        %v4685 = vadd.f32 %v4596, %v4684
        %4686 = vmatmul.bf16.gmra.mxu0 %v4098
        %v4687 = vpop.f32.mrf.mxu0
        %v4688 = vadd.f32 %v4599, %v4687
        %v4689 = vpop.f32.mrf.mxu0
        %v4690 = vadd.f32 %v4601, %v4689
        %4691 = vmatmul.bf16.gmra.mxu0 %v4102
        %v4692 = vpop.f32.mrf.mxu0
        %v4693 = vadd.f32 %v4604, %v4692
        %v4694 = vpop.f32.mrf.mxu0
        %v4695 = vadd.f32 %v4606, %v4694
        %4696 = vmatmul.bf16.gmra.mxu0 %v4106
        %v4697 = vpop.f32.mrf.mxu0
        %v4698 = vadd.f32 %v4609, %v4697
        %v4699 = vpop.f32.mrf.mxu0
        %v4700 = vadd.f32 %v4611, %v4699
        %4701 = vmatmul.bf16.gmra.mxu0 %v4110
        %v4702 = vpop.f32.mrf.mxu0
        %v4703 = vadd.f32 %v4614, %v4702
        %v4704 = vpop.f32.mrf.mxu0
        %v4705 = vadd.f32 %v4616, %v4704
        %4706 = vmatmul.bf16.gmra.mxu0 %v4114
        %v4707 = vpop.f32.mrf.mxu0
        %v4708 = vadd.f32 %v4619, %v4707
        %v4709 = vpop.f32.mrf.mxu0
        %v4710 = vadd.f32 %v4621, %v4709
        %4711 = vmatmul.bf16.gmra.mxu0 %v4118
        %v4712 = vpop.f32.mrf.mxu0
        %v4713 = vadd.f32 %v4624, %v4712
        %v4714 = vpop.f32.mrf.mxu0
        %v4715 = vadd.f32 %v4626, %v4714
        %4716 = vmatmul.bf16.gmra.mxu0 %v4122
        %v4717 = vpop.f32.mrf.mxu0
        %v4718 = vadd.f32 %v4629, %v4717
        %v4719 = vpop.f32.mrf.mxu0
        %v4720 = vadd.f32 %v4631, %v4719
        %4721 = vmatmul.bf16.gmra.mxu0 %v4126
        %v4722 = vpop.f32.mrf.mxu0
        %v4723 = vadd.f32 %v4634, %v4722
        %v4724 = vpop.f32.mrf.mxu0
        %v4725 = vadd.f32 %v4636, %v4724
        %4726 = vdwg.mxu0
        %4727 = vmatpush.bf16.msra.mxu0 %v3856
        %4728 = vmatpush.bf16.msra.mxu0 %v3854
        %4729 = vmatpush.bf16.msra.mxu0 %v3852
        %4730 = vmatpush.bf16.msra.mxu0 %v3850
        %4731 = vmatpush.bf16.msra.mxu0 %v3848
        %4732 = vmatpush.bf16.msra.mxu0 %v3846
        %4733 = vmatpush.bf16.msra.mxu0 %v3844
        %4734 = vmatpush.bf16.msra.mxu0 %v3842
        %4735 = vmatmul.bf16.gmra.mxu0 %v4067
        %v4736 = vpop.f32.mrf.mxu0
        %v4737 = vadd.f32 %v4648, %v4736
        %v4738 = vpop.f32.mrf.mxu0
        %v4739 = vadd.f32 %v4650, %v4738
        %4740 = vmatmul.bf16.gmra.mxu0 %v4071
        %v4741 = vpop.f32.mrf.mxu0
        %v4742 = vadd.f32 %v4653, %v4741
        %v4743 = vpop.f32.mrf.mxu0
        %v4744 = vadd.f32 %v4655, %v4743
        %4745 = vmatmul.bf16.gmra.mxu0 %v4075
        %v4746 = vpop.f32.mrf.mxu0
        %v4747 = vadd.f32 %v4658, %v4746
        %v4748 = vpop.f32.mrf.mxu0
        %v4749 = vadd.f32 %v4660, %v4748
        %4750 = vmatmul.bf16.gmra.mxu0 %v4079
        %v4751 = vpop.f32.mrf.mxu0
        %v4752 = vadd.f32 %v4663, %v4751
        %v4753 = vpop.f32.mrf.mxu0
        %v4754 = vadd.f32 %v4665, %v4753
        %4755 = vmatmul.bf16.gmra.mxu0 %v4083
        %v4756 = vpop.f32.mrf.mxu0
        %v4757 = vadd.f32 %v4668, %v4756
        %v4758 = vpop.f32.mrf.mxu0
        %v4759 = vadd.f32 %v4670, %v4758
        %4760 = vmatmul.bf16.gmra.mxu0 %v4087
        %v4761 = vpop.f32.mrf.mxu0
        %v4762 = vadd.f32 %v4673, %v4761
        %v4763 = vpop.f32.mrf.mxu0
        %v4764 = vadd.f32 %v4675, %v4763
        %4765 = vmatmul.bf16.gmra.mxu0 %v4091
        %v4766 = vpop.f32.mrf.mxu0
        %v4767 = vadd.f32 %v4678, %v4766
        %v4768 = vpop.f32.mrf.mxu0
        %v4769 = vadd.f32 %v4680, %v4768
        %4770 = vmatmul.bf16.gmra.mxu0 %v4095
        %v4771 = vpop.f32.mrf.mxu0
        %v4772 = vadd.f32 %v4683, %v4771
        %v4773 = vpop.f32.mrf.mxu0
        %v4774 = vadd.f32 %v4685, %v4773
        %4775 = vmatmul.bf16.gmra.mxu0 %v4099
        %v4776 = vpop.f32.mrf.mxu0
        %v4777 = vadd.f32 %v4688, %v4776
        %v4778 = vpop.f32.mrf.mxu0
        %v4779 = vadd.f32 %v4690, %v4778
        %4780 = vmatmul.bf16.gmra.mxu0 %v4103
        %v4781 = vpop.f32.mrf.mxu0
        %v4782 = vadd.f32 %v4693, %v4781
        %v4783 = vpop.f32.mrf.mxu0
        %v4784 = vadd.f32 %v4695, %v4783
        %4785 = vmatmul.bf16.gmra.mxu0 %v4107
        %v4786 = vpop.f32.mrf.mxu0
        %v4787 = vadd.f32 %v4698, %v4786
        %v4788 = vpop.f32.mrf.mxu0
        %v4789 = vadd.f32 %v4700, %v4788
        %4790 = vmatmul.bf16.gmra.mxu0 %v4111
        %v4791 = vpop.f32.mrf.mxu0
        %v4792 = vadd.f32 %v4703, %v4791
        %v4793 = vpop.f32.mrf.mxu0
        %v4794 = vadd.f32 %v4705, %v4793
        %4795 = vmatmul.bf16.gmra.mxu0 %v4115
        %v4796 = vpop.f32.mrf.mxu0
        %v4797 = vadd.f32 %v4708, %v4796
        %v4798 = vpop.f32.mrf.mxu0
        %v4799 = vadd.f32 %v4710, %v4798
        %4800 = vmatmul.bf16.gmra.mxu0 %v4119
        %v4801 = vpop.f32.mrf.mxu0
        %v4802 = vadd.f32 %v4713, %v4801
        %v4803 = vpop.f32.mrf.mxu0
        %v4804 = vadd.f32 %v4715, %v4803
        %4805 = vmatmul.bf16.gmra.mxu0 %v4123
        %v4806 = vpop.f32.mrf.mxu0
        %v4807 = vadd.f32 %v4718, %v4806
        %v4808 = vpop.f32.mrf.mxu0
        %v4809 = vadd.f32 %v4720, %v4808
        %4810 = vmatmul.bf16.gmra.mxu0 %v4127
        %v4811 = vpop.f32.mrf.mxu0
        %v4812 = vadd.f32 %v4723, %v4811
        %v4813 = vpop.f32.mrf.mxu0
        %v4814 = vadd.f32 %v4725, %v4813
        %4815 = vdwg.mxu0
        %4816 = vmatpush.bf16.msra.mxu0 %v3872
        %4817 = vmatpush.bf16.msra.mxu0 %v3870
        %4818 = vmatpush.bf16.msra.mxu0 %v3868
        %4819 = vmatpush.bf16.msra.mxu0 %v3866
        %4820 = vmatpush.bf16.msra.mxu0 %v3864
        %4821 = vmatpush.bf16.msra.mxu0 %v3862
        %4822 = vmatpush.bf16.msra.mxu0 %v3860
        %4823 = vmatpush.bf16.msra.mxu0 %v3858
        %4824 = vmatmul.bf16.gmra.mxu0 %v4068
        %v4825 = vpop.f32.mrf.mxu0
        %v4826 = vadd.f32 %v4737, %v4825
        %v4827 = vpop.f32.mrf.mxu0
        %v4828 = vadd.f32 %v4739, %v4827
        %4829 = vmatmul.bf16.gmra.mxu0 %v4072
        %v4830 = vpop.f32.mrf.mxu0
        %v4831 = vadd.f32 %v4742, %v4830
        %v4832 = vpop.f32.mrf.mxu0
        %v4833 = vadd.f32 %v4744, %v4832
        %4834 = vmatmul.bf16.gmra.mxu0 %v4076
        %v4835 = vpop.f32.mrf.mxu0
        %v4836 = vadd.f32 %v4747, %v4835
        %v4837 = vpop.f32.mrf.mxu0
        %v4838 = vadd.f32 %v4749, %v4837
        %4839 = vmatmul.bf16.gmra.mxu0 %v4080
        %v4840 = vpop.f32.mrf.mxu0
        %v4841 = vadd.f32 %v4752, %v4840
        %v4842 = vpop.f32.mrf.mxu0
        %v4843 = vadd.f32 %v4754, %v4842
        %4844 = vmatmul.bf16.gmra.mxu0 %v4084
        %v4845 = vpop.f32.mrf.mxu0
        %v4846 = vadd.f32 %v4757, %v4845
        %v4847 = vpop.f32.mrf.mxu0
        %v4848 = vadd.f32 %v4759, %v4847
        %4849 = vmatmul.bf16.gmra.mxu0 %v4088
        %v4850 = vpop.f32.mrf.mxu0
        %v4851 = vadd.f32 %v4762, %v4850
        %v4852 = vpop.f32.mrf.mxu0
        %v4853 = vadd.f32 %v4764, %v4852
        %4854 = vmatmul.bf16.gmra.mxu0 %v4092
        %v4855 = vpop.f32.mrf.mxu0
        %v4856 = vadd.f32 %v4767, %v4855
        %v4857 = vpop.f32.mrf.mxu0
        %v4858 = vadd.f32 %v4769, %v4857
        %4859 = vmatmul.bf16.gmra.mxu0 %v4096
        %v4860 = vpop.f32.mrf.mxu0
        %v4861 = vadd.f32 %v4772, %v4860
        %v4862 = vpop.f32.mrf.mxu0
        %v4863 = vadd.f32 %v4774, %v4862
        %4864 = vmatmul.bf16.gmra.mxu0 %v4100
        %v4865 = vpop.f32.mrf.mxu0
        %v4866 = vadd.f32 %v4777, %v4865
        %v4867 = vpop.f32.mrf.mxu0
        %v4868 = vadd.f32 %v4779, %v4867
        %4869 = vmatmul.bf16.gmra.mxu0 %v4104
        %v4870 = vpop.f32.mrf.mxu0
        %v4871 = vadd.f32 %v4782, %v4870
        %v4872 = vpop.f32.mrf.mxu0
        %v4873 = vadd.f32 %v4784, %v4872
        %4874 = vmatmul.bf16.gmra.mxu0 %v4108
        %v4875 = vpop.f32.mrf.mxu0
        %v4876 = vadd.f32 %v4787, %v4875
        %v4877 = vpop.f32.mrf.mxu0
        %v4878 = vadd.f32 %v4789, %v4877
        %4879 = vmatmul.bf16.gmra.mxu0 %v4112
        %v4880 = vpop.f32.mrf.mxu0
        %v4881 = vadd.f32 %v4792, %v4880
        %v4882 = vpop.f32.mrf.mxu0
        %v4883 = vadd.f32 %v4794, %v4882
        %4884 = vmatmul.bf16.gmra.mxu0 %v4116
        %v4885 = vpop.f32.mrf.mxu0
        %v4886 = vadd.f32 %v4797, %v4885
        %v4887 = vpop.f32.mrf.mxu0
        %v4888 = vadd.f32 %v4799, %v4887
        %4889 = vmatmul.bf16.gmra.mxu0 %v4120
        %v4890 = vpop.f32.mrf.mxu0
        %v4891 = vadd.f32 %v4802, %v4890
        %v4892 = vpop.f32.mrf.mxu0
        %v4893 = vadd.f32 %v4804, %v4892
        %4894 = vmatmul.bf16.gmra.mxu0 %v4124
        %v4895 = vpop.f32.mrf.mxu0
        %v4896 = vadd.f32 %v4807, %v4895
        %v4897 = vpop.f32.mrf.mxu0
        %v4898 = vadd.f32 %v4809, %v4897
        %4899 = vmatmul.bf16.gmra.mxu0 %v4128
        %v4900 = vpop.f32.mrf.mxu0
        %v4901 = vadd.f32 %v4812, %v4900
        %v4902 = vpop.f32.mrf.mxu0
        %v4903 = vadd.f32 %v4814, %v4902
        %4904 = vdwg.mxu0
        %p4905 = scmp.eq.s32.totalorder %s23, 0
        // Predicated region
        $region72: #{fused_bn_add_relu_conv_bn.1} parent=66 // pred_check
          %p4906 = pneg %p4905
        $region73: #{fused_bn_add_relu_conv_bn.1} parent=66 // pred_check_branch
          %4908 = sbr.rel (%p4906) target = $region75
        $region74: #{fused_bn_add_relu_conv_bn.1} parent=66 // pred_region
          %4909 = vst [vmem:[%s539] sm:$0xff] %v4470
          %4910 = vst.msk [vmem:[%s539 + $0x8] sm:$0xff] %vm800, %v4826
          %4911 = vst [vmem:[%s539 + $0x10] sm:$0xff] %v4472
          %4912 = vst.msk [vmem:[%s539 + $0x18] sm:$0xff] %vm800, %v4828
          %4913 = vst [vmem:[%s539 + $0x20] sm:$0xff] %v4475
          %4914 = vst.msk [vmem:[%s539 + $0x28] sm:$0xff] %vm800, %v4831
          %4915 = vst [vmem:[%s539 + $0x30] sm:$0xff] %v4477
          %4916 = vst.msk [vmem:[%s539 + $0x38] sm:$0xff] %vm800, %v4833
          %4917 = vst [vmem:[%s539 + $0x40] sm:$0xff] %v4480
          %4918 = vst.msk [vmem:[%s539 + $0x48] sm:$0xff] %vm800, %v4836
          %4919 = vst [vmem:[%s539 + $0x50] sm:$0xff] %v4482
          %4920 = vst.msk [vmem:[%s539 + $0x58] sm:$0xff] %vm800, %v4838
          %4921 = vst [vmem:[%s539 + $0x60] sm:$0xff] %v4485
          %4922 = vst.msk [vmem:[%s539 + $0x68] sm:$0xff] %vm800, %v4841
          %4923 = vst [vmem:[%s539 + $0x70] sm:$0xff] %v4487
          %4924 = vst.msk [vmem:[%s539 + $0x78] sm:$0xff] %vm800, %v4843
          %4925 = vst [vmem:[%s539 + $0x80] sm:$0xff] %v4490
          %4926 = vst.msk [vmem:[%s539 + $0x88] sm:$0xff] %vm800, %v4846
          %4927 = vst [vmem:[%s539 + $0x90] sm:$0xff] %v4492
          %4928 = vst.msk [vmem:[%s539 + $0x98] sm:$0xff] %vm800, %v4848
          %4929 = vst [vmem:[%s539 + $0xa0] sm:$0xff] %v4495
          %4930 = vst.msk [vmem:[%s539 + $0xa8] sm:$0xff] %vm800, %v4851
          %4931 = vst [vmem:[%s539 + $0xb0] sm:$0xff] %v4497
          %4932 = vst.msk [vmem:[%s539 + $0xb8] sm:$0xff] %vm800, %v4853
          %4933 = vst [vmem:[%s539 + $0xc0] sm:$0xff] %v4500
          %4934 = vst.msk [vmem:[%s539 + $0xc8] sm:$0xff] %vm800, %v4856
          %4935 = vst [vmem:[%s539 + $0xd0] sm:$0xff] %v4502
          %4936 = vst.msk [vmem:[%s539 + $0xd8] sm:$0xff] %vm800, %v4858
          %4937 = vst [vmem:[%s539 + $0xe0] sm:$0xff] %v4505
          %4938 = vst.msk [vmem:[%s539 + $0xe8] sm:$0xff] %vm800, %v4861
          %4939 = vst [vmem:[%s539 + $0xf0] sm:$0xff] %v4507
          %4940 = vst.msk [vmem:[%s539 + $0xf8] sm:$0xff] %vm800, %v4863
          %4941 = vst [vmem:[%s539 + $0x100] sm:$0xff] %v4510
          %4942 = vst.msk [vmem:[%s539 + $0x108] sm:$0xff] %vm800, %v4866
          %4943 = vst [vmem:[%s539 + $0x110] sm:$0xff] %v4512
          %4944 = vst.msk [vmem:[%s539 + $0x118] sm:$0xff] %vm800, %v4868
          %4945 = vst [vmem:[%s539 + $0x120] sm:$0xff] %v4515
          %4946 = vst.msk [vmem:[%s539 + $0x128] sm:$0xff] %vm800, %v4871
          %4947 = vst [vmem:[%s539 + $0x130] sm:$0xff] %v4517
          %4948 = vst.msk [vmem:[%s539 + $0x138] sm:$0xff] %vm800, %v4873
          %4949 = vst [vmem:[%s539 + $0x140] sm:$0xff] %v4520
          %4950 = vst.msk [vmem:[%s539 + $0x148] sm:$0xff] %vm800, %v4876
          %4951 = vst [vmem:[%s539 + $0x150] sm:$0xff] %v4522
          %4952 = vst.msk [vmem:[%s539 + $0x158] sm:$0xff] %vm800, %v4878
          %4953 = vst [vmem:[%s539 + $0x160] sm:$0xff] %v4525
          %4954 = vst.msk [vmem:[%s539 + $0x168] sm:$0xff] %vm800, %v4881
          %4955 = vst [vmem:[%s539 + $0x170] sm:$0xff] %v4527
          %4956 = vst.msk [vmem:[%s539 + $0x178] sm:$0xff] %vm800, %v4883
          %4957 = vst [vmem:[%s539 + $0x180] sm:$0xff] %v4530
          %4958 = vst.msk [vmem:[%s539 + $0x188] sm:$0xff] %vm800, %v4886
          %4959 = vst [vmem:[%s539 + $0x190] sm:$0xff] %v4532
          %4960 = vst.msk [vmem:[%s539 + $0x198] sm:$0xff] %vm800, %v4888
          %4961 = vst [vmem:[%s539 + $0x1a0] sm:$0xff] %v4535
          %4962 = vst.msk [vmem:[%s539 + $0x1a8] sm:$0xff] %vm800, %v4891
          %4963 = vst [vmem:[%s539 + $0x1b0] sm:$0xff] %v4537
          %4964 = vst.msk [vmem:[%s539 + $0x1b8] sm:$0xff] %vm800, %v4893
          %4965 = vst [vmem:[%s539 + $0x1c0] sm:$0xff] %v4540
          %4966 = vst.msk [vmem:[%s539 + $0x1c8] sm:$0xff] %vm800, %v4896
          %4967 = vst [vmem:[%s539 + $0x1d0] sm:$0xff] %v4542
          %4968 = vst.msk [vmem:[%s539 + $0x1d8] sm:$0xff] %vm800, %v4898
          %4969 = vst [vmem:[%s539 + $0x1e0] sm:$0xff] %v4545
          %4970 = vst.msk [vmem:[%s539 + $0x1e8] sm:$0xff] %vm800, %v4901
          %4971 = vst [vmem:[%s539 + $0x1f0] sm:$0xff] %v4547
          %4972 = vst.msk [vmem:[%s539 + $0x1f8] sm:$0xff] %vm800, %v4903
        $region75: #{fused_bn_add_relu_conv_bn.1} parent=66 // pred_fallthru
          _
        %p4973 = scmp.ne.s32.totalorder %s23, 0
        // Predicated region
        $region76: #{fused_bn_add_relu_conv_bn.1} parent=66 // pred_check
          %p4974 = pneg %p4973
        $region77: #{fused_bn_add_relu_conv_bn.1} parent=66 // pred_check_branch
          %4976 = sbr.rel (%p4974) target = $region79
        $region78: #{fused_bn_add_relu_conv_bn.1} parent=66 // pred_region
          %v4977 = vld [vmem:[%s539] sm:$0xff]
          %v4978 = vld [vmem:[%s539 + $0x8] sm:$0xff]
          %v4979 = vld [vmem:[%s539 + $0x10] sm:$0xff]
          %v4980 = vld [vmem:[%s539 + $0x18] sm:$0xff]
          %v4981 = vld [vmem:[%s539 + $0x20] sm:$0xff]
          %v4982 = vld [vmem:[%s539 + $0x28] sm:$0xff]
          %v4983 = vld [vmem:[%s539 + $0x30] sm:$0xff]
          %v4984 = vld [vmem:[%s539 + $0x38] sm:$0xff]
          %v4985 = vld [vmem:[%s539 + $0x40] sm:$0xff]
          %v4986 = vld [vmem:[%s539 + $0x48] sm:$0xff]
          %v4987 = vld [vmem:[%s539 + $0x50] sm:$0xff]
          %v4988 = vld [vmem:[%s539 + $0x58] sm:$0xff]
          %v4989 = vld [vmem:[%s539 + $0x60] sm:$0xff]
          %v4990 = vld [vmem:[%s539 + $0x68] sm:$0xff]
          %v4991 = vld [vmem:[%s539 + $0x70] sm:$0xff]
          %v4992 = vld [vmem:[%s539 + $0x78] sm:$0xff]
          %v4993 = vld [vmem:[%s539 + $0x80] sm:$0xff]
          %v4994 = vld [vmem:[%s539 + $0x88] sm:$0xff]
          %v4995 = vld [vmem:[%s539 + $0x90] sm:$0xff]
          %v4996 = vld [vmem:[%s539 + $0x98] sm:$0xff]
          %v4997 = vld [vmem:[%s539 + $0xa0] sm:$0xff]
          %v4998 = vld [vmem:[%s539 + $0xa8] sm:$0xff]
          %v4999 = vld [vmem:[%s539 + $0xb0] sm:$0xff]
          %v5000 = vld [vmem:[%s539 + $0xb8] sm:$0xff]
          %v5001 = vld [vmem:[%s539 + $0xc0] sm:$0xff]
          %v5002 = vld [vmem:[%s539 + $0xc8] sm:$0xff]
          %v5003 = vld [vmem:[%s539 + $0xd0] sm:$0xff]
          %v5004 = vld [vmem:[%s539 + $0xd8] sm:$0xff]
          %v5005 = vld [vmem:[%s539 + $0xe0] sm:$0xff]
          %v5006 = vld [vmem:[%s539 + $0xe8] sm:$0xff]
          %v5007 = vld [vmem:[%s539 + $0xf0] sm:$0xff]
          %v5008 = vld [vmem:[%s539 + $0xf8] sm:$0xff]
          %v5009 = vld [vmem:[%s539 + $0x100] sm:$0xff]
          %v5010 = vld [vmem:[%s539 + $0x108] sm:$0xff]
          %v5011 = vld [vmem:[%s539 + $0x110] sm:$0xff]
          %v5012 = vld [vmem:[%s539 + $0x118] sm:$0xff]
          %v5013 = vld [vmem:[%s539 + $0x120] sm:$0xff]
          %v5014 = vld [vmem:[%s539 + $0x128] sm:$0xff]
          %v5015 = vld [vmem:[%s539 + $0x130] sm:$0xff]
          %v5016 = vld [vmem:[%s539 + $0x138] sm:$0xff]
          %v5017 = vld [vmem:[%s539 + $0x140] sm:$0xff]
          %v5018 = vld [vmem:[%s539 + $0x148] sm:$0xff]
          %v5019 = vld [vmem:[%s539 + $0x150] sm:$0xff]
          %v5020 = vld [vmem:[%s539 + $0x158] sm:$0xff]
          %v5021 = vld [vmem:[%s539 + $0x160] sm:$0xff]
          %v5022 = vld [vmem:[%s539 + $0x168] sm:$0xff]
          %v5023 = vld [vmem:[%s539 + $0x170] sm:$0xff]
          %v5024 = vld [vmem:[%s539 + $0x178] sm:$0xff]
          %v5025 = vld [vmem:[%s539 + $0x180] sm:$0xff]
          %v5026 = vld [vmem:[%s539 + $0x188] sm:$0xff]
          %v5027 = vld [vmem:[%s539 + $0x190] sm:$0xff]
          %v5028 = vld [vmem:[%s539 + $0x198] sm:$0xff]
          %v5029 = vld [vmem:[%s539 + $0x1a0] sm:$0xff]
          %v5030 = vld [vmem:[%s539 + $0x1a8] sm:$0xff]
          %v5031 = vld [vmem:[%s539 + $0x1b0] sm:$0xff]
          %v5032 = vld [vmem:[%s539 + $0x1b8] sm:$0xff]
          %v5033 = vld [vmem:[%s539 + $0x1c0] sm:$0xff]
          %v5034 = vld [vmem:[%s539 + $0x1c8] sm:$0xff]
          %v5035 = vld [vmem:[%s539 + $0x1d0] sm:$0xff]
          %v5036 = vld [vmem:[%s539 + $0x1d8] sm:$0xff]
          %v5037 = vld [vmem:[%s539 + $0x1e0] sm:$0xff]
          %v5038 = vld [vmem:[%s539 + $0x1e8] sm:$0xff]
          %v5039 = vld [vmem:[%s539 + $0x1f0] sm:$0xff]
          %v5040 = vld [vmem:[%s539 + $0x1f8] sm:$0xff]
          %v5041 = vadd.f32 %v4977, %v4470
          %v5042 = vadd.f32 %v4978, %v4826
          %v5043 = vadd.f32 %v4979, %v4472
          %v5044 = vadd.f32 %v4980, %v4828
          %v5045 = vadd.f32 %v4981, %v4475
          %v5046 = vadd.f32 %v4982, %v4831
          %v5047 = vadd.f32 %v4983, %v4477
          %v5048 = vadd.f32 %v4984, %v4833
          %v5049 = vadd.f32 %v4985, %v4480
          %v5050 = vadd.f32 %v4986, %v4836
          %v5051 = vadd.f32 %v4987, %v4482
          %v5052 = vadd.f32 %v4988, %v4838
          %v5053 = vadd.f32 %v4989, %v4485
          %v5054 = vadd.f32 %v4990, %v4841
          %v5055 = vadd.f32 %v4991, %v4487
          %v5056 = vadd.f32 %v4992, %v4843
          %v5057 = vadd.f32 %v4993, %v4490
          %v5058 = vadd.f32 %v4994, %v4846
          %v5059 = vadd.f32 %v4995, %v4492
          %v5060 = vadd.f32 %v4996, %v4848
          %v5061 = vadd.f32 %v4997, %v4495
          %v5062 = vadd.f32 %v4998, %v4851
          %v5063 = vadd.f32 %v4999, %v4497
          %v5064 = vadd.f32 %v5000, %v4853
          %v5065 = vadd.f32 %v5001, %v4500
          %v5066 = vadd.f32 %v5002, %v4856
          %v5067 = vadd.f32 %v5003, %v4502
          %v5068 = vadd.f32 %v5004, %v4858
          %v5069 = vadd.f32 %v5005, %v4505
          %v5070 = vadd.f32 %v5006, %v4861
          %v5071 = vadd.f32 %v5007, %v4507
          %v5072 = vadd.f32 %v5008, %v4863
          %v5073 = vadd.f32 %v5009, %v4510
          %v5074 = vadd.f32 %v5010, %v4866
          %v5075 = vadd.f32 %v5011, %v4512
          %v5076 = vadd.f32 %v5012, %v4868
          %v5077 = vadd.f32 %v5013, %v4515
          %v5078 = vadd.f32 %v5014, %v4871
          %v5079 = vadd.f32 %v5015, %v4517
          %v5080 = vadd.f32 %v5016, %v4873
          %v5081 = vadd.f32 %v5017, %v4520
          %v5082 = vadd.f32 %v5018, %v4876
          %v5083 = vadd.f32 %v5019, %v4522
          %v5084 = vadd.f32 %v5020, %v4878
          %v5085 = vadd.f32 %v5021, %v4525
          %v5086 = vadd.f32 %v5022, %v4881
          %v5087 = vadd.f32 %v5023, %v4527
          %v5088 = vadd.f32 %v5024, %v4883
          %v5089 = vadd.f32 %v5025, %v4530
          %v5090 = vadd.f32 %v5026, %v4886
          %v5091 = vadd.f32 %v5027, %v4532
          %v5092 = vadd.f32 %v5028, %v4888
          %v5093 = vadd.f32 %v5029, %v4535
          %v5094 = vadd.f32 %v5030, %v4891
          %v5095 = vadd.f32 %v5031, %v4537
          %v5096 = vadd.f32 %v5032, %v4893
          %v5097 = vadd.f32 %v5033, %v4540
          %v5098 = vadd.f32 %v5034, %v4896
          %v5099 = vadd.f32 %v5035, %v4542
          %v5100 = vadd.f32 %v5036, %v4898
          %v5101 = vadd.f32 %v5037, %v4545
          %v5102 = vadd.f32 %v5038, %v4901
          %v5103 = vadd.f32 %v5039, %v4547
          %v5104 = vadd.f32 %v5040, %v4903
          %5105 = vst [vmem:[%s539] sm:$0xff] %v5041
          %5106 = vst.msk [vmem:[%s539 + $0x8] sm:$0xff] %vm800, %v5042
          %5107 = vst [vmem:[%s539 + $0x10] sm:$0xff] %v5043
          %5108 = vst.msk [vmem:[%s539 + $0x18] sm:$0xff] %vm800, %v5044
          %5109 = vst [vmem:[%s539 + $0x20] sm:$0xff] %v5045
          %5110 = vst.msk [vmem:[%s539 + $0x28] sm:$0xff] %vm800, %v5046
          %5111 = vst [vmem:[%s539 + $0x30] sm:$0xff] %v5047
          %5112 = vst.msk [vmem:[%s539 + $0x38] sm:$0xff] %vm800, %v5048
          %5113 = vst [vmem:[%s539 + $0x40] sm:$0xff] %v5049
          %5114 = vst.msk [vmem:[%s539 + $0x48] sm:$0xff] %vm800, %v5050
          %5115 = vst [vmem:[%s539 + $0x50] sm:$0xff] %v5051
          %5116 = vst.msk [vmem:[%s539 + $0x58] sm:$0xff] %vm800, %v5052
          %5117 = vst [vmem:[%s539 + $0x60] sm:$0xff] %v5053
          %5118 = vst.msk [vmem:[%s539 + $0x68] sm:$0xff] %vm800, %v5054
          %5119 = vst [vmem:[%s539 + $0x70] sm:$0xff] %v5055
          %5120 = vst.msk [vmem:[%s539 + $0x78] sm:$0xff] %vm800, %v5056
          %5121 = vst [vmem:[%s539 + $0x80] sm:$0xff] %v5057
          %5122 = vst.msk [vmem:[%s539 + $0x88] sm:$0xff] %vm800, %v5058
          %5123 = vst [vmem:[%s539 + $0x90] sm:$0xff] %v5059
          %5124 = vst.msk [vmem:[%s539 + $0x98] sm:$0xff] %vm800, %v5060
          %5125 = vst [vmem:[%s539 + $0xa0] sm:$0xff] %v5061
          %5126 = vst.msk [vmem:[%s539 + $0xa8] sm:$0xff] %vm800, %v5062
          %5127 = vst [vmem:[%s539 + $0xb0] sm:$0xff] %v5063
          %5128 = vst.msk [vmem:[%s539 + $0xb8] sm:$0xff] %vm800, %v5064
          %5129 = vst [vmem:[%s539 + $0xc0] sm:$0xff] %v5065
          %5130 = vst.msk [vmem:[%s539 + $0xc8] sm:$0xff] %vm800, %v5066
          %5131 = vst [vmem:[%s539 + $0xd0] sm:$0xff] %v5067
          %5132 = vst.msk [vmem:[%s539 + $0xd8] sm:$0xff] %vm800, %v5068
          %5133 = vst [vmem:[%s539 + $0xe0] sm:$0xff] %v5069
          %5134 = vst.msk [vmem:[%s539 + $0xe8] sm:$0xff] %vm800, %v5070
          %5135 = vst [vmem:[%s539 + $0xf0] sm:$0xff] %v5071
          %5136 = vst.msk [vmem:[%s539 + $0xf8] sm:$0xff] %vm800, %v5072
          %5137 = vst [vmem:[%s539 + $0x100] sm:$0xff] %v5073
          %5138 = vst.msk [vmem:[%s539 + $0x108] sm:$0xff] %vm800, %v5074
          %5139 = vst [vmem:[%s539 + $0x110] sm:$0xff] %v5075
          %5140 = vst.msk [vmem:[%s539 + $0x118] sm:$0xff] %vm800, %v5076
          %5141 = vst [vmem:[%s539 + $0x120] sm:$0xff] %v5077
          %5142 = vst.msk [vmem:[%s539 + $0x128] sm:$0xff] %vm800, %v5078
          %5143 = vst [vmem:[%s539 + $0x130] sm:$0xff] %v5079
          %5144 = vst.msk [vmem:[%s539 + $0x138] sm:$0xff] %vm800, %v5080
          %5145 = vst [vmem:[%s539 + $0x140] sm:$0xff] %v5081
          %5146 = vst.msk [vmem:[%s539 + $0x148] sm:$0xff] %vm800, %v5082
          %5147 = vst [vmem:[%s539 + $0x150] sm:$0xff] %v5083
          %5148 = vst.msk [vmem:[%s539 + $0x158] sm:$0xff] %vm800, %v5084
          %5149 = vst [vmem:[%s539 + $0x160] sm:$0xff] %v5085
          %5150 = vst.msk [vmem:[%s539 + $0x168] sm:$0xff] %vm800, %v5086
          %5151 = vst [vmem:[%s539 + $0x170] sm:$0xff] %v5087
          %5152 = vst.msk [vmem:[%s539 + $0x178] sm:$0xff] %vm800, %v5088
          %5153 = vst [vmem:[%s539 + $0x180] sm:$0xff] %v5089
          %5154 = vst.msk [vmem:[%s539 + $0x188] sm:$0xff] %vm800, %v5090
          %5155 = vst [vmem:[%s539 + $0x190] sm:$0xff] %v5091
          %5156 = vst.msk [vmem:[%s539 + $0x198] sm:$0xff] %vm800, %v5092
          %5157 = vst [vmem:[%s539 + $0x1a0] sm:$0xff] %v5093
          %5158 = vst.msk [vmem:[%s539 + $0x1a8] sm:$0xff] %vm800, %v5094
          %5159 = vst [vmem:[%s539 + $0x1b0] sm:$0xff] %v5095
          %5160 = vst.msk [vmem:[%s539 + $0x1b8] sm:$0xff] %vm800, %v5096
          %5161 = vst [vmem:[%s539 + $0x1c0] sm:$0xff] %v5097
          %5162 = vst.msk [vmem:[%s539 + $0x1c8] sm:$0xff] %vm800, %v5098
          %5163 = vst [vmem:[%s539 + $0x1d0] sm:$0xff] %v5099
          %5164 = vst.msk [vmem:[%s539 + $0x1d8] sm:$0xff] %vm800, %v5100
          %5165 = vst [vmem:[%s539 + $0x1e0] sm:$0xff] %v5101
          %5166 = vst.msk [vmem:[%s539 + $0x1e8] sm:$0xff] %vm800, %v5102
          %5167 = vst [vmem:[%s539 + $0x1f0] sm:$0xff] %v5103
          %5168 = vst.msk [vmem:[%s539 + $0x1f8] sm:$0xff] %vm800, %v5104
        $region79: #{fused_bn_add_relu_conv_bn.1} parent=66 // pred_fallthru
          _
        %p5169 = scmp.eq.s32.totalorder %s23, 1
        // Predicated region
        $region80: #{fused_bn_add_relu_conv_bn.1} parent=66 // pred_check
          %p5170 = pneg %p5169
        $region81: #{fused_bn_add_relu_conv_bn.1} parent=66 // pred_check_branch
          %5172 = sbr.rel (%p5170) target = $region83
        $region82: #{fused_bn_add_relu_conv_bn.1} parent=66 // pred_region
          %v5173 = vld [vmem:[%s539] sm:$0xff]
          %v5174 = vld [vmem:[%s539 + $0x8] sm:$0xff]
          %v5175 = vld [vmem:[%s539 + $0x10] sm:$0xff]
          %v5176 = vld [vmem:[%s539 + $0x18] sm:$0xff]
          %v5177 = vld [vmem:[%s539 + $0x20] sm:$0xff]
          %v5178 = vld [vmem:[%s539 + $0x28] sm:$0xff]
          %v5179 = vld [vmem:[%s539 + $0x30] sm:$0xff]
          %v5180 = vld [vmem:[%s539 + $0x38] sm:$0xff]
          %v5181 = vld [vmem:[%s539 + $0x40] sm:$0xff]
          %v5182 = vld [vmem:[%s539 + $0x48] sm:$0xff]
          %v5183 = vld [vmem:[%s539 + $0x50] sm:$0xff]
          %v5184 = vld [vmem:[%s539 + $0x58] sm:$0xff]
          %v5185 = vld [vmem:[%s539 + $0x60] sm:$0xff]
          %v5186 = vld [vmem:[%s539 + $0x68] sm:$0xff]
          %v5187 = vld [vmem:[%s539 + $0x70] sm:$0xff]
          %v5188 = vld [vmem:[%s539 + $0x78] sm:$0xff]
          %v5189 = vld [vmem:[%s539 + $0x80] sm:$0xff]
          %v5190 = vld [vmem:[%s539 + $0x88] sm:$0xff]
          %v5191 = vld [vmem:[%s539 + $0x90] sm:$0xff]
          %v5192 = vld [vmem:[%s539 + $0x98] sm:$0xff]
          %v5193 = vld [vmem:[%s539 + $0xa0] sm:$0xff]
          %v5194 = vld [vmem:[%s539 + $0xa8] sm:$0xff]
          %v5195 = vld [vmem:[%s539 + $0xb0] sm:$0xff]
          %v5196 = vld [vmem:[%s539 + $0xb8] sm:$0xff]
          %v5197 = vld [vmem:[%s539 + $0xc0] sm:$0xff]
          %v5198 = vld [vmem:[%s539 + $0xc8] sm:$0xff]
          %v5199 = vld [vmem:[%s539 + $0xd0] sm:$0xff]
          %v5200 = vld [vmem:[%s539 + $0xd8] sm:$0xff]
          %v5201 = vld [vmem:[%s539 + $0xe0] sm:$0xff]
          %v5202 = vld [vmem:[%s539 + $0xe8] sm:$0xff]
          %v5203 = vld [vmem:[%s539 + $0xf0] sm:$0xff]
          %v5204 = vld [vmem:[%s539 + $0xf8] sm:$0xff]
          %v5205 = vld [vmem:[%s539 + $0x100] sm:$0xff]
          %v5206 = vld [vmem:[%s539 + $0x108] sm:$0xff]
          %v5207 = vld [vmem:[%s539 + $0x110] sm:$0xff]
          %v5208 = vld [vmem:[%s539 + $0x118] sm:$0xff]
          %v5209 = vld [vmem:[%s539 + $0x120] sm:$0xff]
          %v5210 = vld [vmem:[%s539 + $0x128] sm:$0xff]
          %v5211 = vld [vmem:[%s539 + $0x130] sm:$0xff]
          %v5212 = vld [vmem:[%s539 + $0x138] sm:$0xff]
          %v5213 = vld [vmem:[%s539 + $0x140] sm:$0xff]
          %v5214 = vld [vmem:[%s539 + $0x148] sm:$0xff]
          %v5215 = vld [vmem:[%s539 + $0x150] sm:$0xff]
          %v5216 = vld [vmem:[%s539 + $0x158] sm:$0xff]
          %v5217 = vld [vmem:[%s539 + $0x160] sm:$0xff]
          %v5218 = vld [vmem:[%s539 + $0x168] sm:$0xff]
          %v5219 = vld [vmem:[%s539 + $0x170] sm:$0xff]
          %v5220 = vld [vmem:[%s539 + $0x178] sm:$0xff]
          %v5221 = vld [vmem:[%s539 + $0x180] sm:$0xff]
          %v5222 = vld [vmem:[%s539 + $0x188] sm:$0xff]
          %v5223 = vld [vmem:[%s539 + $0x190] sm:$0xff]
          %v5224 = vld [vmem:[%s539 + $0x198] sm:$0xff]
          %v5225 = vld [vmem:[%s539 + $0x1a0] sm:$0xff]
          %v5226 = vld [vmem:[%s539 + $0x1a8] sm:$0xff]
          %v5227 = vld [vmem:[%s539 + $0x1b0] sm:$0xff]
          %v5228 = vld [vmem:[%s539 + $0x1b8] sm:$0xff]
          %v5229 = vld [vmem:[%s539 + $0x1c0] sm:$0xff]
          %v5230 = vld [vmem:[%s539 + $0x1c8] sm:$0xff]
          %v5231 = vld [vmem:[%s539 + $0x1d0] sm:$0xff]
          %v5232 = vld [vmem:[%s539 + $0x1d8] sm:$0xff]
          %v5233 = vld [vmem:[%s539 + $0x1e0] sm:$0xff]
          %v5234 = vld [vmem:[%s539 + $0x1e8] sm:$0xff]
          %v5235 = vld [vmem:[%s539 + $0x1f0] sm:$0xff]
          %v5236 = vld [vmem:[%s539 + $0x1f8] sm:$0xff]
          %v5237 = vsel %vm800, %v5174, 0.0
          %v5238 = vadd.f32 %v5173, %v5237
          %5239 = vadd.xlane.f32.xlu0 %v5238
          %v5240 = vpop.xlane.xlu0 %5239
          %v5241 = vsel %vm800, %v5176, 0.0
          %v5242 = vadd.f32 %v5175, %v5241
          %5243 = vadd.xlane.f32.xlu0 %v5242
          %v5244 = vpop.xlane.xlu0 %5243
          %v5245 = vsel %vm800, %v5178, 0.0
          %v5246 = vadd.f32 %v5177, %v5245
          %5247 = vadd.xlane.f32.xlu0 %v5246
          %v5248 = vpop.xlane.xlu0 %5247
          %v5249 = vsel %vm800, %v5180, 0.0
          %v5250 = vadd.f32 %v5179, %v5249
          %5251 = vadd.xlane.f32.xlu0 %v5250
          %v5252 = vpop.xlane.xlu0 %5251
          %v5253 = vsel %vm800, %v5182, 0.0
          %v5254 = vadd.f32 %v5181, %v5253
          %5255 = vadd.xlane.f32.xlu0 %v5254
          %v5256 = vpop.xlane.xlu0 %5255
          %v5257 = vsel %vm800, %v5184, 0.0
          %v5258 = vadd.f32 %v5183, %v5257
          %5259 = vadd.xlane.f32.xlu0 %v5258
          %v5260 = vpop.xlane.xlu0 %5259
          %v5261 = vsel %vm800, %v5186, 0.0
          %v5262 = vadd.f32 %v5185, %v5261
          %5263 = vadd.xlane.f32.xlu0 %v5262
          %v5264 = vpop.xlane.xlu0 %5263
          %v5265 = vsel %vm800, %v5188, 0.0
          %v5266 = vadd.f32 %v5187, %v5265
          %5267 = vadd.xlane.f32.xlu0 %v5266
          %v5268 = vpop.xlane.xlu0 %5267
          %v5269 = vsel %vm800, %v5190, 0.0
          %v5270 = vadd.f32 %v5189, %v5269
          %5271 = vadd.xlane.f32.xlu0 %v5270
          %v5272 = vpop.xlane.xlu0 %5271
          %v5273 = vsel %vm800, %v5192, 0.0
          %v5274 = vadd.f32 %v5191, %v5273
          %5275 = vadd.xlane.f32.xlu0 %v5274
          %v5276 = vpop.xlane.xlu0 %5275
          %v5277 = vsel %vm800, %v5194, 0.0
          %v5278 = vadd.f32 %v5193, %v5277
          %5279 = vadd.xlane.f32.xlu0 %v5278
          %v5280 = vpop.xlane.xlu0 %5279
          %v5281 = vsel %vm800, %v5196, 0.0
          %v5282 = vadd.f32 %v5195, %v5281
          %5283 = vadd.xlane.f32.xlu0 %v5282
          %v5284 = vpop.xlane.xlu0 %5283
          %v5285 = vsel %vm800, %v5198, 0.0
          %v5286 = vadd.f32 %v5197, %v5285
          %5287 = vadd.xlane.f32.xlu0 %v5286
          %v5288 = vpop.xlane.xlu0 %5287
          %v5289 = vsel %vm800, %v5200, 0.0
          %v5290 = vadd.f32 %v5199, %v5289
          %5291 = vadd.xlane.f32.xlu0 %v5290
          %v5292 = vpop.xlane.xlu0 %5291
          %v5293 = vsel %vm800, %v5202, 0.0
          %v5294 = vadd.f32 %v5201, %v5293
          %5295 = vadd.xlane.f32.xlu0 %v5294
          %v5296 = vpop.xlane.xlu0 %5295
          %v5297 = vsel %vm800, %v5204, 0.0
          %v5298 = vadd.f32 %v5203, %v5297
          %5299 = vadd.xlane.f32.xlu0 %v5298
          %v5300 = vpop.xlane.xlu0 %5299
          %v5301 = vsel %vm800, %v5206, 0.0
          %v5302 = vadd.f32 %v5205, %v5301
          %5303 = vadd.xlane.f32.xlu0 %v5302
          %v5304 = vpop.xlane.xlu0 %5303
          %v5305 = vsel %vm800, %v5208, 0.0
          %v5306 = vadd.f32 %v5207, %v5305
          %5307 = vadd.xlane.f32.xlu0 %v5306
          %v5308 = vpop.xlane.xlu0 %5307
          %v5309 = vsel %vm800, %v5210, 0.0
          %v5310 = vadd.f32 %v5209, %v5309
          %5311 = vadd.xlane.f32.xlu0 %v5310
          %v5312 = vpop.xlane.xlu0 %5311
          %v5313 = vsel %vm800, %v5212, 0.0
          %v5314 = vadd.f32 %v5211, %v5313
          %5315 = vadd.xlane.f32.xlu0 %v5314
          %v5316 = vpop.xlane.xlu0 %5315
          %v5317 = vsel %vm800, %v5214, 0.0
          %v5318 = vadd.f32 %v5213, %v5317
          %5319 = vadd.xlane.f32.xlu0 %v5318
          %v5320 = vpop.xlane.xlu0 %5319
          %v5321 = vsel %vm800, %v5216, 0.0
          %v5322 = vadd.f32 %v5215, %v5321
          %5323 = vadd.xlane.f32.xlu0 %v5322
          %v5324 = vpop.xlane.xlu0 %5323
          %v5325 = vsel %vm800, %v5218, 0.0
          %v5326 = vadd.f32 %v5217, %v5325
          %5327 = vadd.xlane.f32.xlu0 %v5326
          %v5328 = vpop.xlane.xlu0 %5327
          %v5329 = vsel %vm800, %v5220, 0.0
          %v5330 = vadd.f32 %v5219, %v5329
          %5331 = vadd.xlane.f32.xlu0 %v5330
          %v5332 = vpop.xlane.xlu0 %5331
          %v5333 = vsel %vm800, %v5222, 0.0
          %v5334 = vadd.f32 %v5221, %v5333
          %5335 = vadd.xlane.f32.xlu0 %v5334
          %v5336 = vpop.xlane.xlu0 %5335
          %v5337 = vsel %vm800, %v5224, 0.0
          %v5338 = vadd.f32 %v5223, %v5337
          %5339 = vadd.xlane.f32.xlu0 %v5338
          %v5340 = vpop.xlane.xlu0 %5339
          %v5341 = vsel %vm800, %v5226, 0.0
          %v5342 = vadd.f32 %v5225, %v5341
          %5343 = vadd.xlane.f32.xlu0 %v5342
          %v5344 = vpop.xlane.xlu0 %5343
          %v5345 = vsel %vm800, %v5228, 0.0
          %v5346 = vadd.f32 %v5227, %v5345
          %5347 = vadd.xlane.f32.xlu0 %v5346
          %v5348 = vpop.xlane.xlu0 %5347
          %v5349 = vsel %vm800, %v5230, 0.0
          %v5350 = vadd.f32 %v5229, %v5349
          %5351 = vadd.xlane.f32.xlu0 %v5350
          %v5352 = vpop.xlane.xlu0 %5351
          %v5353 = vsel %vm800, %v5232, 0.0
          %v5354 = vadd.f32 %v5231, %v5353
          %5355 = vadd.xlane.f32.xlu0 %v5354
          %v5356 = vpop.xlane.xlu0 %5355
          %v5357 = vsel %vm800, %v5234, 0.0
          %v5358 = vadd.f32 %v5233, %v5357
          %5359 = vadd.xlane.f32.xlu0 %v5358
          %v5360 = vpop.xlane.xlu0 %5359
          %v5361 = vsel %vm800, %v5236, 0.0
          %v5362 = vadd.f32 %v5235, %v5361
          %5363 = vadd.xlane.f32.xlu0 %v5362
          %v5364 = vpop.xlane.xlu0 %5363
          %v5365 = vmul.f32 %v5240, 0.0051020407
          %v5366 = vmul.f32 %v5244, 0.0051020407
          %v5367 = vmul.f32 %v5248, 0.0051020407
          %v5368 = vmul.f32 %v5252, 0.0051020407
          %v5369 = vmul.f32 %v5256, 0.0051020407
          %v5370 = vmul.f32 %v5260, 0.0051020407
          %v5371 = vmul.f32 %v5264, 0.0051020407
          %v5372 = vmul.f32 %v5268, 0.0051020407
          %v5373 = vmul.f32 %v5272, 0.0051020407
          %v5374 = vmul.f32 %v5276, 0.0051020407
          %v5375 = vmul.f32 %v5280, 0.0051020407
          %v5376 = vmul.f32 %v5284, 0.0051020407
          %v5377 = vmul.f32 %v5288, 0.0051020407
          %v5378 = vmul.f32 %v5292, 0.0051020407
          %v5379 = vmul.f32 %v5296, 0.0051020407
          %v5380 = vmul.f32 %v5300, 0.0051020407
          %v5381 = vmul.f32 %v5304, 0.0051020407
          %v5382 = vmul.f32 %v5308, 0.0051020407
          %v5383 = vmul.f32 %v5312, 0.0051020407
          %v5384 = vmul.f32 %v5316, 0.0051020407
          %v5385 = vmul.f32 %v5320, 0.0051020407
          %v5386 = vmul.f32 %v5324, 0.0051020407
          %v5387 = vmul.f32 %v5328, 0.0051020407
          %v5388 = vmul.f32 %v5332, 0.0051020407
          %v5389 = vmul.f32 %v5336, 0.0051020407
          %v5390 = vmul.f32 %v5340, 0.0051020407
          %v5391 = vmul.f32 %v5344, 0.0051020407
          %v5392 = vmul.f32 %v5348, 0.0051020407
          %v5393 = vmul.f32 %v5352, 0.0051020407
          %v5394 = vmul.f32 %v5356, 0.0051020407
          %v5395 = vmul.f32 %v5360, 0.0051020407
          %v5396 = vmul.f32 %v5364, 0.0051020407
          %v5397 = vsub.f32 %v5173, %v5365
          %v5398 = vsub.f32 %v5174, %v5365
          %v5399 = vsub.f32 %v5175, %v5366
          %v5400 = vsub.f32 %v5176, %v5366
          %v5401 = vsub.f32 %v5177, %v5367
          %v5402 = vsub.f32 %v5178, %v5367
          %v5403 = vsub.f32 %v5179, %v5368
          %v5404 = vsub.f32 %v5180, %v5368
          %v5405 = vsub.f32 %v5181, %v5369
          %v5406 = vsub.f32 %v5182, %v5369
          %v5407 = vsub.f32 %v5183, %v5370
          %v5408 = vsub.f32 %v5184, %v5370
          %v5409 = vsub.f32 %v5185, %v5371
          %v5410 = vsub.f32 %v5186, %v5371
          %v5411 = vsub.f32 %v5187, %v5372
          %v5412 = vsub.f32 %v5188, %v5372
          %v5413 = vsub.f32 %v5189, %v5373
          %v5414 = vsub.f32 %v5190, %v5373
          %v5415 = vsub.f32 %v5191, %v5374
          %v5416 = vsub.f32 %v5192, %v5374
          %v5417 = vsub.f32 %v5193, %v5375
          %v5418 = vsub.f32 %v5194, %v5375
          %v5419 = vsub.f32 %v5195, %v5376
          %v5420 = vsub.f32 %v5196, %v5376
          %v5421 = vsub.f32 %v5197, %v5377
          %v5422 = vsub.f32 %v5198, %v5377
          %v5423 = vsub.f32 %v5199, %v5378
          %v5424 = vsub.f32 %v5200, %v5378
          %v5425 = vsub.f32 %v5201, %v5379
          %v5426 = vsub.f32 %v5202, %v5379
          %v5427 = vsub.f32 %v5203, %v5380
          %v5428 = vsub.f32 %v5204, %v5380
          %v5429 = vsub.f32 %v5205, %v5381
          %v5430 = vsub.f32 %v5206, %v5381
          %v5431 = vsub.f32 %v5207, %v5382
          %v5432 = vsub.f32 %v5208, %v5382
          %v5433 = vsub.f32 %v5209, %v5383
          %v5434 = vsub.f32 %v5210, %v5383
          %v5435 = vsub.f32 %v5211, %v5384
          %v5436 = vsub.f32 %v5212, %v5384
          %v5437 = vsub.f32 %v5213, %v5385
          %v5438 = vsub.f32 %v5214, %v5385
          %v5439 = vsub.f32 %v5215, %v5386
          %v5440 = vsub.f32 %v5216, %v5386
          %v5441 = vsub.f32 %v5217, %v5387
          %v5442 = vsub.f32 %v5218, %v5387
          %v5443 = vsub.f32 %v5219, %v5388
          %v5444 = vsub.f32 %v5220, %v5388
          %v5445 = vsub.f32 %v5221, %v5389
          %v5446 = vsub.f32 %v5222, %v5389
          %v5447 = vsub.f32 %v5223, %v5390
          %v5448 = vsub.f32 %v5224, %v5390
          %v5449 = vsub.f32 %v5225, %v5391
          %v5450 = vsub.f32 %v5226, %v5391
          %v5451 = vsub.f32 %v5227, %v5392
          %v5452 = vsub.f32 %v5228, %v5392
          %v5453 = vsub.f32 %v5229, %v5393
          %v5454 = vsub.f32 %v5230, %v5393
          %v5455 = vsub.f32 %v5231, %v5394
          %v5456 = vsub.f32 %v5232, %v5394
          %v5457 = vsub.f32 %v5233, %v5395
          %v5458 = vsub.f32 %v5234, %v5395
          %v5459 = vsub.f32 %v5235, %v5396
          %v5460 = vsub.f32 %v5236, %v5396
          %v5461 = vmul.f32 %v5397, %v5397
          %v5462 = vmul.f32 %v5398, %v5398
          %v5463 = vmul.f32 %v5399, %v5399
          %v5464 = vmul.f32 %v5400, %v5400
          %v5465 = vmul.f32 %v5401, %v5401
          %v5466 = vmul.f32 %v5402, %v5402
          %v5467 = vmul.f32 %v5403, %v5403
          %v5468 = vmul.f32 %v5404, %v5404
          %v5469 = vmul.f32 %v5405, %v5405
          %v5470 = vmul.f32 %v5406, %v5406
          %v5471 = vmul.f32 %v5407, %v5407
          %v5472 = vmul.f32 %v5408, %v5408
          %v5473 = vmul.f32 %v5409, %v5409
          %v5474 = vmul.f32 %v5410, %v5410
          %v5475 = vmul.f32 %v5411, %v5411
          %v5476 = vmul.f32 %v5412, %v5412
          %v5477 = vmul.f32 %v5413, %v5413
          %v5478 = vmul.f32 %v5414, %v5414
          %v5479 = vmul.f32 %v5415, %v5415
          %v5480 = vmul.f32 %v5416, %v5416
          %v5481 = vmul.f32 %v5417, %v5417
          %v5482 = vmul.f32 %v5418, %v5418
          %v5483 = vmul.f32 %v5419, %v5419
          %v5484 = vmul.f32 %v5420, %v5420
          %v5485 = vmul.f32 %v5421, %v5421
          %v5486 = vmul.f32 %v5422, %v5422
          %v5487 = vmul.f32 %v5423, %v5423
          %v5488 = vmul.f32 %v5424, %v5424
          %v5489 = vmul.f32 %v5425, %v5425
          %v5490 = vmul.f32 %v5426, %v5426
          %v5491 = vmul.f32 %v5427, %v5427
          %v5492 = vmul.f32 %v5428, %v5428
          %v5493 = vmul.f32 %v5429, %v5429
          %v5494 = vmul.f32 %v5430, %v5430
          %v5495 = vmul.f32 %v5431, %v5431
          %v5496 = vmul.f32 %v5432, %v5432
          %v5497 = vmul.f32 %v5433, %v5433
          %v5498 = vmul.f32 %v5434, %v5434
          %v5499 = vmul.f32 %v5435, %v5435
          %v5500 = vmul.f32 %v5436, %v5436
          %v5501 = vmul.f32 %v5437, %v5437
          %v5502 = vmul.f32 %v5438, %v5438
          %v5503 = vmul.f32 %v5439, %v5439
          %v5504 = vmul.f32 %v5440, %v5440
          %v5505 = vmul.f32 %v5441, %v5441
          %v5506 = vmul.f32 %v5442, %v5442
          %v5507 = vmul.f32 %v5443, %v5443
          %v5508 = vmul.f32 %v5444, %v5444
          %v5509 = vmul.f32 %v5445, %v5445
          %v5510 = vmul.f32 %v5446, %v5446
          %v5511 = vmul.f32 %v5447, %v5447
          %v5512 = vmul.f32 %v5448, %v5448
          %v5513 = vmul.f32 %v5449, %v5449
          %v5514 = vmul.f32 %v5450, %v5450
          %v5515 = vmul.f32 %v5451, %v5451
          %v5516 = vmul.f32 %v5452, %v5452
          %v5517 = vmul.f32 %v5453, %v5453
          %v5518 = vmul.f32 %v5454, %v5454
          %v5519 = vmul.f32 %v5455, %v5455
          %v5520 = vmul.f32 %v5456, %v5456
          %v5521 = vmul.f32 %v5457, %v5457
          %v5522 = vmul.f32 %v5458, %v5458
          %v5523 = vmul.f32 %v5459, %v5459
          %v5524 = vmul.f32 %v5460, %v5460
          %v5525 = vsel %vm800, %v5462, 0.0
          %v5526 = vadd.f32 %v5461, %v5525
          %5527 = vadd.xlane.f32.xlu0 %v5526
          %v5528 = vpop.xlane.xlu0 %5527
          %v5529 = vsel %vm800, %v5464, 0.0
          %v5530 = vadd.f32 %v5463, %v5529
          %5531 = vadd.xlane.f32.xlu0 %v5530
          %v5532 = vpop.xlane.xlu0 %5531
          %v5533 = vsel %vm800, %v5466, 0.0
          %v5534 = vadd.f32 %v5465, %v5533
          %5535 = vadd.xlane.f32.xlu0 %v5534
          %v5536 = vpop.xlane.xlu0 %5535
          %v5537 = vsel %vm800, %v5468, 0.0
          %v5538 = vadd.f32 %v5467, %v5537
          %5539 = vadd.xlane.f32.xlu0 %v5538
          %v5540 = vpop.xlane.xlu0 %5539
          %v5541 = vsel %vm800, %v5470, 0.0
          %v5542 = vadd.f32 %v5469, %v5541
          %5543 = vadd.xlane.f32.xlu0 %v5542
          %v5544 = vpop.xlane.xlu0 %5543
          %v5545 = vsel %vm800, %v5472, 0.0
          %v5546 = vadd.f32 %v5471, %v5545
          %5547 = vadd.xlane.f32.xlu0 %v5546
          %v5548 = vpop.xlane.xlu0 %5547
          %v5549 = vsel %vm800, %v5474, 0.0
          %v5550 = vadd.f32 %v5473, %v5549
          %5551 = vadd.xlane.f32.xlu0 %v5550
          %v5552 = vpop.xlane.xlu0 %5551
          %v5553 = vsel %vm800, %v5476, 0.0
          %v5554 = vadd.f32 %v5475, %v5553
          %5555 = vadd.xlane.f32.xlu0 %v5554
          %v5556 = vpop.xlane.xlu0 %5555
          %v5557 = vsel %vm800, %v5478, 0.0
          %v5558 = vadd.f32 %v5477, %v5557
          %5559 = vadd.xlane.f32.xlu0 %v5558
          %v5560 = vpop.xlane.xlu0 %5559
          %v5561 = vsel %vm800, %v5480, 0.0
          %v5562 = vadd.f32 %v5479, %v5561
          %5563 = vadd.xlane.f32.xlu0 %v5562
          %v5564 = vpop.xlane.xlu0 %5563
          %v5565 = vsel %vm800, %v5482, 0.0
          %v5566 = vadd.f32 %v5481, %v5565
          %5567 = vadd.xlane.f32.xlu0 %v5566
          %v5568 = vpop.xlane.xlu0 %5567
          %v5569 = vsel %vm800, %v5484, 0.0
          %v5570 = vadd.f32 %v5483, %v5569
          %5571 = vadd.xlane.f32.xlu0 %v5570
          %v5572 = vpop.xlane.xlu0 %5571
          %v5573 = vsel %vm800, %v5486, 0.0
          %v5574 = vadd.f32 %v5485, %v5573
          %5575 = vadd.xlane.f32.xlu0 %v5574
          %v5576 = vpop.xlane.xlu0 %5575
          %v5577 = vsel %vm800, %v5488, 0.0
          %v5578 = vadd.f32 %v5487, %v5577
          %5579 = vadd.xlane.f32.xlu0 %v5578
          %v5580 = vpop.xlane.xlu0 %5579
          %v5581 = vsel %vm800, %v5490, 0.0
          %v5582 = vadd.f32 %v5489, %v5581
          %5583 = vadd.xlane.f32.xlu0 %v5582
          %v5584 = vpop.xlane.xlu0 %5583
          %v5585 = vsel %vm800, %v5492, 0.0
          %v5586 = vadd.f32 %v5491, %v5585
          %5587 = vadd.xlane.f32.xlu0 %v5586
          %v5588 = vpop.xlane.xlu0 %5587
          %v5589 = vsel %vm800, %v5494, 0.0
          %v5590 = vadd.f32 %v5493, %v5589
          %5591 = vadd.xlane.f32.xlu0 %v5590
          %v5592 = vpop.xlane.xlu0 %5591
          %v5593 = vsel %vm800, %v5496, 0.0
          %v5594 = vadd.f32 %v5495, %v5593
          %5595 = vadd.xlane.f32.xlu0 %v5594
          %v5596 = vpop.xlane.xlu0 %5595
          %v5597 = vsel %vm800, %v5498, 0.0
          %v5598 = vadd.f32 %v5497, %v5597
          %5599 = vadd.xlane.f32.xlu0 %v5598
          %v5600 = vpop.xlane.xlu0 %5599
          %v5601 = vsel %vm800, %v5500, 0.0
          %v5602 = vadd.f32 %v5499, %v5601
          %5603 = vadd.xlane.f32.xlu0 %v5602
          %v5604 = vpop.xlane.xlu0 %5603
          %v5605 = vsel %vm800, %v5502, 0.0
          %v5606 = vadd.f32 %v5501, %v5605
          %5607 = vadd.xlane.f32.xlu0 %v5606
          %v5608 = vpop.xlane.xlu0 %5607
          %v5609 = vsel %vm800, %v5504, 0.0
          %v5610 = vadd.f32 %v5503, %v5609
          %5611 = vadd.xlane.f32.xlu0 %v5610
          %v5612 = vpop.xlane.xlu0 %5611
          %v5613 = vsel %vm800, %v5506, 0.0
          %v5614 = vadd.f32 %v5505, %v5613
          %5615 = vadd.xlane.f32.xlu0 %v5614
          %v5616 = vpop.xlane.xlu0 %5615
          %v5617 = vsel %vm800, %v5508, 0.0
          %v5618 = vadd.f32 %v5507, %v5617
          %5619 = vadd.xlane.f32.xlu0 %v5618
          %v5620 = vpop.xlane.xlu0 %5619
          %v5621 = vsel %vm800, %v5510, 0.0
          %v5622 = vadd.f32 %v5509, %v5621
          %5623 = vadd.xlane.f32.xlu0 %v5622
          %v5624 = vpop.xlane.xlu0 %5623
          %v5625 = vsel %vm800, %v5512, 0.0
          %v5626 = vadd.f32 %v5511, %v5625
          %5627 = vadd.xlane.f32.xlu0 %v5626
          %v5628 = vpop.xlane.xlu0 %5627
          %v5629 = vsel %vm800, %v5514, 0.0
          %v5630 = vadd.f32 %v5513, %v5629
          %5631 = vadd.xlane.f32.xlu0 %v5630
          %v5632 = vpop.xlane.xlu0 %5631
          %v5633 = vsel %vm800, %v5516, 0.0
          %v5634 = vadd.f32 %v5515, %v5633
          %5635 = vadd.xlane.f32.xlu0 %v5634
          %v5636 = vpop.xlane.xlu0 %5635
          %v5637 = vsel %vm800, %v5518, 0.0
          %v5638 = vadd.f32 %v5517, %v5637
          %5639 = vadd.xlane.f32.xlu0 %v5638
          %v5640 = vpop.xlane.xlu0 %5639
          %v5641 = vsel %vm800, %v5520, 0.0
          %v5642 = vadd.f32 %v5519, %v5641
          %5643 = vadd.xlane.f32.xlu0 %v5642
          %v5644 = vpop.xlane.xlu0 %5643
          %v5645 = vsel %vm800, %v5522, 0.0
          %v5646 = vadd.f32 %v5521, %v5645
          %5647 = vadd.xlane.f32.xlu0 %v5646
          %v5648 = vpop.xlane.xlu0 %5647
          %v5649 = vsel %vm800, %v5524, 0.0
          %v5650 = vadd.f32 %v5523, %v5649
          %5651 = vadd.xlane.f32.xlu0 %v5650
          %v5652 = vpop.xlane.xlu0 %5651
          %v5653 = vmul.f32 %v5528, 0.0051020407
          %v5654 = vmul.f32 %v5532, 0.0051020407
          %v5655 = vmul.f32 %v5536, 0.0051020407
          %v5656 = vmul.f32 %v5540, 0.0051020407
          %v5657 = vmul.f32 %v5544, 0.0051020407
          %v5658 = vmul.f32 %v5548, 0.0051020407
          %v5659 = vmul.f32 %v5552, 0.0051020407
          %v5660 = vmul.f32 %v5556, 0.0051020407
          %v5661 = vmul.f32 %v5560, 0.0051020407
          %v5662 = vmul.f32 %v5564, 0.0051020407
          %v5663 = vmul.f32 %v5568, 0.0051020407
          %v5664 = vmul.f32 %v5572, 0.0051020407
          %v5665 = vmul.f32 %v5576, 0.0051020407
          %v5666 = vmul.f32 %v5580, 0.0051020407
          %v5667 = vmul.f32 %v5584, 0.0051020407
          %v5668 = vmul.f32 %v5588, 0.0051020407
          %v5669 = vmul.f32 %v5592, 0.0051020407
          %v5670 = vmul.f32 %v5596, 0.0051020407
          %v5671 = vmul.f32 %v5600, 0.0051020407
          %v5672 = vmul.f32 %v5604, 0.0051020407
          %v5673 = vmul.f32 %v5608, 0.0051020407
          %v5674 = vmul.f32 %v5612, 0.0051020407
          %v5675 = vmul.f32 %v5616, 0.0051020407
          %v5676 = vmul.f32 %v5620, 0.0051020407
          %v5677 = vmul.f32 %v5624, 0.0051020407
          %v5678 = vmul.f32 %v5628, 0.0051020407
          %v5679 = vmul.f32 %v5632, 0.0051020407
          %v5680 = vmul.f32 %v5636, 0.0051020407
          %v5681 = vmul.f32 %v5640, 0.0051020407
          %v5682 = vmul.f32 %v5644, 0.0051020407
          %v5683 = vmul.f32 %v5648, 0.0051020407
          %v5684 = vmul.f32 %v5652, 0.0051020407
          %v5685 = vld [vmem:[%s526] sm:$0xff]
          %v5686 = vld [vmem:[%s526 + $0x8] sm:$0xff]
          %v5687 = vld [vmem:[%s526 + $0x10] sm:$0xff]
          %v5688 = vld [vmem:[%s526 + $0x18] sm:$0xff]
          %v5689 = vld [vmem:[%s526 + $0x20] sm:$0xff]
          %v5690 = vld [vmem:[%s526 + $0x28] sm:$0xff]
          %v5691 = vld [vmem:[%s526 + $0x30] sm:$0xff]
          %v5692 = vld [vmem:[%s526 + $0x38] sm:$0xff]
          %v5693 = vld [vmem:[%s526 + $0x40] sm:$0xff]
          %v5694 = vld [vmem:[%s526 + $0x48] sm:$0xff]
          %v5695 = vld [vmem:[%s526 + $0x50] sm:$0xff]
          %v5696 = vld [vmem:[%s526 + $0x58] sm:$0xff]
          %v5697 = vld [vmem:[%s526 + $0x60] sm:$0xff]
          %v5698 = vld [vmem:[%s526 + $0x68] sm:$0xff]
          %v5699 = vld [vmem:[%s526 + $0x70] sm:$0xff]
          %v5700 = vld [vmem:[%s526 + $0x78] sm:$0xff]
          %v5701 = vld [vmem:[%s526 + $0x80] sm:$0xff]
          %v5702 = vld [vmem:[%s526 + $0x88] sm:$0xff]
          %v5703 = vld [vmem:[%s526 + $0x90] sm:$0xff]
          %v5704 = vld [vmem:[%s526 + $0x98] sm:$0xff]
          %v5705 = vld [vmem:[%s526 + $0xa0] sm:$0xff]
          %v5706 = vld [vmem:[%s526 + $0xa8] sm:$0xff]
          %v5707 = vld [vmem:[%s526 + $0xb0] sm:$0xff]
          %v5708 = vld [vmem:[%s526 + $0xb8] sm:$0xff]
          %v5709 = vld [vmem:[%s526 + $0xc0] sm:$0xff]
          %v5710 = vld [vmem:[%s526 + $0xc8] sm:$0xff]
          %v5711 = vld [vmem:[%s526 + $0xd0] sm:$0xff]
          %v5712 = vld [vmem:[%s526 + $0xd8] sm:$0xff]
          %v5713 = vld [vmem:[%s526 + $0xe0] sm:$0xff]
          %v5714 = vld [vmem:[%s526 + $0xe8] sm:$0xff]
          %v5715 = vld [vmem:[%s526 + $0xf0] sm:$0xff]
          %v5716 = vld [vmem:[%s526 + $0xf8] sm:$0xff]
          %v5717 = vadd.f32 %v5653, 1e-05
          %v5718 = vadd.f32 %v5654, 1e-05
          %v5719 = vadd.f32 %v5655, 1e-05
          %v5720 = vadd.f32 %v5656, 1e-05
          %v5721 = vadd.f32 %v5657, 1e-05
          %v5722 = vadd.f32 %v5658, 1e-05
          %v5723 = vadd.f32 %v5659, 1e-05
          %v5724 = vadd.f32 %v5660, 1e-05
          %v5725 = vadd.f32 %v5661, 1e-05
          %v5726 = vadd.f32 %v5662, 1e-05
          %v5727 = vadd.f32 %v5663, 1e-05
          %v5728 = vadd.f32 %v5664, 1e-05
          %v5729 = vadd.f32 %v5665, 1e-05
          %v5730 = vadd.f32 %v5666, 1e-05
          %v5731 = vadd.f32 %v5667, 1e-05
          %v5732 = vadd.f32 %v5668, 1e-05
          %v5733 = vadd.f32 %v5669, 1e-05
          %v5734 = vadd.f32 %v5670, 1e-05
          %v5735 = vadd.f32 %v5671, 1e-05
          %v5736 = vadd.f32 %v5672, 1e-05
          %v5737 = vadd.f32 %v5673, 1e-05
          %v5738 = vadd.f32 %v5674, 1e-05
          %v5739 = vadd.f32 %v5675, 1e-05
          %v5740 = vadd.f32 %v5676, 1e-05
          %v5741 = vadd.f32 %v5677, 1e-05
          %v5742 = vadd.f32 %v5678, 1e-05
          %v5743 = vadd.f32 %v5679, 1e-05
          %v5744 = vadd.f32 %v5680, 1e-05
          %v5745 = vadd.f32 %v5681, 1e-05
          %v5746 = vadd.f32 %v5682, 1e-05
          %v5747 = vadd.f32 %v5683, 1e-05
          %v5748 = vadd.f32 %v5684, 1e-05
          %v5749 = vrsqrt.pop %v5717
          %v5750 = vmul.f32 %v5749, %v5717
          %v5751 = vmul.f32 %v5750, %v5749
          %v5752 = vmul.f32 0.5, %v5751
          %v5753 = vsub.f32 1.5, %v5752
          %v5754 = vmul.f32 %v5749, %v5753
          %vm5755 = vweird.f32 %v5717
          %vm5756 = vweird.f32 %v5749
          %vm5757 = vmor %vm5755, %vm5756
          %v5758 = vsel %vm5757, %v5749, %v5754
          %v5759 = vrsqrt.pop %v5718
          %v5760 = vmul.f32 %v5759, %v5718
          %v5761 = vmul.f32 %v5760, %v5759
          %v5762 = vmul.f32 0.5, %v5761
          %v5763 = vsub.f32 1.5, %v5762
          %v5764 = vmul.f32 %v5759, %v5763
          %vm5765 = vweird.f32 %v5718
          %vm5766 = vweird.f32 %v5759
          %vm5767 = vmor %vm5765, %vm5766
          %v5768 = vsel %vm5767, %v5759, %v5764
          %v5769 = vrsqrt.pop %v5719
          %v5770 = vmul.f32 %v5769, %v5719
          %v5771 = vmul.f32 %v5770, %v5769
          %v5772 = vmul.f32 0.5, %v5771
          %v5773 = vsub.f32 1.5, %v5772
          %v5774 = vmul.f32 %v5769, %v5773
          %vm5775 = vweird.f32 %v5719
          %vm5776 = vweird.f32 %v5769
          %vm5777 = vmor %vm5775, %vm5776
          %v5778 = vsel %vm5777, %v5769, %v5774
          %v5779 = vrsqrt.pop %v5720
          %v5780 = vmul.f32 %v5779, %v5720
          %v5781 = vmul.f32 %v5780, %v5779
          %v5782 = vmul.f32 0.5, %v5781
          %v5783 = vsub.f32 1.5, %v5782
          %v5784 = vmul.f32 %v5779, %v5783
          %vm5785 = vweird.f32 %v5720
          %vm5786 = vweird.f32 %v5779
          %vm5787 = vmor %vm5785, %vm5786
          %v5788 = vsel %vm5787, %v5779, %v5784
          %v5789 = vrsqrt.pop %v5721
          %v5790 = vmul.f32 %v5789, %v5721
          %v5791 = vmul.f32 %v5790, %v5789
          %v5792 = vmul.f32 0.5, %v5791
          %v5793 = vsub.f32 1.5, %v5792
          %v5794 = vmul.f32 %v5789, %v5793
          %vm5795 = vweird.f32 %v5721
          %vm5796 = vweird.f32 %v5789
          %vm5797 = vmor %vm5795, %vm5796
          %v5798 = vsel %vm5797, %v5789, %v5794
          %v5799 = vrsqrt.pop %v5722
          %v5800 = vmul.f32 %v5799, %v5722
          %v5801 = vmul.f32 %v5800, %v5799
          %v5802 = vmul.f32 0.5, %v5801
          %v5803 = vsub.f32 1.5, %v5802
          %v5804 = vmul.f32 %v5799, %v5803
          %vm5805 = vweird.f32 %v5722
          %vm5806 = vweird.f32 %v5799
          %vm5807 = vmor %vm5805, %vm5806
          %v5808 = vsel %vm5807, %v5799, %v5804
          %v5809 = vrsqrt.pop %v5723
          %v5810 = vmul.f32 %v5809, %v5723
          %v5811 = vmul.f32 %v5810, %v5809
          %v5812 = vmul.f32 0.5, %v5811
          %v5813 = vsub.f32 1.5, %v5812
          %v5814 = vmul.f32 %v5809, %v5813
          %vm5815 = vweird.f32 %v5723
          %vm5816 = vweird.f32 %v5809
          %vm5817 = vmor %vm5815, %vm5816
          %v5818 = vsel %vm5817, %v5809, %v5814
          %v5819 = vrsqrt.pop %v5724
          %v5820 = vmul.f32 %v5819, %v5724
          %v5821 = vmul.f32 %v5820, %v5819
          %v5822 = vmul.f32 0.5, %v5821
          %v5823 = vsub.f32 1.5, %v5822
          %v5824 = vmul.f32 %v5819, %v5823
          %vm5825 = vweird.f32 %v5724
          %vm5826 = vweird.f32 %v5819
          %vm5827 = vmor %vm5825, %vm5826
          %v5828 = vsel %vm5827, %v5819, %v5824
          %v5829 = vrsqrt.pop %v5725
          %v5830 = vmul.f32 %v5829, %v5725
          %v5831 = vmul.f32 %v5830, %v5829
          %v5832 = vmul.f32 0.5, %v5831
          %v5833 = vsub.f32 1.5, %v5832
          %v5834 = vmul.f32 %v5829, %v5833
          %vm5835 = vweird.f32 %v5725
          %vm5836 = vweird.f32 %v5829
          %vm5837 = vmor %vm5835, %vm5836
          %v5838 = vsel %vm5837, %v5829, %v5834
          %v5839 = vrsqrt.pop %v5726
          %v5840 = vmul.f32 %v5839, %v5726
          %v5841 = vmul.f32 %v5840, %v5839
          %v5842 = vmul.f32 0.5, %v5841
          %v5843 = vsub.f32 1.5, %v5842
          %v5844 = vmul.f32 %v5839, %v5843
          %vm5845 = vweird.f32 %v5726
          %vm5846 = vweird.f32 %v5839
          %vm5847 = vmor %vm5845, %vm5846
          %v5848 = vsel %vm5847, %v5839, %v5844
          %v5849 = vrsqrt.pop %v5727
          %v5850 = vmul.f32 %v5849, %v5727
          %v5851 = vmul.f32 %v5850, %v5849
          %v5852 = vmul.f32 0.5, %v5851
          %v5853 = vsub.f32 1.5, %v5852
          %v5854 = vmul.f32 %v5849, %v5853
          %vm5855 = vweird.f32 %v5727
          %vm5856 = vweird.f32 %v5849
          %vm5857 = vmor %vm5855, %vm5856
          %v5858 = vsel %vm5857, %v5849, %v5854
          %v5859 = vrsqrt.pop %v5728
          %v5860 = vmul.f32 %v5859, %v5728
          %v5861 = vmul.f32 %v5860, %v5859
          %v5862 = vmul.f32 0.5, %v5861
          %v5863 = vsub.f32 1.5, %v5862
          %v5864 = vmul.f32 %v5859, %v5863
          %vm5865 = vweird.f32 %v5728
          %vm5866 = vweird.f32 %v5859
          %vm5867 = vmor %vm5865, %vm5866
          %v5868 = vsel %vm5867, %v5859, %v5864
          %v5869 = vrsqrt.pop %v5729
          %v5870 = vmul.f32 %v5869, %v5729
          %v5871 = vmul.f32 %v5870, %v5869
          %v5872 = vmul.f32 0.5, %v5871
          %v5873 = vsub.f32 1.5, %v5872
          %v5874 = vmul.f32 %v5869, %v5873
          %vm5875 = vweird.f32 %v5729
          %vm5876 = vweird.f32 %v5869
          %vm5877 = vmor %vm5875, %vm5876
          %v5878 = vsel %vm5877, %v5869, %v5874
          %v5879 = vrsqrt.pop %v5730
          %v5880 = vmul.f32 %v5879, %v5730
          %v5881 = vmul.f32 %v5880, %v5879
          %v5882 = vmul.f32 0.5, %v5881
          %v5883 = vsub.f32 1.5, %v5882
          %v5884 = vmul.f32 %v5879, %v5883
          %vm5885 = vweird.f32 %v5730
          %vm5886 = vweird.f32 %v5879
          %vm5887 = vmor %vm5885, %vm5886
          %v5888 = vsel %vm5887, %v5879, %v5884
          %v5889 = vrsqrt.pop %v5731
          %v5890 = vmul.f32 %v5889, %v5731
          %v5891 = vmul.f32 %v5890, %v5889
          %v5892 = vmul.f32 0.5, %v5891
          %v5893 = vsub.f32 1.5, %v5892
          %v5894 = vmul.f32 %v5889, %v5893
          %vm5895 = vweird.f32 %v5731
          %vm5896 = vweird.f32 %v5889
          %vm5897 = vmor %vm5895, %vm5896
          %v5898 = vsel %vm5897, %v5889, %v5894
          %v5899 = vrsqrt.pop %v5732
          %v5900 = vmul.f32 %v5899, %v5732
          %v5901 = vmul.f32 %v5900, %v5899
          %v5902 = vmul.f32 0.5, %v5901
          %v5903 = vsub.f32 1.5, %v5902
          %v5904 = vmul.f32 %v5899, %v5903
          %vm5905 = vweird.f32 %v5732
          %vm5906 = vweird.f32 %v5899
          %vm5907 = vmor %vm5905, %vm5906
          %v5908 = vsel %vm5907, %v5899, %v5904
          %v5909 = vrsqrt.pop %v5733
          %v5910 = vmul.f32 %v5909, %v5733
          %v5911 = vmul.f32 %v5910, %v5909
          %v5912 = vmul.f32 0.5, %v5911
          %v5913 = vsub.f32 1.5, %v5912
          %v5914 = vmul.f32 %v5909, %v5913
          %vm5915 = vweird.f32 %v5733
          %vm5916 = vweird.f32 %v5909
          %vm5917 = vmor %vm5915, %vm5916
          %v5918 = vsel %vm5917, %v5909, %v5914
          %v5919 = vrsqrt.pop %v5734
          %v5920 = vmul.f32 %v5919, %v5734
          %v5921 = vmul.f32 %v5920, %v5919
          %v5922 = vmul.f32 0.5, %v5921
          %v5923 = vsub.f32 1.5, %v5922
          %v5924 = vmul.f32 %v5919, %v5923
          %vm5925 = vweird.f32 %v5734
          %vm5926 = vweird.f32 %v5919
          %vm5927 = vmor %vm5925, %vm5926
          %v5928 = vsel %vm5927, %v5919, %v5924
          %v5929 = vrsqrt.pop %v5735
          %v5930 = vmul.f32 %v5929, %v5735
          %v5931 = vmul.f32 %v5930, %v5929
          %v5932 = vmul.f32 0.5, %v5931
          %v5933 = vsub.f32 1.5, %v5932
          %v5934 = vmul.f32 %v5929, %v5933
          %vm5935 = vweird.f32 %v5735
          %vm5936 = vweird.f32 %v5929
          %vm5937 = vmor %vm5935, %vm5936
          %v5938 = vsel %vm5937, %v5929, %v5934
          %v5939 = vrsqrt.pop %v5736
          %v5940 = vmul.f32 %v5939, %v5736
          %v5941 = vmul.f32 %v5940, %v5939
          %v5942 = vmul.f32 0.5, %v5941
          %v5943 = vsub.f32 1.5, %v5942
          %v5944 = vmul.f32 %v5939, %v5943
          %vm5945 = vweird.f32 %v5736
          %vm5946 = vweird.f32 %v5939
          %vm5947 = vmor %vm5945, %vm5946
          %v5948 = vsel %vm5947, %v5939, %v5944
          %v5949 = vrsqrt.pop %v5737
          %v5950 = vmul.f32 %v5949, %v5737
          %v5951 = vmul.f32 %v5950, %v5949
          %v5952 = vmul.f32 0.5, %v5951
          %v5953 = vsub.f32 1.5, %v5952
          %v5954 = vmul.f32 %v5949, %v5953
          %vm5955 = vweird.f32 %v5737
          %vm5956 = vweird.f32 %v5949
          %vm5957 = vmor %vm5955, %vm5956
          %v5958 = vsel %vm5957, %v5949, %v5954
          %v5959 = vrsqrt.pop %v5738
          %v5960 = vmul.f32 %v5959, %v5738
          %v5961 = vmul.f32 %v5960, %v5959
          %v5962 = vmul.f32 0.5, %v5961
          %v5963 = vsub.f32 1.5, %v5962
          %v5964 = vmul.f32 %v5959, %v5963
          %vm5965 = vweird.f32 %v5738
          %vm5966 = vweird.f32 %v5959
          %vm5967 = vmor %vm5965, %vm5966
          %v5968 = vsel %vm5967, %v5959, %v5964
          %v5969 = vrsqrt.pop %v5739
          %v5970 = vmul.f32 %v5969, %v5739
          %v5971 = vmul.f32 %v5970, %v5969
          %v5972 = vmul.f32 0.5, %v5971
          %v5973 = vsub.f32 1.5, %v5972
          %v5974 = vmul.f32 %v5969, %v5973
          %vm5975 = vweird.f32 %v5739
          %vm5976 = vweird.f32 %v5969
          %vm5977 = vmor %vm5975, %vm5976
          %v5978 = vsel %vm5977, %v5969, %v5974
          %v5979 = vrsqrt.pop %v5740
          %v5980 = vmul.f32 %v5979, %v5740
          %v5981 = vmul.f32 %v5980, %v5979
          %v5982 = vmul.f32 0.5, %v5981
          %v5983 = vsub.f32 1.5, %v5982
          %v5984 = vmul.f32 %v5979, %v5983
          %vm5985 = vweird.f32 %v5740
          %vm5986 = vweird.f32 %v5979
          %vm5987 = vmor %vm5985, %vm5986
          %v5988 = vsel %vm5987, %v5979, %v5984
          %v5989 = vrsqrt.pop %v5741
          %v5990 = vmul.f32 %v5989, %v5741
          %v5991 = vmul.f32 %v5990, %v5989
          %v5992 = vmul.f32 0.5, %v5991
          %v5993 = vsub.f32 1.5, %v5992
          %v5994 = vmul.f32 %v5989, %v5993
          %vm5995 = vweird.f32 %v5741
          %vm5996 = vweird.f32 %v5989
          %vm5997 = vmor %vm5995, %vm5996
          %v5998 = vsel %vm5997, %v5989, %v5994
          %v5999 = vrsqrt.pop %v5742
          %v6000 = vmul.f32 %v5999, %v5742
          %v6001 = vmul.f32 %v6000, %v5999
          %v6002 = vmul.f32 0.5, %v6001
          %v6003 = vsub.f32 1.5, %v6002
          %v6004 = vmul.f32 %v5999, %v6003
          %vm6005 = vweird.f32 %v5742
          %vm6006 = vweird.f32 %v5999
          %vm6007 = vmor %vm6005, %vm6006
          %v6008 = vsel %vm6007, %v5999, %v6004
          %v6009 = vrsqrt.pop %v5743
          %v6010 = vmul.f32 %v6009, %v5743
          %v6011 = vmul.f32 %v6010, %v6009
          %v6012 = vmul.f32 0.5, %v6011
          %v6013 = vsub.f32 1.5, %v6012
          %v6014 = vmul.f32 %v6009, %v6013
          %vm6015 = vweird.f32 %v5743
          %vm6016 = vweird.f32 %v6009
          %vm6017 = vmor %vm6015, %vm6016
          %v6018 = vsel %vm6017, %v6009, %v6014
          %v6019 = vrsqrt.pop %v5744
          %v6020 = vmul.f32 %v6019, %v5744
          %v6021 = vmul.f32 %v6020, %v6019
          %v6022 = vmul.f32 0.5, %v6021
          %v6023 = vsub.f32 1.5, %v6022
          %v6024 = vmul.f32 %v6019, %v6023
          %vm6025 = vweird.f32 %v5744
          %vm6026 = vweird.f32 %v6019
          %vm6027 = vmor %vm6025, %vm6026
          %v6028 = vsel %vm6027, %v6019, %v6024
          %v6029 = vrsqrt.pop %v5745
          %v6030 = vmul.f32 %v6029, %v5745
          %v6031 = vmul.f32 %v6030, %v6029
          %v6032 = vmul.f32 0.5, %v6031
          %v6033 = vsub.f32 1.5, %v6032
          %v6034 = vmul.f32 %v6029, %v6033
          %vm6035 = vweird.f32 %v5745
          %vm6036 = vweird.f32 %v6029
          %vm6037 = vmor %vm6035, %vm6036
          %v6038 = vsel %vm6037, %v6029, %v6034
          %v6039 = vrsqrt.pop %v5746
          %v6040 = vmul.f32 %v6039, %v5746
          %v6041 = vmul.f32 %v6040, %v6039
          %v6042 = vmul.f32 0.5, %v6041
          %v6043 = vsub.f32 1.5, %v6042
          %v6044 = vmul.f32 %v6039, %v6043
          %vm6045 = vweird.f32 %v5746
          %vm6046 = vweird.f32 %v6039
          %vm6047 = vmor %vm6045, %vm6046
          %v6048 = vsel %vm6047, %v6039, %v6044
          %v6049 = vrsqrt.pop %v5747
          %v6050 = vmul.f32 %v6049, %v5747
          %v6051 = vmul.f32 %v6050, %v6049
          %v6052 = vmul.f32 0.5, %v6051
          %v6053 = vsub.f32 1.5, %v6052
          %v6054 = vmul.f32 %v6049, %v6053
          %vm6055 = vweird.f32 %v5747
          %vm6056 = vweird.f32 %v6049
          %vm6057 = vmor %vm6055, %vm6056
          %v6058 = vsel %vm6057, %v6049, %v6054
          %v6059 = vrsqrt.pop %v5748
          %v6060 = vmul.f32 %v6059, %v5748
          %v6061 = vmul.f32 %v6060, %v6059
          %v6062 = vmul.f32 0.5, %v6061
          %v6063 = vsub.f32 1.5, %v6062
          %v6064 = vmul.f32 %v6059, %v6063
          %vm6065 = vweird.f32 %v5748
          %vm6066 = vweird.f32 %v6059
          %vm6067 = vmor %vm6065, %vm6066
          %v6068 = vsel %vm6067, %v6059, %v6064
          %v6069 = vmul.f32 %v5685, %v5758
          %v6070 = vmul.f32 %v5686, %v5768
          %v6071 = vmul.f32 %v5687, %v5778
          %v6072 = vmul.f32 %v5688, %v5788
          %v6073 = vmul.f32 %v5689, %v5798
          %v6074 = vmul.f32 %v5690, %v5808
          %v6075 = vmul.f32 %v5691, %v5818
          %v6076 = vmul.f32 %v5692, %v5828
          %v6077 = vmul.f32 %v5693, %v5838
          %v6078 = vmul.f32 %v5694, %v5848
          %v6079 = vmul.f32 %v5695, %v5858
          %v6080 = vmul.f32 %v5696, %v5868
          %v6081 = vmul.f32 %v5697, %v5878
          %v6082 = vmul.f32 %v5698, %v5888
          %v6083 = vmul.f32 %v5699, %v5898
          %v6084 = vmul.f32 %v5700, %v5908
          %v6085 = vmul.f32 %v5701, %v5918
          %v6086 = vmul.f32 %v5702, %v5928
          %v6087 = vmul.f32 %v5703, %v5938
          %v6088 = vmul.f32 %v5704, %v5948
          %v6089 = vmul.f32 %v5705, %v5958
          %v6090 = vmul.f32 %v5706, %v5968
          %v6091 = vmul.f32 %v5707, %v5978
          %v6092 = vmul.f32 %v5708, %v5988
          %v6093 = vmul.f32 %v5709, %v5998
          %v6094 = vmul.f32 %v5710, %v6008
          %v6095 = vmul.f32 %v5711, %v6018
          %v6096 = vmul.f32 %v5712, %v6028
          %v6097 = vmul.f32 %v5713, %v6038
          %v6098 = vmul.f32 %v5714, %v6048
          %v6099 = vmul.f32 %v5715, %v6058
          %v6100 = vmul.f32 %v5716, %v6068
          %6102 = vset.pattern.permute.xlu0 0
          %6103 = vperm.xlu0 %6102, %v6069
          %v6104 = vpop.permute.xlu0 %6103
          %6107 = vset.pattern.permute.xlu0 0
          %6108 = vperm.xlu0 %6107, %v6070
          %v6109 = vpop.permute.xlu0 %6108
          %6112 = vset.pattern.permute.xlu0 0
          %6113 = vperm.xlu0 %6112, %v6071
          %v6114 = vpop.permute.xlu0 %6113
          %6117 = vset.pattern.permute.xlu0 0
          %6118 = vperm.xlu0 %6117, %v6072
          %v6119 = vpop.permute.xlu0 %6118
          %6122 = vset.pattern.permute.xlu0 0
          %6123 = vperm.xlu0 %6122, %v6073
          %v6124 = vpop.permute.xlu0 %6123
          %6127 = vset.pattern.permute.xlu0 0
          %6128 = vperm.xlu0 %6127, %v6074
          %v6129 = vpop.permute.xlu0 %6128
          %6132 = vset.pattern.permute.xlu0 0
          %6133 = vperm.xlu0 %6132, %v6075
          %v6134 = vpop.permute.xlu0 %6133
          %6137 = vset.pattern.permute.xlu0 0
          %6138 = vperm.xlu0 %6137, %v6076
          %v6139 = vpop.permute.xlu0 %6138
          %6142 = vset.pattern.permute.xlu0 0
          %6143 = vperm.xlu0 %6142, %v6077
          %v6144 = vpop.permute.xlu0 %6143
          %6147 = vset.pattern.permute.xlu0 0
          %6148 = vperm.xlu0 %6147, %v6078
          %v6149 = vpop.permute.xlu0 %6148
          %6152 = vset.pattern.permute.xlu0 0
          %6153 = vperm.xlu0 %6152, %v6079
          %v6154 = vpop.permute.xlu0 %6153
          %6157 = vset.pattern.permute.xlu0 0
          %6158 = vperm.xlu0 %6157, %v6080
          %v6159 = vpop.permute.xlu0 %6158
          %6162 = vset.pattern.permute.xlu0 0
          %6163 = vperm.xlu0 %6162, %v6081
          %v6164 = vpop.permute.xlu0 %6163
          %6167 = vset.pattern.permute.xlu0 0
          %6168 = vperm.xlu0 %6167, %v6082
          %v6169 = vpop.permute.xlu0 %6168
          %6172 = vset.pattern.permute.xlu0 0
          %6173 = vperm.xlu0 %6172, %v6083
          %v6174 = vpop.permute.xlu0 %6173
          %6177 = vset.pattern.permute.xlu0 0
          %6178 = vperm.xlu0 %6177, %v6084
          %v6179 = vpop.permute.xlu0 %6178
          %6182 = vset.pattern.permute.xlu0 0
          %6183 = vperm.xlu0 %6182, %v6085
          %v6184 = vpop.permute.xlu0 %6183
          %6187 = vset.pattern.permute.xlu0 0
          %6188 = vperm.xlu0 %6187, %v6086
          %v6189 = vpop.permute.xlu0 %6188
          %6192 = vset.pattern.permute.xlu0 0
          %6193 = vperm.xlu0 %6192, %v6087
          %v6194 = vpop.permute.xlu0 %6193
          %6197 = vset.pattern.permute.xlu0 0
          %6198 = vperm.xlu0 %6197, %v6088
          %v6199 = vpop.permute.xlu0 %6198
          %6202 = vset.pattern.permute.xlu0 0
          %6203 = vperm.xlu0 %6202, %v6089
          %v6204 = vpop.permute.xlu0 %6203
          %6207 = vset.pattern.permute.xlu0 0
          %6208 = vperm.xlu0 %6207, %v6090
          %v6209 = vpop.permute.xlu0 %6208
          %6212 = vset.pattern.permute.xlu0 0
          %6213 = vperm.xlu0 %6212, %v6091
          %v6214 = vpop.permute.xlu0 %6213
          %6217 = vset.pattern.permute.xlu0 0
          %6218 = vperm.xlu0 %6217, %v6092
          %v6219 = vpop.permute.xlu0 %6218
          %6222 = vset.pattern.permute.xlu0 0
          %6223 = vperm.xlu0 %6222, %v6093
          %v6224 = vpop.permute.xlu0 %6223
          %6227 = vset.pattern.permute.xlu0 0
          %6228 = vperm.xlu0 %6227, %v6094
          %v6229 = vpop.permute.xlu0 %6228
          %6232 = vset.pattern.permute.xlu0 0
          %6233 = vperm.xlu0 %6232, %v6095
          %v6234 = vpop.permute.xlu0 %6233
          %6237 = vset.pattern.permute.xlu0 0
          %6238 = vperm.xlu0 %6237, %v6096
          %v6239 = vpop.permute.xlu0 %6238
          %6242 = vset.pattern.permute.xlu0 0
          %6243 = vperm.xlu0 %6242, %v6097
          %v6244 = vpop.permute.xlu0 %6243
          %6247 = vset.pattern.permute.xlu0 0
          %6248 = vperm.xlu0 %6247, %v6098
          %v6249 = vpop.permute.xlu0 %6248
          %6252 = vset.pattern.permute.xlu0 0
          %6253 = vperm.xlu0 %6252, %v6099
          %v6254 = vpop.permute.xlu0 %6253
          %6257 = vset.pattern.permute.xlu0 0
          %6258 = vperm.xlu0 %6257, %v6100
          %v6259 = vpop.permute.xlu0 %6258
          %v6261 = vmul.f32 %v5397, %v6104
          %v6262 = vmul.f32 %v5398, %v6104
          %v6263 = vmul.f32 %v5399, %v6109
          %v6264 = vmul.f32 %v5400, %v6109
          %v6265 = vmul.f32 %v5401, %v6114
          %v6266 = vmul.f32 %v5402, %v6114
          %v6267 = vmul.f32 %v5403, %v6119
          %v6268 = vmul.f32 %v5404, %v6119
          %v6269 = vmul.f32 %v5405, %v6124
          %v6270 = vmul.f32 %v5406, %v6124
          %v6271 = vmul.f32 %v5407, %v6129
          %v6272 = vmul.f32 %v5408, %v6129
          %v6273 = vmul.f32 %v5409, %v6134
          %v6274 = vmul.f32 %v5410, %v6134
          %v6275 = vmul.f32 %v5411, %v6139
          %v6276 = vmul.f32 %v5412, %v6139
          %v6277 = vmul.f32 %v5413, %v6144
          %v6278 = vmul.f32 %v5414, %v6144
          %v6279 = vmul.f32 %v5415, %v6149
          %v6280 = vmul.f32 %v5416, %v6149
          %v6281 = vmul.f32 %v5417, %v6154
          %v6282 = vmul.f32 %v5418, %v6154
          %v6283 = vmul.f32 %v5419, %v6159
          %v6284 = vmul.f32 %v5420, %v6159
          %v6285 = vmul.f32 %v5421, %v6164
          %v6286 = vmul.f32 %v5422, %v6164
          %v6287 = vmul.f32 %v5423, %v6169
          %v6288 = vmul.f32 %v5424, %v6169
          %v6289 = vmul.f32 %v5425, %v6174
          %v6290 = vmul.f32 %v5426, %v6174
          %v6291 = vmul.f32 %v5427, %v6179
          %v6292 = vmul.f32 %v5428, %v6179
          %v6293 = vmul.f32 %v5429, %v6184
          %v6294 = vmul.f32 %v5430, %v6184
          %v6295 = vmul.f32 %v5431, %v6189
          %v6296 = vmul.f32 %v5432, %v6189
          %v6297 = vmul.f32 %v5433, %v6194
          %v6298 = vmul.f32 %v5434, %v6194
          %v6299 = vmul.f32 %v5435, %v6199
          %v6300 = vmul.f32 %v5436, %v6199
          %v6301 = vmul.f32 %v5437, %v6204
          %v6302 = vmul.f32 %v5438, %v6204
          %v6303 = vmul.f32 %v5439, %v6209
          %v6304 = vmul.f32 %v5440, %v6209
          %v6305 = vmul.f32 %v5441, %v6214
          %v6306 = vmul.f32 %v5442, %v6214
          %v6307 = vmul.f32 %v5443, %v6219
          %v6308 = vmul.f32 %v5444, %v6219
          %v6309 = vmul.f32 %v5445, %v6224
          %v6310 = vmul.f32 %v5446, %v6224
          %v6311 = vmul.f32 %v5447, %v6229
          %v6312 = vmul.f32 %v5448, %v6229
          %v6313 = vmul.f32 %v5449, %v6234
          %v6314 = vmul.f32 %v5450, %v6234
          %v6315 = vmul.f32 %v5451, %v6239
          %v6316 = vmul.f32 %v5452, %v6239
          %v6317 = vmul.f32 %v5453, %v6244
          %v6318 = vmul.f32 %v5454, %v6244
          %v6319 = vmul.f32 %v5455, %v6249
          %v6320 = vmul.f32 %v5456, %v6249
          %v6321 = vmul.f32 %v5457, %v6254
          %v6322 = vmul.f32 %v5458, %v6254
          %v6323 = vmul.f32 %v5459, %v6259
          %v6324 = vmul.f32 %v5460, %v6259
          %v6325 = vld [vmem:[%s532] sm:$0xff]
          %v6326 = vld [vmem:[%s532 + $0x8] sm:$0xff]
          %v6327 = vld [vmem:[%s532 + $0x10] sm:$0xff]
          %v6328 = vld [vmem:[%s532 + $0x18] sm:$0xff]
          %v6329 = vld [vmem:[%s532 + $0x20] sm:$0xff]
          %v6330 = vld [vmem:[%s532 + $0x28] sm:$0xff]
          %v6331 = vld [vmem:[%s532 + $0x30] sm:$0xff]
          %v6332 = vld [vmem:[%s532 + $0x38] sm:$0xff]
          %v6333 = vld [vmem:[%s532 + $0x40] sm:$0xff]
          %v6334 = vld [vmem:[%s532 + $0x48] sm:$0xff]
          %v6335 = vld [vmem:[%s532 + $0x50] sm:$0xff]
          %v6336 = vld [vmem:[%s532 + $0x58] sm:$0xff]
          %v6337 = vld [vmem:[%s532 + $0x60] sm:$0xff]
          %v6338 = vld [vmem:[%s532 + $0x68] sm:$0xff]
          %v6339 = vld [vmem:[%s532 + $0x70] sm:$0xff]
          %v6340 = vld [vmem:[%s532 + $0x78] sm:$0xff]
          %v6341 = vld [vmem:[%s532 + $0x80] sm:$0xff]
          %v6342 = vld [vmem:[%s532 + $0x88] sm:$0xff]
          %v6343 = vld [vmem:[%s532 + $0x90] sm:$0xff]
          %v6344 = vld [vmem:[%s532 + $0x98] sm:$0xff]
          %v6345 = vld [vmem:[%s532 + $0xa0] sm:$0xff]
          %v6346 = vld [vmem:[%s532 + $0xa8] sm:$0xff]
          %v6347 = vld [vmem:[%s532 + $0xb0] sm:$0xff]
          %v6348 = vld [vmem:[%s532 + $0xb8] sm:$0xff]
          %v6349 = vld [vmem:[%s532 + $0xc0] sm:$0xff]
          %v6350 = vld [vmem:[%s532 + $0xc8] sm:$0xff]
          %v6351 = vld [vmem:[%s532 + $0xd0] sm:$0xff]
          %v6352 = vld [vmem:[%s532 + $0xd8] sm:$0xff]
          %v6353 = vld [vmem:[%s532 + $0xe0] sm:$0xff]
          %v6354 = vld [vmem:[%s532 + $0xe8] sm:$0xff]
          %v6355 = vld [vmem:[%s532 + $0xf0] sm:$0xff]
          %v6356 = vld [vmem:[%s532 + $0xf8] sm:$0xff]
          %6358 = vset.pattern.permute.xlu0 0
          %6359 = vperm.xlu0 %6358, %v6325
          %v6360 = vpop.permute.xlu0 %6359
          %6363 = vset.pattern.permute.xlu0 0
          %6364 = vperm.xlu0 %6363, %v6326
          %v6365 = vpop.permute.xlu0 %6364
          %6368 = vset.pattern.permute.xlu0 0
          %6369 = vperm.xlu0 %6368, %v6327
          %v6370 = vpop.permute.xlu0 %6369
          %6373 = vset.pattern.permute.xlu0 0
          %6374 = vperm.xlu0 %6373, %v6328
          %v6375 = vpop.permute.xlu0 %6374
          %6378 = vset.pattern.permute.xlu0 0
          %6379 = vperm.xlu0 %6378, %v6329
          %v6380 = vpop.permute.xlu0 %6379
          %6383 = vset.pattern.permute.xlu0 0
          %6384 = vperm.xlu0 %6383, %v6330
          %v6385 = vpop.permute.xlu0 %6384
          %6388 = vset.pattern.permute.xlu0 0
          %6389 = vperm.xlu0 %6388, %v6331
          %v6390 = vpop.permute.xlu0 %6389
          %6393 = vset.pattern.permute.xlu0 0
          %6394 = vperm.xlu0 %6393, %v6332
          %v6395 = vpop.permute.xlu0 %6394
          %6398 = vset.pattern.permute.xlu0 0
          %6399 = vperm.xlu0 %6398, %v6333
          %v6400 = vpop.permute.xlu0 %6399
          %6403 = vset.pattern.permute.xlu0 0
          %6404 = vperm.xlu0 %6403, %v6334
          %v6405 = vpop.permute.xlu0 %6404
          %6408 = vset.pattern.permute.xlu0 0
          %6409 = vperm.xlu0 %6408, %v6335
          %v6410 = vpop.permute.xlu0 %6409
          %6413 = vset.pattern.permute.xlu0 0
          %6414 = vperm.xlu0 %6413, %v6336
          %v6415 = vpop.permute.xlu0 %6414
          %6418 = vset.pattern.permute.xlu0 0
          %6419 = vperm.xlu0 %6418, %v6337
          %v6420 = vpop.permute.xlu0 %6419
          %6423 = vset.pattern.permute.xlu0 0
          %6424 = vperm.xlu0 %6423, %v6338
          %v6425 = vpop.permute.xlu0 %6424
          %6428 = vset.pattern.permute.xlu0 0
          %6429 = vperm.xlu0 %6428, %v6339
          %v6430 = vpop.permute.xlu0 %6429
          %6433 = vset.pattern.permute.xlu0 0
          %6434 = vperm.xlu0 %6433, %v6340
          %v6435 = vpop.permute.xlu0 %6434
          %6438 = vset.pattern.permute.xlu0 0
          %6439 = vperm.xlu0 %6438, %v6341
          %v6440 = vpop.permute.xlu0 %6439
          %6443 = vset.pattern.permute.xlu0 0
          %6444 = vperm.xlu0 %6443, %v6342
          %v6445 = vpop.permute.xlu0 %6444
          %6448 = vset.pattern.permute.xlu0 0
          %6449 = vperm.xlu0 %6448, %v6343
          %v6450 = vpop.permute.xlu0 %6449
          %6453 = vset.pattern.permute.xlu0 0
          %6454 = vperm.xlu0 %6453, %v6344
          %v6455 = vpop.permute.xlu0 %6454
          %6458 = vset.pattern.permute.xlu0 0
          %6459 = vperm.xlu0 %6458, %v6345
          %v6460 = vpop.permute.xlu0 %6459
          %6463 = vset.pattern.permute.xlu0 0
          %6464 = vperm.xlu0 %6463, %v6346
          %v6465 = vpop.permute.xlu0 %6464
          %6468 = vset.pattern.permute.xlu0 0
          %6469 = vperm.xlu0 %6468, %v6347
          %v6470 = vpop.permute.xlu0 %6469
          %6473 = vset.pattern.permute.xlu0 0
          %6474 = vperm.xlu0 %6473, %v6348
          %v6475 = vpop.permute.xlu0 %6474
          %6478 = vset.pattern.permute.xlu0 0
          %6479 = vperm.xlu0 %6478, %v6349
          %v6480 = vpop.permute.xlu0 %6479
          %6483 = vset.pattern.permute.xlu0 0
          %6484 = vperm.xlu0 %6483, %v6350
          %v6485 = vpop.permute.xlu0 %6484
          %6488 = vset.pattern.permute.xlu0 0
          %6489 = vperm.xlu0 %6488, %v6351
          %v6490 = vpop.permute.xlu0 %6489
          %6493 = vset.pattern.permute.xlu0 0
          %6494 = vperm.xlu0 %6493, %v6352
          %v6495 = vpop.permute.xlu0 %6494
          %6498 = vset.pattern.permute.xlu0 0
          %6499 = vperm.xlu0 %6498, %v6353
          %v6500 = vpop.permute.xlu0 %6499
          %6503 = vset.pattern.permute.xlu0 0
          %6504 = vperm.xlu0 %6503, %v6354
          %v6505 = vpop.permute.xlu0 %6504
          %6508 = vset.pattern.permute.xlu0 0
          %6509 = vperm.xlu0 %6508, %v6355
          %v6510 = vpop.permute.xlu0 %6509
          %6513 = vset.pattern.permute.xlu0 0
          %6514 = vperm.xlu0 %6513, %v6356
          %v6515 = vpop.permute.xlu0 %6514
          %v6517 = vadd.f32 %v6261, %v6360
          %v6518 = vadd.f32 %v6262, %v6360
          %v6519 = vadd.f32 %v6263, %v6365
          %v6520 = vadd.f32 %v6264, %v6365
          %v6521 = vadd.f32 %v6265, %v6370
          %v6522 = vadd.f32 %v6266, %v6370
          %v6523 = vadd.f32 %v6267, %v6375
          %v6524 = vadd.f32 %v6268, %v6375
          %v6525 = vadd.f32 %v6269, %v6380
          %v6526 = vadd.f32 %v6270, %v6380
          %v6527 = vadd.f32 %v6271, %v6385
          %v6528 = vadd.f32 %v6272, %v6385
          %v6529 = vadd.f32 %v6273, %v6390
          %v6530 = vadd.f32 %v6274, %v6390
          %v6531 = vadd.f32 %v6275, %v6395
          %v6532 = vadd.f32 %v6276, %v6395
          %v6533 = vadd.f32 %v6277, %v6400
          %v6534 = vadd.f32 %v6278, %v6400
          %v6535 = vadd.f32 %v6279, %v6405
          %v6536 = vadd.f32 %v6280, %v6405
          %v6537 = vadd.f32 %v6281, %v6410
          %v6538 = vadd.f32 %v6282, %v6410
          %v6539 = vadd.f32 %v6283, %v6415
          %v6540 = vadd.f32 %v6284, %v6415
          %v6541 = vadd.f32 %v6285, %v6420
          %v6542 = vadd.f32 %v6286, %v6420
          %v6543 = vadd.f32 %v6287, %v6425
          %v6544 = vadd.f32 %v6288, %v6425
          %v6545 = vadd.f32 %v6289, %v6430
          %v6546 = vadd.f32 %v6290, %v6430
          %v6547 = vadd.f32 %v6291, %v6435
          %v6548 = vadd.f32 %v6292, %v6435
          %v6549 = vadd.f32 %v6293, %v6440
          %v6550 = vadd.f32 %v6294, %v6440
          %v6551 = vadd.f32 %v6295, %v6445
          %v6552 = vadd.f32 %v6296, %v6445
          %v6553 = vadd.f32 %v6297, %v6450
          %v6554 = vadd.f32 %v6298, %v6450
          %v6555 = vadd.f32 %v6299, %v6455
          %v6556 = vadd.f32 %v6300, %v6455
          %v6557 = vadd.f32 %v6301, %v6460
          %v6558 = vadd.f32 %v6302, %v6460
          %v6559 = vadd.f32 %v6303, %v6465
          %v6560 = vadd.f32 %v6304, %v6465
          %v6561 = vadd.f32 %v6305, %v6470
          %v6562 = vadd.f32 %v6306, %v6470
          %v6563 = vadd.f32 %v6307, %v6475
          %v6564 = vadd.f32 %v6308, %v6475
          %v6565 = vadd.f32 %v6309, %v6480
          %v6566 = vadd.f32 %v6310, %v6480
          %v6567 = vadd.f32 %v6311, %v6485
          %v6568 = vadd.f32 %v6312, %v6485
          %v6569 = vadd.f32 %v6313, %v6490
          %v6570 = vadd.f32 %v6314, %v6490
          %v6571 = vadd.f32 %v6315, %v6495
          %v6572 = vadd.f32 %v6316, %v6495
          %v6573 = vadd.f32 %v6317, %v6500
          %v6574 = vadd.f32 %v6318, %v6500
          %v6575 = vadd.f32 %v6319, %v6505
          %v6576 = vadd.f32 %v6320, %v6505
          %v6577 = vadd.f32 %v6321, %v6510
          %v6578 = vadd.f32 %v6322, %v6510
          %v6579 = vadd.f32 %v6323, %v6515
          %v6580 = vadd.f32 %v6324, %v6515
          %6581 = vst [vmem:[%s539] sm:$0xff] %v6517
          %6582 = vst.msk [vmem:[%s539 + $0x8] sm:$0xff] %vm800, %v6518
          %6583 = vst [vmem:[%s539 + $0x10] sm:$0xff] %v6519
          %6584 = vst.msk [vmem:[%s539 + $0x18] sm:$0xff] %vm800, %v6520
          %6585 = vst [vmem:[%s539 + $0x20] sm:$0xff] %v6521
          %6586 = vst.msk [vmem:[%s539 + $0x28] sm:$0xff] %vm800, %v6522
          %6587 = vst [vmem:[%s539 + $0x30] sm:$0xff] %v6523
          %6588 = vst.msk [vmem:[%s539 + $0x38] sm:$0xff] %vm800, %v6524
          %6589 = vst [vmem:[%s539 + $0x40] sm:$0xff] %v6525
          %6590 = vst.msk [vmem:[%s539 + $0x48] sm:$0xff] %vm800, %v6526
          %6591 = vst [vmem:[%s539 + $0x50] sm:$0xff] %v6527
          %6592 = vst.msk [vmem:[%s539 + $0x58] sm:$0xff] %vm800, %v6528
          %6593 = vst [vmem:[%s539 + $0x60] sm:$0xff] %v6529
          %6594 = vst.msk [vmem:[%s539 + $0x68] sm:$0xff] %vm800, %v6530
          %6595 = vst [vmem:[%s539 + $0x70] sm:$0xff] %v6531
          %6596 = vst.msk [vmem:[%s539 + $0x78] sm:$0xff] %vm800, %v6532
          %6597 = vst [vmem:[%s539 + $0x80] sm:$0xff] %v6533
          %6598 = vst.msk [vmem:[%s539 + $0x88] sm:$0xff] %vm800, %v6534
          %6599 = vst [vmem:[%s539 + $0x90] sm:$0xff] %v6535
          %6600 = vst.msk [vmem:[%s539 + $0x98] sm:$0xff] %vm800, %v6536
          %6601 = vst [vmem:[%s539 + $0xa0] sm:$0xff] %v6537
          %6602 = vst.msk [vmem:[%s539 + $0xa8] sm:$0xff] %vm800, %v6538
          %6603 = vst [vmem:[%s539 + $0xb0] sm:$0xff] %v6539
          %6604 = vst.msk [vmem:[%s539 + $0xb8] sm:$0xff] %vm800, %v6540
          %6605 = vst [vmem:[%s539 + $0xc0] sm:$0xff] %v6541
          %6606 = vst.msk [vmem:[%s539 + $0xc8] sm:$0xff] %vm800, %v6542
          %6607 = vst [vmem:[%s539 + $0xd0] sm:$0xff] %v6543
          %6608 = vst.msk [vmem:[%s539 + $0xd8] sm:$0xff] %vm800, %v6544
          %6609 = vst [vmem:[%s539 + $0xe0] sm:$0xff] %v6545
          %6610 = vst.msk [vmem:[%s539 + $0xe8] sm:$0xff] %vm800, %v6546
          %6611 = vst [vmem:[%s539 + $0xf0] sm:$0xff] %v6547
          %6612 = vst.msk [vmem:[%s539 + $0xf8] sm:$0xff] %vm800, %v6548
          %6613 = vst [vmem:[%s539 + $0x100] sm:$0xff] %v6549
          %6614 = vst.msk [vmem:[%s539 + $0x108] sm:$0xff] %vm800, %v6550
          %6615 = vst [vmem:[%s539 + $0x110] sm:$0xff] %v6551
          %6616 = vst.msk [vmem:[%s539 + $0x118] sm:$0xff] %vm800, %v6552
          %6617 = vst [vmem:[%s539 + $0x120] sm:$0xff] %v6553
          %6618 = vst.msk [vmem:[%s539 + $0x128] sm:$0xff] %vm800, %v6554
          %6619 = vst [vmem:[%s539 + $0x130] sm:$0xff] %v6555
          %6620 = vst.msk [vmem:[%s539 + $0x138] sm:$0xff] %vm800, %v6556
          %6621 = vst [vmem:[%s539 + $0x140] sm:$0xff] %v6557
          %6622 = vst.msk [vmem:[%s539 + $0x148] sm:$0xff] %vm800, %v6558
          %6623 = vst [vmem:[%s539 + $0x150] sm:$0xff] %v6559
          %6624 = vst.msk [vmem:[%s539 + $0x158] sm:$0xff] %vm800, %v6560
          %6625 = vst [vmem:[%s539 + $0x160] sm:$0xff] %v6561
          %6626 = vst.msk [vmem:[%s539 + $0x168] sm:$0xff] %vm800, %v6562
          %6627 = vst [vmem:[%s539 + $0x170] sm:$0xff] %v6563
          %6628 = vst.msk [vmem:[%s539 + $0x178] sm:$0xff] %vm800, %v6564
          %6629 = vst [vmem:[%s539 + $0x180] sm:$0xff] %v6565
          %6630 = vst.msk [vmem:[%s539 + $0x188] sm:$0xff] %vm800, %v6566
          %6631 = vst [vmem:[%s539 + $0x190] sm:$0xff] %v6567
          %6632 = vst.msk [vmem:[%s539 + $0x198] sm:$0xff] %vm800, %v6568
          %6633 = vst [vmem:[%s539 + $0x1a0] sm:$0xff] %v6569
          %6634 = vst.msk [vmem:[%s539 + $0x1a8] sm:$0xff] %vm800, %v6570
          %6635 = vst [vmem:[%s539 + $0x1b0] sm:$0xff] %v6571
          %6636 = vst.msk [vmem:[%s539 + $0x1b8] sm:$0xff] %vm800, %v6572
          %6637 = vst [vmem:[%s539 + $0x1c0] sm:$0xff] %v6573
          %6638 = vst.msk [vmem:[%s539 + $0x1c8] sm:$0xff] %vm800, %v6574
          %6639 = vst [vmem:[%s539 + $0x1d0] sm:$0xff] %v6575
          %6640 = vst.msk [vmem:[%s539 + $0x1d8] sm:$0xff] %vm800, %v6576
          %6641 = vst [vmem:[%s539 + $0x1e0] sm:$0xff] %v6577
          %6642 = vst.msk [vmem:[%s539 + $0x1e8] sm:$0xff] %vm800, %v6578
          %6643 = vst [vmem:[%s539 + $0x1f0] sm:$0xff] %v6579
          %6644 = vst.msk [vmem:[%s539 + $0x1f8] sm:$0xff] %vm800, %v6580
        $region83: #{fused_bn_add_relu_conv_bn.1} parent=66 // pred_fallthru
          _
        %s6645 = smul.u32 32, %s22
        %p6646 = scmp.lt.s32.totalorder %s6645, 31
        %s6647 = scalar_select %p6646, %s6645, 31
        %s6648 = smul.addr %s6647, 2
        %s6649 = smul.addr %s6648, 8
        %s6650 = scalar_lea.vmem %s7, %s6649
        // Predicated region
        $region84: #{fused_bn_add_relu_conv_bn.1} parent=66 // pred_check
          %p6651 = pneg %p222
        $region85: #{fused_bn_add_relu_conv_bn.1} parent=66 // pred_check_branch
          %6653 = sbr.rel (%p6651) target = $region87
        $region86: #{fused_bn_add_relu_conv_bn.1} parent=66 // pred_region
          %s6654 = smul.u32 32, %s22
        $region87: #{fused_bn_add_relu_conv_bn.1} parent=66 // pred_fallthru
          _
        // Predicated region
        $region88: #{fused_bn_add_relu_conv_bn.1} parent=66 // pred_check
          %p6655 = pneg %p222
        $region89: #{fused_bn_add_relu_conv_bn.1} parent=66 // pred_check_branch
          %6657 = sbr.rel (%p6655) target = $region91
        $region90: #{fused_bn_add_relu_conv_bn.1} parent=66 // pred_region
          %s6658 = smul.u32 32, %s22
          %p6659 = scmp.lt.s32.totalorder %s6658, 31
          %s6660 = scalar_select %p6659, %s6658, 31
          %s6661 = smul.addr %s6660, 2
          %s6662 = smul.addr %s6661, 8
          %s6663 = scalar_lea.vmem %s7, %s6662
        $region91: #{fused_bn_add_relu_conv_bn.1} parent=66 // pred_fallthru
          _
      $region67: #{fused_bn_add_relu_conv_bn.1} parent=5 // pred_fallthru
        _
      %p6664 = scmp.le.s32.totalorder 2, %s13
      // Predicated region
      $region92: #{fused_bn_add_relu_conv_bn.1} parent=5 // pred_check
        %p6665 = pneg %p6664
      $region93: #{fused_bn_add_relu_conv_bn.1} parent=5 // pred_check_branch
        %6667 = sbr.rel (%p6665) target = $region95
      $region94: #{fused_bn_add_relu_conv_bn.1} parent=5 // pred_region
        %s6668 = ssub.s32 %s13, 2
      $region95: #{fused_bn_add_relu_conv_bn.1} parent=5 // pred_fallthru
        _
    $region6: #{fused_bn_add_relu_conv_bn.1} parent=1 // loop_footer
      %s17 = sadd.s32 1, %s13
    $region7: #{fused_bn_add_relu_conv_bn.1} parent=1 // loop_footer_branch
      %12 = sbr.rel target = $region3
    $region8: #{fused_bn_add_relu_conv_bn.1} parent=1 // loop_exit
      _

</llo_original>
